<compile_context>
chip_gen: v7x
topology: tpu7x:2x2x1
jax: 0.10.0
libtpu: 0.0.40
codegen_flags: <defaults>
</compile_context>

<pallas_src>
import math

import jax
import jax.numpy as jnp
from jax.experimental import pallas as pl
from jax.experimental.pallas import tpu as pltpu


# bf16 MXU inputs / bf16 stored activations; accumulation, state, softmax,
# biases stay f32.
_MXU_DTYPE = jnp.bfloat16
_ACT_DTYPE = jnp.bfloat16
_VMEM_LIMIT = 32 * 1024 * 1024  # safe on v5e/v6e/v7x


def _sigmoid(x):
    # tanh-based sigmoid: numerically robust and maps onto the EUP.
    return 0.5 * (jnp.tanh(0.5 * x) + 1.0)


def _pick_time_chunk(L):
    # Chunk length must be a multiple of 8 (sublane) or the full L.
    for c in (32, 16, 8):
        if L % c == 0:
            return c
    return L


# ----------------------------- Pallas kernels ------------------------------

def _bilstm_chunk_kernel(xf_ref, xb_ref, mf_ref, mb_ref, w_ref, bias_ref,
                         of_ref, ob_ref, h_sc, c_sc):
    """One (batch_half, time_chunk) step of the fused bidirectional LSTM.

    xf_ref/xb_ref: (Bb, tL, D) bf16 input chunks (forward chunk i, backward
                   chunk nc-1-i of the same array).
    mf_ref/mb_ref: (Bb, tL, 1) f32 validity masks for the same chunks.
    w_ref:         (2D+2H, 8H) bf16 block matrix [wih_f | wih_b | whh_f | whh_b].
    bias_ref:      (1, 8H) f32 combined biases.
    of_ref/ob_ref: (Bb, tL, H) bf16 output chunks (written in-place per step).
    h_sc/c_sc:     (Bb, 2H) f32 carried state ([fwd | bwd] halves).
    """
    tL = xf_ref.shape[1]
    H = of_ref.shape[2]

    @pl.when(pl.program_id(1) == 0)
    def _():
        h_sc[...] = jnp.zeros_like(h_sc)
        c_sc[...] = jnp.zeros_like(c_sc)

    w = w_ref[...]        # VMEM-resident across the whole grid
    bias = bias_ref[...]

    def cell(pre, c_prev):
        # TODO(synk): at production sizes make H a multiple of 128 so these
        # gate slices are lane-aligned (no masked sub-vreg selects).
        i = _sigmoid(pre[:, 0:H])
        f = _sigmoid(pre[:, H:2 * H])
        g = jnp.tanh(pre[:, 2 * H:3 * H])
        o = _sigmoid(pre[:, 3 * H:4 * H])
        c = f * c_prev + i * g
        return o * jnp.tanh(c), c

    # Static unroll within the chunk; the grid axis bounds live ranges.
    for t in range(tL):
        tb = tL - 1 - t
        h = h_sc[...]
        c = c_sc[...]
        # Single fused MXU push per timestep: input projection (both
        # directions) + recurrent projection (both directions).
        z = jnp.concatenate(
            [xf_ref[:, t, :], xb_ref[:, tb, :], h.astype(_MXU_DTYPE)], axis=-1)
        pre = jnp.dot(z, w, preferred_element_type=jnp.float32) + bias
        nh_f, nc_f = cell(pre[:, 0:4 * H], c[:, 0:H])
        nh_b, nc_b = cell(pre[:, 4 * H:8 * H], c[:, H:2 * H])

        vf = mf_ref[:, t, :] > 0.0                     # (Bb, 1)
        vb = mb_ref[:, tb, :] > 0.0
        # Direct writes into the output blocks (no scratch + concat pass).
        of_ref[:, t, :] = jnp.where(vf, nh_f, 0.0).astype(of_ref.dtype)
        ob_ref[:, tb, :] = jnp.where(vb, nh_b, 0.0).astype(ob_ref.dtype)
        # pack_padded_sequence semantics: freeze state at padded positions.
        h_sc[:, 0:H] = jnp.where(vf, nh_f, h[:, 0:H])
        h_sc[:, H:2 * H] = jnp.where(vb, nh_b, h[:, H:2 * H])
        c_sc[:, 0:H] = jnp.where(vf, nc_f, c[:, 0:H])
        c_sc[:, H:2 * H] = jnp.where(vb, nc_b, c[:, H:2 * H])


def _masked_softmax_last(logits, mask_row):
    # mask_row broadcastable to logits; 1.0 for valid key positions.
    logits = logits + (mask_row - 1.0) * 1e9
    m = jnp.max(logits, axis=-1, keepdims=True)
    e = jnp.exp(logits - m)
    return e / jnp.sum(e, axis=-1, keepdims=True)


def _soft_attention_kernel(pf_ref, pb_ref, hf_ref, hb_ref,
                           pmc_ref, pmr_ref, hmc_ref, hmr_ref,
                           ap_ref, ah_ref):
    """Soft alignment attention, one batch element per program."""
    p = jnp.concatenate([pf_ref[0], pb_ref[0]], axis=-1)     # (Lp, 2H) bf16
    h = jnp.concatenate([hf_ref[0], hb_ref[0]], axis=-1)     # (Lh, 2H) bf16
    # One score matmul; the reverse orientation reuses it via a small XLU
    # transpose of the (Lp, Lh) tile instead of a second MXU pass.
    sim = jnp.einsum('pd,kd->pk', p, h, preferred_element_type=jnp.float32)
    attn_ph = _masked_softmax_last(sim, hmr_ref[0])          # (Lp, Lh)
    attn_hp = _masked_softmax_last(sim.T, pmr_ref[0])        # (Lh, Lp)
    ap = jnp.einsum('pk,kd->pd', attn_ph.astype(h.dtype), h,
                    preferred_element_type=jnp.float32)
    ah = jnp.einsum('kp,pd->kd', attn_hp.astype(p.dtype), p,
                    preferred_element_type=jnp.float32)
    ap_ref[0] = (ap * pmc_ref[0]).astype(ap_ref.dtype)
    ah_ref[0] = (ah * hmc_ref[0]).astype(ah_ref.dtype)


def _enhance_project_kernel(af_ref, ab_ref, b_ref, w13_ref, w23_ref, w4_ref,
                            bias_ref, o_ref):
    """relu([a, b, a-b, a*b] @ W + bias) without materializing the concat:
       == relu(a @ (W1+W3) + b @ (W2-W3) + (a*b) @ W4 + bias)."""
    a = jnp.concatenate([af_ref[0], ab_ref[0]], axis=-1)     # (L, 2H) bf16
    b = b_ref[0]                                             # (L, 2H) bf16
    ab = (a.astype(jnp.float32) * b.astype(jnp.float32)).astype(_MXU_DTYPE)
    y = (jnp.dot(a, w13_ref[...], preferred_element_type=jnp.float32)
         + jnp.dot(b, w23_ref[...], preferred_element_type=jnp.float32)
         + jnp.dot(ab, w4_ref[...], preferred_element_type=jnp.float32)
         + bias_ref[...])
    o_ref[0] = jnp.maximum(y, 0.0).astype(o_ref.dtype)


def _pool_kernel(xf_ref, xb_ref, m_ref, o_ref):
    """Masked max-pool ++ masked mean-pool over time, one batch element."""
    x = jnp.concatenate([xf_ref[0], xb_ref[0]], axis=-1).astype(jnp.float32)
    m = m_ref[0]                                             # (L, 1)
    xmax = jnp.max(jnp.where(m > 0.0, x, jnp.float32(-1e30)),
                   axis=0, keepdims=True)                    # (1, 2H)
    xsum = jnp.sum(x * m, axis=0, keepdims=True)
    cnt = jnp.maximum(jnp.sum(m, axis=0, keepdims=True), 1.0)
    o_ref[0] = jnp.concatenate([xmax, xsum / cnt], axis=-1).astype(o_ref.dtype)


def _classifier_kernel(pp_ref, ph_ref, w1_ref, b1_ref, w2_ref, b2_ref, o_ref):
    """Fused Linear -> Tanh -> Linear (dropouts are identity in eval)."""
    x = jnp.concatenate([pp_ref[...], ph_ref[...]], axis=-1).astype(_MXU_DTYPE)
    hid = jnp.tanh(jnp.dot(x, w1_ref[...], preferred_element_type=jnp.float32)
                   + b1_ref[...])
    o_ref[...] = (jnp.dot(hid.astype(_MXU_DTYPE), w2_ref[...],
                          preferred_element_type=jnp.float32)
                  + b2_ref[...]).astype(o_ref.dtype)


# ------------------------------ JAX wrappers --------------------------------

def bilstm_encode(x_bld, mask_bl1, params):
    """(B, L, D) -> forward/backward hidden states, each (B, L, H) bf16."""
    B, L, D = x_bld.shape
    H = params['w_step'].shape[1] // 8
    tL = _pick_time_chunk(L)
    nc = L // tL
    nb = 2 if B % 2 == 0 else 1          # batch halves -> v7x megacore
    Bb = B // nb

    x = x_bld.astype(_MXU_DTYPE)
    data_f = lambda b, i: (b, i, 0)
    data_b = lambda b, i: (b, nc - 1 - i, 0)
    const2 = lambda b, i: (0, 0)

    out_f, out_b = pl.pallas_call(
        _bilstm_chunk_kernel,
        grid_spec=pltpu.PrefetchScalarGridSpec(
            num_scalar_prefetch=0,
            grid=(nb, nc),
            in_specs=[pl.BlockSpec((Bb, tL, D), data_f),
                      pl.BlockSpec((Bb, tL, D), data_b),
                      pl.BlockSpec((Bb, tL, 1), data_f),
                      pl.BlockSpec((Bb, tL, 1), data_b),
                      pl.BlockSpec(params['w_step'].shape, const2),
                      pl.BlockSpec(params['bias_cat'].shape, const2)],
            out_specs=[pl.BlockSpec((Bb, tL, H), data_f),
                       pl.BlockSpec((Bb, tL, H), data_b)],
            scratch_shapes=[pltpu.VMEM((Bb, 2 * H), jnp.float32),
                            pltpu.VMEM((Bb, 2 * H), jnp.float32)]),
        out_shape=(jax.ShapeDtypeStruct((B, L, H), _ACT_DTYPE),
                   jax.ShapeDtypeStruct((B, L, H), _ACT_DTYPE)),
        compiler_params=pltpu.CompilerParams(
            dimension_semantics=("parallel", "arbitrary"),
            vmem_limit_bytes=_VMEM_LIMIT),
    )(x, x, mask_bl1, mask_bl1, params['w_step'], params['bias_cat'])
    return out_f, out_b


def soft_attention(enc_pf, enc_pb, enc_hf, enc_hb, pmask, hmask):
    B, Lp, H = enc_pf.shape
    Lh = enc_hf.shape[1]
    pmc = pmask[:, :, None]
    pmr = pmask[:, None, :]
    hmc = hmask[:, :, None]
    hmr = hmask[:, None, :]
    row3 = lambda b: (b, 0, 0)
    return pl.pallas_call(
        _soft_attention_kernel,
        grid_spec=pltpu.PrefetchScalarGridSpec(
            num_scalar_prefetch=0,
            grid=(B,),
            in_specs=[pl.BlockSpec((1, Lp, H), row3),
                      pl.BlockSpec((1, Lp, H), row3),
                      pl.BlockSpec((1, Lh, H), row3),
                      pl.BlockSpec((1, Lh, H), row3),
                      pl.BlockSpec((1, Lp, 1), row3),
                      pl.BlockSpec((1, 1, Lp), row3),
                      pl.BlockSpec((1, Lh, 1), row3),
                      pl.BlockSpec((1, 1, Lh), row3)],
            out_specs=[pl.BlockSpec((1, Lp, 2 * H), row3),
                       pl.BlockSpec((1, Lh, 2 * H), row3)]),
        out_shape=(jax.ShapeDtypeStruct((B, Lp, 2 * H), _ACT_DTYPE),
                   jax.ShapeDtypeStruct((B, Lh, 2 * H), _ACT_DTYPE)),
        compiler_params=pltpu.CompilerParams(
            dimension_semantics=("parallel",),
            vmem_limit_bytes=_VMEM_LIMIT),
    )(enc_pf, enc_pb, enc_hf, enc_hb, pmc, pmr, hmc, hmr)


def enhance_project(enc_f, enc_b, att, proj):
    B, L, H = enc_f.shape
    Hp = proj['w13'].shape[1]
    row3 = lambda b: (b, 0, 0)
    const2 = lambda b: (0, 0)
    return pl.pallas_call(
        _enhance_project_kernel,
        grid_spec=pltpu.PrefetchScalarGridSpec(
            num_scalar_prefetch=0,
            grid=(B,),
            in_specs=[pl.BlockSpec((1, L, H), row3),
                      pl.BlockSpec((1, L, H), row3),
                      pl.BlockSpec((1, L, 2 * H), row3),
                      pl.BlockSpec(proj['w13'].shape, const2),
                      pl.BlockSpec(proj['w23'].shape, const2),
                      pl.BlockSpec(proj['w4'].shape, const2),
                      pl.BlockSpec(proj['b'].shape, const2)],
            out_specs=pl.BlockSpec((1, L, Hp), row3)),
        out_shape=jax.ShapeDtypeStruct((B, L, Hp), _ACT_DTYPE),
        compiler_params=pltpu.CompilerParams(
            dimension_semantics=("parallel",),
            vmem_limit_bytes=_VMEM_LIMIT),
    )(enc_f, enc_b, att, proj['w13'], proj['w23'], proj['w4'], proj['b'])


def word_sentence_pool(xf, xb, mask_bl1):
    # TODO(synk): WordSentencePooling's exact definition is not given;
    # implemented as masked max-pool ++ masked mean-pool over time.
    B, L, H = xf.shape
    row3 = lambda b: (b, 0, 0)
    pooled = pl.pallas_call(
        _pool_kernel,
        grid_spec=pltpu.PrefetchScalarGridSpec(
            num_scalar_prefetch=0,
            grid=(B,),
            in_specs=[pl.BlockSpec((1, L, H), row3),
                      pl.BlockSpec((1, L, H), row3),
                      pl.BlockSpec((1, L, 1), row3)],
            out_specs=pl.BlockSpec((1, 1, 4 * H), row3)),
        out_shape=jax.ShapeDtypeStruct((B, 1, 4 * H), jnp.float32),
        compiler_params=pltpu.CompilerParams(
            dimension_semantics=("parallel",),
            vmem_limit_bytes=_VMEM_LIMIT),
    )(xf, xb, mask_bl1)
    return pooled.reshape(B, 4 * H)


def classify(pooled_p, pooled_h, p1, p2):
    B = pooled_p.shape[0]
    C = p2['w_t'].shape[1]
    return pl.pallas_call(
        _classifier_kernel,
        out_shape=jax.ShapeDtypeStruct((B, C), jnp.float32),
    )(pooled_p, pooled_h, p1['w_t'], p1['b'], p2['w_t'], p2['b'])


# ------------------------ deterministic parameter init ----------------------

def _xavier_uniform(key, shape):
    fan_out, fan_in = shape
    bound = math.sqrt(6.0 / (fan_in + fan_out))
    return jax.random.uniform(key, shape, jnp.float32, -bound, bound)


def _orthogonal(key, shape):
    rows, cols = shape
    a = jax.random.normal(key, (max(rows, cols), min(rows, cols)), jnp.float32)
    q, r = jnp.linalg.qr(a)
    q = q * jnp.sign(jnp.diag(r))[None, :]
    return q if rows >= cols else jnp.transpose(q)


def _init_lstm_dir(key, input_size, hidden):
    k1, k2 = jax.random.split(key)
    w_ih = _xavier_uniform(k1, (4 * hidden, input_size))    # PyTorch (4H, in)
    w_hh = _orthogonal(k2, (4 * hidden, hidden))             # PyTorch (4H, H)
    bias = jnp.zeros((4 * hidden,), jnp.float32).at[hidden:2 * hidden].set(1.0)
    return jnp.transpose(w_ih), jnp.transpose(w_hh), bias    # (in,4H),(H,4H)


def _init_bilstm(key, input_size, hidden):
    kf, kb = jax.random.split(key)
    wih_f, whh_f, b_f = _init_lstm_dir(kf, input_size, hidden)
    wih_b, whh_b, b_b = _init_lstm_dir(kb, input_size, hidden)
    D, H = input_size, hidden
    # Single per-step block-matrix weight so the whole timestep (input + fwd
    # + bwd recurrent projections) is one MXU push; precomputed once here.
    w_step = jnp.zeros((2 * D + 2 * H, 8 * H), jnp.float32)
    w_step = w_step.at[0:D, 0:4 * H].set(wih_f)
    w_step = w_step.at[D:2 * D, 4 * H:8 * H].set(wih_b)
    w_step = w_step.at[2 * D:2 * D + H, 0:4 * H].set(whh_f)
    w_step = w_step.at[2 * D + H:2 * D + 2 * H, 4 * H:8 * H].set(whh_b)
    bias_cat = jnp.concatenate([b_f, b_b]).reshape(1, 8 * H)
    return dict(w_step=w_step.astype(_MXU_DTYPE), bias_cat=bias_cat)


def _init_projection(key, hidden):
    H2 = 2 * hidden
    w_t = jnp.transpose(_xavier_uniform(key, (hidden, 4 * H2)))   # (8H, H)
    # relu([a,b,a-b,a*b] @ W) == relu(a@(W1+W3) + b@(W2-W3) + (a*b)@W4):
    # folded once at init (not per forward call).
    return dict(w13=(w_t[0:H2] + w_t[2 * H2:3 * H2]).astype(_MXU_DTYPE),
                w23=(w_t[H2:2 * H2] - w_t[2 * H2:3 * H2]).astype(_MXU_DTYPE),
                w4=w_t[3 * H2:4 * H2].astype(_MXU_DTYPE),
                b=jnp.zeros((1, hidden), jnp.float32))


def _init_linear(key, in_dim, out_dim):
    w = _xavier_uniform(key, (out_dim, in_dim))               # PyTorch (out,in)
    return dict(w_t=jnp.transpose(w).astype(_MXU_DTYPE),
                b=jnp.zeros((1, out_dim), jnp.float32))


def init_drlstm_params(key, vocab, embedding_dim, hidden, num_classes):
    # TODO(synk): the real embedding_layer is an external (BERT-like) module;
    # replaced by a deterministic lookup table with the same embedding_dim.
    ks = jax.random.split(key, 8)
    return dict(
        embedding=jax.random.normal(ks[0], (vocab, embedding_dim),
                                    jnp.float32) * 0.02,
        encoder1=_init_bilstm(ks[1], embedding_dim, hidden),
        encoder2=_init_bilstm(ks[2], embedding_dim, hidden),
        projection=_init_projection(ks[3], hidden),
        encoder3=_init_bilstm(ks[4], hidden, hidden),
        encoder4=_init_bilstm(ks[5], hidden, hidden),
        cls1=_init_linear(ks[6], 2 * (2 * 2 * hidden), hidden),  # pool dim 8H
        cls2=_init_linear(ks[7], hidden, num_classes),
    )


# --------------------------------- forward ----------------------------------

def drlstm_forward(params, premises, premises_lengths, hypotheses,
                   hypotheses_lengths):
    B, Lp = premises.shape
    Lh = hypotheses.shape[1]
    pmask = (jnp.arange(Lp)[None, :] < premises_lengths[:, None]
             ).astype(jnp.float32)
    hmask = (jnp.arange(Lh)[None, :] < hypotheses_lengths[:, None]
             ).astype(jnp.float32)
    pmask_c = pmask[:, :, None]
    hmask_c = hmask[:, :, None]

    # Embedding lookup (glue; gather has no clean Pallas win at these sizes).
    emb_p = jnp.take(params['embedding'], premises, axis=0).astype(_MXU_DTYPE)
    emb_h = jnp.take(params['embedding'], hypotheses, axis=0).astype(_MXU_DTYPE)

    # Input encoding (BiLSTM 1 / 2), pack_padded_sequence-style masking.
    enc_pf, enc_pb = bilstm_encode(emb_p, pmask_c, params['encoder1'])
    enc_hf, enc_hb = bilstm_encode(emb_h, hmask_c, params['encoder2'])

    # Soft alignment attention (one batch element per program, 'parallel').
    att_p, att_h = soft_attention(enc_pf, enc_pb, enc_hf, enc_hb, pmask, hmask)

    # Enhancement [a; b; a-b; a*b] + projection (Dropout=id, Linear, ReLU),
    # fused; the (B, L, 8H) enhancement tensor never exists.
    proj_p = enhance_project(enc_pf, enc_pb, att_p, params['projection'])
    proj_h = enhance_project(enc_hf, enc_hb, att_h, params['projection'])

    # Composition (BiLSTM 3 / 4).
    comp_pf, comp_pb = bilstm_encode(proj_p, pmask_c, params['encoder3'])
    comp_hf, comp_hb = bilstm_encode(proj_h, hmask_c, params['encoder4'])

    # Pooling: ('max', 'avg') for premises and hypotheses.
    pooled_p = word_sentence_pool(comp_pf, comp_pb, pmask_c)   # (B, 4H)
    pooled_h = word_sentence_pool(comp_hf, comp_hb, hmask_c)   # (B, 4H)

    # Classification head: Linear -> Tanh -> Linear (dropouts identity).
    return classify(pooled_p, pooled_h, params['cls1'], params['cls2'])


# ----------------------------------- main ------------------------------------

if __name__ == "__main__":
    B, L, E, H, V, C = 2, 8, 32, 32, 50, 3
    key = jax.random.PRNGKey(0)
    kp, kh, kparams = jax.random.split(key, 3)
    params = init_drlstm_params(kparams, V, E, H, C)

    premises = jax.random.randint(kp, (B, L), 1, V, dtype=jnp.int32)
    hypotheses = jax.random.randint(kh, (B, L), 1, V, dtype=jnp.int32)
    premises_lengths = jnp.array([L, L - 2], dtype=jnp.int32)
    hypotheses_lengths = jnp.array([L, L - 3], dtype=jnp.int32)

    fwd = jax.jit(drlstm_forward)
    logits = fwd(params, premises, premises_lengths, hypotheses,
                 hypotheses_lengths)
    jax.block_until_ready(logits)
    assert logits.shape == (B, C) and logits.dtype == jnp.float32
    print("KERNEL_OK")
</pallas_src>

<mosaic_0001>
module attributes {stable_mosaic.version = 11 : i64} {
  func.func @_soft_attention_kernel(%arg0: i32, %arg1: memref<1x8x32xbf16, #tpu.memory_space<vmem>>, %arg2: memref<1x8x32xbf16, #tpu.memory_space<vmem>>, %arg3: memref<1x8x32xbf16, #tpu.memory_space<vmem>>, %arg4: memref<1x8x32xbf16, #tpu.memory_space<vmem>>, %arg5: memref<1x8x1xf32, #tpu.memory_space<vmem>>, %arg6: memref<1x1x8xf32, #tpu.memory_space<vmem>>, %arg7: memref<1x8x1xf32, #tpu.memory_space<vmem>>, %arg8: memref<1x1x8xf32, #tpu.memory_space<vmem>>, %arg9: memref<1x8x64xbf16, #tpu.memory_space<vmem>>, %arg10: memref<1x8x64xbf16, #tpu.memory_space<vmem>>) attributes {dimension_semantics = [#tpu.dimension_semantics<parallel>], iteration_bounds = array<i64: 2>, scalar_prefetch = 0 : i64, scratch_operands = 0 : i64, tpu.core_type = #tpu.core_type<tc>, window_params = [{transform_indices = @transform_0, window_bounds = array<i64: 1, 8, 32>}, {transform_indices = @transform_1, window_bounds = array<i64: 1, 8, 32>}, {transform_indices = @transform_2, window_bounds = array<i64: 1, 8, 32>}, {transform_indices = @transform_3, window_bounds = array<i64: 1, 8, 32>}, {transform_indices = @transform_4, window_bounds = array<i64: 1, 8, 1>}, {transform_indices = @transform_5, window_bounds = array<i64: 1, 1, 8>}, {transform_indices = @transform_6, window_bounds = array<i64: 1, 8, 1>}, {transform_indices = @transform_7, window_bounds = array<i64: 1, 1, 8>}, {transform_indices = @transform_8, window_bounds = array<i64: 1, 8, 64>}, {transform_indices = @transform_9, window_bounds = array<i64: 1, 8, 64>}]} {
    %c0 = arith.constant 0 : index
    %c0_0 = arith.constant 0 : index
    %c0_1 = arith.constant 0 : index
    %0 = vector.load %arg1[%c0, %c0_0, %c0_1] : memref<1x8x32xbf16, #tpu.memory_space<vmem>>, vector<1x8x32xbf16>
    %1 = vector.shape_cast %0 : vector<1x8x32xbf16> to vector<8x32xbf16>
    %c0_2 = arith.constant 0 : index
    %c0_3 = arith.constant 0 : index
    %c0_4 = arith.constant 0 : index
    %2 = vector.load %arg2[%c0_2, %c0_3, %c0_4] : memref<1x8x32xbf16, #tpu.memory_space<vmem>>, vector<1x8x32xbf16>
    %3 = vector.shape_cast %2 : vector<1x8x32xbf16> to vector<8x32xbf16>
    %4 = tpu.concatenate %1, %3 in 1 : vector<8x32xbf16>, vector<8x32xbf16> -> vector<8x64xbf16>
    %c0_5 = arith.constant 0 : index
    %c0_6 = arith.constant 0 : index
    %c0_7 = arith.constant 0 : index
    %5 = vector.load %arg3[%c0_5, %c0_6, %c0_7] : memref<1x8x32xbf16, #tpu.memory_space<vmem>>, vector<1x8x32xbf16>
    %6 = vector.shape_cast %5 : vector<1x8x32xbf16> to vector<8x32xbf16>
    %c0_8 = arith.constant 0 : index
    %c0_9 = arith.constant 0 : index
    %c0_10 = arith.constant 0 : index
    %7 = vector.load %arg4[%c0_8, %c0_9, %c0_10] : memref<1x8x32xbf16, #tpu.memory_space<vmem>>, vector<1x8x32xbf16>
    %8 = vector.shape_cast %7 : vector<1x8x32xbf16> to vector<8x32xbf16>
    %9 = tpu.concatenate %6, %8 in 1 : vector<8x32xbf16>, vector<8x32xbf16> -> vector<8x64xbf16>
    "tpu.trace_start"() <{level = 10 : i32, message = "pd,kd->pk"}> : () -> ()
    %cst = arith.constant dense<0.000000e+00> : vector<8x8xf32>
    %10 = tpu.matmul %4, %9, %cst {dimension_numbers = #tpu.dot_dimension_numbers<[1], [1], [0], [0], [0, 0, 1, 0], [], []>} : vector<8x64xbf16>, vector<8x64xbf16>, vector<8x8xf32> -> vector<8x8xf32>
    "tpu.trace_stop"() : () -> ()
    %c0_11 = arith.constant 0 : index
    %c0_12 = arith.constant 0 : index
    %c0_13 = arith.constant 0 : index
    %11 = vector.load %arg8[%c0_11, %c0_12, %c0_13] : memref<1x1x8xf32, #tpu.memory_space<vmem>>, vector<1x1x8xf32>
    %12 = vector.shape_cast %11 : vector<1x1x8xf32> to vector<1x8xf32>
    %cst_14 = arith.constant 1.000000e+00 : f32
    %13 = vector.broadcast %cst_14 : f32 to vector<1x8xf32>
    %14 = arith.subf %12, %13 : vector<1x8xf32>
    %cst_15 = arith.constant 1.000000e+09 : f32
    %15 = vector.broadcast %cst_15 : f32 to vector<1x8xf32>
    %16 = arith.mulf %14, %15 : vector<1x8xf32>
    %17 = vector.broadcast %16 : vector<1x8xf32> to vector<8x8xf32>
    %18 = arith.addf %10, %17 : vector<8x8xf32>
    %cst_16 = arith.constant dense<0xFF800000> : vector<8xf32>
    %19 = vector.multi_reduction <maximumf>, %18, %cst_16 [1] : vector<8x8xf32> to vector<8xf32>
    %20 = vector.shape_cast %19 : vector<8xf32> to vector<8x1xf32>
    %21 = vector.broadcast %20 : vector<8x1xf32> to vector<8x8xf32>
    %22 = arith.subf %18, %21 : vector<8x8xf32>
    %23 = math.exp %22 : vector<8x8xf32>
    %cst_17 = arith.constant dense<0.000000e+00> : vector<8xf32>
    %24 = vector.multi_reduction <add>, %23, %cst_17 [1] : vector<8x8xf32> to vector<8xf32>
    %25 = vector.shape_cast %24 : vector<8xf32> to vector<8x1xf32>
    %26 = vector.broadcast %25 : vector<8x1xf32> to vector<8x8xf32>
    %27 = arith.divf %23, %26 : vector<8x8xf32>
    %28 = tpu.transpose %10, [1, 0] : vector<8x8xf32> -> vector<8x8xf32>
    %c0_18 = arith.constant 0 : index
    %c0_19 = arith.constant 0 : index
    %c0_20 = arith.constant 0 : index
    %29 = vector.load %arg6[%c0_18, %c0_19, %c0_20] : memref<1x1x8xf32, #tpu.memory_space<vmem>>, vector<1x1x8xf32>
    %30 = vector.shape_cast %29 : vector<1x1x8xf32> to vector<1x8xf32>
    %cst_21 = arith.constant 1.000000e+00 : f32
    %31 = vector.broadcast %cst_21 : f32 to vector<1x8xf32>
    %32 = arith.subf %30, %31 : vector<1x8xf32>
    %cst_22 = arith.constant 1.000000e+09 : f32
    %33 = vector.broadcast %cst_22 : f32 to vector<1x8xf32>
    %34 = arith.mulf %32, %33 : vector<1x8xf32>
    %35 = vector.broadcast %34 : vector<1x8xf32> to vector<8x8xf32>
    %36 = arith.addf %28, %35 : vector<8x8xf32>
    %cst_23 = arith.constant dense<0xFF800000> : vector<8xf32>
    %37 = vector.multi_reduction <maximumf>, %36, %cst_23 [1] : vector<8x8xf32> to vector<8xf32>
    %38 = vector.shape_cast %37 : vector<8xf32> to vector<8x1xf32>
    %39 = vector.broadcast %38 : vector<8x1xf32> to vector<8x8xf32>
    %40 = arith.subf %36, %39 : vector<8x8xf32>
    %41 = math.exp %40 : vector<8x8xf32>
    %cst_24 = arith.constant dense<0.000000e+00> : vector<8xf32>
    %42 = vector.multi_reduction <add>, %41, %cst_24 [1] : vector<8x8xf32> to vector<8xf32>
    %43 = vector.shape_cast %42 : vector<8xf32> to vector<8x1xf32>
    %44 = vector.broadcast %43 : vector<8x1xf32> to vector<8x8xf32>
    %45 = arith.divf %41, %44 : vector<8x8xf32>
    %46 = arith.truncf %27 : vector<8x8xf32> to vector<8x8xbf16>
    "tpu.trace_start"() <{level = 10 : i32, message = "pk,kd->pd"}> : () -> ()
    %cst_25 = arith.constant dense<0.000000e+00> : vector<8x64xf32>
    %47 = tpu.matmul %46, %9, %cst_25 {dimension_numbers = #tpu.dot_dimension_numbers<[1], [0], [0], [1], [0, 0, 1, 1], [], []>} : vector<8x8xbf16>, vector<8x64xbf16>, vector<8x64xf32> -> vector<8x64xf32>
    "tpu.trace_stop"() : () -> ()
    %48 = arith.truncf %45 : vector<8x8xf32> to vector<8x8xbf16>
    "tpu.trace_start"() <{level = 10 : i32, message = "kp,pd->kd"}> : () -> ()
    %cst_26 = arith.constant dense<0.000000e+00> : vector<8x64xf32>
    %49 = tpu.matmul %48, %4, %cst_26 {dimension_numbers = #tpu.dot_dimension_numbers<[1], [0], [0], [1], [0, 0, 1, 1], [], []>} : vector<8x8xbf16>, vector<8x64xbf16>, vector<8x64xf32> -> vector<8x64xf32>
    "tpu.trace_stop"() : () -> ()
    %c0_27 = arith.constant 0 : index
    %c0_28 = arith.constant 0 : index
    %c0_29 = arith.constant 0 : index
    %50 = vector.load %arg5[%c0_27, %c0_28, %c0_29] : memref<1x8x1xf32, #tpu.memory_space<vmem>>, vector<1x8x1xf32>
    %51 = vector.shape_cast %50 : vector<1x8x1xf32> to vector<8x1xf32>
    %52 = vector.broadcast %51 : vector<8x1xf32> to vector<8x64xf32>
    %53 = arith.mulf %47, %52 : vector<8x64xf32>
    %54 = arith.truncf %53 : vector<8x64xf32> to vector<8x64xbf16>
    %c0_30 = arith.constant 0 : index
    %c0_31 = arith.constant 0 : index
    %c0_32 = arith.constant 0 : index
    %55 = vector.load %arg9[%c0_30, %c0_31, %c0_32] : memref<1x8x64xbf16, #tpu.memory_space<vmem>>, vector<1x8x64xbf16>
    %56 = vector.shape_cast %55 : vector<1x8x64xbf16> to vector<8x64xbf16>
    %57 = vector.shape_cast %54 : vector<8x64xbf16> to vector<1x8x64xbf16>
    tpu.vector_store %arg9[%c0_30, %c0_31, %c0_32], %57 {strides = array<i32>} : memref<1x8x64xbf16, #tpu.memory_space<vmem>>, vector<1x8x64xbf16>,
    %c0_33 = arith.constant 0 : index
    %c0_34 = arith.constant 0 : index
    %c0_35 = arith.constant 0 : index
    %58 = vector.load %arg7[%c0_33, %c0_34, %c0_35] : memref<1x8x1xf32, #tpu.memory_space<vmem>>, vector<1x8x1xf32>
    %59 = vector.shape_cast %58 : vector<1x8x1xf32> to vector<8x1xf32>
    %60 = vector.broadcast %59 : vector<8x1xf32> to vector<8x64xf32>
    %61 = arith.mulf %49, %60 : vector<8x64xf32>
    %62 = arith.truncf %61 : vector<8x64xf32> to vector<8x64xbf16>
    %c0_36 = arith.constant 0 : index
    %c0_37 = arith.constant 0 : index
    %c0_38 = arith.constant 0 : index
    %63 = vector.load %arg10[%c0_36, %c0_37, %c0_38] : memref<1x8x64xbf16, #tpu.memory_space<vmem>>, vector<1x8x64xbf16>
    %64 = vector.shape_cast %63 : vector<1x8x64xbf16> to vector<8x64xbf16>
    %65 = vector.shape_cast %62 : vector<8x64xbf16> to vector<1x8x64xbf16>
    tpu.vector_store %arg10[%c0_36, %c0_37, %c0_38], %65 {strides = array<i32>} : memref<1x8x64xbf16, #tpu.memory_space<vmem>>, vector<1x8x64xbf16>,
    return
  }
  func.func @transform_0(%arg0: i32) -> (i32, i32, i32) {
    %c0_i32 = arith.constant 0 : i32
    %c0_i32_0 = arith.constant 0 : i32
    %c0_i32_1 = arith.constant 0 : i32
    return %arg0, %c0_i32, %c0_i32_0 : i32, i32, i32
  }
  func.func @transform_1(%arg0: i32) -> (i32, i32, i32) {
    %c0_i32 = arith.constant 0 : i32
    %c0_i32_0 = arith.constant 0 : i32
    %c0_i32_1 = arith.constant 0 : i32
    return %arg0, %c0_i32, %c0_i32_0 : i32, i32, i32
  }
  func.func @transform_2(%arg0: i32) -> (i32, i32, i32) {
    %c0_i32 = arith.constant 0 : i32
    %c0_i32_0 = arith.constant 0 : i32
    %c0_i32_1 = arith.constant 0 : i32
    return %arg0, %c0_i32, %c0_i32_0 : i32, i32, i32
  }
  func.func @transform_3(%arg0: i32) -> (i32, i32, i32) {
    %c0_i32 = arith.constant 0 : i32
    %c0_i32_0 = arith.constant 0 : i32
    %c0_i32_1 = arith.constant 0 : i32
    return %arg0, %c0_i32, %c0_i32_0 : i32, i32, i32
  }
  func.func @transform_4(%arg0: i32) -> (i32, i32, i32) {
    %c0_i32 = arith.constant 0 : i32
    %c0_i32_0 = arith.constant 0 : i32
    %c0_i32_1 = arith.constant 0 : i32
    return %arg0, %c0_i32, %c0_i32_0 : i32, i32, i32
  }
  func.func @transform_5(%arg0: i32) -> (i32, i32, i32) {
    %c0_i32 = arith.constant 0 : i32
    %c0_i32_0 = arith.constant 0 : i32
    %c0_i32_1 = arith.constant 0 : i32
    return %arg0, %c0_i32, %c0_i32_0 : i32, i32, i32
  }
  func.func @transform_6(%arg0: i32) -> (i32, i32, i32) {
    %c0_i32 = arith.constant 0 : i32
    %c0_i32_0 = arith.constant 0 : i32
    %c0_i32_1 = arith.constant 0 : i32
    return %arg0, %c0_i32, %c0_i32_0 : i32, i32, i32
  }
  func.func @transform_7(%arg0: i32) -> (i32, i32, i32) {
    %c0_i32 = arith.constant 0 : i32
    %c0_i32_0 = arith.constant 0 : i32
    %c0_i32_1 = arith.constant 0 : i32
    return %arg0, %c0_i32, %c0_i32_0 : i32, i32, i32
  }
  func.func @transform_8(%arg0: i32) -> (i32, i32, i32) {
    %c0_i32 = arith.constant 0 : i32
    %c0_i32_0 = arith.constant 0 : i32
    %c0_i32_1 = arith.constant 0 : i32
    return %arg0, %c0_i32, %c0_i32_0 : i32, i32, i32
  }
  func.func @transform_9(%arg0: i32) -> (i32, i32, i32) {
    %c0_i32 = arith.constant 0 : i32
    %c0_i32_0 = arith.constant 0 : i32
    %c0_i32_1 = arith.constant 0 : i32
    return %arg0, %c0_i32, %c0_i32_0 : i32, i32, i32
  }
}

module attributes {stable_mosaic.version = 11 : i64} {
  func.func @_enhance_project_kernel(%arg0: i32, %arg1: memref<1x8x32xbf16, #tpu.memory_space<vmem>>, %arg2: memref<1x8x32xbf16, #tpu.memory_space<vmem>>, %arg3: memref<1x8x64xbf16, #tpu.memory_space<vmem>>, %arg4: memref<64x32xbf16, #tpu.memory_space<vmem>>, %arg5: memref<64x32xbf16, #tpu.memory_space<vmem>>, %arg6: memref<64x32xbf16, #tpu.memory_space<vmem>>, %arg7: memref<1x32xf32, #tpu.memory_space<vmem>>, %arg8: memref<1x8x32xbf16, #tpu.memory_space<vmem>>) attributes {dimension_semantics = [#tpu.dimension_semantics<parallel>], iteration_bounds = array<i64: 2>, scalar_prefetch = 0 : i64, scratch_operands = 0 : i64, tpu.core_type = #tpu.core_type<tc>, window_params = [{transform_indices = @transform_0, window_bounds = array<i64: 1, 8, 32>}, {transform_indices = @transform_1, window_bounds = array<i64: 1, 8, 32>}, {transform_indices = @transform_2, window_bounds = array<i64: 1, 8, 64>}, {pipeline_mode = #tpu.pipeline_mode<synchronous>, transform_indices = @transform_3, window_bounds = array<i64: 64, 32>}, {pipeline_mode = #tpu.pipeline_mode<synchronous>, transform_indices = @transform_4, window_bounds = array<i64: 64, 32>}, {pipeline_mode = #tpu.pipeline_mode<synchronous>, transform_indices = @transform_5, window_bounds = array<i64: 64, 32>}, {pipeline_mode = #tpu.pipeline_mode<synchronous>, transform_indices = @transform_6, window_bounds = array<i64: 1, 32>}, {transform_indices = @transform_7, window_bounds = array<i64: 1, 8, 32>}]} {
    %c0 = arith.constant 0 : index
    %c0_0 = arith.constant 0 : index
    %c0_1 = arith.constant 0 : index
    %0 = vector.load %arg1[%c0, %c0_0, %c0_1] : memref<1x8x32xbf16, #tpu.memory_space<vmem>>, vector<1x8x32xbf16>
    %1 = vector.shape_cast %0 : vector<1x8x32xbf16> to vector<8x32xbf16>
    %c0_2 = arith.constant 0 : index
    %c0_3 = arith.constant 0 : index
    %c0_4 = arith.constant 0 : index
    %2 = vector.load %arg2[%c0_2, %c0_3, %c0_4] : memref<1x8x32xbf16, #tpu.memory_space<vmem>>, vector<1x8x32xbf16>
    %3 = vector.shape_cast %2 : vector<1x8x32xbf16> to vector<8x32xbf16>
    %4 = tpu.concatenate %1, %3 in 1 : vector<8x32xbf16>, vector<8x32xbf16> -> vector<8x64xbf16>
    %c0_5 = arith.constant 0 : index
    %c0_6 = arith.constant 0 : index
    %c0_7 = arith.constant 0 : index
    %5 = vector.load %arg3[%c0_5, %c0_6, %c0_7] : memref<1x8x64xbf16, #tpu.memory_space<vmem>>, vector<1x8x64xbf16>
    %6 = vector.shape_cast %5 : vector<1x8x64xbf16> to vector<8x64xbf16>
    %7 = arith.extf %4 : vector<8x64xbf16> to vector<8x64xf32>
    %8 = arith.extf %6 : vector<8x64xbf16> to vector<8x64xf32>
    %9 = arith.mulf %7, %8 : vector<8x64xf32>
    %10 = arith.truncf %9 : vector<8x64xf32> to vector<8x64xbf16>
    %c0_8 = arith.constant 0 : index
    %c0_9 = arith.constant 0 : index
    %11 = vector.load %arg4[%c0_8, %c0_9] : memref<64x32xbf16, #tpu.memory_space<vmem>>, vector<64x32xbf16>
    %cst = arith.constant dense<0.000000e+00> : vector<8x32xf32>
    %12 = tpu.matmul %4, %11, %cst {dimension_numbers = #tpu.dot_dimension_numbers<[1], [0], [0], [1], [0, 0, 1, 1], [], []>} : vector<8x64xbf16>, vector<64x32xbf16>, vector<8x32xf32> -> vector<8x32xf32>
    %c0_10 = arith.constant 0 : index
    %c0_11 = arith.constant 0 : index
    %13 = vector.load %arg5[%c0_10, %c0_11] : memref<64x32xbf16, #tpu.memory_space<vmem>>, vector<64x32xbf16>
    %cst_12 = arith.constant dense<0.000000e+00> : vector<8x32xf32>
    %14 = tpu.matmul %6, %13, %cst_12 {dimension_numbers = #tpu.dot_dimension_numbers<[1], [0], [0], [1], [0, 0, 1, 1], [], []>} : vector<8x64xbf16>, vector<64x32xbf16>, vector<8x32xf32> -> vector<8x32xf32>
    %15 = arith.addf %12, %14 : vector<8x32xf32>
    %c0_13 = arith.constant 0 : index
    %c0_14 = arith.constant 0 : index
    %16 = vector.load %arg6[%c0_13, %c0_14] : memref<64x32xbf16, #tpu.memory_space<vmem>>, vector<64x32xbf16>
    %cst_15 = arith.constant dense<0.000000e+00> : vector<8x32xf32>
    %17 = tpu.matmul %10, %16, %cst_15 {dimension_numbers = #tpu.dot_dimension_numbers<[1], [0], [0], [1], [0, 0, 1, 1], [], []>} : vector<8x64xbf16>, vector<64x32xbf16>, vector<8x32xf32> -> vector<8x32xf32>
    %18 = arith.addf %15, %17 : vector<8x32xf32>
    %c0_16 = arith.constant 0 : index
    %c0_17 = arith.constant 0 : index
    %19 = vector.load %arg7[%c0_16, %c0_17] : memref<1x32xf32, #tpu.memory_space<vmem>>, vector<1x32xf32>
    %20 = vector.broadcast %19 : vector<1x32xf32> to vector<8x32xf32>
    %21 = arith.addf %18, %20 : vector<8x32xf32>
    %cst_18 = arith.constant 0.000000e+00 : f32
    %22 = vector.broadcast %cst_18 : f32 to vector<8x32xf32>
    %23 = arith.maximumf %21, %22 : vector<8x32xf32>
    %24 = arith.truncf %23 : vector<8x32xf32> to vector<8x32xbf16>
    %c0_19 = arith.constant 0 : index
    %c0_20 = arith.constant 0 : index
    %c0_21 = arith.constant 0 : index
    %25 = vector.load %arg8[%c0_19, %c0_20, %c0_21] : memref<1x8x32xbf16, #tpu.memory_space<vmem>>, vector<1x8x32xbf16>
    %26 = vector.shape_cast %25 : vector<1x8x32xbf16> to vector<8x32xbf16>
    %27 = vector.shape_cast %24 : vector<8x32xbf16> to vector<1x8x32xbf16>
    tpu.vector_store %arg8[%c0_19, %c0_20, %c0_21], %27 {strides = array<i32>} : memref<1x8x32xbf16, #tpu.memory_space<vmem>>, vector<1x8x32xbf16>,
    return
  }
  func.func @transform_0(%arg0: i32) -> (i32, i32, i32) {
    %c0_i32 = arith.constant 0 : i32
    %c0_i32_0 = arith.constant 0 : i32
    %c0_i32_1 = arith.constant 0 : i32
    return %arg0, %c0_i32, %c0_i32_0 : i32, i32, i32
  }
  func.func @transform_1(%arg0: i32) -> (i32, i32, i32) {
    %c0_i32 = arith.constant 0 : i32
    %c0_i32_0 = arith.constant 0 : i32
    %c0_i32_1 = arith.constant 0 : i32
    return %arg0, %c0_i32, %c0_i32_0 : i32, i32, i32
  }
  func.func @transform_2(%arg0: i32) -> (i32, i32, i32) {
    %c0_i32 = arith.constant 0 : i32
    %c0_i32_0 = arith.constant 0 : i32
    %c0_i32_1 = arith.constant 0 : i32
    return %arg0, %c0_i32, %c0_i32_0 : i32, i32, i32
  }
  func.func @transform_3(%arg0: i32) -> (i32, i32) {
    %c0_i32 = arith.constant 0 : i32
    %c0_i32_0 = arith.constant 0 : i32
    %c0_i32_1 = arith.constant 0 : i32
    return %c0_i32, %c0_i32_0 : i32, i32
  }
  func.func @transform_4(%arg0: i32) -> (i32, i32) {
    %c0_i32 = arith.constant 0 : i32
    %c0_i32_0 = arith.constant 0 : i32
    %c0_i32_1 = arith.constant 0 : i32
    return %c0_i32, %c0_i32_0 : i32, i32
  }
  func.func @transform_5(%arg0: i32) -> (i32, i32) {
    %c0_i32 = arith.constant 0 : i32
    %c0_i32_0 = arith.constant 0 : i32
    %c0_i32_1 = arith.constant 0 : i32
    return %c0_i32, %c0_i32_0 : i32, i32
  }
  func.func @transform_6(%arg0: i32) -> (i32, i32) {
    %c0_i32 = arith.constant 0 : i32
    %c0_i32_0 = arith.constant 0 : i32
    %c0_i32_1 = arith.constant 0 : i32
    return %c0_i32, %c0_i32_0 : i32, i32
  }
  func.func @transform_7(%arg0: i32) -> (i32, i32, i32) {
    %c0_i32 = arith.constant 0 : i32
    %c0_i32_0 = arith.constant 0 : i32
    %c0_i32_1 = arith.constant 0 : i32
    return %arg0, %c0_i32, %c0_i32_0 : i32, i32, i32
  }
}

module attributes {stable_mosaic.version = 11 : i64} {
  func.func @_pool_kernel(%arg0: i32, %arg1: memref<1x8x32xbf16, #tpu.memory_space<vmem>>, %arg2: memref<1x8x32xbf16, #tpu.memory_space<vmem>>, %arg3: memref<1x8x1xf32, #tpu.memory_space<vmem>>, %arg4: memref<1x1x128xf32, #tpu.memory_space<vmem>>) attributes {dimension_semantics = [#tpu.dimension_semantics<parallel>], iteration_bounds = array<i64: 2>, scalar_prefetch = 0 : i64, scratch_operands = 0 : i64, tpu.core_type = #tpu.core_type<tc>, window_params = [{transform_indices = @transform_0, window_bounds = array<i64: 1, 8, 32>}, {transform_indices = @transform_1, window_bounds = array<i64: 1, 8, 32>}, {transform_indices = @transform_2, window_bounds = array<i64: 1, 8, 1>}, {transform_indices = @transform_3, window_bounds = array<i64: 1, 1, 128>}]} {
    %c0 = arith.constant 0 : index
    %c0_0 = arith.constant 0 : index
    %c0_1 = arith.constant 0 : index
    %0 = vector.load %arg1[%c0, %c0_0, %c0_1] : memref<1x8x32xbf16, #tpu.memory_space<vmem>>, vector<1x8x32xbf16>
    %1 = vector.shape_cast %0 : vector<1x8x32xbf16> to vector<8x32xbf16>
    %c0_2 = arith.constant 0 : index
    %c0_3 = arith.constant 0 : index
    %c0_4 = arith.constant 0 : index
    %2 = vector.load %arg2[%c0_2, %c0_3, %c0_4] : memref<1x8x32xbf16, #tpu.memory_space<vmem>>, vector<1x8x32xbf16>
    %3 = vector.shape_cast %2 : vector<1x8x32xbf16> to vector<8x32xbf16>
    %4 = tpu.concatenate %1, %3 in 1 : vector<8x32xbf16>, vector<8x32xbf16> -> vector<8x64xbf16>
    %5 = arith.extf %4 : vector<8x64xbf16> to vector<8x64xf32>
    %c0_5 = arith.constant 0 : index
    %c0_6 = arith.constant 0 : index
    %c0_7 = arith.constant 0 : index
    %6 = vector.load %arg3[%c0_5, %c0_6, %c0_7] : memref<1x8x1xf32, #tpu.memory_space<vmem>>, vector<1x8x1xf32>
    %7 = vector.shape_cast %6 : vector<1x8x1xf32> to vector<8x1xf32>
    %cst = arith.constant 0.000000e+00 : f32
    %8 = vector.broadcast %cst : f32 to vector<8x1xf32>
    %9 = arith.cmpf ogt, %7, %8 : vector<8x1xf32>
    %cst_8 = arith.constant -1.000000e+30 : f32
    %10 = vector.shape_cast %9 : vector<8x1xi1> to vector<8x1xi1>
    %11 = vector.broadcast %10 : vector<8x1xi1> to vector<8x64xi1>
    %12 = vector.broadcast %cst_8 : f32 to vector<8x64xf32>
    %13 = arith.select %11, %5, %12 : vector<8x64xi1>, vector<8x64xf32>
    %cst_9 = arith.constant dense<0xFF800000> : vector<64xf32>
    %14 = vector.multi_reduction <maximumf>, %13, %cst_9 [0] : vector<8x64xf32> to vector<64xf32>
    %15 = vector.shape_cast %14 : vector<64xf32> to vector<1x64xf32>
    %16 = vector.broadcast %7 : vector<8x1xf32> to vector<8x64xf32>
    %17 = arith.mulf %5, %16 : vector<8x64xf32>
    %cst_10 = arith.constant dense<0.000000e+00> : vector<64xf32>
    %18 = vector.multi_reduction <add>, %17, %cst_10 [0] : vector<8x64xf32> to vector<64xf32>
    %19 = vector.shape_cast %18 : vector<64xf32> to vector<1x64xf32>
    %cst_11 = arith.constant dense<0.000000e+00> : vector<1xf32>
    %20 = vector.multi_reduction <add>, %7, %cst_11 [0] : vector<8x1xf32> to vector<1xf32>
    %21 = vector.shape_cast %20 : vector<1xf32> to vector<1x1xf32>
    %cst_12 = arith.constant 1.000000e+00 : f32
    %22 = vector.broadcast %cst_12 : f32 to vector<1x1xf32>
    %23 = arith.maximumf %21, %22 : vector<1x1xf32>
    %24 = vector.broadcast %23 : vector<1x1xf32> to vector<1x64xf32>
    %25 = arith.divf %19, %24 : vector<1x64xf32>
    %26 = tpu.concatenate %15, %25 in 1 : vector<1x64xf32>, vector<1x64xf32> -> vector<1x128xf32>
    %c0_13 = arith.constant 0 : index
    %c0_14 = arith.constant 0 : index
    %c0_15 = arith.constant 0 : index
    %27 = vector.load %arg4[%c0_13, %c0_14, %c0_15] : memref<1x1x128xf32, #tpu.memory_space<vmem>>, vector<1x1x128xf32>
    %28 = vector.shape_cast %27 : vector<1x1x128xf32> to vector<1x128xf32>
    %29 = vector.shape_cast %26 : vector<1x128xf32> to vector<1x1x128xf32>
    tpu.vector_store %arg4[%c0_13, %c0_14, %c0_15], %29 {strides = array<i32>} : memref<1x1x128xf32, #tpu.memory_space<vmem>>, vector<1x1x128xf32>,
    return
  }
  func.func @transform_0(%arg0: i32) -> (i32, i32, i32) {
    %c0_i32 = arith.constant 0 : i32
    %c0_i32_0 = arith.constant 0 : i32
    %c0_i32_1 = arith.constant 0 : i32
    return %arg0, %c0_i32, %c0_i32_0 : i32, i32, i32
  }
  func.func @transform_1(%arg0: i32) -> (i32, i32, i32) {
    %c0_i32 = arith.constant 0 : i32
    %c0_i32_0 = arith.constant 0 : i32
    %c0_i32_1 = arith.constant 0 : i32
    return %arg0, %c0_i32, %c0_i32_0 : i32, i32, i32
  }
  func.func @transform_2(%arg0: i32) -> (i32, i32, i32) {
    %c0_i32 = arith.constant 0 : i32
    %c0_i32_0 = arith.constant 0 : i32
    %c0_i32_1 = arith.constant 0 : i32
    return %arg0, %c0_i32, %c0_i32_0 : i32, i32, i32
  }
  func.func @transform_3(%arg0: i32) -> (i32, i32, i32) {
    %c0_i32 = arith.constant 0 : i32
    %c0_i32_0 = arith.constant 0 : i32
    %c0_i32_1 = arith.constant 0 : i32
    return %arg0, %c0_i32, %c0_i32_0 : i32, i32, i32
  }
}

module attributes {stable_mosaic.version = 11 : i64} {
  func.func @_bilstm_chunk_kernel(%arg0: i32, %arg1: i32, %arg2: memref<1x8x32xbf16, #tpu.memory_space<vmem>>, %arg3: memref<1x8x32xbf16, #tpu.memory_space<vmem>>, %arg4: memref<1x8x1xf32, #tpu.memory_space<vmem>>, %arg5: memref<1x8x1xf32, #tpu.memory_space<vmem>>, %arg6: memref<128x256xbf16, #tpu.memory_space<vmem>>, %arg7: memref<1x256xf32, #tpu.memory_space<vmem>>, %arg8: memref<1x8x32xbf16, #tpu.memory_space<vmem>>, %arg9: memref<1x8x32xbf16, #tpu.memory_space<vmem>>, %arg10: memref<1x64xf32, #tpu.memory_space<vmem>>, %arg11: memref<1x64xf32, #tpu.memory_space<vmem>>) attributes {dimension_semantics = [#tpu.dimension_semantics<parallel>, #tpu.dimension_semantics<arbitrary>], iteration_bounds = array<i64: 2, 1>, scalar_prefetch = 0 : i64, scratch_operands = 2 : i64, tpu.core_type = #tpu.core_type<tc>, window_params = [{transform_indices = @transform_0, window_bounds = array<i64: 1, 8, 32>}, {transform_indices = @transform_1, window_bounds = array<i64: 1, 8, 32>}, {transform_indices = @transform_2, window_bounds = array<i64: 1, 8, 1>}, {transform_indices = @transform_3, window_bounds = array<i64: 1, 8, 1>}, {pipeline_mode = #tpu.pipeline_mode<synchronous>, transform_indices = @transform_4, window_bounds = array<i64: 128, 256>}, {pipeline_mode = #tpu.pipeline_mode<synchronous>, transform_indices = @transform_5, window_bounds = array<i64: 1, 256>}, {transform_indices = @transform_6, window_bounds = array<i64: 1, 8, 32>}, {transform_indices = @transform_7, window_bounds = array<i64: 1, 8, 32>}]} {
    %c0_i32 = arith.constant 0 : i32
    %0 = arith.cmpi eq, %arg1, %c0_i32 : i32
    %1 = arith.extui %0 : i1 to i32
    %c0_i32_0 = arith.constant 0 : i32
    %2 = arith.cmpi ne, %1, %c0_i32_0 : i32
    scf.if %2 {
      %cst_419 = arith.constant 0.000000e+00 : f32
      %965 = vector.broadcast %cst_419 : f32 to vector<1x64xf32>
      %c0_420 = arith.constant 0 : index
      %c0_421 = arith.constant 0 : index
      %966 = vector.load %arg10[%c0_420, %c0_421] : memref<1x64xf32, #tpu.memory_space<vmem>>, vector<1x64xf32>
      tpu.vector_store %arg10[%c0_420, %c0_421], %965 {strides = array<i32>} : memref<1x64xf32, #tpu.memory_space<vmem>>, vector<1x64xf32>,
      %cst_422 = arith.constant 0.000000e+00 : f32
      %967 = vector.broadcast %cst_422 : f32 to vector<1x64xf32>
      %c0_423 = arith.constant 0 : index
      %c0_424 = arith.constant 0 : index
      %968 = vector.load %arg11[%c0_423, %c0_424] : memref<1x64xf32, #tpu.memory_space<vmem>>, vector<1x64xf32>
      tpu.vector_store %arg11[%c0_423, %c0_424], %967 {strides = array<i32>} : memref<1x64xf32, #tpu.memory_space<vmem>>, vector<1x64xf32>,
    } else {
    }
    %c0 = arith.constant 0 : index
    %c0_1 = arith.constant 0 : index
    %3 = vector.load %arg6[%c0, %c0_1] : memref<128x256xbf16, #tpu.memory_space<vmem>>, vector<128x256xbf16>
    %c0_2 = arith.constant 0 : index
    %c0_3 = arith.constant 0 : index
    %4 = vector.load %arg7[%c0_2, %c0_3] : memref<1x256xf32, #tpu.memory_space<vmem>>, vector<1x256xf32>
    %c0_4 = arith.constant 0 : index
    %c0_5 = arith.constant 0 : index
    %5 = vector.load %arg10[%c0_4, %c0_5] : memref<1x64xf32, #tpu.memory_space<vmem>>, vector<1x64xf32>
    %c0_6 = arith.constant 0 : index
    %c0_7 = arith.constant 0 : index
    %6 = vector.load %arg11[%c0_6, %c0_7] : memref<1x64xf32, #tpu.memory_space<vmem>>, vector<1x64xf32>
    %c0_8 = arith.constant 0 : index
    %c0_9 = arith.constant 0 : index
    %c0_10 = arith.constant 0 : index
    %7 = vector.load %arg2[%c0_8, %c0_9, %c0_10] : memref<1x8x32xbf16, #tpu.memory_space<vmem>>, vector<1x1x32xbf16>
    %8 = vector.shape_cast %7 : vector<1x1x32xbf16> to vector<1x32xbf16>
    %c0_11 = arith.constant 0 : index
    %c7 = arith.constant 7 : index
    %c0_12 = arith.constant 0 : index
    %9 = vector.load %arg3[%c0_11, %c7, %c0_12] : memref<1x8x32xbf16, #tpu.memory_space<vmem>>, vector<1x1x32xbf16>
    %10 = vector.shape_cast %9 : vector<1x1x32xbf16> to vector<1x32xbf16>
    %11 = arith.truncf %5 : vector<1x64xf32> to vector<1x64xbf16>
    %12 = tpu.concatenate %8, %10, %11 in 1 : vector<1x32xbf16>, vector<1x32xbf16>, vector<1x64xbf16> -> vector<1x128xbf16>
    %cst = arith.constant dense<0.000000e+00> : vector<1x256xf32>
    %13 = tpu.matmul %12, %3, %cst {dimension_numbers = #tpu.dot_dimension_numbers<[1], [0], [0], [1], [0, 0, 1, 1], [], []>} : vector<1x128xbf16>, vector<128x256xbf16>, vector<1x256xf32> -> vector<1x256xf32>
    %14 = arith.addf %13, %4 : vector<1x256xf32>
    %15 = vector.extract_strided_slice %14 {offsets = [0, 0], sizes = [1, 128], strides = [1, 1]} : vector<1x256xf32> to vector<1x128xf32>
    %16 = vector.extract_strided_slice %6 {offsets = [0, 0], sizes = [1, 32], strides = [1, 1]} : vector<1x64xf32> to vector<1x32xf32>
    %17 = vector.extract_strided_slice %15 {offsets = [0, 0], sizes = [1, 32], strides = [1, 1]} : vector<1x128xf32> to vector<1x32xf32>
    %cst_13 = arith.constant 5.000000e-01 : f32
    %18 = vector.broadcast %cst_13 : f32 to vector<1x32xf32>
    %19 = arith.mulf %18, %17 : vector<1x32xf32>
    %20 = math.tanh %19 : vector<1x32xf32>
    %cst_14 = arith.constant 1.000000e+00 : f32
    %21 = vector.broadcast %cst_14 : f32 to vector<1x32xf32>
    %22 = arith.addf %20, %21 : vector<1x32xf32>
    %cst_15 = arith.constant 5.000000e-01 : f32
    %23 = vector.broadcast %cst_15 : f32 to vector<1x32xf32>
    %24 = arith.mulf %23, %22 : vector<1x32xf32>
    %25 = vector.extract_strided_slice %15 {offsets = [0, 32], sizes = [1, 32], strides = [1, 1]} : vector<1x128xf32> to vector<1x32xf32>
    %cst_16 = arith.constant 5.000000e-01 : f32
    %26 = vector.broadcast %cst_16 : f32 to vector<1x32xf32>
    %27 = arith.mulf %26, %25 : vector<1x32xf32>
    %28 = math.tanh %27 : vector<1x32xf32>
    %cst_17 = arith.constant 1.000000e+00 : f32
    %29 = vector.broadcast %cst_17 : f32 to vector<1x32xf32>
    %30 = arith.addf %28, %29 : vector<1x32xf32>
    %cst_18 = arith.constant 5.000000e-01 : f32
    %31 = vector.broadcast %cst_18 : f32 to vector<1x32xf32>
    %32 = arith.mulf %31, %30 : vector<1x32xf32>
    %33 = vector.extract_strided_slice %15 {offsets = [0, 64], sizes = [1, 32], strides = [1, 1]} : vector<1x128xf32> to vector<1x32xf32>
    %34 = math.tanh %33 : vector<1x32xf32>
    %35 = vector.extract_strided_slice %15 {offsets = [0, 96], sizes = [1, 32], strides = [1, 1]} : vector<1x128xf32> to vector<1x32xf32>
    %cst_19 = arith.constant 5.000000e-01 : f32
    %36 = vector.broadcast %cst_19 : f32 to vector<1x32xf32>
    %37 = arith.mulf %36, %35 : vector<1x32xf32>
    %38 = math.tanh %37 : vector<1x32xf32>
    %cst_20 = arith.constant 1.000000e+00 : f32
    %39 = vector.broadcast %cst_20 : f32 to vector<1x32xf32>
    %40 = arith.addf %38, %39 : vector<1x32xf32>
    %cst_21 = arith.constant 5.000000e-01 : f32
    %41 = vector.broadcast %cst_21 : f32 to vector<1x32xf32>
    %42 = arith.mulf %41, %40 : vector<1x32xf32>
    %43 = arith.mulf %32, %16 : vector<1x32xf32>
    %44 = arith.mulf %24, %34 : vector<1x32xf32>
    %45 = arith.addf %43, %44 : vector<1x32xf32>
    %46 = math.tanh %45 : vector<1x32xf32>
    %47 = arith.mulf %42, %46 : vector<1x32xf32>
    %48 = vector.extract_strided_slice %14 {offsets = [0, 128], sizes = [1, 128], strides = [1, 1]} : vector<1x256xf32> to vector<1x128xf32>
    %49 = vector.extract_strided_slice %6 {offsets = [0, 32], sizes = [1, 32], strides = [1, 1]} : vector<1x64xf32> to vector<1x32xf32>
    %50 = vector.extract_strided_slice %48 {offsets = [0, 0], sizes = [1, 32], strides = [1, 1]} : vector<1x128xf32> to vector<1x32xf32>
    %cst_22 = arith.constant 5.000000e-01 : f32
    %51 = vector.broadcast %cst_22 : f32 to vector<1x32xf32>
    %52 = arith.mulf %51, %50 : vector<1x32xf32>
    %53 = math.tanh %52 : vector<1x32xf32>
    %cst_23 = arith.constant 1.000000e+00 : f32
    %54 = vector.broadcast %cst_23 : f32 to vector<1x32xf32>
    %55 = arith.addf %53, %54 : vector<1x32xf32>
    %cst_24 = arith.constant 5.000000e-01 : f32
    %56 = vector.broadcast %cst_24 : f32 to vector<1x32xf32>
    %57 = arith.mulf %56, %55 : vector<1x32xf32>
    %58 = vector.extract_strided_slice %48 {offsets = [0, 32], sizes = [1, 32], strides = [1, 1]} : vector<1x128xf32> to vector<1x32xf32>
    %cst_25 = arith.constant 5.000000e-01 : f32
    %59 = vector.broadcast %cst_25 : f32 to vector<1x32xf32>
    %60 = arith.mulf %59, %58 : vector<1x32xf32>
    %61 = math.tanh %60 : vector<1x32xf32>
    %cst_26 = arith.constant 1.000000e+00 : f32
    %62 = vector.broadcast %cst_26 : f32 to vector<1x32xf32>
    %63 = arith.addf %61, %62 : vector<1x32xf32>
    %cst_27 = arith.constant 5.000000e-01 : f32
    %64 = vector.broadcast %cst_27 : f32 to vector<1x32xf32>
    %65 = arith.mulf %64, %63 : vector<1x32xf32>
    %66 = vector.extract_strided_slice %48 {offsets = [0, 64], sizes = [1, 32], strides = [1, 1]} : vector<1x128xf32> to vector<1x32xf32>
    %67 = math.tanh %66 : vector<1x32xf32>
    %68 = vector.extract_strided_slice %48 {offsets = [0, 96], sizes = [1, 32], strides = [1, 1]} : vector<1x128xf32> to vector<1x32xf32>
    %cst_28 = arith.constant 5.000000e-01 : f32
    %69 = vector.broadcast %cst_28 : f32 to vector<1x32xf32>
    %70 = arith.mulf %69, %68 : vector<1x32xf32>
    %71 = math.tanh %70 : vector<1x32xf32>
    %cst_29 = arith.constant 1.000000e+00 : f32
    %72 = vector.broadcast %cst_29 : f32 to vector<1x32xf32>
    %73 = arith.addf %71, %72 : vector<1x32xf32>
    %cst_30 = arith.constant 5.000000e-01 : f32
    %74 = vector.broadcast %cst_30 : f32 to vector<1x32xf32>
    %75 = arith.mulf %74, %73 : vector<1x32xf32>
    %76 = arith.mulf %65, %49 : vector<1x32xf32>
    %77 = arith.mulf %57, %67 : vector<1x32xf32>
    %78 = arith.addf %76, %77 : vector<1x32xf32>
    %79 = math.tanh %78 : vector<1x32xf32>
    %80 = arith.mulf %75, %79 : vector<1x32xf32>
    %c0_31 = arith.constant 0 : index
    %c0_32 = arith.constant 0 : index
    %c0_33 = arith.constant 0 : index
    %81 = vector.load %arg4[%c0_31, %c0_32, %c0_33] : memref<1x8x1xf32, #tpu.memory_space<vmem>>, vector<1x1x1xf32>
    %82 = vector.shape_cast %81 : vector<1x1x1xf32> to vector<1x1xf32>
    %cst_34 = arith.constant 0.000000e+00 : f32
    %83 = vector.broadcast %cst_34 : f32 to vector<1x1xf32>
    %84 = arith.cmpf ogt, %82, %83 : vector<1x1xf32>
    %c0_35 = arith.constant 0 : index
    %c7_36 = arith.constant 7 : index
    %c0_37 = arith.constant 0 : index
    %85 = vector.load %arg5[%c0_35, %c7_36, %c0_37] : memref<1x8x1xf32, #tpu.memory_space<vmem>>, vector<1x1x1xf32>
    %86 = vector.shape_cast %85 : vector<1x1x1xf32> to vector<1x1xf32>
    %cst_38 = arith.constant 0.000000e+00 : f32
    %87 = vector.broadcast %cst_38 : f32 to vector<1x1xf32>
    %88 = arith.cmpf ogt, %86, %87 : vector<1x1xf32>
    %cst_39 = arith.constant 0.000000e+00 : f32
    %89 = vector.shape_cast %84 : vector<1x1xi1> to vector<1x1xi1>
    %90 = vector.broadcast %89 : vector<1x1xi1> to vector<1x32xi1>
    %91 = vector.broadcast %cst_39 : f32 to vector<1x32xf32>
    %92 = arith.select %90, %47, %91 : vector<1x32xi1>, vector<1x32xf32>
    %93 = arith.truncf %92 : vector<1x32xf32> to vector<1x32xbf16>
    %c0_40 = arith.constant 0 : index
    %c0_41 = arith.constant 0 : index
    %c0_42 = arith.constant 0 : index
    %94 = vector.load %arg8[%c0_40, %c0_41, %c0_42] : memref<1x8x32xbf16, #tpu.memory_space<vmem>>, vector<1x1x32xbf16>
    %95 = vector.shape_cast %94 : vector<1x1x32xbf16> to vector<1x32xbf16>
    %96 = vector.shape_cast %93 : vector<1x32xbf16> to vector<1x1x32xbf16>
    tpu.vector_store %arg8[%c0_40, %c0_41, %c0_42], %96 {strides = array<i32>} : memref<1x8x32xbf16, #tpu.memory_space<vmem>>, vector<1x1x32xbf16>,
    %cst_43 = arith.constant 0.000000e+00 : f32
    %97 = vector.shape_cast %88 : vector<1x1xi1> to vector<1x1xi1>
    %98 = vector.broadcast %97 : vector<1x1xi1> to vector<1x32xi1>
    %99 = vector.broadcast %cst_43 : f32 to vector<1x32xf32>
    %100 = arith.select %98, %80, %99 : vector<1x32xi1>, vector<1x32xf32>
    %101 = arith.truncf %100 : vector<1x32xf32> to vector<1x32xbf16>
    %c0_44 = arith.constant 0 : index
    %c7_45 = arith.constant 7 : index
    %c0_46 = arith.constant 0 : index
    %102 = vector.load %arg9[%c0_44, %c7_45, %c0_46] : memref<1x8x32xbf16, #tpu.memory_space<vmem>>, vector<1x1x32xbf16>
    %103 = vector.shape_cast %102 : vector<1x1x32xbf16> to vector<1x32xbf16>
    %104 = vector.shape_cast %101 : vector<1x32xbf16> to vector<1x1x32xbf16>
    tpu.vector_store %arg9[%c0_44, %c7_45, %c0_46], %104 {strides = array<i32>} : memref<1x8x32xbf16, #tpu.memory_space<vmem>>, vector<1x1x32xbf16>,
    %105 = vector.extract_strided_slice %5 {offsets = [0, 0], sizes = [1, 32], strides = [1, 1]} : vector<1x64xf32> to vector<1x32xf32>
    %106 = vector.shape_cast %84 : vector<1x1xi1> to vector<1x1xi1>
    %107 = vector.broadcast %106 : vector<1x1xi1> to vector<1x32xi1>
    %108 = arith.select %107, %47, %105 : vector<1x32xi1>, vector<1x32xf32>
    %c0_47 = arith.constant 0 : index
    %c0_48 = arith.constant 0 : index
    %109 = vector.load %arg10[%c0_47, %c0_48] : memref<1x64xf32, #tpu.memory_space<vmem>>, vector<1x32xf32>
    tpu.vector_store %arg10[%c0_47, %c0_48], %108 {strides = array<i32>} : memref<1x64xf32, #tpu.memory_space<vmem>>, vector<1x32xf32>,
    %110 = vector.extract_strided_slice %5 {offsets = [0, 32], sizes = [1, 32], strides = [1, 1]} : vector<1x64xf32> to vector<1x32xf32>
    %111 = vector.shape_cast %88 : vector<1x1xi1> to vector<1x1xi1>
    %112 = vector.broadcast %111 : vector<1x1xi1> to vector<1x32xi1>
    %113 = arith.select %112, %80, %110 : vector<1x32xi1>, vector<1x32xf32>
    %c0_49 = arith.constant 0 : index
    %c32 = arith.constant 32 : index
    %114 = vector.load %arg10[%c0_49, %c32] : memref<1x64xf32, #tpu.memory_space<vmem>>, vector<1x32xf32>
    tpu.vector_store %arg10[%c0_49, %c32], %113 {strides = array<i32>} : memref<1x64xf32, #tpu.memory_space<vmem>>, vector<1x32xf32>,
    %115 = vector.extract_strided_slice %6 {offsets = [0, 0], sizes = [1, 32], strides = [1, 1]} : vector<1x64xf32> to vector<1x32xf32>
    %116 = vector.shape_cast %84 : vector<1x1xi1> to vector<1x1xi1>
    %117 = vector.broadcast %116 : vector<1x1xi1> to vector<1x32xi1>
    %118 = arith.select %117, %45, %115 : vector<1x32xi1>, vector<1x32xf32>
    %c0_50 = arith.constant 0 : index
    %c0_51 = arith.constant 0 : index
    %119 = vector.load %arg11[%c0_50, %c0_51] : memref<1x64xf32, #tpu.memory_space<vmem>>, vector<1x32xf32>
    tpu.vector_store %arg11[%c0_50, %c0_51], %118 {strides = array<i32>} : memref<1x64xf32, #tpu.memory_space<vmem>>, vector<1x32xf32>,
    %120 = vector.extract_strided_slice %6 {offsets = [0, 32], sizes = [1, 32], strides = [1, 1]} : vector<1x64xf32> to vector<1x32xf32>
    %121 = vector.shape_cast %88 : vector<1x1xi1> to vector<1x1xi1>
    %122 = vector.broadcast %121 : vector<1x1xi1> to vector<1x32xi1>
    %123 = arith.select %122, %78, %120 : vector<1x32xi1>, vector<1x32xf32>
    %c0_52 = arith.constant 0 : index
    %c32_53 = arith.constant 32 : index
    %124 = vector.load %arg11[%c0_52, %c32_53] : memref<1x64xf32, #tpu.memory_space<vmem>>, vector<1x32xf32>
    tpu.vector_store %arg11[%c0_52, %c32_53], %123 {strides = array<i32>} : memref<1x64xf32, #tpu.memory_space<vmem>>, vector<1x32xf32>,
    %c0_54 = arith.constant 0 : index
    %c0_55 = arith.constant 0 : index
    %125 = vector.load %arg10[%c0_54, %c0_55] : memref<1x64xf32, #tpu.memory_space<vmem>>, vector<1x64xf32>
    %c0_56 = arith.constant 0 : index
    %c0_57 = arith.constant 0 : index
    %126 = vector.load %arg11[%c0_56, %c0_57] : memref<1x64xf32, #tpu.memory_space<vmem>>, vector<1x64xf32>
    %c0_58 = arith.constant 0 : index
    %c1 = arith.constant 1 : index
    %c0_59 = arith.constant 0 : index
    %127 = vector.load %arg2[%c0_58, %c1, %c0_59] : memref<1x8x32xbf16, #tpu.memory_space<vmem>>, vector<1x1x32xbf16>
    %128 = vector.shape_cast %127 : vector<1x1x32xbf16> to vector<1x32xbf16>
    %c0_60 = arith.constant 0 : index
    %c6 = arith.constant 6 : index
    %c0_61 = arith.constant 0 : index
    %129 = vector.load %arg3[%c0_60, %c6, %c0_61] : memref<1x8x32xbf16, #tpu.memory_space<vmem>>, vector<1x1x32xbf16>
    %130 = vector.shape_cast %129 : vector<1x1x32xbf16> to vector<1x32xbf16>
    %131 = arith.truncf %125 : vector<1x64xf32> to vector<1x64xbf16>
    %132 = tpu.concatenate %128, %130, %131 in 1 : vector<1x32xbf16>, vector<1x32xbf16>, vector<1x64xbf16> -> vector<1x128xbf16>
    %cst_62 = arith.constant dense<0.000000e+00> : vector<1x256xf32>
    %133 = tpu.matmul %132, %3, %cst_62 {dimension_numbers = #tpu.dot_dimension_numbers<[1], [0], [0], [1], [0, 0, 1, 1], [], []>} : vector<1x128xbf16>, vector<128x256xbf16>, vector<1x256xf32> -> vector<1x256xf32>
    %134 = arith.addf %133, %4 : vector<1x256xf32>
    %135 = vector.extract_strided_slice %134 {offsets = [0, 0], sizes = [1, 128], strides = [1, 1]} : vector<1x256xf32> to vector<1x128xf32>
    %136 = vector.extract_strided_slice %126 {offsets = [0, 0], sizes = [1, 32], strides = [1, 1]} : vector<1x64xf32> to vector<1x32xf32>
    %137 = vector.extract_strided_slice %135 {offsets = [0, 0], sizes = [1, 32], strides = [1, 1]} : vector<1x128xf32> to vector<1x32xf32>
    %cst_63 = arith.constant 5.000000e-01 : f32
    %138 = vector.broadcast %cst_63 : f32 to vector<1x32xf32>
    %139 = arith.mulf %138, %137 : vector<1x32xf32>
    %140 = math.tanh %139 : vector<1x32xf32>
    %cst_64 = arith.constant 1.000000e+00 : f32
    %141 = vector.broadcast %cst_64 : f32 to vector<1x32xf32>
    %142 = arith.addf %140, %141 : vector<1x32xf32>
    %cst_65 = arith.constant 5.000000e-01 : f32
    %143 = vector.broadcast %cst_65 : f32 to vector<1x32xf32>
    %144 = arith.mulf %143, %142 : vector<1x32xf32>
    %145 = vector.extract_strided_slice %135 {offsets = [0, 32], sizes = [1, 32], strides = [1, 1]} : vector<1x128xf32> to vector<1x32xf32>
    %cst_66 = arith.constant 5.000000e-01 : f32
    %146 = vector.broadcast %cst_66 : f32 to vector<1x32xf32>
    %147 = arith.mulf %146, %145 : vector<1x32xf32>
    %148 = math.tanh %147 : vector<1x32xf32>
    %cst_67 = arith.constant 1.000000e+00 : f32
    %149 = vector.broadcast %cst_67 : f32 to vector<1x32xf32>
    %150 = arith.addf %148, %149 : vector<1x32xf32>
    %cst_68 = arith.constant 5.000000e-01 : f32
    %151 = vector.broadcast %cst_68 : f32 to vector<1x32xf32>
    %152 = arith.mulf %151, %150 : vector<1x32xf32>
    %153 = vector.extract_strided_slice %135 {offsets = [0, 64], sizes = [1, 32], strides = [1, 1]} : vector<1x128xf32> to vector<1x32xf32>
    %154 = math.tanh %153 : vector<1x32xf32>
    %155 = vector.extract_strided_slice %135 {offsets = [0, 96], sizes = [1, 32], strides = [1, 1]} : vector<1x128xf32> to vector<1x32xf32>
    %cst_69 = arith.constant 5.000000e-01 : f32
    %156 = vector.broadcast %cst_69 : f32 to vector<1x32xf32>
    %157 = arith.mulf %156, %155 : vector<1x32xf32>
    %158 = math.tanh %157 : vector<1x32xf32>
    %cst_70 = arith.constant 1.000000e+00 : f32
    %159 = vector.broadcast %cst_70 : f32 to vector<1x32xf32>
    %160 = arith.addf %158, %159 : vector<1x32xf32>
    %cst_71 = arith.constant 5.000000e-01 : f32
    %161 = vector.broadcast %cst_71 : f32 to vector<1x32xf32>
    %162 = arith.mulf %161, %160 : vector<1x32xf32>
    %163 = arith.mulf %152, %136 : vector<1x32xf32>
    %164 = arith.mulf %144, %154 : vector<1x32xf32>
    %165 = arith.addf %163, %164 : vector<1x32xf32>
    %166 = math.tanh %165 : vector<1x32xf32>
    %167 = arith.mulf %162, %166 : vector<1x32xf32>
    %168 = vector.extract_strided_slice %134 {offsets = [0, 128], sizes = [1, 128], strides = [1, 1]} : vector<1x256xf32> to vector<1x128xf32>
    %169 = vector.extract_strided_slice %126 {offsets = [0, 32], sizes = [1, 32], strides = [1, 1]} : vector<1x64xf32> to vector<1x32xf32>
    %170 = vector.extract_strided_slice %168 {offsets = [0, 0], sizes = [1, 32], strides = [1, 1]} : vector<1x128xf32> to vector<1x32xf32>
    %cst_72 = arith.constant 5.000000e-01 : f32
    %171 = vector.broadcast %cst_72 : f32 to vector<1x32xf32>
    %172 = arith.mulf %171, %170 : vector<1x32xf32>
    %173 = math.tanh %172 : vector<1x32xf32>
    %cst_73 = arith.constant 1.000000e+00 : f32
    %174 = vector.broadcast %cst_73 : f32 to vector<1x32xf32>
    %175 = arith.addf %173, %174 : vector<1x32xf32>
    %cst_74 = arith.constant 5.000000e-01 : f32
    %176 = vector.broadcast %cst_74 : f32 to vector<1x32xf32>
    %177 = arith.mulf %176, %175 : vector<1x32xf32>
    %178 = vector.extract_strided_slice %168 {offsets = [0, 32], sizes = [1, 32], strides = [1, 1]} : vector<1x128xf32> to vector<1x32xf32>
    %cst_75 = arith.constant 5.000000e-01 : f32
    %179 = vector.broadcast %cst_75 : f32 to vector<1x32xf32>
    %180 = arith.mulf %179, %178 : vector<1x32xf32>
    %181 = math.tanh %180 : vector<1x32xf32>
    %cst_76 = arith.constant 1.000000e+00 : f32
    %182 = vector.broadcast %cst_76 : f32 to vector<1x32xf32>
    %183 = arith.addf %181, %182 : vector<1x32xf32>
    %cst_77 = arith.constant 5.000000e-01 : f32
    %184 = vector.broadcast %cst_77 : f32 to vector<1x32xf32>
    %185 = arith.mulf %184, %183 : vector<1x32xf32>
    %186 = vector.extract_strided_slice %168 {offsets = [0, 64], sizes = [1, 32], strides = [1, 1]} : vector<1x128xf32> to vector<1x32xf32>
    %187 = math.tanh %186 : vector<1x32xf32>
    %188 = vector.extract_strided_slice %168 {offsets = [0, 96], sizes = [1, 32], strides = [1, 1]} : vector<1x128xf32> to vector<1x32xf32>
    %cst_78 = arith.constant 5.000000e-01 : f32
    %189 = vector.broadcast %cst_78 : f32 to vector<1x32xf32>
    %190 = arith.mulf %189, %188 : vector<1x32xf32>
    %191 = math.tanh %190 : vector<1x32xf32>
    %cst_79 = arith.constant 1.000000e+00 : f32
    %192 = vector.broadcast %cst_79 : f32 to vector<1x32xf32>
    %193 = arith.addf %191, %192 : vector<1x32xf32>
    %cst_80 = arith.constant 5.000000e-01 : f32
    %194 = vector.broadcast %cst_80 : f32 to vector<1x32xf32>
    %195 = arith.mulf %194, %193 : vector<1x32xf32>
    %196 = arith.mulf %185, %169 : vector<1x32xf32>
    %197 = arith.mulf %177, %187 : vector<1x32xf32>
    %198 = arith.addf %196, %197 : vector<1x32xf32>
    %199 = math.tanh %198 : vector<1x32xf32>
    %200 = arith.mulf %195, %199 : vector<1x32xf32>
    %c0_81 = arith.constant 0 : index
    %c1_82 = arith.constant 1 : index
    %c0_83 = arith.constant 0 : index
    %201 = vector.load %arg4[%c0_81, %c1_82, %c0_83] : memref<1x8x1xf32, #tpu.memory_space<vmem>>, vector<1x1x1xf32>
    %202 = vector.shape_cast %201 : vector<1x1x1xf32> to vector<1x1xf32>
    %cst_84 = arith.constant 0.000000e+00 : f32
    %203 = vector.broadcast %cst_84 : f32 to vector<1x1xf32>
    %204 = arith.cmpf ogt, %202, %203 : vector<1x1xf32>
    %c0_85 = arith.constant 0 : index
    %c6_86 = arith.constant 6 : index
    %c0_87 = arith.constant 0 : index
    %205 = vector.load %arg5[%c0_85, %c6_86, %c0_87] : memref<1x8x1xf32, #tpu.memory_space<vmem>>, vector<1x1x1xf32>
    %206 = vector.shape_cast %205 : vector<1x1x1xf32> to vector<1x1xf32>
    %cst_88 = arith.constant 0.000000e+00 : f32
    %207 = vector.broadcast %cst_88 : f32 to vector<1x1xf32>
    %208 = arith.cmpf ogt, %206, %207 : vector<1x1xf32>
    %cst_89 = arith.constant 0.000000e+00 : f32
    %209 = vector.shape_cast %204 : vector<1x1xi1> to vector<1x1xi1>
    %210 = vector.broadcast %209 : vector<1x1xi1> to vector<1x32xi1>
    %211 = vector.broadcast %cst_89 : f32 to vector<1x32xf32>
    %212 = arith.select %210, %167, %211 : vector<1x32xi1>, vector<1x32xf32>
    %213 = arith.truncf %212 : vector<1x32xf32> to vector<1x32xbf16>
    %c0_90 = arith.constant 0 : index
    %c1_91 = arith.constant 1 : index
    %c0_92 = arith.constant 0 : index
    %214 = vector.load %arg8[%c0_90, %c1_91, %c0_92] : memref<1x8x32xbf16, #tpu.memory_space<vmem>>, vector<1x1x32xbf16>
    %215 = vector.shape_cast %214 : vector<1x1x32xbf16> to vector<1x32xbf16>
    %216 = vector.shape_cast %213 : vector<1x32xbf16> to vector<1x1x32xbf16>
    tpu.vector_store %arg8[%c0_90, %c1_91, %c0_92], %216 {strides = array<i32>} : memref<1x8x32xbf16, #tpu.memory_space<vmem>>, vector<1x1x32xbf16>,
    %cst_93 = arith.constant 0.000000e+00 : f32
    %217 = vector.shape_cast %208 : vector<1x1xi1> to vector<1x1xi1>
    %218 = vector.broadcast %217 : vector<1x1xi1> to vector<1x32xi1>
    %219 = vector.broadcast %cst_93 : f32 to vector<1x32xf32>
    %220 = arith.select %218, %200, %219 : vector<1x32xi1>, vector<1x32xf32>
    %221 = arith.truncf %220 : vector<1x32xf32> to vector<1x32xbf16>
    %c0_94 = arith.constant 0 : index
    %c6_95 = arith.constant 6 : index
    %c0_96 = arith.constant 0 : index
    %222 = vector.load %arg9[%c0_94, %c6_95, %c0_96] : memref<1x8x32xbf16, #tpu.memory_space<vmem>>, vector<1x1x32xbf16>
    %223 = vector.shape_cast %222 : vector<1x1x32xbf16> to vector<1x32xbf16>
    %224 = vector.shape_cast %221 : vector<1x32xbf16> to vector<1x1x32xbf16>
    tpu.vector_store %arg9[%c0_94, %c6_95, %c0_96], %224 {strides = array<i32>} : memref<1x8x32xbf16, #tpu.memory_space<vmem>>, vector<1x1x32xbf16>,
    %225 = vector.extract_strided_slice %125 {offsets = [0, 0], sizes = [1, 32], strides = [1, 1]} : vector<1x64xf32> to vector<1x32xf32>
    %226 = vector.shape_cast %204 : vector<1x1xi1> to vector<1x1xi1>
    %227 = vector.broadcast %226 : vector<1x1xi1> to vector<1x32xi1>
    %228 = arith.select %227, %167, %225 : vector<1x32xi1>, vector<1x32xf32>
    %c0_97 = arith.constant 0 : index
    %c0_98 = arith.constant 0 : index
    %229 = vector.load %arg10[%c0_97, %c0_98] : memref<1x64xf32, #tpu.memory_space<vmem>>, vector<1x32xf32>
    tpu.vector_store %arg10[%c0_97, %c0_98], %228 {strides = array<i32>} : memref<1x64xf32, #tpu.memory_space<vmem>>, vector<1x32xf32>,
    %230 = vector.extract_strided_slice %125 {offsets = [0, 32], sizes = [1, 32], strides = [1, 1]} : vector<1x64xf32> to vector<1x32xf32>
    %231 = vector.shape_cast %208 : vector<1x1xi1> to vector<1x1xi1>
    %232 = vector.broadcast %231 : vector<1x1xi1> to vector<1x32xi1>
    %233 = arith.select %232, %200, %230 : vector<1x32xi1>, vector<1x32xf32>
    %c0_99 = arith.constant 0 : index
    %c32_100 = arith.constant 32 : index
    %234 = vector.load %arg10[%c0_99, %c32_100] : memref<1x64xf32, #tpu.memory_space<vmem>>, vector<1x32xf32>
    tpu.vector_store %arg10[%c0_99, %c32_100], %233 {strides = array<i32>} : memref<1x64xf32, #tpu.memory_space<vmem>>, vector<1x32xf32>,
    %235 = vector.extract_strided_slice %126 {offsets = [0, 0], sizes = [1, 32], strides = [1, 1]} : vector<1x64xf32> to vector<1x32xf32>
    %236 = vector.shape_cast %204 : vector<1x1xi1> to vector<1x1xi1>
    %237 = vector.broadcast %236 : vector<1x1xi1> to vector<1x32xi1>
    %238 = arith.select %237, %165, %235 : vector<1x32xi1>, vector<1x32xf32>
    %c0_101 = arith.constant 0 : index
    %c0_102 = arith.constant 0 : index
    %239 = vector.load %arg11[%c0_101, %c0_102] : memref<1x64xf32, #tpu.memory_space<vmem>>, vector<1x32xf32>
    tpu.vector_store %arg11[%c0_101, %c0_102], %238 {strides = array<i32>} : memref<1x64xf32, #tpu.memory_space<vmem>>, vector<1x32xf32>,
    %240 = vector.extract_strided_slice %126 {offsets = [0, 32], sizes = [1, 32], strides = [1, 1]} : vector<1x64xf32> to vector<1x32xf32>
    %241 = vector.shape_cast %208 : vector<1x1xi1> to vector<1x1xi1>
    %242 = vector.broadcast %241 : vector<1x1xi1> to vector<1x32xi1>
    %243 = arith.select %242, %198, %240 : vector<1x32xi1>, vector<1x32xf32>
    %c0_103 = arith.constant 0 : index
    %c32_104 = arith.constant 32 : index
    %244 = vector.load %arg11[%c0_103, %c32_104] : memref<1x64xf32, #tpu.memory_space<vmem>>, vector<1x32xf32>
    tpu.vector_store %arg11[%c0_103, %c32_104], %243 {strides = array<i32>} : memref<1x64xf32, #tpu.memory_space<vmem>>, vector<1x32xf32>,
    %c0_105 = arith.constant 0 : index
    %c0_106 = arith.constant 0 : index
    %245 = vector.load %arg10[%c0_105, %c0_106] : memref<1x64xf32, #tpu.memory_space<vmem>>, vector<1x64xf32>
    %c0_107 = arith.constant 0 : index
    %c0_108 = arith.constant 0 : index
    %246 = vector.load %arg11[%c0_107, %c0_108] : memref<1x64xf32, #tpu.memory_space<vmem>>, vector<1x64xf32>
    %c0_109 = arith.constant 0 : index
    %c2 = arith.constant 2 : index
    %c0_110 = arith.constant 0 : index
    %247 = vector.load %arg2[%c0_109, %c2, %c0_110] : memref<1x8x32xbf16, #tpu.memory_space<vmem>>, vector<1x1x32xbf16>
    %248 = vector.shape_cast %247 : vector<1x1x32xbf16> to vector<1x32xbf16>
    %c0_111 = arith.constant 0 : index
    %c5 = arith.constant 5 : index
    %c0_112 = arith.constant 0 : index
    %249 = vector.load %arg3[%c0_111, %c5, %c0_112] : memref<1x8x32xbf16, #tpu.memory_space<vmem>>, vector<1x1x32xbf16>
    %250 = vector.shape_cast %249 : vector<1x1x32xbf16> to vector<1x32xbf16>
    %251 = arith.truncf %245 : vector<1x64xf32> to vector<1x64xbf16>
    %252 = tpu.concatenate %248, %250, %251 in 1 : vector<1x32xbf16>, vector<1x32xbf16>, vector<1x64xbf16> -> vector<1x128xbf16>
    %cst_113 = arith.constant dense<0.000000e+00> : vector<1x256xf32>
    %253 = tpu.matmul %252, %3, %cst_113 {dimension_numbers = #tpu.dot_dimension_numbers<[1], [0], [0], [1], [0, 0, 1, 1], [], []>} : vector<1x128xbf16>, vector<128x256xbf16>, vector<1x256xf32> -> vector<1x256xf32>
    %254 = arith.addf %253, %4 : vector<1x256xf32>
    %255 = vector.extract_strided_slice %254 {offsets = [0, 0], sizes = [1, 128], strides = [1, 1]} : vector<1x256xf32> to vector<1x128xf32>
    %256 = vector.extract_strided_slice %246 {offsets = [0, 0], sizes = [1, 32], strides = [1, 1]} : vector<1x64xf32> to vector<1x32xf32>
    %257 = vector.extract_strided_slice %255 {offsets = [0, 0], sizes = [1, 32], strides = [1, 1]} : vector<1x128xf32> to vector<1x32xf32>
    %cst_114 = arith.constant 5.000000e-01 : f32
    %258 = vector.broadcast %cst_114 : f32 to vector<1x32xf32>
    %259 = arith.mulf %258, %257 : vector<1x32xf32>
    %260 = math.tanh %259 : vector<1x32xf32>
    %cst_115 = arith.constant 1.000000e+00 : f32
    %261 = vector.broadcast %cst_115 : f32 to vector<1x32xf32>
    %262 = arith.addf %260, %261 : vector<1x32xf32>
    %cst_116 = arith.constant 5.000000e-01 : f32
    %263 = vector.broadcast %cst_116 : f32 to vector<1x32xf32>
    %264 = arith.mulf %263, %262 : vector<1x32xf32>
    %265 = vector.extract_strided_slice %255 {offsets = [0, 32], sizes = [1, 32], strides = [1, 1]} : vector<1x128xf32> to vector<1x32xf32>
    %cst_117 = arith.constant 5.000000e-01 : f32
    %266 = vector.broadcast %cst_117 : f32 to vector<1x32xf32>
    %267 = arith.mulf %266, %265 : vector<1x32xf32>
    %268 = math.tanh %267 : vector<1x32xf32>
    %cst_118 = arith.constant 1.000000e+00 : f32
    %269 = vector.broadcast %cst_118 : f32 to vector<1x32xf32>
    %270 = arith.addf %268, %269 : vector<1x32xf32>
    %cst_119 = arith.constant 5.000000e-01 : f32
    %271 = vector.broadcast %cst_119 : f32 to vector<1x32xf32>
    %272 = arith.mulf %271, %270 : vector<1x32xf32>
    %273 = vector.extract_strided_slice %255 {offsets = [0, 64], sizes = [1, 32], strides = [1, 1]} : vector<1x128xf32> to vector<1x32xf32>
    %274 = math.tanh %273 : vector<1x32xf32>
    %275 = vector.extract_strided_slice %255 {offsets = [0, 96], sizes = [1, 32], strides = [1, 1]} : vector<1x128xf32> to vector<1x32xf32>
    %cst_120 = arith.constant 5.000000e-01 : f32
    %276 = vector.broadcast %cst_120 : f32 to vector<1x32xf32>
    %277 = arith.mulf %276, %275 : vector<1x32xf32>
    %278 = math.tanh %277 : vector<1x32xf32>
    %cst_121 = arith.constant 1.000000e+00 : f32
    %279 = vector.broadcast %cst_121 : f32 to vector<1x32xf32>
    %280 = arith.addf %278, %279 : vector<1x32xf32>
    %cst_122 = arith.constant 5.000000e-01 : f32
    %281 = vector.broadcast %cst_122 : f32 to vector<1x32xf32>
    %282 = arith.mulf %281, %280 : vector<1x32xf32>
    %283 = arith.mulf %272, %256 : vector<1x32xf32>
    %284 = arith.mulf %264, %274 : vector<1x32xf32>
    %285 = arith.addf %283, %284 : vector<1x32xf32>
    %286 = math.tanh %285 : vector<1x32xf32>
    %287 = arith.mulf %282, %286 : vector<1x32xf32>
    %288 = vector.extract_strided_slice %254 {offsets = [0, 128], sizes = [1, 128], strides = [1, 1]} : vector<1x256xf32> to vector<1x128xf32>
    %289 = vector.extract_strided_slice %246 {offsets = [0, 32], sizes = [1, 32], strides = [1, 1]} : vector<1x64xf32> to vector<1x32xf32>
    %290 = vector.extract_strided_slice %288 {offsets = [0, 0], sizes = [1, 32], strides = [1, 1]} : vector<1x128xf32> to vector<1x32xf32>
    %cst_123 = arith.constant 5.000000e-01 : f32
    %291 = vector.broadcast %cst_123 : f32 to vector<1x32xf32>
    %292 = arith.mulf %291, %290 : vector<1x32xf32>
    %293 = math.tanh %292 : vector<1x32xf32>
    %cst_124 = arith.constant 1.000000e+00 : f32
    %294 = vector.broadcast %cst_124 : f32 to vector<1x32xf32>
    %295 = arith.addf %293, %294 : vector<1x32xf32>
    %cst_125 = arith.constant 5.000000e-01 : f32
    %296 = vector.broadcast %cst_125 : f32 to vector<1x32xf32>
    %297 = arith.mulf %296, %295 : vector<1x32xf32>
    %298 = vector.extract_strided_slice %288 {offsets = [0, 32], sizes = [1, 32], strides = [1, 1]} : vector<1x128xf32> to vector<1x32xf32>
    %cst_126 = arith.constant 5.000000e-01 : f32
    %299 = vector.broadcast %cst_126 : f32 to vector<1x32xf32>
    %300 = arith.mulf %299, %298 : vector<1x32xf32>
    %301 = math.tanh %300 : vector<1x32xf32>
    %cst_127 = arith.constant 1.000000e+00 : f32
    %302 = vector.broadcast %cst_127 : f32 to vector<1x32xf32>
    %303 = arith.addf %301, %302 : vector<1x32xf32>
    %cst_128 = arith.constant 5.000000e-01 : f32
    %304 = vector.broadcast %cst_128 : f32 to vector<1x32xf32>
    %305 = arith.mulf %304, %303 : vector<1x32xf32>
    %306 = vector.extract_strided_slice %288 {offsets = [0, 64], sizes = [1, 32], strides = [1, 1]} : vector<1x128xf32> to vector<1x32xf32>
    %307 = math.tanh %306 : vector<1x32xf32>
    %308 = vector.extract_strided_slice %288 {offsets = [0, 96], sizes = [1, 32], strides = [1, 1]} : vector<1x128xf32> to vector<1x32xf32>
    %cst_129 = arith.constant 5.000000e-01 : f32
    %309 = vector.broadcast %cst_129 : f32 to vector<1x32xf32>
    %310 = arith.mulf %309, %308 : vector<1x32xf32>
    %311 = math.tanh %310 : vector<1x32xf32>
    %cst_130 = arith.constant 1.000000e+00 : f32
    %312 = vector.broadcast %cst_130 : f32 to vector<1x32xf32>
    %313 = arith.addf %311, %312 : vector<1x32xf32>
    %cst_131 = arith.constant 5.000000e-01 : f32
    %314 = vector.broadcast %cst_131 : f32 to vector<1x32xf32>
    %315 = arith.mulf %314, %313 : vector<1x32xf32>
    %316 = arith.mulf %305, %289 : vector<1x32xf32>
    %317 = arith.mulf %297, %307 : vector<1x32xf32>
    %318 = arith.addf %316, %317 : vector<1x32xf32>
    %319 = math.tanh %318 : vector<1x32xf32>
    %320 = arith.mulf %315, %319 : vector<1x32xf32>
    %c0_132 = arith.constant 0 : index
    %c2_133 = arith.constant 2 : index
    %c0_134 = arith.constant 0 : index
    %321 = vector.load %arg4[%c0_132, %c2_133, %c0_134] : memref<1x8x1xf32, #tpu.memory_space<vmem>>, vector<1x1x1xf32>
    %322 = vector.shape_cast %321 : vector<1x1x1xf32> to vector<1x1xf32>
    %cst_135 = arith.constant 0.000000e+00 : f32
    %323 = vector.broadcast %cst_135 : f32 to vector<1x1xf32>
    %324 = arith.cmpf ogt, %322, %323 : vector<1x1xf32>
    %c0_136 = arith.constant 0 : index
    %c5_137 = arith.constant 5 : index
    %c0_138 = arith.constant 0 : index
    %325 = vector.load %arg5[%c0_136, %c5_137, %c0_138] : memref<1x8x1xf32, #tpu.memory_space<vmem>>, vector<1x1x1xf32>
    %326 = vector.shape_cast %325 : vector<1x1x1xf32> to vector<1x1xf32>
    %cst_139 = arith.constant 0.000000e+00 : f32
    %327 = vector.broadcast %cst_139 : f32 to vector<1x1xf32>
    %328 = arith.cmpf ogt, %326, %327 : vector<1x1xf32>
    %cst_140 = arith.constant 0.000000e+00 : f32
    %329 = vector.shape_cast %324 : vector<1x1xi1> to vector<1x1xi1>
    %330 = vector.broadcast %329 : vector<1x1xi1> to vector<1x32xi1>
    %331 = vector.broadcast %cst_140 : f32 to vector<1x32xf32>
    %332 = arith.select %330, %287, %331 : vector<1x32xi1>, vector<1x32xf32>
    %333 = arith.truncf %332 : vector<1x32xf32> to vector<1x32xbf16>
    %c0_141 = arith.constant 0 : index
    %c2_142 = arith.constant 2 : index
    %c0_143 = arith.constant 0 : index
    %334 = vector.load %arg8[%c0_141, %c2_142, %c0_143] : memref<1x8x32xbf16, #tpu.memory_space<vmem>>, vector<1x1x32xbf16>
    %335 = vector.shape_cast %334 : vector<1x1x32xbf16> to vector<1x32xbf16>
    %336 = vector.shape_cast %333 : vector<1x32xbf16> to vector<1x1x32xbf16>
    tpu.vector_store %arg8[%c0_141, %c2_142, %c0_143], %336 {strides = array<i32>} : memref<1x8x32xbf16, #tpu.memory_space<vmem>>, vector<1x1x32xbf16>,
    %cst_144 = arith.constant 0.000000e+00 : f32
    %337 = vector.shape_cast %328 : vector<1x1xi1> to vector<1x1xi1>
    %338 = vector.broadcast %337 : vector<1x1xi1> to vector<1x32xi1>
    %339 = vector.broadcast %cst_144 : f32 to vector<1x32xf32>
    %340 = arith.select %338, %320, %339 : vector<1x32xi1>, vector<1x32xf32>
    %341 = arith.truncf %340 : vector<1x32xf32> to vector<1x32xbf16>
    %c0_145 = arith.constant 0 : index
    %c5_146 = arith.constant 5 : index
    %c0_147 = arith.constant 0 : index
    %342 = vector.load %arg9[%c0_145, %c5_146, %c0_147] : memref<1x8x32xbf16, #tpu.memory_space<vmem>>, vector<1x1x32xbf16>
    %343 = vector.shape_cast %342 : vector<1x1x32xbf16> to vector<1x32xbf16>
    %344 = vector.shape_cast %341 : vector<1x32xbf16> to vector<1x1x32xbf16>
    tpu.vector_store %arg9[%c0_145, %c5_146, %c0_147], %344 {strides = array<i32>} : memref<1x8x32xbf16, #tpu.memory_space<vmem>>, vector<1x1x32xbf16>,
    %345 = vector.extract_strided_slice %245 {offsets = [0, 0], sizes = [1, 32], strides = [1, 1]} : vector<1x64xf32> to vector<1x32xf32>
    %346 = vector.shape_cast %324 : vector<1x1xi1> to vector<1x1xi1>
    %347 = vector.broadcast %346 : vector<1x1xi1> to vector<1x32xi1>
    %348 = arith.select %347, %287, %345 : vector<1x32xi1>, vector<1x32xf32>
    %c0_148 = arith.constant 0 : index
    %c0_149 = arith.constant 0 : index
    %349 = vector.load %arg10[%c0_148, %c0_149] : memref<1x64xf32, #tpu.memory_space<vmem>>, vector<1x32xf32>
    tpu.vector_store %arg10[%c0_148, %c0_149], %348 {strides = array<i32>} : memref<1x64xf32, #tpu.memory_space<vmem>>, vector<1x32xf32>,
    %350 = vector.extract_strided_slice %245 {offsets = [0, 32], sizes = [1, 32], strides = [1, 1]} : vector<1x64xf32> to vector<1x32xf32>
    %351 = vector.shape_cast %328 : vector<1x1xi1> to vector<1x1xi1>
    %352 = vector.broadcast %351 : vector<1x1xi1> to vector<1x32xi1>
    %353 = arith.select %352, %320, %350 : vector<1x32xi1>, vector<1x32xf32>
    %c0_150 = arith.constant 0 : index
    %c32_151 = arith.constant 32 : index
    %354 = vector.load %arg10[%c0_150, %c32_151] : memref<1x64xf32, #tpu.memory_space<vmem>>, vector<1x32xf32>
    tpu.vector_store %arg10[%c0_150, %c32_151], %353 {strides = array<i32>} : memref<1x64xf32, #tpu.memory_space<vmem>>, vector<1x32xf32>,
    %355 = vector.extract_strided_slice %246 {offsets = [0, 0], sizes = [1, 32], strides = [1, 1]} : vector<1x64xf32> to vector<1x32xf32>
    %356 = vector.shape_cast %324 : vector<1x1xi1> to vector<1x1xi1>
    %357 = vector.broadcast %356 : vector<1x1xi1> to vector<1x32xi1>
    %358 = arith.select %357, %285, %355 : vector<1x32xi1>, vector<1x32xf32>
    %c0_152 = arith.constant 0 : index
    %c0_153 = arith.constant 0 : index
    %359 = vector.load %arg11[%c0_152, %c0_153] : memref<1x64xf32, #tpu.memory_space<vmem>>, vector<1x32xf32>
    tpu.vector_store %arg11[%c0_152, %c0_153], %358 {strides = array<i32>} : memref<1x64xf32, #tpu.memory_space<vmem>>, vector<1x32xf32>,
    %360 = vector.extract_strided_slice %246 {offsets = [0, 32], sizes = [1, 32], strides = [1, 1]} : vector<1x64xf32> to vector<1x32xf32>
    %361 = vector.shape_cast %328 : vector<1x1xi1> to vector<1x1xi1>
    %362 = vector.broadcast %361 : vector<1x1xi1> to vector<1x32xi1>
    %363 = arith.select %362, %318, %360 : vector<1x32xi1>, vector<1x32xf32>
    %c0_154 = arith.constant 0 : index
    %c32_155 = arith.constant 32 : index
    %364 = vector.load %arg11[%c0_154, %c32_155] : memref<1x64xf32, #tpu.memory_space<vmem>>, vector<1x32xf32>
    tpu.vector_store %arg11[%c0_154, %c32_155], %363 {strides = array<i32>} : memref<1x64xf32, #tpu.memory_space<vmem>>, vector<1x32xf32>,
    %c0_156 = arith.constant 0 : index
    %c0_157 = arith.constant 0 : index
    %365 = vector.load %arg10[%c0_156, %c0_157] : memref<1x64xf32, #tpu.memory_space<vmem>>, vector<1x64xf32>
    %c0_158 = arith.constant 0 : index
    %c0_159 = arith.constant 0 : index
    %366 = vector.load %arg11[%c0_158, %c0_159] : memref<1x64xf32, #tpu.memory_space<vmem>>, vector<1x64xf32>
    %c0_160 = arith.constant 0 : index
    %c3 = arith.constant 3 : index
    %c0_161 = arith.constant 0 : index
    %367 = vector.load %arg2[%c0_160, %c3, %c0_161] : memref<1x8x32xbf16, #tpu.memory_space<vmem>>, vector<1x1x32xbf16>
    %368 = vector.shape_cast %367 : vector<1x1x32xbf16> to vector<1x32xbf16>
    %c0_162 = arith.constant 0 : index
    %c4 = arith.constant 4 : index
    %c0_163 = arith.constant 0 : index
    %369 = vector.load %arg3[%c0_162, %c4, %c0_163] : memref<1x8x32xbf16, #tpu.memory_space<vmem>>, vector<1x1x32xbf16>
    %370 = vector.shape_cast %369 : vector<1x1x32xbf16> to vector<1x32xbf16>
    %371 = arith.truncf %365 : vector<1x64xf32> to vector<1x64xbf16>
    %372 = tpu.concatenate %368, %370, %371 in 1 : vector<1x32xbf16>, vector<1x32xbf16>, vector<1x64xbf16> -> vector<1x128xbf16>
    %cst_164 = arith.constant dense<0.000000e+00> : vector<1x256xf32>
    %373 = tpu.matmul %372, %3, %cst_164 {dimension_numbers = #tpu.dot_dimension_numbers<[1], [0], [0], [1], [0, 0, 1, 1], [], []>} : vector<1x128xbf16>, vector<128x256xbf16>, vector<1x256xf32> -> vector<1x256xf32>
    %374 = arith.addf %373, %4 : vector<1x256xf32>
    %375 = vector.extract_strided_slice %374 {offsets = [0, 0], sizes = [1, 128], strides = [1, 1]} : vector<1x256xf32> to vector<1x128xf32>
    %376 = vector.extract_strided_slice %366 {offsets = [0, 0], sizes = [1, 32], strides = [1, 1]} : vector<1x64xf32> to vector<1x32xf32>
    %377 = vector.extract_strided_slice %375 {offsets = [0, 0], sizes = [1, 32], strides = [1, 1]} : vector<1x128xf32> to vector<1x32xf32>
    %cst_165 = arith.constant 5.000000e-01 : f32
    %378 = vector.broadcast %cst_165 : f32 to vector<1x32xf32>
    %379 = arith.mulf %378, %377 : vector<1x32xf32>
    %380 = math.tanh %379 : vector<1x32xf32>
    %cst_166 = arith.constant 1.000000e+00 : f32
    %381 = vector.broadcast %cst_166 : f32 to vector<1x32xf32>
    %382 = arith.addf %380, %381 : vector<1x32xf32>
    %cst_167 = arith.constant 5.000000e-01 : f32
    %383 = vector.broadcast %cst_167 : f32 to vector<1x32xf32>
    %384 = arith.mulf %383, %382 : vector<1x32xf32>
    %385 = vector.extract_strided_slice %375 {offsets = [0, 32], sizes = [1, 32], strides = [1, 1]} : vector<1x128xf32> to vector<1x32xf32>
    %cst_168 = arith.constant 5.000000e-01 : f32
    %386 = vector.broadcast %cst_168 : f32 to vector<1x32xf32>
    %387 = arith.mulf %386, %385 : vector<1x32xf32>
    %388 = math.tanh %387 : vector<1x32xf32>
    %cst_169 = arith.constant 1.000000e+00 : f32
    %389 = vector.broadcast %cst_169 : f32 to vector<1x32xf32>
    %390 = arith.addf %388, %389 : vector<1x32xf32>
    %cst_170 = arith.constant 5.000000e-01 : f32
    %391 = vector.broadcast %cst_170 : f32 to vector<1x32xf32>
    %392 = arith.mulf %391, %390 : vector<1x32xf32>
    %393 = vector.extract_strided_slice %375 {offsets = [0, 64], sizes = [1, 32], strides = [1, 1]} : vector<1x128xf32> to vector<1x32xf32>
    %394 = math.tanh %393 : vector<1x32xf32>
    %395 = vector.extract_strided_slice %375 {offsets = [0, 96], sizes = [1, 32], strides = [1, 1]} : vector<1x128xf32> to vector<1x32xf32>
    %cst_171 = arith.constant 5.000000e-01 : f32
    %396 = vector.broadcast %cst_171 : f32 to vector<1x32xf32>
    %397 = arith.mulf %396, %395 : vector<1x32xf32>
    %398 = math.tanh %397 : vector<1x32xf32>
    %cst_172 = arith.constant 1.000000e+00 : f32
    %399 = vector.broadcast %cst_172 : f32 to vector<1x32xf32>
    %400 = arith.addf %398, %399 : vector<1x32xf32>
    %cst_173 = arith.constant 5.000000e-01 : f32
    %401 = vector.broadcast %cst_173 : f32 to vector<1x32xf32>
    %402 = arith.mulf %401, %400 : vector<1x32xf32>
    %403 = arith.mulf %392, %376 : vector<1x32xf32>
    %404 = arith.mulf %384, %394 : vector<1x32xf32>
    %405 = arith.addf %403, %404 : vector<1x32xf32>
    %406 = math.tanh %405 : vector<1x32xf32>
    %407 = arith.mulf %402, %406 : vector<1x32xf32>
    %408 = vector.extract_strided_slice %374 {offsets = [0, 128], sizes = [1, 128], strides = [1, 1]} : vector<1x256xf32> to vector<1x128xf32>
    %409 = vector.extract_strided_slice %366 {offsets = [0, 32], sizes = [1, 32], strides = [1, 1]} : vector<1x64xf32> to vector<1x32xf32>
    %410 = vector.extract_strided_slice %408 {offsets = [0, 0], sizes = [1, 32], strides = [1, 1]} : vector<1x128xf32> to vector<1x32xf32>
    %cst_174 = arith.constant 5.000000e-01 : f32
    %411 = vector.broadcast %cst_174 : f32 to vector<1x32xf32>
    %412 = arith.mulf %411, %410 : vector<1x32xf32>
    %413 = math.tanh %412 : vector<1x32xf32>
    %cst_175 = arith.constant 1.000000e+00 : f32
    %414 = vector.broadcast %cst_175 : f32 to vector<1x32xf32>
    %415 = arith.addf %413, %414 : vector<1x32xf32>
    %cst_176 = arith.constant 5.000000e-01 : f32
    %416 = vector.broadcast %cst_176 : f32 to vector<1x32xf32>
    %417 = arith.mulf %416, %415 : vector<1x32xf32>
    %418 = vector.extract_strided_slice %408 {offsets = [0, 32], sizes = [1, 32], strides = [1, 1]} : vector<1x128xf32> to vector<1x32xf32>
    %cst_177 = arith.constant 5.000000e-01 : f32
    %419 = vector.broadcast %cst_177 : f32 to vector<1x32xf32>
    %420 = arith.mulf %419, %418 : vector<1x32xf32>
    %421 = math.tanh %420 : vector<1x32xf32>
    %cst_178 = arith.constant 1.000000e+00 : f32
    %422 = vector.broadcast %cst_178 : f32 to vector<1x32xf32>
    %423 = arith.addf %421, %422 : vector<1x32xf32>
    %cst_179 = arith.constant 5.000000e-01 : f32
    %424 = vector.broadcast %cst_179 : f32 to vector<1x32xf32>
    %425 = arith.mulf %424, %423 : vector<1x32xf32>
    %426 = vector.extract_strided_slice %408 {offsets = [0, 64], sizes = [1, 32], strides = [1, 1]} : vector<1x128xf32> to vector<1x32xf32>
    %427 = math.tanh %426 : vector<1x32xf32>
    %428 = vector.extract_strided_slice %408 {offsets = [0, 96], sizes = [1, 32], strides = [1, 1]} : vector<1x128xf32> to vector<1x32xf32>
    %cst_180 = arith.constant 5.000000e-01 : f32
    %429 = vector.broadcast %cst_180 : f32 to vector<1x32xf32>
    %430 = arith.mulf %429, %428 : vector<1x32xf32>
    %431 = math.tanh %430 : vector<1x32xf32>
    %cst_181 = arith.constant 1.000000e+00 : f32
    %432 = vector.broadcast %cst_181 : f32 to vector<1x32xf32>
    %433 = arith.addf %431, %432 : vector<1x32xf32>
    %cst_182 = arith.constant 5.000000e-01 : f32
    %434 = vector.broadcast %cst_182 : f32 to vector<1x32xf32>
    %435 = arith.mulf %434, %433 : vector<1x32xf32>
    %436 = arith.mulf %425, %409 : vector<1x32xf32>
    %437 = arith.mulf %417, %427 : vector<1x32xf32>
    %438 = arith.addf %436, %437 : vector<1x32xf32>
    %439 = math.tanh %438 : vector<1x32xf32>
    %440 = arith.mulf %435, %439 : vector<1x32xf32>
    %c0_183 = arith.constant 0 : index
    %c3_184 = arith.constant 3 : index
    %c0_185 = arith.constant 0 : index
    %441 = vector.load %arg4[%c0_183, %c3_184, %c0_185] : memref<1x8x1xf32, #tpu.memory_space<vmem>>, vector<1x1x1xf32>
    %442 = vector.shape_cast %441 : vector<1x1x1xf32> to vector<1x1xf32>
    %cst_186 = arith.constant 0.000000e+00 : f32
    %443 = vector.broadcast %cst_186 : f32 to vector<1x1xf32>
    %444 = arith.cmpf ogt, %442, %443 : vector<1x1xf32>
    %c0_187 = arith.constant 0 : index
    %c4_188 = arith.constant 4 : index
    %c0_189 = arith.constant 0 : index
    %445 = vector.load %arg5[%c0_187, %c4_188, %c0_189] : memref<1x8x1xf32, #tpu.memory_space<vmem>>, vector<1x1x1xf32>
    %446 = vector.shape_cast %445 : vector<1x1x1xf32> to vector<1x1xf32>
    %cst_190 = arith.constant 0.000000e+00 : f32
    %447 = vector.broadcast %cst_190 : f32 to vector<1x1xf32>
    %448 = arith.cmpf ogt, %446, %447 : vector<1x1xf32>
    %cst_191 = arith.constant 0.000000e+00 : f32
    %449 = vector.shape_cast %444 : vector<1x1xi1> to vector<1x1xi1>
    %450 = vector.broadcast %449 : vector<1x1xi1> to vector<1x32xi1>
    %451 = vector.broadcast %cst_191 : f32 to vector<1x32xf32>
    %452 = arith.select %450, %407, %451 : vector<1x32xi1>, vector<1x32xf32>
    %453 = arith.truncf %452 : vector<1x32xf32> to vector<1x32xbf16>
    %c0_192 = arith.constant 0 : index
    %c3_193 = arith.constant 3 : index
    %c0_194 = arith.constant 0 : index
    %454 = vector.load %arg8[%c0_192, %c3_193, %c0_194] : memref<1x8x32xbf16, #tpu.memory_space<vmem>>, vector<1x1x32xbf16>
    %455 = vector.shape_cast %454 : vector<1x1x32xbf16> to vector<1x32xbf16>
    %456 = vector.shape_cast %453 : vector<1x32xbf16> to vector<1x1x32xbf16>
    tpu.vector_store %arg8[%c0_192, %c3_193, %c0_194], %456 {strides = array<i32>} : memref<1x8x32xbf16, #tpu.memory_space<vmem>>, vector<1x1x32xbf16>,
    %cst_195 = arith.constant 0.000000e+00 : f32
    %457 = vector.shape_cast %448 : vector<1x1xi1> to vector<1x1xi1>
    %458 = vector.broadcast %457 : vector<1x1xi1> to vector<1x32xi1>
    %459 = vector.broadcast %cst_195 : f32 to vector<1x32xf32>
    %460 = arith.select %458, %440, %459 : vector<1x32xi1>, vector<1x32xf32>
    %461 = arith.truncf %460 : vector<1x32xf32> to vector<1x32xbf16>
    %c0_196 = arith.constant 0 : index
    %c4_197 = arith.constant 4 : index
    %c0_198 = arith.constant 0 : index
    %462 = vector.load %arg9[%c0_196, %c4_197, %c0_198] : memref<1x8x32xbf16, #tpu.memory_space<vmem>>, vector<1x1x32xbf16>
    %463 = vector.shape_cast %462 : vector<1x1x32xbf16> to vector<1x32xbf16>
    %464 = vector.shape_cast %461 : vector<1x32xbf16> to vector<1x1x32xbf16>
    tpu.vector_store %arg9[%c0_196, %c4_197, %c0_198], %464 {strides = array<i32>} : memref<1x8x32xbf16, #tpu.memory_space<vmem>>, vector<1x1x32xbf16>,
    %465 = vector.extract_strided_slice %365 {offsets = [0, 0], sizes = [1, 32], strides = [1, 1]} : vector<1x64xf32> to vector<1x32xf32>
    %466 = vector.shape_cast %444 : vector<1x1xi1> to vector<1x1xi1>
    %467 = vector.broadcast %466 : vector<1x1xi1> to vector<1x32xi1>
    %468 = arith.select %467, %407, %465 : vector<1x32xi1>, vector<1x32xf32>
    %c0_199 = arith.constant 0 : index
    %c0_200 = arith.constant 0 : index
    %469 = vector.load %arg10[%c0_199, %c0_200] : memref<1x64xf32, #tpu.memory_space<vmem>>, vector<1x32xf32>
    tpu.vector_store %arg10[%c0_199, %c0_200], %468 {strides = array<i32>} : memref<1x64xf32, #tpu.memory_space<vmem>>, vector<1x32xf32>,
    %470 = vector.extract_strided_slice %365 {offsets = [0, 32], sizes = [1, 32], strides = [1, 1]} : vector<1x64xf32> to vector<1x32xf32>
    %471 = vector.shape_cast %448 : vector<1x1xi1> to vector<1x1xi1>
    %472 = vector.broadcast %471 : vector<1x1xi1> to vector<1x32xi1>
    %473 = arith.select %472, %440, %470 : vector<1x32xi1>, vector<1x32xf32>
    %c0_201 = arith.constant 0 : index
    %c32_202 = arith.constant 32 : index
    %474 = vector.load %arg10[%c0_201, %c32_202] : memref<1x64xf32, #tpu.memory_space<vmem>>, vector<1x32xf32>
    tpu.vector_store %arg10[%c0_201, %c32_202], %473 {strides = array<i32>} : memref<1x64xf32, #tpu.memory_space<vmem>>, vector<1x32xf32>,
    %475 = vector.extract_strided_slice %366 {offsets = [0, 0], sizes = [1, 32], strides = [1, 1]} : vector<1x64xf32> to vector<1x32xf32>
    %476 = vector.shape_cast %444 : vector<1x1xi1> to vector<1x1xi1>
    %477 = vector.broadcast %476 : vector<1x1xi1> to vector<1x32xi1>
    %478 = arith.select %477, %405, %475 : vector<1x32xi1>, vector<1x32xf32>
    %c0_203 = arith.constant 0 : index
    %c0_204 = arith.constant 0 : index
    %479 = vector.load %arg11[%c0_203, %c0_204] : memref<1x64xf32, #tpu.memory_space<vmem>>, vector<1x32xf32>
    tpu.vector_store %arg11[%c0_203, %c0_204], %478 {strides = array<i32>} : memref<1x64xf32, #tpu.memory_space<vmem>>, vector<1x32xf32>,
    %480 = vector.extract_strided_slice %366 {offsets = [0, 32], sizes = [1, 32], strides = [1, 1]} : vector<1x64xf32> to vector<1x32xf32>
    %481 = vector.shape_cast %448 : vector<1x1xi1> to vector<1x1xi1>
    %482 = vector.broadcast %481 : vector<1x1xi1> to vector<1x32xi1>
    %483 = arith.select %482, %438, %480 : vector<1x32xi1>, vector<1x32xf32>
    %c0_205 = arith.constant 0 : index
    %c32_206 = arith.constant 32 : index
    %484 = vector.load %arg11[%c0_205, %c32_206] : memref<1x64xf32, #tpu.memory_space<vmem>>, vector<1x32xf32>
    tpu.vector_store %arg11[%c0_205, %c32_206], %483 {strides = array<i32>} : memref<1x64xf32, #tpu.memory_space<vmem>>, vector<1x32xf32>,
    %c0_207 = arith.constant 0 : index
    %c0_208 = arith.constant 0 : index
    %485 = vector.load %arg10[%c0_207, %c0_208] : memref<1x64xf32, #tpu.memory_space<vmem>>, vector<1x64xf32>
    %c0_209 = arith.constant 0 : index
    %c0_210 = arith.constant 0 : index
    %486 = vector.load %arg11[%c0_209, %c0_210] : memref<1x64xf32, #tpu.memory_space<vmem>>, vector<1x64xf32>
    %c0_211 = arith.constant 0 : index
    %c4_212 = arith.constant 4 : index
    %c0_213 = arith.constant 0 : index
    %487 = vector.load %arg2[%c0_211, %c4_212, %c0_213] : memref<1x8x32xbf16, #tpu.memory_space<vmem>>, vector<1x1x32xbf16>
    %488 = vector.shape_cast %487 : vector<1x1x32xbf16> to vector<1x32xbf16>
    %c0_214 = arith.constant 0 : index
    %c3_215 = arith.constant 3 : index
    %c0_216 = arith.constant 0 : index
    %489 = vector.load %arg3[%c0_214, %c3_215, %c0_216] : memref<1x8x32xbf16, #tpu.memory_space<vmem>>, vector<1x1x32xbf16>
    %490 = vector.shape_cast %489 : vector<1x1x32xbf16> to vector<1x32xbf16>
    %491 = arith.truncf %485 : vector<1x64xf32> to vector<1x64xbf16>
    %492 = tpu.concatenate %488, %490, %491 in 1 : vector<1x32xbf16>, vector<1x32xbf16>, vector<1x64xbf16> -> vector<1x128xbf16>
    %cst_217 = arith.constant dense<0.000000e+00> : vector<1x256xf32>
    %493 = tpu.matmul %492, %3, %cst_217 {dimension_numbers = #tpu.dot_dimension_numbers<[1], [0], [0], [1], [0, 0, 1, 1], [], []>} : vector<1x128xbf16>, vector<128x256xbf16>, vector<1x256xf32> -> vector<1x256xf32>
    %494 = arith.addf %493, %4 : vector<1x256xf32>
    %495 = vector.extract_strided_slice %494 {offsets = [0, 0], sizes = [1, 128], strides = [1, 1]} : vector<1x256xf32> to vector<1x128xf32>
    %496 = vector.extract_strided_slice %486 {offsets = [0, 0], sizes = [1, 32], strides = [1, 1]} : vector<1x64xf32> to vector<1x32xf32>
    %497 = vector.extract_strided_slice %495 {offsets = [0, 0], sizes = [1, 32], strides = [1, 1]} : vector<1x128xf32> to vector<1x32xf32>
    %cst_218 = arith.constant 5.000000e-01 : f32
    %498 = vector.broadcast %cst_218 : f32 to vector<1x32xf32>
    %499 = arith.mulf %498, %497 : vector<1x32xf32>
    %500 = math.tanh %499 : vector<1x32xf32>
    %cst_219 = arith.constant 1.000000e+00 : f32
    %501 = vector.broadcast %cst_219 : f32 to vector<1x32xf32>
    %502 = arith.addf %500, %501 : vector<1x32xf32>
    %cst_220 = arith.constant 5.000000e-01 : f32
    %503 = vector.broadcast %cst_220 : f32 to vector<1x32xf32>
    %504 = arith.mulf %503, %502 : vector<1x32xf32>
    %505 = vector.extract_strided_slice %495 {offsets = [0, 32], sizes = [1, 32], strides = [1, 1]} : vector<1x128xf32> to vector<1x32xf32>
    %cst_221 = arith.constant 5.000000e-01 : f32
    %506 = vector.broadcast %cst_221 : f32 to vector<1x32xf32>
    %507 = arith.mulf %506, %505 : vector<1x32xf32>
    %508 = math.tanh %507 : vector<1x32xf32>
    %cst_222 = arith.constant 1.000000e+00 : f32
    %509 = vector.broadcast %cst_222 : f32 to vector<1x32xf32>
    %510 = arith.addf %508, %509 : vector<1x32xf32>
    %cst_223 = arith.constant 5.000000e-01 : f32
    %511 = vector.broadcast %cst_223 : f32 to vector<1x32xf32>
    %512 = arith.mulf %511, %510 : vector<1x32xf32>
    %513 = vector.extract_strided_slice %495 {offsets = [0, 64], sizes = [1, 32], strides = [1, 1]} : vector<1x128xf32> to vector<1x32xf32>
    %514 = math.tanh %513 : vector<1x32xf32>
    %515 = vector.extract_strided_slice %495 {offsets = [0, 96], sizes = [1, 32], strides = [1, 1]} : vector<1x128xf32> to vector<1x32xf32>
    %cst_224 = arith.constant 5.000000e-01 : f32
    %516 = vector.broadcast %cst_224 : f32 to vector<1x32xf32>
    %517 = arith.mulf %516, %515 : vector<1x32xf32>
    %518 = math.tanh %517 : vector<1x32xf32>
    %cst_225 = arith.constant 1.000000e+00 : f32
    %519 = vector.broadcast %cst_225 : f32 to vector<1x32xf32>
    %520 = arith.addf %518, %519 : vector<1x32xf32>
    %cst_226 = arith.constant 5.000000e-01 : f32
    %521 = vector.broadcast %cst_226 : f32 to vector<1x32xf32>
    %522 = arith.mulf %521, %520 : vector<1x32xf32>
    %523 = arith.mulf %512, %496 : vector<1x32xf32>
    %524 = arith.mulf %504, %514 : vector<1x32xf32>
    %525 = arith.addf %523, %524 : vector<1x32xf32>
    %526 = math.tanh %525 : vector<1x32xf32>
    %527 = arith.mulf %522, %526 : vector<1x32xf32>
    %528 = vector.extract_strided_slice %494 {offsets = [0, 128], sizes = [1, 128], strides = [1, 1]} : vector<1x256xf32> to vector<1x128xf32>
    %529 = vector.extract_strided_slice %486 {offsets = [0, 32], sizes = [1, 32], strides = [1, 1]} : vector<1x64xf32> to vector<1x32xf32>
    %530 = vector.extract_strided_slice %528 {offsets = [0, 0], sizes = [1, 32], strides = [1, 1]} : vector<1x128xf32> to vector<1x32xf32>
    %cst_227 = arith.constant 5.000000e-01 : f32
    %531 = vector.broadcast %cst_227 : f32 to vector<1x32xf32>
    %532 = arith.mulf %531, %530 : vector<1x32xf32>
    %533 = math.tanh %532 : vector<1x32xf32>
    %cst_228 = arith.constant 1.000000e+00 : f32
    %534 = vector.broadcast %cst_228 : f32 to vector<1x32xf32>
    %535 = arith.addf %533, %534 : vector<1x32xf32>
    %cst_229 = arith.constant 5.000000e-01 : f32
    %536 = vector.broadcast %cst_229 : f32 to vector<1x32xf32>
    %537 = arith.mulf %536, %535 : vector<1x32xf32>
    %538 = vector.extract_strided_slice %528 {offsets = [0, 32], sizes = [1, 32], strides = [1, 1]} : vector<1x128xf32> to vector<1x32xf32>
    %cst_230 = arith.constant 5.000000e-01 : f32
    %539 = vector.broadcast %cst_230 : f32 to vector<1x32xf32>
    %540 = arith.mulf %539, %538 : vector<1x32xf32>
    %541 = math.tanh %540 : vector<1x32xf32>
    %cst_231 = arith.constant 1.000000e+00 : f32
    %542 = vector.broadcast %cst_231 : f32 to vector<1x32xf32>
    %543 = arith.addf %541, %542 : vector<1x32xf32>
    %cst_232 = arith.constant 5.000000e-01 : f32
    %544 = vector.broadcast %cst_232 : f32 to vector<1x32xf32>
    %545 = arith.mulf %544, %543 : vector<1x32xf32>
    %546 = vector.extract_strided_slice %528 {offsets = [0, 64], sizes = [1, 32], strides = [1, 1]} : vector<1x128xf32> to vector<1x32xf32>
    %547 = math.tanh %546 : vector<1x32xf32>
    %548 = vector.extract_strided_slice %528 {offsets = [0, 96], sizes = [1, 32], strides = [1, 1]} : vector<1x128xf32> to vector<1x32xf32>
    %cst_233 = arith.constant 5.000000e-01 : f32
    %549 = vector.broadcast %cst_233 : f32 to vector<1x32xf32>
    %550 = arith.mulf %549, %548 : vector<1x32xf32>
    %551 = math.tanh %550 : vector<1x32xf32>
    %cst_234 = arith.constant 1.000000e+00 : f32
    %552 = vector.broadcast %cst_234 : f32 to vector<1x32xf32>
    %553 = arith.addf %551, %552 : vector<1x32xf32>
    %cst_235 = arith.constant 5.000000e-01 : f32
    %554 = vector.broadcast %cst_235 : f32 to vector<1x32xf32>
    %555 = arith.mulf %554, %553 : vector<1x32xf32>
    %556 = arith.mulf %545, %529 : vector<1x32xf32>
    %557 = arith.mulf %537, %547 : vector<1x32xf32>
    %558 = arith.addf %556, %557 : vector<1x32xf32>
    %559 = math.tanh %558 : vector<1x32xf32>
    %560 = arith.mulf %555, %559 : vector<1x32xf32>
    %c0_236 = arith.constant 0 : index
    %c4_237 = arith.constant 4 : index
    %c0_238 = arith.constant 0 : index
    %561 = vector.load %arg4[%c0_236, %c4_237, %c0_238] : memref<1x8x1xf32, #tpu.memory_space<vmem>>, vector<1x1x1xf32>
    %562 = vector.shape_cast %561 : vector<1x1x1xf32> to vector<1x1xf32>
    %cst_239 = arith.constant 0.000000e+00 : f32
    %563 = vector.broadcast %cst_239 : f32 to vector<1x1xf32>
    %564 = arith.cmpf ogt, %562, %563 : vector<1x1xf32>
    %c0_240 = arith.constant 0 : index
    %c3_241 = arith.constant 3 : index
    %c0_242 = arith.constant 0 : index
    %565 = vector.load %arg5[%c0_240, %c3_241, %c0_242] : memref<1x8x1xf32, #tpu.memory_space<vmem>>, vector<1x1x1xf32>
    %566 = vector.shape_cast %565 : vector<1x1x1xf32> to vector<1x1xf32>
    %cst_243 = arith.constant 0.000000e+00 : f32
    %567 = vector.broadcast %cst_243 : f32 to vector<1x1xf32>
    %568 = arith.cmpf ogt, %566, %567 : vector<1x1xf32>
    %cst_244 = arith.constant 0.000000e+00 : f32
    %569 = vector.shape_cast %564 : vector<1x1xi1> to vector<1x1xi1>
    %570 = vector.broadcast %569 : vector<1x1xi1> to vector<1x32xi1>
    %571 = vector.broadcast %cst_244 : f32 to vector<1x32xf32>
    %572 = arith.select %570, %527, %571 : vector<1x32xi1>, vector<1x32xf32>
    %573 = arith.truncf %572 : vector<1x32xf32> to vector<1x32xbf16>
    %c0_245 = arith.constant 0 : index
    %c4_246 = arith.constant 4 : index
    %c0_247 = arith.constant 0 : index
    %574 = vector.load %arg8[%c0_245, %c4_246, %c0_247] : memref<1x8x32xbf16, #tpu.memory_space<vmem>>, vector<1x1x32xbf16>
    %575 = vector.shape_cast %574 : vector<1x1x32xbf16> to vector<1x32xbf16>
    %576 = vector.shape_cast %573 : vector<1x32xbf16> to vector<1x1x32xbf16>
    tpu.vector_store %arg8[%c0_245, %c4_246, %c0_247], %576 {strides = array<i32>} : memref<1x8x32xbf16, #tpu.memory_space<vmem>>, vector<1x1x32xbf16>,
    %cst_248 = arith.constant 0.000000e+00 : f32
    %577 = vector.shape_cast %568 : vector<1x1xi1> to vector<1x1xi1>
    %578 = vector.broadcast %577 : vector<1x1xi1> to vector<1x32xi1>
    %579 = vector.broadcast %cst_248 : f32 to vector<1x32xf32>
    %580 = arith.select %578, %560, %579 : vector<1x32xi1>, vector<1x32xf32>
    %581 = arith.truncf %580 : vector<1x32xf32> to vector<1x32xbf16>
    %c0_249 = arith.constant 0 : index
    %c3_250 = arith.constant 3 : index
    %c0_251 = arith.constant 0 : index
    %582 = vector.load %arg9[%c0_249, %c3_250, %c0_251] : memref<1x8x32xbf16, #tpu.memory_space<vmem>>, vector<1x1x32xbf16>
    %583 = vector.shape_cast %582 : vector<1x1x32xbf16> to vector<1x32xbf16>
    %584 = vector.shape_cast %581 : vector<1x32xbf16> to vector<1x1x32xbf16>
    tpu.vector_store %arg9[%c0_249, %c3_250, %c0_251], %584 {strides = array<i32>} : memref<1x8x32xbf16, #tpu.memory_space<vmem>>, vector<1x1x32xbf16>,
    %585 = vector.extract_strided_slice %485 {offsets = [0, 0], sizes = [1, 32], strides = [1, 1]} : vector<1x64xf32> to vector<1x32xf32>
    %586 = vector.shape_cast %564 : vector<1x1xi1> to vector<1x1xi1>
    %587 = vector.broadcast %586 : vector<1x1xi1> to vector<1x32xi1>
    %588 = arith.select %587, %527, %585 : vector<1x32xi1>, vector<1x32xf32>
    %c0_252 = arith.constant 0 : index
    %c0_253 = arith.constant 0 : index
    %589 = vector.load %arg10[%c0_252, %c0_253] : memref<1x64xf32, #tpu.memory_space<vmem>>, vector<1x32xf32>
    tpu.vector_store %arg10[%c0_252, %c0_253], %588 {strides = array<i32>} : memref<1x64xf32, #tpu.memory_space<vmem>>, vector<1x32xf32>,
    %590 = vector.extract_strided_slice %485 {offsets = [0, 32], sizes = [1, 32], strides = [1, 1]} : vector<1x64xf32> to vector<1x32xf32>
    %591 = vector.shape_cast %568 : vector<1x1xi1> to vector<1x1xi1>
    %592 = vector.broadcast %591 : vector<1x1xi1> to vector<1x32xi1>
    %593 = arith.select %592, %560, %590 : vector<1x32xi1>, vector<1x32xf32>
    %c0_254 = arith.constant 0 : index
    %c32_255 = arith.constant 32 : index
    %594 = vector.load %arg10[%c0_254, %c32_255] : memref<1x64xf32, #tpu.memory_space<vmem>>, vector<1x32xf32>
    tpu.vector_store %arg10[%c0_254, %c32_255], %593 {strides = array<i32>} : memref<1x64xf32, #tpu.memory_space<vmem>>, vector<1x32xf32>,
    %595 = vector.extract_strided_slice %486 {offsets = [0, 0], sizes = [1, 32], strides = [1, 1]} : vector<1x64xf32> to vector<1x32xf32>
    %596 = vector.shape_cast %564 : vector<1x1xi1> to vector<1x1xi1>
    %597 = vector.broadcast %596 : vector<1x1xi1> to vector<1x32xi1>
    %598 = arith.select %597, %525, %595 : vector<1x32xi1>, vector<1x32xf32>
    %c0_256 = arith.constant 0 : index
    %c0_257 = arith.constant 0 : index
    %599 = vector.load %arg11[%c0_256, %c0_257] : memref<1x64xf32, #tpu.memory_space<vmem>>, vector<1x32xf32>
    tpu.vector_store %arg11[%c0_256, %c0_257], %598 {strides = array<i32>} : memref<1x64xf32, #tpu.memory_space<vmem>>, vector<1x32xf32>,
    %600 = vector.extract_strided_slice %486 {offsets = [0, 32], sizes = [1, 32], strides = [1, 1]} : vector<1x64xf32> to vector<1x32xf32>
    %601 = vector.shape_cast %568 : vector<1x1xi1> to vector<1x1xi1>
    %602 = vector.broadcast %601 : vector<1x1xi1> to vector<1x32xi1>
    %603 = arith.select %602, %558, %600 : vector<1x32xi1>, vector<1x32xf32>
    %c0_258 = arith.constant 0 : index
    %c32_259 = arith.constant 32 : index
    %604 = vector.load %arg11[%c0_258, %c32_259] : memref<1x64xf32, #tpu.memory_space<vmem>>, vector<1x32xf32>
    tpu.vector_store %arg11[%c0_258, %c32_259], %603 {strides = array<i32>} : memref<1x64xf32, #tpu.memory_space<vmem>>, vector<1x32xf32>,
    %c0_260 = arith.constant 0 : index
    %c0_261 = arith.constant 0 : index
    %605 = vector.load %arg10[%c0_260, %c0_261] : memref<1x64xf32, #tpu.memory_space<vmem>>, vector<1x64xf32>
    %c0_262 = arith.constant 0 : index
    %c0_263 = arith.constant 0 : index
    %606 = vector.load %arg11[%c0_262, %c0_263] : memref<1x64xf32, #tpu.memory_space<vmem>>, vector<1x64xf32>
    %c0_264 = arith.constant 0 : index
    %c5_265 = arith.constant 5 : index
    %c0_266 = arith.constant 0 : index
    %607 = vector.load %arg2[%c0_264, %c5_265, %c0_266] : memref<1x8x32xbf16, #tpu.memory_space<vmem>>, vector<1x1x32xbf16>
    %608 = vector.shape_cast %607 : vector<1x1x32xbf16> to vector<1x32xbf16>
    %c0_267 = arith.constant 0 : index
    %c2_268 = arith.constant 2 : index
    %c0_269 = arith.constant 0 : index
    %609 = vector.load %arg3[%c0_267, %c2_268, %c0_269] : memref<1x8x32xbf16, #tpu.memory_space<vmem>>, vector<1x1x32xbf16>
    %610 = vector.shape_cast %609 : vector<1x1x32xbf16> to vector<1x32xbf16>
    %611 = arith.truncf %605 : vector<1x64xf32> to vector<1x64xbf16>
    %612 = tpu.concatenate %608, %610, %611 in 1 : vector<1x32xbf16>, vector<1x32xbf16>, vector<1x64xbf16> -> vector<1x128xbf16>
    %cst_270 = arith.constant dense<0.000000e+00> : vector<1x256xf32>
    %613 = tpu.matmul %612, %3, %cst_270 {dimension_numbers = #tpu.dot_dimension_numbers<[1], [0], [0], [1], [0, 0, 1, 1], [], []>} : vector<1x128xbf16>, vector<128x256xbf16>, vector<1x256xf32> -> vector<1x256xf32>
    %614 = arith.addf %613, %4 : vector<1x256xf32>
    %615 = vector.extract_strided_slice %614 {offsets = [0, 0], sizes = [1, 128], strides = [1, 1]} : vector<1x256xf32> to vector<1x128xf32>
    %616 = vector.extract_strided_slice %606 {offsets = [0, 0], sizes = [1, 32], strides = [1, 1]} : vector<1x64xf32> to vector<1x32xf32>
    %617 = vector.extract_strided_slice %615 {offsets = [0, 0], sizes = [1, 32], strides = [1, 1]} : vector<1x128xf32> to vector<1x32xf32>
    %cst_271 = arith.constant 5.000000e-01 : f32
    %618 = vector.broadcast %cst_271 : f32 to vector<1x32xf32>
    %619 = arith.mulf %618, %617 : vector<1x32xf32>
    %620 = math.tanh %619 : vector<1x32xf32>
    %cst_272 = arith.constant 1.000000e+00 : f32
    %621 = vector.broadcast %cst_272 : f32 to vector<1x32xf32>
    %622 = arith.addf %620, %621 : vector<1x32xf32>
    %cst_273 = arith.constant 5.000000e-01 : f32
    %623 = vector.broadcast %cst_273 : f32 to vector<1x32xf32>
    %624 = arith.mulf %623, %622 : vector<1x32xf32>
    %625 = vector.extract_strided_slice %615 {offsets = [0, 32], sizes = [1, 32], strides = [1, 1]} : vector<1x128xf32> to vector<1x32xf32>
    %cst_274 = arith.constant 5.000000e-01 : f32
    %626 = vector.broadcast %cst_274 : f32 to vector<1x32xf32>
    %627 = arith.mulf %626, %625 : vector<1x32xf32>
    %628 = math.tanh %627 : vector<1x32xf32>
    %cst_275 = arith.constant 1.000000e+00 : f32
    %629 = vector.broadcast %cst_275 : f32 to vector<1x32xf32>
    %630 = arith.addf %628, %629 : vector<1x32xf32>
    %cst_276 = arith.constant 5.000000e-01 : f32
    %631 = vector.broadcast %cst_276 : f32 to vector<1x32xf32>
    %632 = arith.mulf %631, %630 : vector<1x32xf32>
    %633 = vector.extract_strided_slice %615 {offsets = [0, 64], sizes = [1, 32], strides = [1, 1]} : vector<1x128xf32> to vector<1x32xf32>
    %634 = math.tanh %633 : vector<1x32xf32>
    %635 = vector.extract_strided_slice %615 {offsets = [0, 96], sizes = [1, 32], strides = [1, 1]} : vector<1x128xf32> to vector<1x32xf32>
    %cst_277 = arith.constant 5.000000e-01 : f32
    %636 = vector.broadcast %cst_277 : f32 to vector<1x32xf32>
    %637 = arith.mulf %636, %635 : vector<1x32xf32>
    %638 = math.tanh %637 : vector<1x32xf32>
    %cst_278 = arith.constant 1.000000e+00 : f32
    %639 = vector.broadcast %cst_278 : f32 to vector<1x32xf32>
    %640 = arith.addf %638, %639 : vector<1x32xf32>
    %cst_279 = arith.constant 5.000000e-01 : f32
    %641 = vector.broadcast %cst_279 : f32 to vector<1x32xf32>
    %642 = arith.mulf %641, %640 : vector<1x32xf32>
    %643 = arith.mulf %632, %616 : vector<1x32xf32>
    %644 = arith.mulf %624, %634 : vector<1x32xf32>
    %645 = arith.addf %643, %644 : vector<1x32xf32>
    %646 = math.tanh %645 : vector<1x32xf32>
    %647 = arith.mulf %642, %646 : vector<1x32xf32>
    %648 = vector.extract_strided_slice %614 {offsets = [0, 128], sizes = [1, 128], strides = [1, 1]} : vector<1x256xf32> to vector<1x128xf32>
    %649 = vector.extract_strided_slice %606 {offsets = [0, 32], sizes = [1, 32], strides = [1, 1]} : vector<1x64xf32> to vector<1x32xf32>
    %650 = vector.extract_strided_slice %648 {offsets = [0, 0], sizes = [1, 32], strides = [1, 1]} : vector<1x128xf32> to vector<1x32xf32>
    %cst_280 = arith.constant 5.000000e-01 : f32
    %651 = vector.broadcast %cst_280 : f32 to vector<1x32xf32>
    %652 = arith.mulf %651, %650 : vector<1x32xf32>
    %653 = math.tanh %652 : vector<1x32xf32>
    %cst_281 = arith.constant 1.000000e+00 : f32
    %654 = vector.broadcast %cst_281 : f32 to vector<1x32xf32>
    %655 = arith.addf %653, %654 : vector<1x32xf32>
    %cst_282 = arith.constant 5.000000e-01 : f32
    %656 = vector.broadcast %cst_282 : f32 to vector<1x32xf32>
    %657 = arith.mulf %656, %655 : vector<1x32xf32>
    %658 = vector.extract_strided_slice %648 {offsets = [0, 32], sizes = [1, 32], strides = [1, 1]} : vector<1x128xf32> to vector<1x32xf32>
    %cst_283 = arith.constant 5.000000e-01 : f32
    %659 = vector.broadcast %cst_283 : f32 to vector<1x32xf32>
    %660 = arith.mulf %659, %658 : vector<1x32xf32>
    %661 = math.tanh %660 : vector<1x32xf32>
    %cst_284 = arith.constant 1.000000e+00 : f32
    %662 = vector.broadcast %cst_284 : f32 to vector<1x32xf32>
    %663 = arith.addf %661, %662 : vector<1x32xf32>
    %cst_285 = arith.constant 5.000000e-01 : f32
    %664 = vector.broadcast %cst_285 : f32 to vector<1x32xf32>
    %665 = arith.mulf %664, %663 : vector<1x32xf32>
    %666 = vector.extract_strided_slice %648 {offsets = [0, 64], sizes = [1, 32], strides = [1, 1]} : vector<1x128xf32> to vector<1x32xf32>
    %667 = math.tanh %666 : vector<1x32xf32>
    %668 = vector.extract_strided_slice %648 {offsets = [0, 96], sizes = [1, 32], strides = [1, 1]} : vector<1x128xf32> to vector<1x32xf32>
    %cst_286 = arith.constant 5.000000e-01 : f32
    %669 = vector.broadcast %cst_286 : f32 to vector<1x32xf32>
    %670 = arith.mulf %669, %668 : vector<1x32xf32>
    %671 = math.tanh %670 : vector<1x32xf32>
    %cst_287 = arith.constant 1.000000e+00 : f32
    %672 = vector.broadcast %cst_287 : f32 to vector<1x32xf32>
    %673 = arith.addf %671, %672 : vector<1x32xf32>
    %cst_288 = arith.constant 5.000000e-01 : f32
    %674 = vector.broadcast %cst_288 : f32 to vector<1x32xf32>
    %675 = arith.mulf %674, %673 : vector<1x32xf32>
    %676 = arith.mulf %665, %649 : vector<1x32xf32>
    %677 = arith.mulf %657, %667 : vector<1x32xf32>
    %678 = arith.addf %676, %677 : vector<1x32xf32>
    %679 = math.tanh %678 : vector<1x32xf32>
    %680 = arith.mulf %675, %679 : vector<1x32xf32>
    %c0_289 = arith.constant 0 : index
    %c5_290 = arith.constant 5 : index
    %c0_291 = arith.constant 0 : index
    %681 = vector.load %arg4[%c0_289, %c5_290, %c0_291] : memref<1x8x1xf32, #tpu.memory_space<vmem>>, vector<1x1x1xf32>
    %682 = vector.shape_cast %681 : vector<1x1x1xf32> to vector<1x1xf32>
    %cst_292 = arith.constant 0.000000e+00 : f32
    %683 = vector.broadcast %cst_292 : f32 to vector<1x1xf32>
    %684 = arith.cmpf ogt, %682, %683 : vector<1x1xf32>
    %c0_293 = arith.constant 0 : index
    %c2_294 = arith.constant 2 : index
    %c0_295 = arith.constant 0 : index
    %685 = vector.load %arg5[%c0_293, %c2_294, %c0_295] : memref<1x8x1xf32, #tpu.memory_space<vmem>>, vector<1x1x1xf32>
    %686 = vector.shape_cast %685 : vector<1x1x1xf32> to vector<1x1xf32>
    %cst_296 = arith.constant 0.000000e+00 : f32
    %687 = vector.broadcast %cst_296 : f32 to vector<1x1xf32>
    %688 = arith.cmpf ogt, %686, %687 : vector<1x1xf32>
    %cst_297 = arith.constant 0.000000e+00 : f32
    %689 = vector.shape_cast %684 : vector<1x1xi1> to vector<1x1xi1>
    %690 = vector.broadcast %689 : vector<1x1xi1> to vector<1x32xi1>
    %691 = vector.broadcast %cst_297 : f32 to vector<1x32xf32>
    %692 = arith.select %690, %647, %691 : vector<1x32xi1>, vector<1x32xf32>
    %693 = arith.truncf %692 : vector<1x32xf32> to vector<1x32xbf16>
    %c0_298 = arith.constant 0 : index
    %c5_299 = arith.constant 5 : index
    %c0_300 = arith.constant 0 : index
    %694 = vector.load %arg8[%c0_298, %c5_299, %c0_300] : memref<1x8x32xbf16, #tpu.memory_space<vmem>>, vector<1x1x32xbf16>
    %695 = vector.shape_cast %694 : vector<1x1x32xbf16> to vector<1x32xbf16>
    %696 = vector.shape_cast %693 : vector<1x32xbf16> to vector<1x1x32xbf16>
    tpu.vector_store %arg8[%c0_298, %c5_299, %c0_300], %696 {strides = array<i32>} : memref<1x8x32xbf16, #tpu.memory_space<vmem>>, vector<1x1x32xbf16>,
    %cst_301 = arith.constant 0.000000e+00 : f32
    %697 = vector.shape_cast %688 : vector<1x1xi1> to vector<1x1xi1>
    %698 = vector.broadcast %697 : vector<1x1xi1> to vector<1x32xi1>
    %699 = vector.broadcast %cst_301 : f32 to vector<1x32xf32>
    %700 = arith.select %698, %680, %699 : vector<1x32xi1>, vector<1x32xf32>
    %701 = arith.truncf %700 : vector<1x32xf32> to vector<1x32xbf16>
    %c0_302 = arith.constant 0 : index
    %c2_303 = arith.constant 2 : index
    %c0_304 = arith.constant 0 : index
    %702 = vector.load %arg9[%c0_302, %c2_303, %c0_304] : memref<1x8x32xbf16, #tpu.memory_space<vmem>>, vector<1x1x32xbf16>
    %703 = vector.shape_cast %702 : vector<1x1x32xbf16> to vector<1x32xbf16>
    %704 = vector.shape_cast %701 : vector<1x32xbf16> to vector<1x1x32xbf16>
    tpu.vector_store %arg9[%c0_302, %c2_303, %c0_304], %704 {strides = array<i32>} : memref<1x8x32xbf16, #tpu.memory_space<vmem>>, vector<1x1x32xbf16>,
    %705 = vector.extract_strided_slice %605 {offsets = [0, 0], sizes = [1, 32], strides = [1, 1]} : vector<1x64xf32> to vector<1x32xf32>
    %706 = vector.shape_cast %684 : vector<1x1xi1> to vector<1x1xi1>
    %707 = vector.broadcast %706 : vector<1x1xi1> to vector<1x32xi1>
    %708 = arith.select %707, %647, %705 : vector<1x32xi1>, vector<1x32xf32>
    %c0_305 = arith.constant 0 : index
    %c0_306 = arith.constant 0 : index
    %709 = vector.load %arg10[%c0_305, %c0_306] : memref<1x64xf32, #tpu.memory_space<vmem>>, vector<1x32xf32>
    tpu.vector_store %arg10[%c0_305, %c0_306], %708 {strides = array<i32>} : memref<1x64xf32, #tpu.memory_space<vmem>>, vector<1x32xf32>,
    %710 = vector.extract_strided_slice %605 {offsets = [0, 32], sizes = [1, 32], strides = [1, 1]} : vector<1x64xf32> to vector<1x32xf32>
    %711 = vector.shape_cast %688 : vector<1x1xi1> to vector<1x1xi1>
    %712 = vector.broadcast %711 : vector<1x1xi1> to vector<1x32xi1>
    %713 = arith.select %712, %680, %710 : vector<1x32xi1>, vector<1x32xf32>
    %c0_307 = arith.constant 0 : index
    %c32_308 = arith.constant 32 : index
    %714 = vector.load %arg10[%c0_307, %c32_308] : memref<1x64xf32, #tpu.memory_space<vmem>>, vector<1x32xf32>
    tpu.vector_store %arg10[%c0_307, %c32_308], %713 {strides = array<i32>} : memref<1x64xf32, #tpu.memory_space<vmem>>, vector<1x32xf32>,
    %715 = vector.extract_strided_slice %606 {offsets = [0, 0], sizes = [1, 32], strides = [1, 1]} : vector<1x64xf32> to vector<1x32xf32>
    %716 = vector.shape_cast %684 : vector<1x1xi1> to vector<1x1xi1>
    %717 = vector.broadcast %716 : vector<1x1xi1> to vector<1x32xi1>
    %718 = arith.select %717, %645, %715 : vector<1x32xi1>, vector<1x32xf32>
    %c0_309 = arith.constant 0 : index
    %c0_310 = arith.constant 0 : index
    %719 = vector.load %arg11[%c0_309, %c0_310] : memref<1x64xf32, #tpu.memory_space<vmem>>, vector<1x32xf32>
    tpu.vector_store %arg11[%c0_309, %c0_310], %718 {strides = array<i32>} : memref<1x64xf32, #tpu.memory_space<vmem>>, vector<1x32xf32>,
    %720 = vector.extract_strided_slice %606 {offsets = [0, 32], sizes = [1, 32], strides = [1, 1]} : vector<1x64xf32> to vector<1x32xf32>
    %721 = vector.shape_cast %688 : vector<1x1xi1> to vector<1x1xi1>
    %722 = vector.broadcast %721 : vector<1x1xi1> to vector<1x32xi1>
    %723 = arith.select %722, %678, %720 : vector<1x32xi1>, vector<1x32xf32>
    %c0_311 = arith.constant 0 : index
    %c32_312 = arith.constant 32 : index
    %724 = vector.load %arg11[%c0_311, %c32_312] : memref<1x64xf32, #tpu.memory_space<vmem>>, vector<1x32xf32>
    tpu.vector_store %arg11[%c0_311, %c32_312], %723 {strides = array<i32>} : memref<1x64xf32, #tpu.memory_space<vmem>>, vector<1x32xf32>,
    %c0_313 = arith.constant 0 : index
    %c0_314 = arith.constant 0 : index
    %725 = vector.load %arg10[%c0_313, %c0_314] : memref<1x64xf32, #tpu.memory_space<vmem>>, vector<1x64xf32>
    %c0_315 = arith.constant 0 : index
    %c0_316 = arith.constant 0 : index
    %726 = vector.load %arg11[%c0_315, %c0_316] : memref<1x64xf32, #tpu.memory_space<vmem>>, vector<1x64xf32>
    %c0_317 = arith.constant 0 : index
    %c6_318 = arith.constant 6 : index
    %c0_319 = arith.constant 0 : index
    %727 = vector.load %arg2[%c0_317, %c6_318, %c0_319] : memref<1x8x32xbf16, #tpu.memory_space<vmem>>, vector<1x1x32xbf16>
    %728 = vector.shape_cast %727 : vector<1x1x32xbf16> to vector<1x32xbf16>
    %c0_320 = arith.constant 0 : index
    %c1_321 = arith.constant 1 : index
    %c0_322 = arith.constant 0 : index
    %729 = vector.load %arg3[%c0_320, %c1_321, %c0_322] : memref<1x8x32xbf16, #tpu.memory_space<vmem>>, vector<1x1x32xbf16>
    %730 = vector.shape_cast %729 : vector<1x1x32xbf16> to vector<1x32xbf16>
    %731 = arith.truncf %725 : vector<1x64xf32> to vector<1x64xbf16>
    %732 = tpu.concatenate %728, %730, %731 in 1 : vector<1x32xbf16>, vector<1x32xbf16>, vector<1x64xbf16> -> vector<1x128xbf16>
    %cst_323 = arith.constant dense<0.000000e+00> : vector<1x256xf32>
    %733 = tpu.matmul %732, %3, %cst_323 {dimension_numbers = #tpu.dot_dimension_numbers<[1], [0], [0], [1], [0, 0, 1, 1], [], []>} : vector<1x128xbf16>, vector<128x256xbf16>, vector<1x256xf32> -> vector<1x256xf32>
    %734 = arith.addf %733, %4 : vector<1x256xf32>
    %735 = vector.extract_strided_slice %734 {offsets = [0, 0], sizes = [1, 128], strides = [1, 1]} : vector<1x256xf32> to vector<1x128xf32>
    %736 = vector.extract_strided_slice %726 {offsets = [0, 0], sizes = [1, 32], strides = [1, 1]} : vector<1x64xf32> to vector<1x32xf32>
    %737 = vector.extract_strided_slice %735 {offsets = [0, 0], sizes = [1, 32], strides = [1, 1]} : vector<1x128xf32> to vector<1x32xf32>
    %cst_324 = arith.constant 5.000000e-01 : f32
    %738 = vector.broadcast %cst_324 : f32 to vector<1x32xf32>
    %739 = arith.mulf %738, %737 : vector<1x32xf32>
    %740 = math.tanh %739 : vector<1x32xf32>
    %cst_325 = arith.constant 1.000000e+00 : f32
    %741 = vector.broadcast %cst_325 : f32 to vector<1x32xf32>
    %742 = arith.addf %740, %741 : vector<1x32xf32>
    %cst_326 = arith.constant 5.000000e-01 : f32
    %743 = vector.broadcast %cst_326 : f32 to vector<1x32xf32>
    %744 = arith.mulf %743, %742 : vector<1x32xf32>
    %745 = vector.extract_strided_slice %735 {offsets = [0, 32], sizes = [1, 32], strides = [1, 1]} : vector<1x128xf32> to vector<1x32xf32>
    %cst_327 = arith.constant 5.000000e-01 : f32
    %746 = vector.broadcast %cst_327 : f32 to vector<1x32xf32>
    %747 = arith.mulf %746, %745 : vector<1x32xf32>
    %748 = math.tanh %747 : vector<1x32xf32>
    %cst_328 = arith.constant 1.000000e+00 : f32
    %749 = vector.broadcast %cst_328 : f32 to vector<1x32xf32>
    %750 = arith.addf %748, %749 : vector<1x32xf32>
    %cst_329 = arith.constant 5.000000e-01 : f32
    %751 = vector.broadcast %cst_329 : f32 to vector<1x32xf32>
    %752 = arith.mulf %751, %750 : vector<1x32xf32>
    %753 = vector.extract_strided_slice %735 {offsets = [0, 64], sizes = [1, 32], strides = [1, 1]} : vector<1x128xf32> to vector<1x32xf32>
    %754 = math.tanh %753 : vector<1x32xf32>
    %755 = vector.extract_strided_slice %735 {offsets = [0, 96], sizes = [1, 32], strides = [1, 1]} : vector<1x128xf32> to vector<1x32xf32>
    %cst_330 = arith.constant 5.000000e-01 : f32
    %756 = vector.broadcast %cst_330 : f32 to vector<1x32xf32>
    %757 = arith.mulf %756, %755 : vector<1x32xf32>
    %758 = math.tanh %757 : vector<1x32xf32>
    %cst_331 = arith.constant 1.000000e+00 : f32
    %759 = vector.broadcast %cst_331 : f32 to vector<1x32xf32>
    %760 = arith.addf %758, %759 : vector<1x32xf32>
    %cst_332 = arith.constant 5.000000e-01 : f32
    %761 = vector.broadcast %cst_332 : f32 to vector<1x32xf32>
    %762 = arith.mulf %761, %760 : vector<1x32xf32>
    %763 = arith.mulf %752, %736 : vector<1x32xf32>
    %764 = arith.mulf %744, %754 : vector<1x32xf32>
    %765 = arith.addf %763, %764 : vector<1x32xf32>
    %766 = math.tanh %765 : vector<1x32xf32>
    %767 = arith.mulf %762, %766 : vector<1x32xf32>
    %768 = vector.extract_strided_slice %734 {offsets = [0, 128], sizes = [1, 128], strides = [1, 1]} : vector<1x256xf32> to vector<1x128xf32>
    %769 = vector.extract_strided_slice %726 {offsets = [0, 32], sizes = [1, 32], strides = [1, 1]} : vector<1x64xf32> to vector<1x32xf32>
    %770 = vector.extract_strided_slice %768 {offsets = [0, 0], sizes = [1, 32], strides = [1, 1]} : vector<1x128xf32> to vector<1x32xf32>
    %cst_333 = arith.constant 5.000000e-01 : f32
    %771 = vector.broadcast %cst_333 : f32 to vector<1x32xf32>
    %772 = arith.mulf %771, %770 : vector<1x32xf32>
    %773 = math.tanh %772 : vector<1x32xf32>
    %cst_334 = arith.constant 1.000000e+00 : f32
    %774 = vector.broadcast %cst_334 : f32 to vector<1x32xf32>
    %775 = arith.addf %773, %774 : vector<1x32xf32>
    %cst_335 = arith.constant 5.000000e-01 : f32
    %776 = vector.broadcast %cst_335 : f32 to vector<1x32xf32>
    %777 = arith.mulf %776, %775 : vector<1x32xf32>
    %778 = vector.extract_strided_slice %768 {offsets = [0, 32], sizes = [1, 32], strides = [1, 1]} : vector<1x128xf32> to vector<1x32xf32>
    %cst_336 = arith.constant 5.000000e-01 : f32
    %779 = vector.broadcast %cst_336 : f32 to vector<1x32xf32>
    %780 = arith.mulf %779, %778 : vector<1x32xf32>
    %781 = math.tanh %780 : vector<1x32xf32>
    %cst_337 = arith.constant 1.000000e+00 : f32
    %782 = vector.broadcast %cst_337 : f32 to vector<1x32xf32>
    %783 = arith.addf %781, %782 : vector<1x32xf32>
    %cst_338 = arith.constant 5.000000e-01 : f32
    %784 = vector.broadcast %cst_338 : f32 to vector<1x32xf32>
    %785 = arith.mulf %784, %783 : vector<1x32xf32>
    %786 = vector.extract_strided_slice %768 {offsets = [0, 64], sizes = [1, 32], strides = [1, 1]} : vector<1x128xf32> to vector<1x32xf32>
    %787 = math.tanh %786 : vector<1x32xf32>
    %788 = vector.extract_strided_slice %768 {offsets = [0, 96], sizes = [1, 32], strides = [1, 1]} : vector<1x128xf32> to vector<1x32xf32>
    %cst_339 = arith.constant 5.000000e-01 : f32
    %789 = vector.broadcast %cst_339 : f32 to vector<1x32xf32>
    %790 = arith.mulf %789, %788 : vector<1x32xf32>
    %791 = math.tanh %790 : vector<1x32xf32>
    %cst_340 = arith.constant 1.000000e+00 : f32
    %792 = vector.broadcast %cst_340 : f32 to vector<1x32xf32>
    %793 = arith.addf %791, %792 : vector<1x32xf32>
    %cst_341 = arith.constant 5.000000e-01 : f32
    %794 = vector.broadcast %cst_341 : f32 to vector<1x32xf32>
    %795 = arith.mulf %794, %793 : vector<1x32xf32>
    %796 = arith.mulf %785, %769 : vector<1x32xf32>
    %797 = arith.mulf %777, %787 : vector<1x32xf32>
    %798 = arith.addf %796, %797 : vector<1x32xf32>
    %799 = math.tanh %798 : vector<1x32xf32>
    %800 = arith.mulf %795, %799 : vector<1x32xf32>
    %c0_342 = arith.constant 0 : index
    %c6_343 = arith.constant 6 : index
    %c0_344 = arith.constant 0 : index
    %801 = vector.load %arg4[%c0_342, %c6_343, %c0_344] : memref<1x8x1xf32, #tpu.memory_space<vmem>>, vector<1x1x1xf32>
    %802 = vector.shape_cast %801 : vector<1x1x1xf32> to vector<1x1xf32>
    %cst_345 = arith.constant 0.000000e+00 : f32
    %803 = vector.broadcast %cst_345 : f32 to vector<1x1xf32>
    %804 = arith.cmpf ogt, %802, %803 : vector<1x1xf32>
    %c0_346 = arith.constant 0 : index
    %c1_347 = arith.constant 1 : index
    %c0_348 = arith.constant 0 : index
    %805 = vector.load %arg5[%c0_346, %c1_347, %c0_348] : memref<1x8x1xf32, #tpu.memory_space<vmem>>, vector<1x1x1xf32>
    %806 = vector.shape_cast %805 : vector<1x1x1xf32> to vector<1x1xf32>
    %cst_349 = arith.constant 0.000000e+00 : f32
    %807 = vector.broadcast %cst_349 : f32 to vector<1x1xf32>
    %808 = arith.cmpf ogt, %806, %807 : vector<1x1xf32>
    %cst_350 = arith.constant 0.000000e+00 : f32
    %809 = vector.shape_cast %804 : vector<1x1xi1> to vector<1x1xi1>
    %810 = vector.broadcast %809 : vector<1x1xi1> to vector<1x32xi1>
    %811 = vector.broadcast %cst_350 : f32 to vector<1x32xf32>
    %812 = arith.select %810, %767, %811 : vector<1x32xi1>, vector<1x32xf32>
    %813 = arith.truncf %812 : vector<1x32xf32> to vector<1x32xbf16>
    %c0_351 = arith.constant 0 : index
    %c6_352 = arith.constant 6 : index
    %c0_353 = arith.constant 0 : index
    %814 = vector.load %arg8[%c0_351, %c6_352, %c0_353] : memref<1x8x32xbf16, #tpu.memory_space<vmem>>, vector<1x1x32xbf16>
    %815 = vector.shape_cast %814 : vector<1x1x32xbf16> to vector<1x32xbf16>
    %816 = vector.shape_cast %813 : vector<1x32xbf16> to vector<1x1x32xbf16>
    tpu.vector_store %arg8[%c0_351, %c6_352, %c0_353], %816 {strides = array<i32>} : memref<1x8x32xbf16, #tpu.memory_space<vmem>>, vector<1x1x32xbf16>,
    %cst_354 = arith.constant 0.000000e+00 : f32
    %817 = vector.shape_cast %808 : vector<1x1xi1> to vector<1x1xi1>
    %818 = vector.broadcast %817 : vector<1x1xi1> to vector<1x32xi1>
    %819 = vector.broadcast %cst_354 : f32 to vector<1x32xf32>
    %820 = arith.select %818, %800, %819 : vector<1x32xi1>, vector<1x32xf32>
    %821 = arith.truncf %820 : vector<1x32xf32> to vector<1x32xbf16>
    %c0_355 = arith.constant 0 : index
    %c1_356 = arith.constant 1 : index
    %c0_357 = arith.constant 0 : index
    %822 = vector.load %arg9[%c0_355, %c1_356, %c0_357] : memref<1x8x32xbf16, #tpu.memory_space<vmem>>, vector<1x1x32xbf16>
    %823 = vector.shape_cast %822 : vector<1x1x32xbf16> to vector<1x32xbf16>
    %824 = vector.shape_cast %821 : vector<1x32xbf16> to vector<1x1x32xbf16>
    tpu.vector_store %arg9[%c0_355, %c1_356, %c0_357], %824 {strides = array<i32>} : memref<1x8x32xbf16, #tpu.memory_space<vmem>>, vector<1x1x32xbf16>,
    %825 = vector.extract_strided_slice %725 {offsets = [0, 0], sizes = [1, 32], strides = [1, 1]} : vector<1x64xf32> to vector<1x32xf32>
    %826 = vector.shape_cast %804 : vector<1x1xi1> to vector<1x1xi1>
    %827 = vector.broadcast %826 : vector<1x1xi1> to vector<1x32xi1>
    %828 = arith.select %827, %767, %825 : vector<1x32xi1>, vector<1x32xf32>
    %c0_358 = arith.constant 0 : index
    %c0_359 = arith.constant 0 : index
    %829 = vector.load %arg10[%c0_358, %c0_359] : memref<1x64xf32, #tpu.memory_space<vmem>>, vector<1x32xf32>
    tpu.vector_store %arg10[%c0_358, %c0_359], %828 {strides = array<i32>} : memref<1x64xf32, #tpu.memory_space<vmem>>, vector<1x32xf32>,
    %830 = vector.extract_strided_slice %725 {offsets = [0, 32], sizes = [1, 32], strides = [1, 1]} : vector<1x64xf32> to vector<1x32xf32>
    %831 = vector.shape_cast %808 : vector<1x1xi1> to vector<1x1xi1>
    %832 = vector.broadcast %831 : vector<1x1xi1> to vector<1x32xi1>
    %833 = arith.select %832, %800, %830 : vector<1x32xi1>, vector<1x32xf32>
    %c0_360 = arith.constant 0 : index
    %c32_361 = arith.constant 32 : index
    %834 = vector.load %arg10[%c0_360, %c32_361] : memref<1x64xf32, #tpu.memory_space<vmem>>, vector<1x32xf32>
    tpu.vector_store %arg10[%c0_360, %c32_361], %833 {strides = array<i32>} : memref<1x64xf32, #tpu.memory_space<vmem>>, vector<1x32xf32>,
    %835 = vector.extract_strided_slice %726 {offsets = [0, 0], sizes = [1, 32], strides = [1, 1]} : vector<1x64xf32> to vector<1x32xf32>
    %836 = vector.shape_cast %804 : vector<1x1xi1> to vector<1x1xi1>
    %837 = vector.broadcast %836 : vector<1x1xi1> to vector<1x32xi1>
    %838 = arith.select %837, %765, %835 : vector<1x32xi1>, vector<1x32xf32>
    %c0_362 = arith.constant 0 : index
    %c0_363 = arith.constant 0 : index
    %839 = vector.load %arg11[%c0_362, %c0_363] : memref<1x64xf32, #tpu.memory_space<vmem>>, vector<1x32xf32>
    tpu.vector_store %arg11[%c0_362, %c0_363], %838 {strides = array<i32>} : memref<1x64xf32, #tpu.memory_space<vmem>>, vector<1x32xf32>,
    %840 = vector.extract_strided_slice %726 {offsets = [0, 32], sizes = [1, 32], strides = [1, 1]} : vector<1x64xf32> to vector<1x32xf32>
    %841 = vector.shape_cast %808 : vector<1x1xi1> to vector<1x1xi1>
    %842 = vector.broadcast %841 : vector<1x1xi1> to vector<1x32xi1>
    %843 = arith.select %842, %798, %840 : vector<1x32xi1>, vector<1x32xf32>
    %c0_364 = arith.constant 0 : index
    %c32_365 = arith.constant 32 : index
    %844 = vector.load %arg11[%c0_364, %c32_365] : memref<1x64xf32, #tpu.memory_space<vmem>>, vector<1x32xf32>
    tpu.vector_store %arg11[%c0_364, %c32_365], %843 {strides = array<i32>} : memref<1x64xf32, #tpu.memory_space<vmem>>, vector<1x32xf32>,
    %c0_366 = arith.constant 0 : index
    %c0_367 = arith.constant 0 : index
    %845 = vector.load %arg10[%c0_366, %c0_367] : memref<1x64xf32, #tpu.memory_space<vmem>>, vector<1x64xf32>
    %c0_368 = arith.constant 0 : index
    %c0_369 = arith.constant 0 : index
    %846 = vector.load %arg11[%c0_368, %c0_369] : memref<1x64xf32, #tpu.memory_space<vmem>>, vector<1x64xf32>
    %c0_370 = arith.constant 0 : index
    %c7_371 = arith.constant 7 : index
    %c0_372 = arith.constant 0 : index
    %847 = vector.load %arg2[%c0_370, %c7_371, %c0_372] : memref<1x8x32xbf16, #tpu.memory_space<vmem>>, vector<1x1x32xbf16>
    %848 = vector.shape_cast %847 : vector<1x1x32xbf16> to vector<1x32xbf16>
    %c0_373 = arith.constant 0 : index
    %c0_374 = arith.constant 0 : index
    %c0_375 = arith.constant 0 : index
    %849 = vector.load %arg3[%c0_373, %c0_374, %c0_375] : memref<1x8x32xbf16, #tpu.memory_space<vmem>>, vector<1x1x32xbf16>
    %850 = vector.shape_cast %849 : vector<1x1x32xbf16> to vector<1x32xbf16>
    %851 = arith.truncf %845 : vector<1x64xf32> to vector<1x64xbf16>
    %852 = tpu.concatenate %848, %850, %851 in 1 : vector<1x32xbf16>, vector<1x32xbf16>, vector<1x64xbf16> -> vector<1x128xbf16>
    %cst_376 = arith.constant dense<0.000000e+00> : vector<1x256xf32>
    %853 = tpu.matmul %852, %3, %cst_376 {dimension_numbers = #tpu.dot_dimension_numbers<[1], [0], [0], [1], [0, 0, 1, 1], [], []>} : vector<1x128xbf16>, vector<128x256xbf16>, vector<1x256xf32> -> vector<1x256xf32>
    %854 = arith.addf %853, %4 : vector<1x256xf32>
    %855 = vector.extract_strided_slice %854 {offsets = [0, 0], sizes = [1, 128], strides = [1, 1]} : vector<1x256xf32> to vector<1x128xf32>
    %856 = vector.extract_strided_slice %846 {offsets = [0, 0], sizes = [1, 32], strides = [1, 1]} : vector<1x64xf32> to vector<1x32xf32>
    %857 = vector.extract_strided_slice %855 {offsets = [0, 0], sizes = [1, 32], strides = [1, 1]} : vector<1x128xf32> to vector<1x32xf32>
    %cst_377 = arith.constant 5.000000e-01 : f32
    %858 = vector.broadcast %cst_377 : f32 to vector<1x32xf32>
    %859 = arith.mulf %858, %857 : vector<1x32xf32>
    %860 = math.tanh %859 : vector<1x32xf32>
    %cst_378 = arith.constant 1.000000e+00 : f32
    %861 = vector.broadcast %cst_378 : f32 to vector<1x32xf32>
    %862 = arith.addf %860, %861 : vector<1x32xf32>
    %cst_379 = arith.constant 5.000000e-01 : f32
    %863 = vector.broadcast %cst_379 : f32 to vector<1x32xf32>
    %864 = arith.mulf %863, %862 : vector<1x32xf32>
    %865 = vector.extract_strided_slice %855 {offsets = [0, 32], sizes = [1, 32], strides = [1, 1]} : vector<1x128xf32> to vector<1x32xf32>
    %cst_380 = arith.constant 5.000000e-01 : f32
    %866 = vector.broadcast %cst_380 : f32 to vector<1x32xf32>
    %867 = arith.mulf %866, %865 : vector<1x32xf32>
    %868 = math.tanh %867 : vector<1x32xf32>
    %cst_381 = arith.constant 1.000000e+00 : f32
    %869 = vector.broadcast %cst_381 : f32 to vector<1x32xf32>
    %870 = arith.addf %868, %869 : vector<1x32xf32>
    %cst_382 = arith.constant 5.000000e-01 : f32
    %871 = vector.broadcast %cst_382 : f32 to vector<1x32xf32>
    %872 = arith.mulf %871, %870 : vector<1x32xf32>
    %873 = vector.extract_strided_slice %855 {offsets = [0, 64], sizes = [1, 32], strides = [1, 1]} : vector<1x128xf32> to vector<1x32xf32>
    %874 = math.tanh %873 : vector<1x32xf32>
    %875 = vector.extract_strided_slice %855 {offsets = [0, 96], sizes = [1, 32], strides = [1, 1]} : vector<1x128xf32> to vector<1x32xf32>
    %cst_383 = arith.constant 5.000000e-01 : f32
    %876 = vector.broadcast %cst_383 : f32 to vector<1x32xf32>
    %877 = arith.mulf %876, %875 : vector<1x32xf32>
    %878 = math.tanh %877 : vector<1x32xf32>
    %cst_384 = arith.constant 1.000000e+00 : f32
    %879 = vector.broadcast %cst_384 : f32 to vector<1x32xf32>
    %880 = arith.addf %878, %879 : vector<1x32xf32>
    %cst_385 = arith.constant 5.000000e-01 : f32
    %881 = vector.broadcast %cst_385 : f32 to vector<1x32xf32>
    %882 = arith.mulf %881, %880 : vector<1x32xf32>
    %883 = arith.mulf %872, %856 : vector<1x32xf32>
    %884 = arith.mulf %864, %874 : vector<1x32xf32>
    %885 = arith.addf %883, %884 : vector<1x32xf32>
    %886 = math.tanh %885 : vector<1x32xf32>
    %887 = arith.mulf %882, %886 : vector<1x32xf32>
    %888 = vector.extract_strided_slice %854 {offsets = [0, 128], sizes = [1, 128], strides = [1, 1]} : vector<1x256xf32> to vector<1x128xf32>
    %889 = vector.extract_strided_slice %846 {offsets = [0, 32], sizes = [1, 32], strides = [1, 1]} : vector<1x64xf32> to vector<1x32xf32>
    %890 = vector.extract_strided_slice %888 {offsets = [0, 0], sizes = [1, 32], strides = [1, 1]} : vector<1x128xf32> to vector<1x32xf32>
    %cst_386 = arith.constant 5.000000e-01 : f32
    %891 = vector.broadcast %cst_386 : f32 to vector<1x32xf32>
    %892 = arith.mulf %891, %890 : vector<1x32xf32>
    %893 = math.tanh %892 : vector<1x32xf32>
    %cst_387 = arith.constant 1.000000e+00 : f32
    %894 = vector.broadcast %cst_387 : f32 to vector<1x32xf32>
    %895 = arith.addf %893, %894 : vector<1x32xf32>
    %cst_388 = arith.constant 5.000000e-01 : f32
    %896 = vector.broadcast %cst_388 : f32 to vector<1x32xf32>
    %897 = arith.mulf %896, %895 : vector<1x32xf32>
    %898 = vector.extract_strided_slice %888 {offsets = [0, 32], sizes = [1, 32], strides = [1, 1]} : vector<1x128xf32> to vector<1x32xf32>
    %cst_389 = arith.constant 5.000000e-01 : f32
    %899 = vector.broadcast %cst_389 : f32 to vector<1x32xf32>
    %900 = arith.mulf %899, %898 : vector<1x32xf32>
    %901 = math.tanh %900 : vector<1x32xf32>
    %cst_390 = arith.constant 1.000000e+00 : f32
    %902 = vector.broadcast %cst_390 : f32 to vector<1x32xf32>
    %903 = arith.addf %901, %902 : vector<1x32xf32>
    %cst_391 = arith.constant 5.000000e-01 : f32
    %904 = vector.broadcast %cst_391 : f32 to vector<1x32xf32>
    %905 = arith.mulf %904, %903 : vector<1x32xf32>
    %906 = vector.extract_strided_slice %888 {offsets = [0, 64], sizes = [1, 32], strides = [1, 1]} : vector<1x128xf32> to vector<1x32xf32>
    %907 = math.tanh %906 : vector<1x32xf32>
    %908 = vector.extract_strided_slice %888 {offsets = [0, 96], sizes = [1, 32], strides = [1, 1]} : vector<1x128xf32> to vector<1x32xf32>
    %cst_392 = arith.constant 5.000000e-01 : f32
    %909 = vector.broadcast %cst_392 : f32 to vector<1x32xf32>
    %910 = arith.mulf %909, %908 : vector<1x32xf32>
    %911 = math.tanh %910 : vector<1x32xf32>
    %cst_393 = arith.constant 1.000000e+00 : f32
    %912 = vector.broadcast %cst_393 : f32 to vector<1x32xf32>
    %913 = arith.addf %911, %912 : vector<1x32xf32>
    %cst_394 = arith.constant 5.000000e-01 : f32
    %914 = vector.broadcast %cst_394 : f32 to vector<1x32xf32>
    %915 = arith.mulf %914, %913 : vector<1x32xf32>
    %916 = arith.mulf %905, %889 : vector<1x32xf32>
    %917 = arith.mulf %897, %907 : vector<1x32xf32>
    %918 = arith.addf %916, %917 : vector<1x32xf32>
    %919 = math.tanh %918 : vector<1x32xf32>
    %920 = arith.mulf %915, %919 : vector<1x32xf32>
    %c0_395 = arith.constant 0 : index
    %c7_396 = arith.constant 7 : index
    %c0_397 = arith.constant 0 : index
    %921 = vector.load %arg4[%c0_395, %c7_396, %c0_397] : memref<1x8x1xf32, #tpu.memory_space<vmem>>, vector<1x1x1xf32>
    %922 = vector.shape_cast %921 : vector<1x1x1xf32> to vector<1x1xf32>
    %cst_398 = arith.constant 0.000000e+00 : f32
    %923 = vector.broadcast %cst_398 : f32 to vector<1x1xf32>
    %924 = arith.cmpf ogt, %922, %923 : vector<1x1xf32>
    %c0_399 = arith.constant 0 : index
    %c0_400 = arith.constant 0 : index
    %c0_401 = arith.constant 0 : index
    %925 = vector.load %arg5[%c0_399, %c0_400, %c0_401] : memref<1x8x1xf32, #tpu.memory_space<vmem>>, vector<1x1x1xf32>
    %926 = vector.shape_cast %925 : vector<1x1x1xf32> to vector<1x1xf32>
    %cst_402 = arith.constant 0.000000e+00 : f32
    %927 = vector.broadcast %cst_402 : f32 to vector<1x1xf32>
    %928 = arith.cmpf ogt, %926, %927 : vector<1x1xf32>
    %cst_403 = arith.constant 0.000000e+00 : f32
    %929 = vector.shape_cast %924 : vector<1x1xi1> to vector<1x1xi1>
    %930 = vector.broadcast %929 : vector<1x1xi1> to vector<1x32xi1>
    %931 = vector.broadcast %cst_403 : f32 to vector<1x32xf32>
    %932 = arith.select %930, %887, %931 : vector<1x32xi1>, vector<1x32xf32>
    %933 = arith.truncf %932 : vector<1x32xf32> to vector<1x32xbf16>
    %c0_404 = arith.constant 0 : index
    %c7_405 = arith.constant 7 : index
    %c0_406 = arith.constant 0 : index
    %934 = vector.load %arg8[%c0_404, %c7_405, %c0_406] : memref<1x8x32xbf16, #tpu.memory_space<vmem>>, vector<1x1x32xbf16>
    %935 = vector.shape_cast %934 : vector<1x1x32xbf16> to vector<1x32xbf16>
    %936 = vector.shape_cast %933 : vector<1x32xbf16> to vector<1x1x32xbf16>
    tpu.vector_store %arg8[%c0_404, %c7_405, %c0_406], %936 {strides = array<i32>} : memref<1x8x32xbf16, #tpu.memory_space<vmem>>, vector<1x1x32xbf16>,
    %cst_407 = arith.constant 0.000000e+00 : f32
    %937 = vector.shape_cast %928 : vector<1x1xi1> to vector<1x1xi1>
    %938 = vector.broadcast %937 : vector<1x1xi1> to vector<1x32xi1>
    %939 = vector.broadcast %cst_407 : f32 to vector<1x32xf32>
    %940 = arith.select %938, %920, %939 : vector<1x32xi1>, vector<1x32xf32>
    %941 = arith.truncf %940 : vector<1x32xf32> to vector<1x32xbf16>
    %c0_408 = arith.constant 0 : index
    %c0_409 = arith.constant 0 : index
    %c0_410 = arith.constant 0 : index
    %942 = vector.load %arg9[%c0_408, %c0_409, %c0_410] : memref<1x8x32xbf16, #tpu.memory_space<vmem>>, vector<1x1x32xbf16>
    %943 = vector.shape_cast %942 : vector<1x1x32xbf16> to vector<1x32xbf16>
    %944 = vector.shape_cast %941 : vector<1x32xbf16> to vector<1x1x32xbf16>
    tpu.vector_store %arg9[%c0_408, %c0_409, %c0_410], %944 {strides = array<i32>} : memref<1x8x32xbf16, #tpu.memory_space<vmem>>, vector<1x1x32xbf16>,
    %945 = vector.extract_strided_slice %845 {offsets = [0, 0], sizes = [1, 32], strides = [1, 1]} : vector<1x64xf32> to vector<1x32xf32>
    %946 = vector.shape_cast %924 : vector<1x1xi1> to vector<1x1xi1>
    %947 = vector.broadcast %946 : vector<1x1xi1> to vector<1x32xi1>
    %948 = arith.select %947, %887, %945 : vector<1x32xi1>, vector<1x32xf32>
    %c0_411 = arith.constant 0 : index
    %c0_412 = arith.constant 0 : index
    %949 = vector.load %arg10[%c0_411, %c0_412] : memref<1x64xf32, #tpu.memory_space<vmem>>, vector<1x32xf32>
    tpu.vector_store %arg10[%c0_411, %c0_412], %948 {strides = array<i32>} : memref<1x64xf32, #tpu.memory_space<vmem>>, vector<1x32xf32>,
    %950 = vector.extract_strided_slice %845 {offsets = [0, 32], sizes = [1, 32], strides = [1, 1]} : vector<1x64xf32> to vector<1x32xf32>
    %951 = vector.shape_cast %928 : vector<1x1xi1> to vector<1x1xi1>
    %952 = vector.broadcast %951 : vector<1x1xi1> to vector<1x32xi1>
    %953 = arith.select %952, %920, %950 : vector<1x32xi1>, vector<1x32xf32>
    %c0_413 = arith.constant 0 : index
    %c32_414 = arith.constant 32 : index
    %954 = vector.load %arg10[%c0_413, %c32_414] : memref<1x64xf32, #tpu.memory_space<vmem>>, vector<1x32xf32>
    tpu.vector_store %arg10[%c0_413, %c32_414], %953 {strides = array<i32>} : memref<1x64xf32, #tpu.memory_space<vmem>>, vector<1x32xf32>,
    %955 = vector.extract_strided_slice %846 {offsets = [0, 0], sizes = [1, 32], strides = [1, 1]} : vector<1x64xf32> to vector<1x32xf32>
    %956 = vector.shape_cast %924 : vector<1x1xi1> to vector<1x1xi1>
    %957 = vector.broadcast %956 : vector<1x1xi1> to vector<1x32xi1>
    %958 = arith.select %957, %885, %955 : vector<1x32xi1>, vector<1x32xf32>
    %c0_415 = arith.constant 0 : index
    %c0_416 = arith.constant 0 : index
    %959 = vector.load %arg11[%c0_415, %c0_416] : memref<1x64xf32, #tpu.memory_space<vmem>>, vector<1x32xf32>
    tpu.vector_store %arg11[%c0_415, %c0_416], %958 {strides = array<i32>} : memref<1x64xf32, #tpu.memory_space<vmem>>, vector<1x32xf32>,
    %960 = vector.extract_strided_slice %846 {offsets = [0, 32], sizes = [1, 32], strides = [1, 1]} : vector<1x64xf32> to vector<1x32xf32>
    %961 = vector.shape_cast %928 : vector<1x1xi1> to vector<1x1xi1>
    %962 = vector.broadcast %961 : vector<1x1xi1> to vector<1x32xi1>
    %963 = arith.select %962, %918, %960 : vector<1x32xi1>, vector<1x32xf32>
    %c0_417 = arith.constant 0 : index
    %c32_418 = arith.constant 32 : index
    %964 = vector.load %arg11[%c0_417, %c32_418] : memref<1x64xf32, #tpu.memory_space<vmem>>, vector<1x32xf32>
    tpu.vector_store %arg11[%c0_417, %c32_418], %963 {strides = array<i32>} : memref<1x64xf32, #tpu.memory_space<vmem>>, vector<1x32xf32>,
    return
  }
  func.func @transform_0(%arg0: i32, %arg1: i32) -> (i32, i32, i32) {
    %c0_i32 = arith.constant 0 : i32
    %c0_i32_0 = arith.constant 0 : i32
    return %arg0, %arg1, %c0_i32 : i32, i32, i32
  }
  func.func @transform_1(%arg0: i32, %arg1: i32) -> (i32, i32, i32) {
    %c0_i32 = arith.constant 0 : i32
    %0 = arith.subi %c0_i32, %arg1 : i32
    %c0_i32_0 = arith.constant 0 : i32
    %c0_i32_1 = arith.constant 0 : i32
    return %arg0, %0, %c0_i32_0 : i32, i32, i32
  }
  func.func @transform_2(%arg0: i32, %arg1: i32) -> (i32, i32, i32) {
    %c0_i32 = arith.constant 0 : i32
    %c0_i32_0 = arith.constant 0 : i32
    return %arg0, %arg1, %c0_i32 : i32, i32, i32
  }
  func.func @transform_3(%arg0: i32, %arg1: i32) -> (i32, i32, i32) {
    %c0_i32 = arith.constant 0 : i32
    %0 = arith.subi %c0_i32, %arg1 : i32
    %c0_i32_0 = arith.constant 0 : i32
    %c0_i32_1 = arith.constant 0 : i32
    return %arg0, %0, %c0_i32_0 : i32, i32, i32
  }
  func.func @transform_4(%arg0: i32, %arg1: i32) -> (i32, i32) {
    %c0_i32 = arith.constant 0 : i32
    %c0_i32_0 = arith.constant 0 : i32
    %c0_i32_1 = arith.constant 0 : i32
    return %c0_i32, %c0_i32_0 : i32, i32
  }
  func.func @transform_5(%arg0: i32, %arg1: i32) -> (i32, i32) {
    %c0_i32 = arith.constant 0 : i32
    %c0_i32_0 = arith.constant 0 : i32
    %c0_i32_1 = arith.constant 0 : i32
    return %c0_i32, %c0_i32_0 : i32, i32
  }
  func.func @transform_6(%arg0: i32, %arg1: i32) -> (i32, i32, i32) {
    %c0_i32 = arith.constant 0 : i32
    %c0_i32_0 = arith.constant 0 : i32
    return %arg0, %arg1, %c0_i32 : i32, i32, i32
  }
  func.func @transform_7(%arg0: i32, %arg1: i32) -> (i32, i32, i32) {
    %c0_i32 = arith.constant 0 : i32
    %0 = arith.subi %c0_i32, %arg1 : i32
    %c0_i32_0 = arith.constant 0 : i32
    %c0_i32_1 = arith.constant 0 : i32
    return %arg0, %0, %c0_i32_0 : i32, i32, i32
  }
}

module attributes {stable_mosaic.version = 11 : i64} {
  func.func @_classifier_kernel(%arg0: memref<2x128xf32, #tpu.memory_space<vmem>>, %arg1: memref<2x128xf32, #tpu.memory_space<vmem>>, %arg2: memref<256x32xbf16, #tpu.memory_space<vmem>>, %arg3: memref<1x32xf32, #tpu.memory_space<vmem>>, %arg4: memref<32x3xbf16, #tpu.memory_space<vmem>>, %arg5: memref<1x3xf32, #tpu.memory_space<vmem>>, %arg6: memref<2x3xf32, #tpu.memory_space<vmem>>) attributes {dimension_semantics = [], scalar_prefetch = 0 : i64, scratch_operands = 0 : i64, tpu.core_type = #tpu.core_type<tc>} {
    %c0 = arith.constant 0 : index
    %c0_0 = arith.constant 0 : index
    %0 = vector.load %arg0[%c0, %c0_0] : memref<2x128xf32, #tpu.memory_space<vmem>>, vector<2x128xf32>
    %c0_1 = arith.constant 0 : index
    %c0_2 = arith.constant 0 : index
    %1 = vector.load %arg1[%c0_1, %c0_2] : memref<2x128xf32, #tpu.memory_space<vmem>>, vector<2x128xf32>
    %2 = tpu.concatenate %0, %1 in 1 : vector<2x128xf32>, vector<2x128xf32> -> vector<2x256xf32>
    %3 = arith.truncf %2 : vector<2x256xf32> to vector<2x256xbf16>
    %c0_3 = arith.constant 0 : index
    %c0_4 = arith.constant 0 : index
    %4 = vector.load %arg2[%c0_3, %c0_4] : memref<256x32xbf16, #tpu.memory_space<vmem>>, vector<256x32xbf16>
    %cst = arith.constant dense<0.000000e+00> : vector<2x32xf32>
    %5 = tpu.matmul %3, %4, %cst {dimension_numbers = #tpu.dot_dimension_numbers<[1], [0], [0], [1], [0, 0, 1, 1], [], []>} : vector<2x256xbf16>, vector<256x32xbf16>, vector<2x32xf32> -> vector<2x32xf32>
    %c0_5 = arith.constant 0 : index
    %c0_6 = arith.constant 0 : index
    %6 = vector.load %arg3[%c0_5, %c0_6] : memref<1x32xf32, #tpu.memory_space<vmem>>, vector<1x32xf32>
    %7 = vector.broadcast %6 : vector<1x32xf32> to vector<2x32xf32>
    %8 = arith.addf %5, %7 : vector<2x32xf32>
    %9 = math.tanh %8 : vector<2x32xf32>
    %10 = arith.truncf %9 : vector<2x32xf32> to vector<2x32xbf16>
    %c0_7 = arith.constant 0 : index
    %c0_8 = arith.constant 0 : index
    %11 = vector.load %arg4[%c0_7, %c0_8] : memref<32x3xbf16, #tpu.memory_space<vmem>>, vector<32x3xbf16>
    %cst_9 = arith.constant dense<0.000000e+00> : vector<2x3xf32>
    %12 = tpu.matmul %10, %11, %cst_9 {dimension_numbers = #tpu.dot_dimension_numbers<[1], [0], [0], [1], [0, 0, 1, 1], [], []>} : vector<2x32xbf16>, vector<32x3xbf16>, vector<2x3xf32> -> vector<2x3xf32>
    %c0_10 = arith.constant 0 : index
    %c0_11 = arith.constant 0 : index
    %13 = vector.load %arg5[%c0_10, %c0_11] : memref<1x3xf32, #tpu.memory_space<vmem>>, vector<1x3xf32>
    %14 = vector.broadcast %13 : vector<1x3xf32> to vector<2x3xf32>
    %15 = arith.addf %12, %14 : vector<2x3xf32>
    %c0_12 = arith.constant 0 : index
    %c0_13 = arith.constant 0 : index
    %16 = vector.load %arg6[%c0_12, %c0_13] : memref<2x3xf32, #tpu.memory_space<vmem>>, vector<2x3xf32>
    tpu.vector_store %arg6[%c0_12, %c0_13], %15 {strides = array<i32>} : memref<2x3xf32, #tpu.memory_space<vmem>>, vector<2x3xf32>,
    return
  }
}

</mosaic_0001>

<llo_original>
// kernel: drlstm_forward.18
$region0: #{drlstm_forward.18}
  #allocation0 [shape = 'u32[]', space=smem, size = 0x4, offset = 0x4, fixed_abs, tag = 'smem constant byte address 0x4 - core index']
  #allocation1 [shape = 'u32[144,128]{1,0:T(1,128)}', space=vmem, size = 0x12000, scoped, tag = 'internal scratch']
  %s0 = inlined_call_operand.vmem [shape: bf16[2,8,32], index: 0, kind: input, shape index: {}]
  %s1 = inlined_call_operand.vmem [shape: bf16[2,8,32], index: 1, kind: input, shape index: {}]
  %s2 = inlined_call_operand.vmem [shape: f32[2,8,1], index: 2, kind: input, shape index: {}]
  %s3 = inlined_call_operand.vmem [shape: f32[2,1,128], index: 3, kind: output, shape index: {}]
  %s4 = sld [smem:[#allocation0]]
  $region45: #{drlstm_forward.18} parent=0
    _
  %s6 = ssub.s32 1, %s4
  %s7 = scalar_select 0, %s6, %s4
  loop: start=0, step=1, limit=4
  $region2: #{drlstm_forward.18} parent=0 // loop_pre_header
    _
  $region3: #{drlstm_forward.18} parent=0 // loop_header
    %s9 = sphi 0, %s13
    %p10 = scmp.ge.s32.totalorder %s9, 4
    %s19 = sphi 0, %s21
    %s22 = sphi 0, %s19
    %s23 = sphi 0, %s22
    %s39 = sphi 0, %s23
    %s45 = sphi 0, %s47
    %s48 = sphi 0, %s45
    %s49 = sphi 0, %s48
    %s65 = sphi 0, %s49
    %s71 = sphi 0, %s73
    %s74 = sphi 0, %s71
    %s75 = sphi 0, %s74
    %s91 = sphi 0, %s75
    %s97 = sphi 0, %s99
    %s100 = sphi 0, %s97
    %s101 = sphi 0, %s100
    %s117 = sphi 0, %s101
  $region4: #{drlstm_forward.18} parent=0 // loop_header_branch
    %12 = sbr.rel (%p10) target = $region8
  $region5: #{drlstm_forward.18} parent=0 // loop_body
    %s14 = ssub.s32 %s9, 1
    %s15 = ssub.s32 %s9, 2
    %s16 = sadd.s32 %s9, 1
    %s17 = ssub.s32 %s9, %s16
    %p18 = scmp.eq.s32.totalorder %s17, 0
    %s20 = sadd.s32 %s19, 1
    %s21 = scalar_select %p18, %s19, %s20
    %p24 = pneg %p18
    %p25 = scmp.eq.s32.totalorder %s9, 1
    %p26 = por %p24, %p25
    %p27 = scmp.ne.s32.totalorder %s19, %s22
    %p28 = scmp.eq.s32.totalorder %s9, 0
    %p29 = por %p27, %p28
    %p30 = scmp.ne.s32.totalorder %s19, %s22
    %p31 = scmp.eq.s32.totalorder %s14, 1
    %p32 = por %p30, %p31
    %p33 = scmp.ne.s32.totalorder %s22, %s23
    %p34 = scmp.eq.s32.totalorder %s14, 0
    %p35 = por %p33, %p34
    %p36 = scmp.ne.s32.totalorder %s22, %s23
    %p37 = scmp.eq.s32.totalorder %s15, 1
    %p38 = por %p36, %p37
    %p40 = scmp.ne.s32.totalorder %s23, %s39
    %p41 = scmp.eq.s32.totalorder %s15, 0
    %p42 = por %p40, %p41
    %s43 = ssub.s32 %s9, %s16
    %p44 = scmp.eq.s32.totalorder %s43, 0
    %s46 = sadd.s32 %s45, 1
    %s47 = scalar_select %p44, %s45, %s46
    %p50 = pneg %p44
    %p51 = scmp.eq.s32.totalorder %s9, 1
    %p52 = por %p50, %p51
    %p53 = scmp.ne.s32.totalorder %s45, %s48
    %p54 = scmp.eq.s32.totalorder %s9, 0
    %p55 = por %p53, %p54
    %p56 = scmp.ne.s32.totalorder %s45, %s48
    %p57 = scmp.eq.s32.totalorder %s14, 1
    %p58 = por %p56, %p57
    %p59 = scmp.ne.s32.totalorder %s48, %s49
    %p60 = scmp.eq.s32.totalorder %s14, 0
    %p61 = por %p59, %p60
    %p62 = scmp.ne.s32.totalorder %s48, %s49
    %p63 = scmp.eq.s32.totalorder %s15, 1
    %p64 = por %p62, %p63
    %p66 = scmp.ne.s32.totalorder %s49, %s65
    %p67 = scmp.eq.s32.totalorder %s15, 0
    %p68 = por %p66, %p67
    %s69 = ssub.s32 %s9, %s16
    %p70 = scmp.eq.s32.totalorder %s69, 0
    %s72 = sadd.s32 %s71, 1
    %s73 = scalar_select %p70, %s71, %s72
    %p76 = pneg %p70
    %p77 = scmp.eq.s32.totalorder %s9, 1
    %p78 = por %p76, %p77
    %p79 = scmp.ne.s32.totalorder %s71, %s74
    %p80 = scmp.eq.s32.totalorder %s9, 0
    %p81 = por %p79, %p80
    %p82 = scmp.ne.s32.totalorder %s71, %s74
    %p83 = scmp.eq.s32.totalorder %s14, 1
    %p84 = por %p82, %p83
    %p85 = scmp.ne.s32.totalorder %s74, %s75
    %p86 = scmp.eq.s32.totalorder %s14, 0
    %p87 = por %p85, %p86
    %p88 = scmp.ne.s32.totalorder %s74, %s75
    %p89 = scmp.eq.s32.totalorder %s15, 1
    %p90 = por %p88, %p89
    %p92 = scmp.ne.s32.totalorder %s75, %s91
    %p93 = scmp.eq.s32.totalorder %s15, 0
    %p94 = por %p92, %p93
    %s95 = ssub.s32 %s9, %s16
    %p96 = scmp.eq.s32.totalorder %s95, 0
    %s98 = sadd.s32 %s97, 1
    %s99 = scalar_select %p96, %s97, %s98
    %p102 = pneg %p96
    %p103 = scmp.eq.s32.totalorder %s9, 1
    %p104 = por %p102, %p103
    %p105 = scmp.ne.s32.totalorder %s97, %s100
    %p106 = scmp.eq.s32.totalorder %s9, 0
    %p107 = por %p105, %p106
    %p108 = scmp.ne.s32.totalorder %s97, %s100
    %p109 = scmp.eq.s32.totalorder %s14, 1
    %p110 = por %p108, %p109
    %p111 = scmp.ne.s32.totalorder %s100, %s101
    %p112 = scmp.eq.s32.totalorder %s14, 0
    %p113 = por %p111, %p112
    %p114 = scmp.ne.s32.totalorder %s100, %s101
    %p115 = scmp.eq.s32.totalorder %s15, 1
    %p116 = por %p114, %p115
    %p118 = scmp.ne.s32.totalorder %s101, %s117
    %p119 = scmp.eq.s32.totalorder %s15, 0
    %p120 = por %p118, %p119
    %p121 = scmp.le.s32.totalorder 1, %s9
    %p122 = scmp.lt.s32.totalorder %s9, 3
    %p123 = pnand %p121, %p122
    %p124 = pneg %p123
    // Predicated region
    $region9: #{drlstm_forward.18} parent=5 // pred_check
      _
    $region10: #{drlstm_forward.18} parent=5 // pred_check_branch
      %126 = sbr.rel (%p123) target = $region12
    $region11: #{drlstm_forward.18} parent=5 // pred_region
      %s127 = ssub.s32 %s9, 1
    $region12: #{drlstm_forward.18} parent=5 // pred_fallthru
      _
    %p128 = scmp.lt.s32.totalorder %s9, 2
    // Predicated region
    $region13: #{drlstm_forward.18} parent=5 // pred_check
      %p129 = pneg %p128
    $region14: #{drlstm_forward.18} parent=5 // pred_check_branch
      %131 = sbr.rel (%p129) target = $region16
    $region15: #{drlstm_forward.18} parent=5 // pred_region
      // Predicated region
      $region17: #{drlstm_forward.18} parent=15 // pred_check
        %p132 = pneg %p29
      $region18: #{drlstm_forward.18} parent=15 // pred_check_branch
        %134 = sbr.rel (%p132) target = $region20
      $region19: #{drlstm_forward.18} parent=15 // pred_region
        %p135 = scmp.lt.s32.totalorder %s9, 1
        %s136 = scalar_select %p135, %s9, 1
        %s137 = smul.addr %s136, 4
        %s138 = scalar_lea.vmem %s0, %s137
      $region20: #{drlstm_forward.18} parent=15 // pred_fallthru
        _
      // Predicated region
      $region21: #{drlstm_forward.18} parent=15 // pred_check
        %p139 = pneg %p55
      $region22: #{drlstm_forward.18} parent=15 // pred_check_branch
        %141 = sbr.rel (%p139) target = $region24
      $region23: #{drlstm_forward.18} parent=15 // pred_region
        %p142 = scmp.lt.s32.totalorder %s9, 1
        %s143 = scalar_select %p142, %s9, 1
        %s144 = smul.addr %s143, 4
        %s145 = scalar_lea.vmem %s1, %s144
      $region24: #{drlstm_forward.18} parent=15 // pred_fallthru
        _
      // Predicated region
      $region25: #{drlstm_forward.18} parent=15 // pred_check
        %p146 = pneg %p81
      $region26: #{drlstm_forward.18} parent=15 // pred_check_branch
        %148 = sbr.rel (%p146) target = $region28
      $region27: #{drlstm_forward.18} parent=15 // pred_region
        %p149 = scmp.lt.s32.totalorder %s9, 1
        %s150 = scalar_select %p149, %s9, 1
        %s151 = smul.addr %s150, 8
        %s152 = scalar_lea.vmem %s2, %s151
      $region28: #{drlstm_forward.18} parent=15 // pred_fallthru
        _
    $region16: #{drlstm_forward.18} parent=5 // pred_fallthru
      _
    %p153 = scmp.le.s32.totalorder 1, %s9
    %p154 = scmp.lt.s32.totalorder %s9, 3
    %p155 = pnand %p153, %p154
    %p156 = pneg %p155
    // Predicated region
    $region29: #{drlstm_forward.18} parent=5 // pred_check
      _
    $region30: #{drlstm_forward.18} parent=5 // pred_check_branch
      %158 = sbr.rel (%p155) target = $region32
    $region31: #{drlstm_forward.18} parent=5 // pred_region
      %s159 = ssub.s32 %s9, 1
      %p160 = scmp.lt.s32.totalorder %s14, 1
      %s161 = scalar_select %p160, %s14, 1
      %s162 = smul.addr %s161, 4
      %s163 = scalar_lea.vmem %s0, %s162
      %p164 = pneg %p35
      %p165 = pneg %p32
      %p166 = scmp.lt.s32.totalorder %s14, 1
      %s167 = scalar_select %p166, %s14, 1
      %s168 = smul.addr %s167, 4
      %s169 = scalar_lea.vmem %s1, %s168
      %p170 = pneg %p61
      %p171 = pneg %p58
      %p172 = scmp.lt.s32.totalorder %s14, 1
      %s173 = scalar_select %p172, %s14, 1
      %s174 = smul.addr %s173, 8
      %s175 = scalar_lea.vmem %s2, %s174
      %p176 = pneg %p87
      %p177 = pneg %p84
      %p178 = pneg %p113
      %p179 = pneg %p110
      %p180 = scmp.lt.s32.totalorder %s14, 1
      %s181 = scalar_select %p180, %s14, 1
      %s182 = scalar_lea.vmem %s3, %s181
      %p183 = scmp.lt.s32.totalorder %s14, 1
      %s184 = scalar_select %p183, %s14, 1
      %s185 = smul.addr %s184, 4
      %s186 = scalar_lea.vmem %s0, %s185
      %p187 = scmp.lt.s32.totalorder %s14, 1
      %s188 = scalar_select %p187, %s14, 1
      %s189 = smul.addr %s188, 4
      %s190 = scalar_lea.vmem %s1, %s189
      %p191 = scmp.lt.s32.totalorder %s14, 1
      %s192 = scalar_select %p191, %s14, 1
      %s193 = smul.addr %s192, 8
      %s194 = scalar_lea.vmem %s2, %s193
      %p195 = scmp.lt.s32.totalorder %s14, 1
      %s196 = scalar_select %p195, %s14, 1
      %s197 = scalar_lea.vmem %s3, %s196
      %v198 = vld [vmem:[%s186] sm:$0xf]
      %v199 = vld [vmem:[%s190] sm:$0xf]
      %v201 = vunpack.c.l.b16 %v199
      %v202 = vpack.c.b16 %v201, %v201
      %203 = vrot.lane.b32.xlu0 %v202, 32
      %v204 = vpop.permute.xlu0 %203
      %vm205 = vcmask 261120
      %v208 = vsel %vm205, %v198, %v204
      %v210 = vunpack.c.l.bf16 %v208
      %v211 = vld [vmem:[%s194] sm:$0xff]
      %vm212 = vcmp.gt.f32.partialorder %v211, 0.0
      %v213 = vsel %vm212, 1, 0
      %214 = vset.pattern.permute.xlu0 0
      %215 = vperm.xlu0 %214, %v213
      %v216 = vpop.permute.xlu0 %215
      %vm217 = vcmp.eq.s32.totalorder %v216, 1
      %v218 = vsel %vm217, %v210, -1e+30
      %vm219 = vcmask 523264
      %v220 = vsel %vm219, %v218, -inf
      %v221 = vrot.slane %v220, 4
      %v222 = vmax.f32 %v220, %v221
      %v223 = vrot.slane %v222, 2
      %v224 = vmax.f32 %v222, %v223
      %v225 = vrot.slane %v224, 1
      %v226 = vmax.f32 %v224, %v225
      %228 = vset.pattern.permute.xlu0 0
      %229 = vperm.xlu0 %228, %v211
      %v230 = vpop.permute.xlu0 %229
      %v232 = vmul.f32 %v210, %v230
      %v233 = vsel %vm219, %v232, 0.0
      %v234 = vrot.slane %v233, 4
      %v235 = vadd.f32 %v233, %v234
      %v236 = vrot.slane %v235, 2
      %v237 = vadd.f32 %v235, %v236
      %v238 = vrot.slane %v237, 1
      %v239 = vadd.f32 %v237, %v238
      %vm240 = vcmask 7168
      %v241 = vsel %vm240, %v211, 0.0
      %v242 = vrot.slane %v241, 4
      %v243 = vadd.f32 %v241, %v242
      %v244 = vrot.slane %v243, 2
      %v245 = vadd.f32 %v243, %v244
      %v246 = vrot.slane %v245, 1
      %v247 = vadd.f32 %v245, %v246
      %v248 = vmax.f32 %v247, 1.0
      %250 = vset.pattern.permute.xlu0 0
      %251 = vperm.xlu0 %250, %v248
      %v252 = vpop.permute.xlu0 %251
      %v254 = vrcp.pop %v252
      %v255 = vmul.f32 %v239, %v254
      %257 = vrot.lane.b32.xlu0 %v255, 64
      %v258 = vpop.permute.xlu0 %257
      %v260 = vsel %vm219, %v226, %v258
      %261 = vst [vmem:[%s197] sm:$0x1] %v260
      %p262 = scmp.lt.s32.totalorder %s14, 1
      %s263 = scalar_select %p262, %s14, 1
      %s264 = scalar_lea.vmem %s3, %s263
      // Predicated region
      $region33: #{drlstm_forward.18} parent=31 // pred_check
        %p265 = pneg %p110
      $region34: #{drlstm_forward.18} parent=31 // pred_check_branch
        %267 = sbr.rel (%p265) target = $region36
      $region35: #{drlstm_forward.18} parent=31 // pred_region
        _
      $region36: #{drlstm_forward.18} parent=31 // pred_fallthru
        _
    $region32: #{drlstm_forward.18} parent=5 // pred_fallthru
      _
    %p268 = scmp.le.s32.totalorder 2, %s9
    // Predicated region
    $region37: #{drlstm_forward.18} parent=5 // pred_check
      %p269 = pneg %p268
    $region38: #{drlstm_forward.18} parent=5 // pred_check_branch
      %271 = sbr.rel (%p269) target = $region40
    $region39: #{drlstm_forward.18} parent=5 // pred_region
      %s272 = ssub.s32 %s9, 2
      // Predicated region
      $region41: #{drlstm_forward.18} parent=39 // pred_check
        %p273 = pneg %p116
      $region42: #{drlstm_forward.18} parent=39 // pred_check_branch
        %275 = sbr.rel (%p273) target = $region44
      $region43: #{drlstm_forward.18} parent=39 // pred_region
        %p276 = scmp.lt.s32.totalorder %s15, 1
        %s277 = scalar_select %p276, %s15, 1
        %s278 = scalar_lea.vmem %s3, %s277
      $region44: #{drlstm_forward.18} parent=39 // pred_fallthru
        _
    $region40: #{drlstm_forward.18} parent=5 // pred_fallthru
      _
  $region6: #{drlstm_forward.18} parent=0 // loop_footer
    %s13 = sadd.s32 1, %s9
  $region7: #{drlstm_forward.18} parent=0 // loop_footer_branch
    %8 = sbr.rel target = $region3
  $region8: #{drlstm_forward.18} parent=0 // loop_exit
    _

// kernel: drlstm_forward.12
$region0: #{drlstm_forward.12}
  #allocation0 [shape = 'u32[]', space=smem, size = 0x4, offset = 0x4, fixed_abs, tag = 'smem constant byte address 0x4 - core index']
  #allocation1 [shape = 'u32[144,128]{1,0:T(1,128)}', space=vmem, size = 0x12000, scoped, tag = 'internal scratch']
  %s0 = inlined_call_operand.vmem [shape: bf16[2,8,32], index: 0, kind: input, shape index: {}]
  %s1 = inlined_call_operand.vmem [shape: bf16[2,8,32], index: 1, kind: input, shape index: {}]
  %s2 = inlined_call_operand.vmem [shape: bf16[2,8,32], index: 2, kind: input, shape index: {}]
  %s3 = inlined_call_operand.vmem [shape: bf16[2,8,32], index: 3, kind: input, shape index: {}]
  %s4 = inlined_call_operand.vmem [shape: f32[2,8,1], index: 4, kind: input, shape index: {}]
  %s5 = inlined_call_operand.vmem [shape: f32[2,1,8], index: 5, kind: input, shape index: {}]
  %s6 = inlined_call_operand.vmem [shape: f32[2,8,1], index: 6, kind: input, shape index: {}]
  %s7 = inlined_call_operand.vmem [shape: f32[2,1,8], index: 7, kind: input, shape index: {}]
  %s8 = inlined_call_operand.vmem [shape: bf16[2,8,64], index: 8, kind: output, shape index: {0}]
  %s9 = inlined_call_operand.vmem [shape: bf16[2,8,64], index: 9, kind: output, shape index: {1}]
  %10 = xla_tuple %s8, %s9
  %s11 = sld [smem:[#allocation0]]
  $region73: #{drlstm_forward.12} parent=0
    _
  %s13 = ssub.s32 1, %s11
  %s14 = scalar_select 0, %s13, %s11
  loop: start=0, step=1, limit=4
  $region2: #{drlstm_forward.12} parent=0 // loop_pre_header
    _
  $region3: #{drlstm_forward.12} parent=0 // loop_header
    %s16 = sphi 0, %s20
    %p17 = scmp.ge.s32.totalorder %s16, 4
    %s26 = sphi 0, %s28
    %s29 = sphi 0, %s26
    %s30 = sphi 0, %s29
    %s46 = sphi 0, %s30
    %s52 = sphi 0, %s54
    %s55 = sphi 0, %s52
    %s56 = sphi 0, %s55
    %s72 = sphi 0, %s56
    %s78 = sphi 0, %s80
    %s81 = sphi 0, %s78
    %s82 = sphi 0, %s81
    %s98 = sphi 0, %s82
    %s104 = sphi 0, %s106
    %s107 = sphi 0, %s104
    %s108 = sphi 0, %s107
    %s124 = sphi 0, %s108
    %s130 = sphi 0, %s132
    %s133 = sphi 0, %s130
    %s134 = sphi 0, %s133
    %s150 = sphi 0, %s134
    %s156 = sphi 0, %s158
    %s159 = sphi 0, %s156
    %s160 = sphi 0, %s159
    %s176 = sphi 0, %s160
    %s182 = sphi 0, %s184
    %s185 = sphi 0, %s182
    %s186 = sphi 0, %s185
    %s202 = sphi 0, %s186
    %s208 = sphi 0, %s210
    %s211 = sphi 0, %s208
    %s212 = sphi 0, %s211
    %s228 = sphi 0, %s212
    %s234 = sphi 0, %s236
    %s237 = sphi 0, %s234
    %s238 = sphi 0, %s237
    %s254 = sphi 0, %s238
    %s260 = sphi 0, %s262
    %s263 = sphi 0, %s260
    %s264 = sphi 0, %s263
    %s280 = sphi 0, %s264
  $region4: #{drlstm_forward.12} parent=0 // loop_header_branch
    %19 = sbr.rel (%p17) target = $region8
  $region5: #{drlstm_forward.12} parent=0 // loop_body
    %s21 = ssub.s32 %s16, 1
    %s22 = ssub.s32 %s16, 2
    %s23 = sadd.s32 %s16, 1
    %s24 = ssub.s32 %s16, %s23
    %p25 = scmp.eq.s32.totalorder %s24, 0
    %s27 = sadd.s32 %s26, 1
    %s28 = scalar_select %p25, %s26, %s27
    %p31 = pneg %p25
    %p32 = scmp.eq.s32.totalorder %s16, 1
    %p33 = por %p31, %p32
    %p34 = scmp.ne.s32.totalorder %s26, %s29
    %p35 = scmp.eq.s32.totalorder %s16, 0
    %p36 = por %p34, %p35
    %p37 = scmp.ne.s32.totalorder %s26, %s29
    %p38 = scmp.eq.s32.totalorder %s21, 1
    %p39 = por %p37, %p38
    %p40 = scmp.ne.s32.totalorder %s29, %s30
    %p41 = scmp.eq.s32.totalorder %s21, 0
    %p42 = por %p40, %p41
    %p43 = scmp.ne.s32.totalorder %s29, %s30
    %p44 = scmp.eq.s32.totalorder %s22, 1
    %p45 = por %p43, %p44
    %p47 = scmp.ne.s32.totalorder %s30, %s46
    %p48 = scmp.eq.s32.totalorder %s22, 0
    %p49 = por %p47, %p48
    %s50 = ssub.s32 %s16, %s23
    %p51 = scmp.eq.s32.totalorder %s50, 0
    %s53 = sadd.s32 %s52, 1
    %s54 = scalar_select %p51, %s52, %s53
    %p57 = pneg %p51
    %p58 = scmp.eq.s32.totalorder %s16, 1
    %p59 = por %p57, %p58
    %p60 = scmp.ne.s32.totalorder %s52, %s55
    %p61 = scmp.eq.s32.totalorder %s16, 0
    %p62 = por %p60, %p61
    %p63 = scmp.ne.s32.totalorder %s52, %s55
    %p64 = scmp.eq.s32.totalorder %s21, 1
    %p65 = por %p63, %p64
    %p66 = scmp.ne.s32.totalorder %s55, %s56
    %p67 = scmp.eq.s32.totalorder %s21, 0
    %p68 = por %p66, %p67
    %p69 = scmp.ne.s32.totalorder %s55, %s56
    %p70 = scmp.eq.s32.totalorder %s22, 1
    %p71 = por %p69, %p70
    %p73 = scmp.ne.s32.totalorder %s56, %s72
    %p74 = scmp.eq.s32.totalorder %s22, 0
    %p75 = por %p73, %p74
    %s76 = ssub.s32 %s16, %s23
    %p77 = scmp.eq.s32.totalorder %s76, 0
    %s79 = sadd.s32 %s78, 1
    %s80 = scalar_select %p77, %s78, %s79
    %p83 = pneg %p77
    %p84 = scmp.eq.s32.totalorder %s16, 1
    %p85 = por %p83, %p84
    %p86 = scmp.ne.s32.totalorder %s78, %s81
    %p87 = scmp.eq.s32.totalorder %s16, 0
    %p88 = por %p86, %p87
    %p89 = scmp.ne.s32.totalorder %s78, %s81
    %p90 = scmp.eq.s32.totalorder %s21, 1
    %p91 = por %p89, %p90
    %p92 = scmp.ne.s32.totalorder %s81, %s82
    %p93 = scmp.eq.s32.totalorder %s21, 0
    %p94 = por %p92, %p93
    %p95 = scmp.ne.s32.totalorder %s81, %s82
    %p96 = scmp.eq.s32.totalorder %s22, 1
    %p97 = por %p95, %p96
    %p99 = scmp.ne.s32.totalorder %s82, %s98
    %p100 = scmp.eq.s32.totalorder %s22, 0
    %p101 = por %p99, %p100
    %s102 = ssub.s32 %s16, %s23
    %p103 = scmp.eq.s32.totalorder %s102, 0
    %s105 = sadd.s32 %s104, 1
    %s106 = scalar_select %p103, %s104, %s105
    %p109 = pneg %p103
    %p110 = scmp.eq.s32.totalorder %s16, 1
    %p111 = por %p109, %p110
    %p112 = scmp.ne.s32.totalorder %s104, %s107
    %p113 = scmp.eq.s32.totalorder %s16, 0
    %p114 = por %p112, %p113
    %p115 = scmp.ne.s32.totalorder %s104, %s107
    %p116 = scmp.eq.s32.totalorder %s21, 1
    %p117 = por %p115, %p116
    %p118 = scmp.ne.s32.totalorder %s107, %s108
    %p119 = scmp.eq.s32.totalorder %s21, 0
    %p120 = por %p118, %p119
    %p121 = scmp.ne.s32.totalorder %s107, %s108
    %p122 = scmp.eq.s32.totalorder %s22, 1
    %p123 = por %p121, %p122
    %p125 = scmp.ne.s32.totalorder %s108, %s124
    %p126 = scmp.eq.s32.totalorder %s22, 0
    %p127 = por %p125, %p126
    %s128 = ssub.s32 %s16, %s23
    %p129 = scmp.eq.s32.totalorder %s128, 0
    %s131 = sadd.s32 %s130, 1
    %s132 = scalar_select %p129, %s130, %s131
    %p135 = pneg %p129
    %p136 = scmp.eq.s32.totalorder %s16, 1
    %p137 = por %p135, %p136
    %p138 = scmp.ne.s32.totalorder %s130, %s133
    %p139 = scmp.eq.s32.totalorder %s16, 0
    %p140 = por %p138, %p139
    %p141 = scmp.ne.s32.totalorder %s130, %s133
    %p142 = scmp.eq.s32.totalorder %s21, 1
    %p143 = por %p141, %p142
    %p144 = scmp.ne.s32.totalorder %s133, %s134
    %p145 = scmp.eq.s32.totalorder %s21, 0
    %p146 = por %p144, %p145
    %p147 = scmp.ne.s32.totalorder %s133, %s134
    %p148 = scmp.eq.s32.totalorder %s22, 1
    %p149 = por %p147, %p148
    %p151 = scmp.ne.s32.totalorder %s134, %s150
    %p152 = scmp.eq.s32.totalorder %s22, 0
    %p153 = por %p151, %p152
    %s154 = ssub.s32 %s16, %s23
    %p155 = scmp.eq.s32.totalorder %s154, 0
    %s157 = sadd.s32 %s156, 1
    %s158 = scalar_select %p155, %s156, %s157
    %p161 = pneg %p155
    %p162 = scmp.eq.s32.totalorder %s16, 1
    %p163 = por %p161, %p162
    %p164 = scmp.ne.s32.totalorder %s156, %s159
    %p165 = scmp.eq.s32.totalorder %s16, 0
    %p166 = por %p164, %p165
    %p167 = scmp.ne.s32.totalorder %s156, %s159
    %p168 = scmp.eq.s32.totalorder %s21, 1
    %p169 = por %p167, %p168
    %p170 = scmp.ne.s32.totalorder %s159, %s160
    %p171 = scmp.eq.s32.totalorder %s21, 0
    %p172 = por %p170, %p171
    %p173 = scmp.ne.s32.totalorder %s159, %s160
    %p174 = scmp.eq.s32.totalorder %s22, 1
    %p175 = por %p173, %p174
    %p177 = scmp.ne.s32.totalorder %s160, %s176
    %p178 = scmp.eq.s32.totalorder %s22, 0
    %p179 = por %p177, %p178
    %s180 = ssub.s32 %s16, %s23
    %p181 = scmp.eq.s32.totalorder %s180, 0
    %s183 = sadd.s32 %s182, 1
    %s184 = scalar_select %p181, %s182, %s183
    %p187 = pneg %p181
    %p188 = scmp.eq.s32.totalorder %s16, 1
    %p189 = por %p187, %p188
    %p190 = scmp.ne.s32.totalorder %s182, %s185
    %p191 = scmp.eq.s32.totalorder %s16, 0
    %p192 = por %p190, %p191
    %p193 = scmp.ne.s32.totalorder %s182, %s185
    %p194 = scmp.eq.s32.totalorder %s21, 1
    %p195 = por %p193, %p194
    %p196 = scmp.ne.s32.totalorder %s185, %s186
    %p197 = scmp.eq.s32.totalorder %s21, 0
    %p198 = por %p196, %p197
    %p199 = scmp.ne.s32.totalorder %s185, %s186
    %p200 = scmp.eq.s32.totalorder %s22, 1
    %p201 = por %p199, %p200
    %p203 = scmp.ne.s32.totalorder %s186, %s202
    %p204 = scmp.eq.s32.totalorder %s22, 0
    %p205 = por %p203, %p204
    %s206 = ssub.s32 %s16, %s23
    %p207 = scmp.eq.s32.totalorder %s206, 0
    %s209 = sadd.s32 %s208, 1
    %s210 = scalar_select %p207, %s208, %s209
    %p213 = pneg %p207
    %p214 = scmp.eq.s32.totalorder %s16, 1
    %p215 = por %p213, %p214
    %p216 = scmp.ne.s32.totalorder %s208, %s211
    %p217 = scmp.eq.s32.totalorder %s16, 0
    %p218 = por %p216, %p217
    %p219 = scmp.ne.s32.totalorder %s208, %s211
    %p220 = scmp.eq.s32.totalorder %s21, 1
    %p221 = por %p219, %p220
    %p222 = scmp.ne.s32.totalorder %s211, %s212
    %p223 = scmp.eq.s32.totalorder %s21, 0
    %p224 = por %p222, %p223
    %p225 = scmp.ne.s32.totalorder %s211, %s212
    %p226 = scmp.eq.s32.totalorder %s22, 1
    %p227 = por %p225, %p226
    %p229 = scmp.ne.s32.totalorder %s212, %s228
    %p230 = scmp.eq.s32.totalorder %s22, 0
    %p231 = por %p229, %p230
    %s232 = ssub.s32 %s16, %s23
    %p233 = scmp.eq.s32.totalorder %s232, 0
    %s235 = sadd.s32 %s234, 1
    %s236 = scalar_select %p233, %s234, %s235
    %p239 = pneg %p233
    %p240 = scmp.eq.s32.totalorder %s16, 1
    %p241 = por %p239, %p240
    %p242 = scmp.ne.s32.totalorder %s234, %s237
    %p243 = scmp.eq.s32.totalorder %s16, 0
    %p244 = por %p242, %p243
    %p245 = scmp.ne.s32.totalorder %s234, %s237
    %p246 = scmp.eq.s32.totalorder %s21, 1
    %p247 = por %p245, %p246
    %p248 = scmp.ne.s32.totalorder %s237, %s238
    %p249 = scmp.eq.s32.totalorder %s21, 0
    %p250 = por %p248, %p249
    %p251 = scmp.ne.s32.totalorder %s237, %s238
    %p252 = scmp.eq.s32.totalorder %s22, 1
    %p253 = por %p251, %p252
    %p255 = scmp.ne.s32.totalorder %s238, %s254
    %p256 = scmp.eq.s32.totalorder %s22, 0
    %p257 = por %p255, %p256
    %s258 = ssub.s32 %s16, %s23
    %p259 = scmp.eq.s32.totalorder %s258, 0
    %s261 = sadd.s32 %s260, 1
    %s262 = scalar_select %p259, %s260, %s261
    %p265 = pneg %p259
    %p266 = scmp.eq.s32.totalorder %s16, 1
    %p267 = por %p265, %p266
    %p268 = scmp.ne.s32.totalorder %s260, %s263
    %p269 = scmp.eq.s32.totalorder %s16, 0
    %p270 = por %p268, %p269
    %p271 = scmp.ne.s32.totalorder %s260, %s263
    %p272 = scmp.eq.s32.totalorder %s21, 1
    %p273 = por %p271, %p272
    %p274 = scmp.ne.s32.totalorder %s263, %s264
    %p275 = scmp.eq.s32.totalorder %s21, 0
    %p276 = por %p274, %p275
    %p277 = scmp.ne.s32.totalorder %s263, %s264
    %p278 = scmp.eq.s32.totalorder %s22, 1
    %p279 = por %p277, %p278
    %p281 = scmp.ne.s32.totalorder %s264, %s280
    %p282 = scmp.eq.s32.totalorder %s22, 0
    %p283 = por %p281, %p282
    %p284 = scmp.le.s32.totalorder 1, %s16
    %p285 = scmp.lt.s32.totalorder %s16, 3
    %p286 = pnand %p284, %p285
    %p287 = pneg %p286
    // Predicated region
    $region9: #{drlstm_forward.12} parent=5 // pred_check
      _
    $region10: #{drlstm_forward.12} parent=5 // pred_check_branch
      %289 = sbr.rel (%p286) target = $region12
    $region11: #{drlstm_forward.12} parent=5 // pred_region
      %s290 = ssub.s32 %s16, 1
    $region12: #{drlstm_forward.12} parent=5 // pred_fallthru
      _
    %p291 = scmp.lt.s32.totalorder %s16, 2
    // Predicated region
    $region13: #{drlstm_forward.12} parent=5 // pred_check
      %p292 = pneg %p291
    $region14: #{drlstm_forward.12} parent=5 // pred_check_branch
      %294 = sbr.rel (%p292) target = $region16
    $region15: #{drlstm_forward.12} parent=5 // pred_region
      // Predicated region
      $region17: #{drlstm_forward.12} parent=15 // pred_check
        %p295 = pneg %p36
      $region18: #{drlstm_forward.12} parent=15 // pred_check_branch
        %297 = sbr.rel (%p295) target = $region20
      $region19: #{drlstm_forward.12} parent=15 // pred_region
        %p298 = scmp.lt.s32.totalorder %s16, 1
        %s299 = scalar_select %p298, %s16, 1
        %s300 = smul.addr %s299, 4
        %s301 = scalar_lea.vmem %s0, %s300
      $region20: #{drlstm_forward.12} parent=15 // pred_fallthru
        _
      // Predicated region
      $region21: #{drlstm_forward.12} parent=15 // pred_check
        %p302 = pneg %p62
      $region22: #{drlstm_forward.12} parent=15 // pred_check_branch
        %304 = sbr.rel (%p302) target = $region24
      $region23: #{drlstm_forward.12} parent=15 // pred_region
        %p305 = scmp.lt.s32.totalorder %s16, 1
        %s306 = scalar_select %p305, %s16, 1
        %s307 = smul.addr %s306, 4
        %s308 = scalar_lea.vmem %s1, %s307
      $region24: #{drlstm_forward.12} parent=15 // pred_fallthru
        _
      // Predicated region
      $region25: #{drlstm_forward.12} parent=15 // pred_check
        %p309 = pneg %p88
      $region26: #{drlstm_forward.12} parent=15 // pred_check_branch
        %311 = sbr.rel (%p309) target = $region28
      $region27: #{drlstm_forward.12} parent=15 // pred_region
        %p312 = scmp.lt.s32.totalorder %s16, 1
        %s313 = scalar_select %p312, %s16, 1
        %s314 = smul.addr %s313, 4
        %s315 = scalar_lea.vmem %s2, %s314
      $region28: #{drlstm_forward.12} parent=15 // pred_fallthru
        _
      // Predicated region
      $region29: #{drlstm_forward.12} parent=15 // pred_check
        %p316 = pneg %p114
      $region30: #{drlstm_forward.12} parent=15 // pred_check_branch
        %318 = sbr.rel (%p316) target = $region32
      $region31: #{drlstm_forward.12} parent=15 // pred_region
        %p319 = scmp.lt.s32.totalorder %s16, 1
        %s320 = scalar_select %p319, %s16, 1
        %s321 = smul.addr %s320, 4
        %s322 = scalar_lea.vmem %s3, %s321
      $region32: #{drlstm_forward.12} parent=15 // pred_fallthru
        _
      // Predicated region
      $region33: #{drlstm_forward.12} parent=15 // pred_check
        %p323 = pneg %p140
      $region34: #{drlstm_forward.12} parent=15 // pred_check_branch
        %325 = sbr.rel (%p323) target = $region36
      $region35: #{drlstm_forward.12} parent=15 // pred_region
        %p326 = scmp.lt.s32.totalorder %s16, 1
        %s327 = scalar_select %p326, %s16, 1
        %s328 = smul.addr %s327, 8
        %s329 = scalar_lea.vmem %s4, %s328
      $region36: #{drlstm_forward.12} parent=15 // pred_fallthru
        _
      // Predicated region
      $region37: #{drlstm_forward.12} parent=15 // pred_check
        %p330 = pneg %p166
      $region38: #{drlstm_forward.12} parent=15 // pred_check_branch
        %332 = sbr.rel (%p330) target = $region40
      $region39: #{drlstm_forward.12} parent=15 // pred_region
        %p333 = scmp.lt.s32.totalorder %s16, 1
        %s334 = scalar_select %p333, %s16, 1
        %s335 = scalar_lea.vmem %s5, %s334
      $region40: #{drlstm_forward.12} parent=15 // pred_fallthru
        _
      // Predicated region
      $region41: #{drlstm_forward.12} parent=15 // pred_check
        %p336 = pneg %p192
      $region42: #{drlstm_forward.12} parent=15 // pred_check_branch
        %338 = sbr.rel (%p336) target = $region44
      $region43: #{drlstm_forward.12} parent=15 // pred_region
        %p339 = scmp.lt.s32.totalorder %s16, 1
        %s340 = scalar_select %p339, %s16, 1
        %s341 = smul.addr %s340, 8
        %s342 = scalar_lea.vmem %s6, %s341
      $region44: #{drlstm_forward.12} parent=15 // pred_fallthru
        _
      // Predicated region
      $region45: #{drlstm_forward.12} parent=15 // pred_check
        %p343 = pneg %p218
      $region46: #{drlstm_forward.12} parent=15 // pred_check_branch
        %345 = sbr.rel (%p343) target = $region48
      $region47: #{drlstm_forward.12} parent=15 // pred_region
        %p346 = scmp.lt.s32.totalorder %s16, 1
        %s347 = scalar_select %p346, %s16, 1
        %s348 = scalar_lea.vmem %s7, %s347
      $region48: #{drlstm_forward.12} parent=15 // pred_fallthru
        _
    $region16: #{drlstm_forward.12} parent=5 // pred_fallthru
      _
    %p349 = scmp.le.s32.totalorder 1, %s16
    %p350 = scmp.lt.s32.totalorder %s16, 3
    %p351 = pnand %p349, %p350
    %p352 = pneg %p351
    // Predicated region
    $region49: #{drlstm_forward.12} parent=5 // pred_check
      _
    $region50: #{drlstm_forward.12} parent=5 // pred_check_branch
      %354 = sbr.rel (%p351) target = $region52
    $region51: #{drlstm_forward.12} parent=5 // pred_region
      %s355 = ssub.s32 %s16, 1
      %p356 = scmp.lt.s32.totalorder %s21, 1
      %s357 = scalar_select %p356, %s21, 1
      %s358 = smul.addr %s357, 4
      %s359 = scalar_lea.vmem %s0, %s358
      %p360 = pneg %p42
      %p361 = pneg %p39
      %p362 = scmp.lt.s32.totalorder %s21, 1
      %s363 = scalar_select %p362, %s21, 1
      %s364 = smul.addr %s363, 4
      %s365 = scalar_lea.vmem %s1, %s364
      %p366 = pneg %p68
      %p367 = pneg %p65
      %p368 = scmp.lt.s32.totalorder %s21, 1
      %s369 = scalar_select %p368, %s21, 1
      %s370 = smul.addr %s369, 4
      %s371 = scalar_lea.vmem %s2, %s370
      %p372 = pneg %p94
      %p373 = pneg %p91
      %p374 = scmp.lt.s32.totalorder %s21, 1
      %s375 = scalar_select %p374, %s21, 1
      %s376 = smul.addr %s375, 4
      %s377 = scalar_lea.vmem %s3, %s376
      %p378 = pneg %p120
      %p379 = pneg %p117
      %p380 = scmp.lt.s32.totalorder %s21, 1
      %s381 = scalar_select %p380, %s21, 1
      %s382 = smul.addr %s381, 8
      %s383 = scalar_lea.vmem %s4, %s382
      %p384 = pneg %p146
      %p385 = pneg %p143
      %p386 = scmp.lt.s32.totalorder %s21, 1
      %s387 = scalar_select %p386, %s21, 1
      %s388 = scalar_lea.vmem %s5, %s387
      %p389 = pneg %p172
      %p390 = pneg %p169
      %p391 = scmp.lt.s32.totalorder %s21, 1
      %s392 = scalar_select %p391, %s21, 1
      %s393 = smul.addr %s392, 8
      %s394 = scalar_lea.vmem %s6, %s393
      %p395 = pneg %p198
      %p396 = pneg %p195
      %p397 = scmp.lt.s32.totalorder %s21, 1
      %s398 = scalar_select %p397, %s21, 1
      %s399 = scalar_lea.vmem %s7, %s398
      %p400 = pneg %p224
      %p401 = pneg %p221
      %p402 = pneg %p250
      %p403 = pneg %p247
      %p404 = scmp.lt.s32.totalorder %s21, 1
      %s405 = scalar_select %p404, %s21, 1
      %s406 = smul.addr %s405, 4
      %s407 = scalar_lea.vmem %s8, %s406
      %p408 = pneg %p276
      %p409 = pneg %p273
      %p410 = scmp.lt.s32.totalorder %s21, 1
      %s411 = scalar_select %p410, %s21, 1
      %s412 = smul.addr %s411, 4
      %s413 = scalar_lea.vmem %s9, %s412
      %p414 = scmp.lt.s32.totalorder %s21, 1
      %s415 = scalar_select %p414, %s21, 1
      %s416 = smul.addr %s415, 4
      %s417 = scalar_lea.vmem %s0, %s416
      %p418 = scmp.lt.s32.totalorder %s21, 1
      %s419 = scalar_select %p418, %s21, 1
      %s420 = smul.addr %s419, 4
      %s421 = scalar_lea.vmem %s1, %s420
      %p422 = scmp.lt.s32.totalorder %s21, 1
      %s423 = scalar_select %p422, %s21, 1
      %s424 = smul.addr %s423, 4
      %s425 = scalar_lea.vmem %s2, %s424
      %p426 = scmp.lt.s32.totalorder %s21, 1
      %s427 = scalar_select %p426, %s21, 1
      %s428 = smul.addr %s427, 4
      %s429 = scalar_lea.vmem %s3, %s428
      %p430 = scmp.lt.s32.totalorder %s21, 1
      %s431 = scalar_select %p430, %s21, 1
      %s432 = smul.addr %s431, 8
      %s433 = scalar_lea.vmem %s4, %s432
      %p434 = scmp.lt.s32.totalorder %s21, 1
      %s435 = scalar_select %p434, %s21, 1
      %s436 = scalar_lea.vmem %s5, %s435
      %p437 = scmp.lt.s32.totalorder %s21, 1
      %s438 = scalar_select %p437, %s21, 1
      %s439 = smul.addr %s438, 8
      %s440 = scalar_lea.vmem %s6, %s439
      %p441 = scmp.lt.s32.totalorder %s21, 1
      %s442 = scalar_select %p441, %s21, 1
      %s443 = scalar_lea.vmem %s7, %s442
      %p444 = scmp.lt.s32.totalorder %s21, 1
      %s445 = scalar_select %p444, %s21, 1
      %s446 = smul.addr %s445, 4
      %s447 = scalar_lea.vmem %s8, %s446
      %p448 = scmp.lt.s32.totalorder %s21, 1
      %s449 = scalar_select %p448, %s21, 1
      %s450 = smul.addr %s449, 4
      %s451 = scalar_lea.vmem %s9, %s450
      %v453 = vld [vmem:[%s417] sm:$0xf]
      %v454 = vld [vmem:[%s421] sm:$0xf]
      %v456 = vunpack.c.l.b16 %v454
      %v457 = vpack.c.b16 %v456, %v456
      %458 = vrot.lane.b32.xlu0 %v457, 32
      %v459 = vpop.permute.xlu0 %458
      %vm460 = vcmask 261120
      %v463 = vsel %vm460, %v453, %v459
      %v464 = vld [vmem:[%s425] sm:$0xf]
      %v465 = vld [vmem:[%s429] sm:$0xf]
      %v467 = vunpack.c.l.b16 %v465
      %v468 = vpack.c.b16 %v467, %v467
      %469 = vrot.lane.b32.xlu0 %v468, 32
      %v470 = vpop.permute.xlu0 %469
      %v473 = vsel %vm460, %v464, %v470
      %vm474 = vcmask 523264
      %v475 = vsel %vm474, %v463, 0
      %v477 = vsel %vm474, %v473, 0
      %479 = vmatprep.subr.bf16.mxu0 0
      %480 = vmatpush1.bf16.xpose.msra.mxu0 %v477
      %481 = vmatprep.subr.bf16.mxu0 0
      %482 = vmatpush1.bf16.xpose.msra.mxu0 0
      %483 = vmatprep.subr.bf16.mxu0 0
      %484 = vmatpush1.bf16.xpose.msra.mxu0 0
      %485 = vmatprep.subr.bf16.mxu0 0
      %486 = vmatpush1.bf16.xpose.msra.mxu0 0
      %487 = vmatprep.subr.bf16.mxu0 0
      %488 = vmatpush1.bf16.xpose.msra.mxu0 0
      %489 = vmatprep.subr.bf16.mxu0 0
      %490 = vmatpush1.bf16.xpose.msra.mxu0 0
      %491 = vmatprep.subr.bf16.mxu0 0
      %492 = vmatpush1.bf16.xpose.msra.mxu0 0
      %493 = vmatprep.subr.bf16.mxu0 0
      %494 = vmatpush1.bf16.xpose.msra.mxu0 0
      %495 = vmatprep.subr.bf16.mxu0 0
      %496 = vmatpush1.bf16.xpose.msra.mxu0 0
      %497 = vmatprep.subr.bf16.mxu0 0
      %498 = vmatpush1.bf16.xpose.msra.mxu0 0
      %499 = vmatprep.subr.bf16.mxu0 0
      %500 = vmatpush1.bf16.xpose.msra.mxu0 0
      %501 = vmatprep.subr.bf16.mxu0 0
      %502 = vmatpush1.bf16.xpose.msra.mxu0 0
      %503 = vmatprep.subr.bf16.mxu0 0
      %504 = vmatpush1.bf16.xpose.msra.mxu0 0
      %505 = vmatprep.subr.bf16.mxu0 0
      %506 = vmatpush1.bf16.xpose.msra.mxu0 0
      %507 = vmatprep.subr.bf16.mxu0 0
      %508 = vmatpush1.bf16.xpose.msra.mxu0 0
      %509 = vmatprep.subr.bf16.mxu0 0
      %510 = vmatpush1.bf16.xpose.msra.mxu0 0
      %511 = vmatprep.mubr.bf16.mxu0 0
      %512 = vmatmul.mubr.bf16.gmra.mrb[0].mxu0 %v475
      %v513 = vpop.f32.mrb[0].mxu0
      %v514 = vadd.f32 0.0, %v513
      %v515 = vpop.f32.mrb[0].mxu0
      %v516 = vpop.f32.mrb[0].mxu0
      %v517 = vpop.f32.mrb[0].mxu0
      %518 = vdwg.mxu0
      %v519 = vld [vmem:[%s443] sm:$0x1]
      %v520 = vsub.f32 %v519, 1.0
      %v521 = vmul.f32 %v520, 1e+09
      %v523 = vlaneseq
      %v524 = vshrl.u32 %v523, 7
      %v525 = vsub.s32 0, %v524
      %v526 = vrot.slane %v521, %v525
      %v528 = vadd.f32 %v514, %v526
      %vm529 = vcmask 64512
      %v530 = vsel %vm529, %v528, -inf
      %531 = vmax.xlane.f32.xlu0 %v530
      %v532 = vpop.xlane.xlu0 %531
      %v533 = vsub.f32 %v528, %v532
      %v534 = vmul.f32 %v533, 1.442695
      %v535 = vpow.pop %v534
      %v536 = vsel %vm529, %v535, 0.0
      %537 = vadd.xlane.f32.xlu0 %v536
      %v538 = vpop.xlane.xlu0 %537
      %v539 = vrcp.pop %v538
      %v540 = vmul.f32 %v535, %v539
      %541 = vxpose.xlu0.b32.start [1/16] %v514, 128
      %542 = vxpose.xlu0.b32.cont [2/16] 0.0, 128
      %543 = vxpose.xlu0.b32.cont [3/16] 0.0, 128
      %544 = vxpose.xlu0.b32.cont [4/16] 0.0, 128
      %545 = vxpose.xlu0.b32.cont [5/16] 0.0, 128
      %546 = vxpose.xlu0.b32.cont [6/16] 0.0, 128
      %547 = vxpose.xlu0.b32.cont [7/16] 0.0, 128
      %548 = vxpose.xlu0.b32.cont [8/16] 0.0, 128
      %549 = vxpose.xlu0.b32.cont [9/16] 0.0, 128
      %550 = vxpose.xlu0.b32.cont [10/16] 0.0, 128
      %551 = vxpose.xlu0.b32.cont [11/16] 0.0, 128
      %552 = vxpose.xlu0.b32.cont [12/16] 0.0, 128
      %553 = vxpose.xlu0.b32.cont [13/16] 0.0, 128
      %554 = vxpose.xlu0.b32.cont [14/16] 0.0, 128
      %555 = vxpose.xlu0.b32.cont [15/16] 0.0, 128
      %556 = vxpose.xlu0.b32.end [16/16] 0.0, 128
      %v557 = vpop.trf.xlu0
      %v558 = vpop.trf.xlu0
      %v559 = vpop.trf.xlu0
      %v560 = vpop.trf.xlu0
      %v561 = vpop.trf.xlu0
      %v562 = vpop.trf.xlu0
      %v563 = vpop.trf.xlu0
      %v564 = vpop.trf.xlu0
      %v565 = vpop.trf.xlu0
      %v566 = vpop.trf.xlu0
      %v567 = vpop.trf.xlu0
      %v568 = vpop.trf.xlu0
      %v569 = vpop.trf.xlu0
      %v570 = vpop.trf.xlu0
      %v571 = vpop.trf.xlu0
      %v572 = vpop.trf.xlu0
      %v573 = vld [vmem:[%s436] sm:$0x1]
      %v574 = vsub.f32 %v573, 1.0
      %v575 = vmul.f32 %v574, 1e+09
      %v577 = vlaneseq
      %v578 = vshrl.u32 %v577, 7
      %v579 = vsub.s32 0, %v578
      %v580 = vrot.slane %v575, %v579
      %v582 = vadd.f32 %v557, %v580
      %v583 = vsel %vm529, %v582, -inf
      %584 = vmax.xlane.f32.xlu0 %v583
      %v585 = vpop.xlane.xlu0 %584
      %v586 = vsub.f32 %v582, %v585
      %v587 = vmul.f32 %v586, 1.442695
      %v588 = vpow.pop %v587
      %v589 = vsel %vm529, %v588, 0.0
      %590 = vadd.xlane.f32.xlu0 %v589
      %v591 = vpop.xlane.xlu0 %590
      %v592 = vrcp.pop %v591
      %v593 = vmul.f32 %v588, %v592
      %v594 = vpack.c.bf16 %v540, %v540
      %v596 = vsel %vm529, %v594, 0
      %vm598 = vcmask 1043456
      %v599 = vsel %vm598, %v473, 0
      %601 = vmatprep.subr.bf16.mxu0 0
      %602 = vmatpush1.bf16.msra.mxu0 %v599
      %603 = vmatprep.subr.bf16.mxu0 0
      %604 = vmatpush1.bf16.msra.mxu0 0
      %605 = vmatprep.subr.bf16.mxu0 0
      %606 = vmatpush1.bf16.msra.mxu0 0
      %607 = vmatprep.subr.bf16.mxu0 0
      %608 = vmatpush1.bf16.msra.mxu0 0
      %609 = vmatprep.subr.bf16.mxu0 0
      %610 = vmatpush1.bf16.msra.mxu0 0
      %611 = vmatprep.subr.bf16.mxu0 0
      %612 = vmatpush1.bf16.msra.mxu0 0
      %613 = vmatprep.subr.bf16.mxu0 0
      %614 = vmatpush1.bf16.msra.mxu0 0
      %615 = vmatprep.subr.bf16.mxu0 0
      %616 = vmatpush1.bf16.msra.mxu0 0
      %617 = vmatprep.subr.bf16.mxu0 0
      %618 = vmatpush1.bf16.msra.mxu0 0
      %619 = vmatprep.subr.bf16.mxu0 0
      %620 = vmatpush1.bf16.msra.mxu0 0
      %621 = vmatprep.subr.bf16.mxu0 0
      %622 = vmatpush1.bf16.msra.mxu0 0
      %623 = vmatprep.subr.bf16.mxu0 0
      %624 = vmatpush1.bf16.msra.mxu0 0
      %625 = vmatprep.subr.bf16.mxu0 0
      %626 = vmatpush1.bf16.msra.mxu0 0
      %627 = vmatprep.subr.bf16.mxu0 0
      %628 = vmatpush1.bf16.msra.mxu0 0
      %629 = vmatprep.subr.bf16.mxu0 0
      %630 = vmatpush1.bf16.msra.mxu0 0
      %631 = vmatprep.subr.bf16.mxu0 0
      %632 = vmatpush1.bf16.msra.mxu0 0
      %633 = vmatprep.mubr.bf16.mxu0 0
      %634 = vmatmul.mubr.bf16.gmra.mrb[0].mxu0 %v596
      %v635 = vpop.f32.mrb[0].mxu0
      %v636 = vadd.f32 0.0, %v635
      %v637 = vpop.f32.mrb[0].mxu0
      %v638 = vpop.f32.mrb[0].mxu0
      %v639 = vpop.f32.mrb[0].mxu0
      %640 = vdwg.mxu0
      %v641 = vpack.c.bf16 %v593, %v593
      %v643 = vsel %vm529, %v641, 0
      %v645 = vsel %vm598, %v463, 0
      %647 = vmatprep.subr.bf16.mxu0 0
      %648 = vmatpush1.bf16.msra.mxu0 %v645
      %649 = vmatprep.subr.bf16.mxu0 0
      %650 = vmatpush1.bf16.msra.mxu0 0
      %651 = vmatprep.subr.bf16.mxu0 0
      %652 = vmatpush1.bf16.msra.mxu0 0
      %653 = vmatprep.subr.bf16.mxu0 0
      %654 = vmatpush1.bf16.msra.mxu0 0
      %655 = vmatprep.subr.bf16.mxu0 0
      %656 = vmatpush1.bf16.msra.mxu0 0
      %657 = vmatprep.subr.bf16.mxu0 0
      %658 = vmatpush1.bf16.msra.mxu0 0
      %659 = vmatprep.subr.bf16.mxu0 0
      %660 = vmatpush1.bf16.msra.mxu0 0
      %661 = vmatprep.subr.bf16.mxu0 0
      %662 = vmatpush1.bf16.msra.mxu0 0
      %663 = vmatprep.subr.bf16.mxu0 0
      %664 = vmatpush1.bf16.msra.mxu0 0
      %665 = vmatprep.subr.bf16.mxu0 0
      %666 = vmatpush1.bf16.msra.mxu0 0
      %667 = vmatprep.subr.bf16.mxu0 0
      %668 = vmatpush1.bf16.msra.mxu0 0
      %669 = vmatprep.subr.bf16.mxu0 0
      %670 = vmatpush1.bf16.msra.mxu0 0
      %671 = vmatprep.subr.bf16.mxu0 0
      %672 = vmatpush1.bf16.msra.mxu0 0
      %673 = vmatprep.subr.bf16.mxu0 0
      %674 = vmatpush1.bf16.msra.mxu0 0
      %675 = vmatprep.subr.bf16.mxu0 0
      %676 = vmatpush1.bf16.msra.mxu0 0
      %677 = vmatprep.subr.bf16.mxu0 0
      %678 = vmatpush1.bf16.msra.mxu0 0
      %679 = vmatprep.mubr.bf16.mxu0 0
      %680 = vmatmul.mubr.bf16.gmra.mrb[0].mxu0 %v643
      %v681 = vpop.f32.mrb[0].mxu0
      %v682 = vadd.f32 0.0, %v681
      %v683 = vpop.f32.mrb[0].mxu0
      %v684 = vpop.f32.mrb[0].mxu0
      %v685 = vpop.f32.mrb[0].mxu0
      %686 = vdwg.mxu0
      %v687 = vld [vmem:[%s433] sm:$0xff]
      %689 = vset.pattern.permute.xlu0 0
      %690 = vperm.xlu0 %689, %v687
      %v691 = vpop.permute.xlu0 %690
      %v693 = vmul.f32 %v636, %v691
      %v694 = vpack.c.bf16 %v693, %v693
      %vm695 = vcmask 519168
      %696 = vst.msk [vmem:[%s447] sm:$0xf] %vm695, %v694
      %v697 = vld [vmem:[%s440] sm:$0xff]
      %699 = vset.pattern.permute.xlu0 0
      %700 = vperm.xlu0 %699, %v697
      %v701 = vpop.permute.xlu0 %700
      %v703 = vmul.f32 %v682, %v701
      %v704 = vpack.c.bf16 %v703, %v703
      %705 = vst.msk [vmem:[%s451] sm:$0xf] %vm695, %v704
      %p706 = scmp.lt.s32.totalorder %s21, 1
      %s707 = scalar_select %p706, %s21, 1
      %s708 = smul.addr %s707, 4
      %s709 = scalar_lea.vmem %s8, %s708
      %p710 = scmp.lt.s32.totalorder %s21, 1
      %s711 = scalar_select %p710, %s21, 1
      %s712 = smul.addr %s711, 4
      %s713 = scalar_lea.vmem %s9, %s712
      // Predicated region
      $region53: #{drlstm_forward.12} parent=51 // pred_check
        %p714 = pneg %p247
      $region54: #{drlstm_forward.12} parent=51 // pred_check_branch
        %716 = sbr.rel (%p714) target = $region56
      $region55: #{drlstm_forward.12} parent=51 // pred_region
        _
      $region56: #{drlstm_forward.12} parent=51 // pred_fallthru
        _
      // Predicated region
      $region57: #{drlstm_forward.12} parent=51 // pred_check
        %p717 = pneg %p273
      $region58: #{drlstm_forward.12} parent=51 // pred_check_branch
        %719 = sbr.rel (%p717) target = $region60
      $region59: #{drlstm_forward.12} parent=51 // pred_region
        _
      $region60: #{drlstm_forward.12} parent=51 // pred_fallthru
        _
    $region52: #{drlstm_forward.12} parent=5 // pred_fallthru
      _
    %p720 = scmp.le.s32.totalorder 2, %s16
    // Predicated region
    $region61: #{drlstm_forward.12} parent=5 // pred_check
      %p721 = pneg %p720
    $region62: #{drlstm_forward.12} parent=5 // pred_check_branch
      %723 = sbr.rel (%p721) target = $region64
    $region63: #{drlstm_forward.12} parent=5 // pred_region
      %s724 = ssub.s32 %s16, 2
      // Predicated region
      $region65: #{drlstm_forward.12} parent=63 // pred_check
        %p725 = pneg %p253
      $region66: #{drlstm_forward.12} parent=63 // pred_check_branch
        %727 = sbr.rel (%p725) target = $region68
      $region67: #{drlstm_forward.12} parent=63 // pred_region
        %p728 = scmp.lt.s32.totalorder %s22, 1
        %s729 = scalar_select %p728, %s22, 1
        %s730 = smul.addr %s729, 4
        %s731 = scalar_lea.vmem %s8, %s730
      $region68: #{drlstm_forward.12} parent=63 // pred_fallthru
        _
      // Predicated region
      $region69: #{drlstm_forward.12} parent=63 // pred_check
        %p732 = pneg %p279
      $region70: #{drlstm_forward.12} parent=63 // pred_check_branch
        %734 = sbr.rel (%p732) target = $region72
      $region71: #{drlstm_forward.12} parent=63 // pred_region
        %p735 = scmp.lt.s32.totalorder %s22, 1
        %s736 = scalar_select %p735, %s22, 1
        %s737 = smul.addr %s736, 4
        %s738 = scalar_lea.vmem %s9, %s737
      $region72: #{drlstm_forward.12} parent=63 // pred_fallthru
        _
    $region64: #{drlstm_forward.12} parent=5 // pred_fallthru
      _
  $region6: #{drlstm_forward.12} parent=0 // loop_footer
    %s20 = sadd.s32 1, %s16
  $region7: #{drlstm_forward.12} parent=0 // loop_footer_branch
    %15 = sbr.rel target = $region3
  $region8: #{drlstm_forward.12} parent=0 // loop_exit
    _

// kernel: drlstm_forward.14
$region0: #{drlstm_forward.14}
  #allocation0 [shape = 'u32[]', space=smem, size = 0x4, offset = 0x4, fixed_abs, tag = 'smem constant byte address 0x4 - core index']
  #allocation1 [shape = 'u32[144,128]{1,0:T(1,128)}', space=vmem, size = 0x12000, scoped, tag = 'internal scratch']
  %s0 = inlined_call_operand.vmem [shape: bf16[2,8,32], index: 0, kind: input, shape index: {}]
  %s1 = inlined_call_operand.vmem [shape: bf16[2,8,32], index: 1, kind: input, shape index: {}]
  %s2 = inlined_call_operand.vmem [shape: bf16[2,8,64], index: 2, kind: input, shape index: {}]
  %s3 = inlined_call_operand.vmem [shape: bf16[64,32], index: 3, kind: input, shape index: {}]
  %s4 = inlined_call_operand.vmem [shape: bf16[64,32], index: 4, kind: input, shape index: {}]
  %s5 = inlined_call_operand.vmem [shape: bf16[64,32], index: 5, kind: input, shape index: {}]
  %s6 = inlined_call_operand.vmem [shape: f32[1,32], index: 6, kind: input, shape index: {}]
  %s7 = inlined_call_operand.vmem [shape: bf16[2,8,32], index: 7, kind: output, shape index: {}]
  %s8 = sld [smem:[#allocation0]]
  $region61: #{drlstm_forward.14} parent=0
    _
  %s10 = ssub.s32 1, %s8
  %s11 = scalar_select 0, %s10, %s8
  loop: start=0, step=1, limit=4
  $region2: #{drlstm_forward.14} parent=0 // loop_pre_header
    _
  $region3: #{drlstm_forward.14} parent=0 // loop_header
    %s13 = sphi 0, %s17
    %p14 = scmp.ge.s32.totalorder %s13, 4
    %s23 = sphi 0, %s25
    %s26 = sphi 0, %s23
    %s27 = sphi 0, %s26
    %s43 = sphi 0, %s27
    %s49 = sphi 0, %s51
    %s52 = sphi 0, %s49
    %s53 = sphi 0, %s52
    %s69 = sphi 0, %s53
    %s75 = sphi 0, %s77
    %s78 = sphi 0, %s75
    %s79 = sphi 0, %s78
    %s95 = sphi 0, %s79
    %s99 = sphi 0, %s99
    %s101 = sphi 0, %s99
    %s102 = sphi 0, %s101
    %s116 = sphi 0, %s102
    %s120 = sphi 0, %s120
    %s122 = sphi 0, %s120
    %s123 = sphi 0, %s122
    %s137 = sphi 0, %s123
    %s141 = sphi 0, %s141
    %s143 = sphi 0, %s141
    %s144 = sphi 0, %s143
    %s158 = sphi 0, %s144
    %s162 = sphi 0, %s162
    %s164 = sphi 0, %s162
    %s165 = sphi 0, %s164
    %s179 = sphi 0, %s165
    %s185 = sphi 0, %s187
    %s188 = sphi 0, %s185
    %s189 = sphi 0, %s188
    %s205 = sphi 0, %s189
  $region4: #{drlstm_forward.14} parent=0 // loop_header_branch
    %16 = sbr.rel (%p14) target = $region8
  $region5: #{drlstm_forward.14} parent=0 // loop_body
    %s18 = ssub.s32 %s13, 1
    %s19 = ssub.s32 %s13, 2
    %s20 = sadd.s32 %s13, 1
    %s21 = ssub.s32 %s13, %s20
    %p22 = scmp.eq.s32.totalorder %s21, 0
    %s24 = sadd.s32 %s23, 1
    %s25 = scalar_select %p22, %s23, %s24
    %p28 = pneg %p22
    %p29 = scmp.eq.s32.totalorder %s13, 1
    %p30 = por %p28, %p29
    %p31 = scmp.ne.s32.totalorder %s23, %s26
    %p32 = scmp.eq.s32.totalorder %s13, 0
    %p33 = por %p31, %p32
    %p34 = scmp.ne.s32.totalorder %s23, %s26
    %p35 = scmp.eq.s32.totalorder %s18, 1
    %p36 = por %p34, %p35
    %p37 = scmp.ne.s32.totalorder %s26, %s27
    %p38 = scmp.eq.s32.totalorder %s18, 0
    %p39 = por %p37, %p38
    %p40 = scmp.ne.s32.totalorder %s26, %s27
    %p41 = scmp.eq.s32.totalorder %s19, 1
    %p42 = por %p40, %p41
    %p44 = scmp.ne.s32.totalorder %s27, %s43
    %p45 = scmp.eq.s32.totalorder %s19, 0
    %p46 = por %p44, %p45
    %s47 = ssub.s32 %s13, %s20
    %p48 = scmp.eq.s32.totalorder %s47, 0
    %s50 = sadd.s32 %s49, 1
    %s51 = scalar_select %p48, %s49, %s50
    %p54 = pneg %p48
    %p55 = scmp.eq.s32.totalorder %s13, 1
    %p56 = por %p54, %p55
    %p57 = scmp.ne.s32.totalorder %s49, %s52
    %p58 = scmp.eq.s32.totalorder %s13, 0
    %p59 = por %p57, %p58
    %p60 = scmp.ne.s32.totalorder %s49, %s52
    %p61 = scmp.eq.s32.totalorder %s18, 1
    %p62 = por %p60, %p61
    %p63 = scmp.ne.s32.totalorder %s52, %s53
    %p64 = scmp.eq.s32.totalorder %s18, 0
    %p65 = por %p63, %p64
    %p66 = scmp.ne.s32.totalorder %s52, %s53
    %p67 = scmp.eq.s32.totalorder %s19, 1
    %p68 = por %p66, %p67
    %p70 = scmp.ne.s32.totalorder %s53, %s69
    %p71 = scmp.eq.s32.totalorder %s19, 0
    %p72 = por %p70, %p71
    %s73 = ssub.s32 %s13, %s20
    %p74 = scmp.eq.s32.totalorder %s73, 0
    %s76 = sadd.s32 %s75, 1
    %s77 = scalar_select %p74, %s75, %s76
    %p80 = pneg %p74
    %p81 = scmp.eq.s32.totalorder %s13, 1
    %p82 = por %p80, %p81
    %p83 = scmp.ne.s32.totalorder %s75, %s78
    %p84 = scmp.eq.s32.totalorder %s13, 0
    %p85 = por %p83, %p84
    %p86 = scmp.ne.s32.totalorder %s75, %s78
    %p87 = scmp.eq.s32.totalorder %s18, 1
    %p88 = por %p86, %p87
    %p89 = scmp.ne.s32.totalorder %s78, %s79
    %p90 = scmp.eq.s32.totalorder %s18, 0
    %p91 = por %p89, %p90
    %p92 = scmp.ne.s32.totalorder %s78, %s79
    %p93 = scmp.eq.s32.totalorder %s19, 1
    %p94 = por %p92, %p93
    %p96 = scmp.ne.s32.totalorder %s79, %s95
    %p97 = scmp.eq.s32.totalorder %s19, 0
    %p98 = por %p96, %p97
    %s100 = sadd.s32 %s99, 1
    %p103 = scmp.eq.s32.totalorder %s13, 1
    %p104 = scmp.ne.s32.totalorder %s99, %s101
    %p105 = scmp.eq.s32.totalorder %s13, 0
    %p106 = por %p104, %p105
    %p107 = scmp.ne.s32.totalorder %s99, %s101
    %p108 = scmp.eq.s32.totalorder %s18, 1
    %p109 = por %p107, %p108
    %p110 = scmp.ne.s32.totalorder %s101, %s102
    %p111 = scmp.eq.s32.totalorder %s18, 0
    %p112 = por %p110, %p111
    %p113 = scmp.ne.s32.totalorder %s101, %s102
    %p114 = scmp.eq.s32.totalorder %s19, 1
    %p115 = por %p113, %p114
    %p117 = scmp.ne.s32.totalorder %s102, %s116
    %p118 = scmp.eq.s32.totalorder %s19, 0
    %p119 = por %p117, %p118
    %s121 = sadd.s32 %s120, 1
    %p124 = scmp.eq.s32.totalorder %s13, 1
    %p125 = scmp.ne.s32.totalorder %s120, %s122
    %p126 = scmp.eq.s32.totalorder %s13, 0
    %p127 = por %p125, %p126
    %p128 = scmp.ne.s32.totalorder %s120, %s122
    %p129 = scmp.eq.s32.totalorder %s18, 1
    %p130 = por %p128, %p129
    %p131 = scmp.ne.s32.totalorder %s122, %s123
    %p132 = scmp.eq.s32.totalorder %s18, 0
    %p133 = por %p131, %p132
    %p134 = scmp.ne.s32.totalorder %s122, %s123
    %p135 = scmp.eq.s32.totalorder %s19, 1
    %p136 = por %p134, %p135
    %p138 = scmp.ne.s32.totalorder %s123, %s137
    %p139 = scmp.eq.s32.totalorder %s19, 0
    %p140 = por %p138, %p139
    %s142 = sadd.s32 %s141, 1
    %p145 = scmp.eq.s32.totalorder %s13, 1
    %p146 = scmp.ne.s32.totalorder %s141, %s143
    %p147 = scmp.eq.s32.totalorder %s13, 0
    %p148 = por %p146, %p147
    %p149 = scmp.ne.s32.totalorder %s141, %s143
    %p150 = scmp.eq.s32.totalorder %s18, 1
    %p151 = por %p149, %p150
    %p152 = scmp.ne.s32.totalorder %s143, %s144
    %p153 = scmp.eq.s32.totalorder %s18, 0
    %p154 = por %p152, %p153
    %p155 = scmp.ne.s32.totalorder %s143, %s144
    %p156 = scmp.eq.s32.totalorder %s19, 1
    %p157 = por %p155, %p156
    %p159 = scmp.ne.s32.totalorder %s144, %s158
    %p160 = scmp.eq.s32.totalorder %s19, 0
    %p161 = por %p159, %p160
    %s163 = sadd.s32 %s162, 1
    %p166 = scmp.eq.s32.totalorder %s13, 1
    %p167 = scmp.ne.s32.totalorder %s162, %s164
    %p168 = scmp.eq.s32.totalorder %s13, 0
    %p169 = por %p167, %p168
    %p170 = scmp.ne.s32.totalorder %s162, %s164
    %p171 = scmp.eq.s32.totalorder %s18, 1
    %p172 = por %p170, %p171
    %p173 = scmp.ne.s32.totalorder %s164, %s165
    %p174 = scmp.eq.s32.totalorder %s18, 0
    %p175 = por %p173, %p174
    %p176 = scmp.ne.s32.totalorder %s164, %s165
    %p177 = scmp.eq.s32.totalorder %s19, 1
    %p178 = por %p176, %p177
    %p180 = scmp.ne.s32.totalorder %s165, %s179
    %p181 = scmp.eq.s32.totalorder %s19, 0
    %p182 = por %p180, %p181
    %s183 = ssub.s32 %s13, %s20
    %p184 = scmp.eq.s32.totalorder %s183, 0
    %s186 = sadd.s32 %s185, 1
    %s187 = scalar_select %p184, %s185, %s186
    %p190 = pneg %p184
    %p191 = scmp.eq.s32.totalorder %s13, 1
    %p192 = por %p190, %p191
    %p193 = scmp.ne.s32.totalorder %s185, %s188
    %p194 = scmp.eq.s32.totalorder %s13, 0
    %p195 = por %p193, %p194
    %p196 = scmp.ne.s32.totalorder %s185, %s188
    %p197 = scmp.eq.s32.totalorder %s18, 1
    %p198 = por %p196, %p197
    %p199 = scmp.ne.s32.totalorder %s188, %s189
    %p200 = scmp.eq.s32.totalorder %s18, 0
    %p201 = por %p199, %p200
    %p202 = scmp.ne.s32.totalorder %s188, %s189
    %p203 = scmp.eq.s32.totalorder %s19, 1
    %p204 = por %p202, %p203
    %p206 = scmp.ne.s32.totalorder %s189, %s205
    %p207 = scmp.eq.s32.totalorder %s19, 0
    %p208 = por %p206, %p207
    %p209 = scmp.le.s32.totalorder 1, %s13
    %p210 = scmp.lt.s32.totalorder %s13, 3
    %p211 = pnand %p209, %p210
    %p212 = pneg %p211
    // Predicated region
    $region9: #{drlstm_forward.14} parent=5 // pred_check
      _
    $region10: #{drlstm_forward.14} parent=5 // pred_check_branch
      %214 = sbr.rel (%p211) target = $region12
    $region11: #{drlstm_forward.14} parent=5 // pred_region
      %s215 = ssub.s32 %s13, 1
      // Predicated region
      $region13: #{drlstm_forward.14} parent=11 // pred_check
        %p216 = pneg %p112
      $region14: #{drlstm_forward.14} parent=11 // pred_check_branch
        %218 = sbr.rel (%p216) target = $region16
      $region15: #{drlstm_forward.14} parent=11 // pred_region
        _
      $region16: #{drlstm_forward.14} parent=11 // pred_fallthru
        _
      // Predicated region
      $region17: #{drlstm_forward.14} parent=11 // pred_check
        %p219 = pneg %p133
      $region18: #{drlstm_forward.14} parent=11 // pred_check_branch
        %221 = sbr.rel (%p219) target = $region20
      $region19: #{drlstm_forward.14} parent=11 // pred_region
        _
      $region20: #{drlstm_forward.14} parent=11 // pred_fallthru
        _
      // Predicated region
      $region21: #{drlstm_forward.14} parent=11 // pred_check
        %p222 = pneg %p154
      $region22: #{drlstm_forward.14} parent=11 // pred_check_branch
        %224 = sbr.rel (%p222) target = $region24
      $region23: #{drlstm_forward.14} parent=11 // pred_region
        _
      $region24: #{drlstm_forward.14} parent=11 // pred_fallthru
        _
      // Predicated region
      $region25: #{drlstm_forward.14} parent=11 // pred_check
        %p225 = pneg %p175
      $region26: #{drlstm_forward.14} parent=11 // pred_check_branch
        %227 = sbr.rel (%p225) target = $region28
      $region27: #{drlstm_forward.14} parent=11 // pred_region
        _
      $region28: #{drlstm_forward.14} parent=11 // pred_fallthru
        _
    $region12: #{drlstm_forward.14} parent=5 // pred_fallthru
      _
    %p228 = scmp.lt.s32.totalorder %s13, 2
    // Predicated region
    $region29: #{drlstm_forward.14} parent=5 // pred_check
      %p229 = pneg %p228
    $region30: #{drlstm_forward.14} parent=5 // pred_check_branch
      %231 = sbr.rel (%p229) target = $region32
    $region31: #{drlstm_forward.14} parent=5 // pred_region
      // Predicated region
      $region33: #{drlstm_forward.14} parent=31 // pred_check
        %p232 = pneg %p33
      $region34: #{drlstm_forward.14} parent=31 // pred_check_branch
        %234 = sbr.rel (%p232) target = $region36
      $region35: #{drlstm_forward.14} parent=31 // pred_region
        %p235 = scmp.lt.s32.totalorder %s13, 1
        %s236 = scalar_select %p235, %s13, 1
        %s237 = smul.addr %s236, 4
        %s238 = scalar_lea.vmem %s0, %s237
      $region36: #{drlstm_forward.14} parent=31 // pred_fallthru
        _
      // Predicated region
      $region37: #{drlstm_forward.14} parent=31 // pred_check
        %p239 = pneg %p59
      $region38: #{drlstm_forward.14} parent=31 // pred_check_branch
        %241 = sbr.rel (%p239) target = $region40
      $region39: #{drlstm_forward.14} parent=31 // pred_region
        %p242 = scmp.lt.s32.totalorder %s13, 1
        %s243 = scalar_select %p242, %s13, 1
        %s244 = smul.addr %s243, 4
        %s245 = scalar_lea.vmem %s1, %s244
      $region40: #{drlstm_forward.14} parent=31 // pred_fallthru
        _
      // Predicated region
      $region41: #{drlstm_forward.14} parent=31 // pred_check
        %p246 = pneg %p85
      $region42: #{drlstm_forward.14} parent=31 // pred_check_branch
        %248 = sbr.rel (%p246) target = $region44
      $region43: #{drlstm_forward.14} parent=31 // pred_region
        %p249 = scmp.lt.s32.totalorder %s13, 1
        %s250 = scalar_select %p249, %s13, 1
        %s251 = smul.addr %s250, 4
        %s252 = scalar_lea.vmem %s2, %s251
      $region44: #{drlstm_forward.14} parent=31 // pred_fallthru
        _
    $region32: #{drlstm_forward.14} parent=5 // pred_fallthru
      _
    %p253 = scmp.le.s32.totalorder 1, %s13
    %p254 = scmp.lt.s32.totalorder %s13, 3
    %p255 = pnand %p253, %p254
    %p256 = pneg %p255
    // Predicated region
    $region45: #{drlstm_forward.14} parent=5 // pred_check
      _
    $region46: #{drlstm_forward.14} parent=5 // pred_check_branch
      %258 = sbr.rel (%p255) target = $region48
    $region47: #{drlstm_forward.14} parent=5 // pred_region
      %s259 = ssub.s32 %s13, 1
      %p260 = scmp.lt.s32.totalorder %s18, 1
      %s261 = scalar_select %p260, %s18, 1
      %s262 = smul.addr %s261, 4
      %s263 = scalar_lea.vmem %s0, %s262
      %p264 = pneg %p39
      %p265 = pneg %p36
      %p266 = scmp.lt.s32.totalorder %s18, 1
      %s267 = scalar_select %p266, %s18, 1
      %s268 = smul.addr %s267, 4
      %s269 = scalar_lea.vmem %s1, %s268
      %p270 = pneg %p65
      %p271 = pneg %p62
      %p272 = scmp.lt.s32.totalorder %s18, 1
      %s273 = scalar_select %p272, %s18, 1
      %s274 = smul.addr %s273, 4
      %s275 = scalar_lea.vmem %s2, %s274
      %p276 = pneg %p91
      %p277 = pneg %p88
      %p278 = pneg %p112
      %p279 = pneg %p109
      %p280 = pneg %p133
      %p281 = pneg %p130
      %p282 = pneg %p154
      %p283 = pneg %p151
      %p284 = pneg %p175
      %p285 = pneg %p172
      %p286 = pneg %p201
      %p287 = pneg %p198
      %p288 = scmp.lt.s32.totalorder %s18, 1
      %s289 = scalar_select %p288, %s18, 1
      %s290 = smul.addr %s289, 4
      %s291 = scalar_lea.vmem %s7, %s290
      %p292 = scmp.lt.s32.totalorder %s18, 1
      %s293 = scalar_select %p292, %s18, 1
      %s294 = smul.addr %s293, 4
      %s295 = scalar_lea.vmem %s0, %s294
      %p296 = scmp.lt.s32.totalorder %s18, 1
      %s297 = scalar_select %p296, %s18, 1
      %s298 = smul.addr %s297, 4
      %s299 = scalar_lea.vmem %s1, %s298
      %p300 = scmp.lt.s32.totalorder %s18, 1
      %s301 = scalar_select %p300, %s18, 1
      %s302 = smul.addr %s301, 4
      %s303 = scalar_lea.vmem %s2, %s302
      %p304 = scmp.lt.s32.totalorder %s18, 1
      %s305 = scalar_select %p304, %s18, 1
      %s306 = smul.addr %s305, 4
      %s307 = scalar_lea.vmem %s7, %s306
      %v309 = vld [vmem:[%s295] sm:$0xf]
      %v310 = vld [vmem:[%s299] sm:$0xf]
      %v312 = vunpack.c.l.b16 %v310
      %v313 = vpack.c.b16 %v312, %v312
      %314 = vrot.lane.b32.xlu0 %v313, 32
      %v315 = vpop.permute.xlu0 %314
      %vm316 = vcmask 261120
      %v319 = vsel %vm316, %v309, %v315
      %v321 = vld [vmem:[%s303] sm:$0xf]
      %v322 = vunpack.c.l.bf16 %v319
      %v323 = vunpack.c.l.bf16 %v321
      %v324 = vmul.f32 %v322, %v323
      %v325 = vpack.c.bf16 %v324, %v324
      %v326 = vld [vmem:[%s3] sm:$0xf]
      %v327 = vld [vmem:[%s3 + $0x4] sm:$0xf]
      %v328 = vld [vmem:[%s3 + $0x8] sm:$0xf]
      %v329 = vld [vmem:[%s3 + $0xc] sm:$0xf]
      %v330 = vld [vmem:[%s3 + $0x10] sm:$0xf]
      %v331 = vld [vmem:[%s3 + $0x14] sm:$0xf]
      %v332 = vld [vmem:[%s3 + $0x18] sm:$0xf]
      %v333 = vld [vmem:[%s3 + $0x1c] sm:$0xf]
      %v334 = vld [vmem:[%s4] sm:$0xf]
      %v335 = vld [vmem:[%s4 + $0x4] sm:$0xf]
      %v336 = vld [vmem:[%s4 + $0x8] sm:$0xf]
      %v337 = vld [vmem:[%s4 + $0xc] sm:$0xf]
      %v338 = vld [vmem:[%s4 + $0x10] sm:$0xf]
      %v339 = vld [vmem:[%s4 + $0x14] sm:$0xf]
      %v340 = vld [vmem:[%s4 + $0x18] sm:$0xf]
      %v341 = vld [vmem:[%s4 + $0x1c] sm:$0xf]
      %v350 = vunpack.c.l.b16 %v334
      %v351 = vunpack.c.l.b16 %v335
      %v352 = vunpack.c.l.b16 %v336
      %v353 = vunpack.c.l.b16 %v337
      %v354 = vunpack.c.l.b16 %v338
      %v355 = vunpack.c.l.b16 %v339
      %v356 = vunpack.c.l.b16 %v340
      %v357 = vunpack.c.l.b16 %v341
      %v358 = vpack.c.b16 %v351, %v350
      %v359 = vpack.c.b16 %v353, %v352
      %v360 = vpack.c.b16 %v355, %v354
      %v361 = vpack.c.b16 %v357, %v356
      %vm366 = vcmask 523264
      %v368 = vsel %vm366, %v321, 0
      %370 = vmatprep.subr.bf16.mxu0 0
      %371 = vmatpush1.bf16.msra.mxu0 %v358
      %372 = vmatprep.subr.bf16.mxu0 0
      %373 = vmatpush1.bf16.msra.mxu0 %v359
      %374 = vmatprep.subr.bf16.mxu0 0
      %375 = vmatpush1.bf16.msra.mxu0 %v360
      %376 = vmatprep.subr.bf16.mxu0 0
      %377 = vmatpush1.bf16.msra.mxu0 %v361
      %378 = vmatprep.subr.bf16.mxu0 0
      %379 = vmatpush1.bf16.msra.mxu0 0
      %380 = vmatprep.subr.bf16.mxu0 0
      %381 = vmatpush1.bf16.msra.mxu0 0
      %382 = vmatprep.subr.bf16.mxu0 0
      %383 = vmatpush1.bf16.msra.mxu0 0
      %384 = vmatprep.subr.bf16.mxu0 0
      %385 = vmatpush1.bf16.msra.mxu0 0
      %386 = vmatprep.subr.bf16.mxu0 0
      %387 = vmatpush1.bf16.msra.mxu0 0
      %388 = vmatprep.subr.bf16.mxu0 0
      %389 = vmatpush1.bf16.msra.mxu0 0
      %390 = vmatprep.subr.bf16.mxu0 0
      %391 = vmatpush1.bf16.msra.mxu0 0
      %392 = vmatprep.subr.bf16.mxu0 0
      %393 = vmatpush1.bf16.msra.mxu0 0
      %394 = vmatprep.subr.bf16.mxu0 0
      %395 = vmatpush1.bf16.msra.mxu0 0
      %396 = vmatprep.subr.bf16.mxu0 0
      %397 = vmatpush1.bf16.msra.mxu0 0
      %398 = vmatprep.subr.bf16.mxu0 0
      %399 = vmatpush1.bf16.msra.mxu0 0
      %400 = vmatprep.subr.bf16.mxu0 0
      %401 = vmatpush1.bf16.msra.mxu0 0
      %402 = vmatprep.mubr.bf16.mxu0 0
      %403 = vmatmul.mubr.bf16.gmra.mrb[0].mxu0 %v368
      %v404 = vpop.f32.mrb[0].mxu0
      %v405 = vadd.f32 0.0, %v404
      %v406 = vpop.f32.mrb[0].mxu0
      %v407 = vpop.f32.mrb[0].mxu0
      %v408 = vpop.f32.mrb[0].mxu0
      %409 = vdwg.mxu0
      %v418 = vunpack.c.l.b16 %v326
      %v419 = vunpack.c.l.b16 %v327
      %v420 = vunpack.c.l.b16 %v328
      %v421 = vunpack.c.l.b16 %v329
      %v422 = vunpack.c.l.b16 %v330
      %v423 = vunpack.c.l.b16 %v331
      %v424 = vunpack.c.l.b16 %v332
      %v425 = vunpack.c.l.b16 %v333
      %v426 = vpack.c.b16 %v419, %v418
      %v427 = vpack.c.b16 %v421, %v420
      %v428 = vpack.c.b16 %v423, %v422
      %v429 = vpack.c.b16 %v425, %v424
      %v434 = vsel %vm366, %v319, 0
      %436 = vmatprep.subr.bf16.mxu0 0
      %437 = vmatpush1.bf16.msra.mxu0 %v426
      %438 = vmatprep.subr.bf16.mxu0 0
      %439 = vmatpush1.bf16.msra.mxu0 %v427
      %440 = vmatprep.subr.bf16.mxu0 0
      %441 = vmatpush1.bf16.msra.mxu0 %v428
      %442 = vmatprep.subr.bf16.mxu0 0
      %443 = vmatpush1.bf16.msra.mxu0 %v429
      %444 = vmatprep.subr.bf16.mxu0 0
      %445 = vmatpush1.bf16.msra.mxu0 0
      %446 = vmatprep.subr.bf16.mxu0 0
      %447 = vmatpush1.bf16.msra.mxu0 0
      %448 = vmatprep.subr.bf16.mxu0 0
      %449 = vmatpush1.bf16.msra.mxu0 0
      %450 = vmatprep.subr.bf16.mxu0 0
      %451 = vmatpush1.bf16.msra.mxu0 0
      %452 = vmatprep.subr.bf16.mxu0 0
      %453 = vmatpush1.bf16.msra.mxu0 0
      %454 = vmatprep.subr.bf16.mxu0 0
      %455 = vmatpush1.bf16.msra.mxu0 0
      %456 = vmatprep.subr.bf16.mxu0 0
      %457 = vmatpush1.bf16.msra.mxu0 0
      %458 = vmatprep.subr.bf16.mxu0 0
      %459 = vmatpush1.bf16.msra.mxu0 0
      %460 = vmatprep.subr.bf16.mxu0 0
      %461 = vmatpush1.bf16.msra.mxu0 0
      %462 = vmatprep.subr.bf16.mxu0 0
      %463 = vmatpush1.bf16.msra.mxu0 0
      %464 = vmatprep.subr.bf16.mxu0 0
      %465 = vmatpush1.bf16.msra.mxu0 0
      %466 = vmatprep.subr.bf16.mxu0 0
      %467 = vmatpush1.bf16.msra.mxu0 0
      %468 = vmatprep.mubr.bf16.mxu0 0
      %469 = vmatmul.mubr.bf16.gmra.mrb[0].mxu0 %v434
      %v470 = vpop.f32.mrb[0].mxu0
      %v471 = vadd.f32 %v405, %v470
      %v472 = vpop.f32.mrb[0].mxu0
      %v473 = vpop.f32.mrb[0].mxu0
      %v474 = vpop.f32.mrb[0].mxu0
      %475 = vdwg.mxu0
      %v476 = vld [vmem:[%s5] sm:$0xf]
      %v477 = vld [vmem:[%s5 + $0x4] sm:$0xf]
      %v478 = vld [vmem:[%s5 + $0x8] sm:$0xf]
      %v479 = vld [vmem:[%s5 + $0xc] sm:$0xf]
      %v480 = vld [vmem:[%s5 + $0x10] sm:$0xf]
      %v481 = vld [vmem:[%s5 + $0x14] sm:$0xf]
      %v482 = vld [vmem:[%s5 + $0x18] sm:$0xf]
      %v483 = vld [vmem:[%s5 + $0x1c] sm:$0xf]
      %v492 = vunpack.c.l.b16 %v476
      %v493 = vunpack.c.l.b16 %v477
      %v494 = vunpack.c.l.b16 %v478
      %v495 = vunpack.c.l.b16 %v479
      %v496 = vunpack.c.l.b16 %v480
      %v497 = vunpack.c.l.b16 %v481
      %v498 = vunpack.c.l.b16 %v482
      %v499 = vunpack.c.l.b16 %v483
      %v500 = vpack.c.b16 %v493, %v492
      %v501 = vpack.c.b16 %v495, %v494
      %v502 = vpack.c.b16 %v497, %v496
      %v503 = vpack.c.b16 %v499, %v498
      %v509 = vsel %vm366, %v325, 0
      %511 = vmatprep.subr.bf16.mxu0 0
      %512 = vmatpush1.bf16.msra.mxu0 %v500
      %513 = vmatprep.subr.bf16.mxu0 0
      %514 = vmatpush1.bf16.msra.mxu0 %v501
      %515 = vmatprep.subr.bf16.mxu0 0
      %516 = vmatpush1.bf16.msra.mxu0 %v502
      %517 = vmatprep.subr.bf16.mxu0 0
      %518 = vmatpush1.bf16.msra.mxu0 %v503
      %519 = vmatprep.subr.bf16.mxu0 0
      %520 = vmatpush1.bf16.msra.mxu0 0
      %521 = vmatprep.subr.bf16.mxu0 0
      %522 = vmatpush1.bf16.msra.mxu0 0
      %523 = vmatprep.subr.bf16.mxu0 0
      %524 = vmatpush1.bf16.msra.mxu0 0
      %525 = vmatprep.subr.bf16.mxu0 0
      %526 = vmatpush1.bf16.msra.mxu0 0
      %527 = vmatprep.subr.bf16.mxu0 0
      %528 = vmatpush1.bf16.msra.mxu0 0
      %529 = vmatprep.subr.bf16.mxu0 0
      %530 = vmatpush1.bf16.msra.mxu0 0
      %531 = vmatprep.subr.bf16.mxu0 0
      %532 = vmatpush1.bf16.msra.mxu0 0
      %533 = vmatprep.subr.bf16.mxu0 0
      %534 = vmatpush1.bf16.msra.mxu0 0
      %535 = vmatprep.subr.bf16.mxu0 0
      %536 = vmatpush1.bf16.msra.mxu0 0
      %537 = vmatprep.subr.bf16.mxu0 0
      %538 = vmatpush1.bf16.msra.mxu0 0
      %539 = vmatprep.subr.bf16.mxu0 0
      %540 = vmatpush1.bf16.msra.mxu0 0
      %541 = vmatprep.subr.bf16.mxu0 0
      %542 = vmatpush1.bf16.msra.mxu0 0
      %543 = vmatprep.mubr.bf16.mxu0 0
      %544 = vmatmul.mubr.bf16.gmra.mrb[0].mxu0 %v509
      %v545 = vpop.f32.mrb[0].mxu0
      %v546 = vadd.f32 0.0, %v545
      %v547 = vpop.f32.mrb[0].mxu0
      %v548 = vpop.f32.mrb[0].mxu0
      %v549 = vpop.f32.mrb[0].mxu0
      %550 = vdwg.mxu0
      %v551 = vadd.f32 %v471, %v546
      %v552 = vld [vmem:[%s6] sm:$0x1]
      %v554 = vlaneseq
      %v555 = vshrl.u32 %v554, 7
      %v556 = vsub.s32 0, %v555
      %v557 = vrot.slane %v552, %v556
      %v559 = vadd.f32 %v551, %v557
      %v560 = vmax.f32 %v559, 0.0
      %v561 = vpack.c.bf16 %v560, %v560
      %vm562 = vcmask 257024
      %563 = vst.msk [vmem:[%s307] sm:$0xf] %vm562, %v561
      %p564 = scmp.lt.s32.totalorder %s18, 1
      %s565 = scalar_select %p564, %s18, 1
      %s566 = smul.addr %s565, 4
      %s567 = scalar_lea.vmem %s7, %s566
      // Predicated region
      $region49: #{drlstm_forward.14} parent=47 // pred_check
        %p568 = pneg %p198
      $region50: #{drlstm_forward.14} parent=47 // pred_check_branch
        %570 = sbr.rel (%p568) target = $region52
      $region51: #{drlstm_forward.14} parent=47 // pred_region
        _
      $region52: #{drlstm_forward.14} parent=47 // pred_fallthru
        _
    $region48: #{drlstm_forward.14} parent=5 // pred_fallthru
      _
    %p571 = scmp.le.s32.totalorder 2, %s13
    // Predicated region
    $region53: #{drlstm_forward.14} parent=5 // pred_check
      %p572 = pneg %p571
    $region54: #{drlstm_forward.14} parent=5 // pred_check_branch
      %574 = sbr.rel (%p572) target = $region56
    $region55: #{drlstm_forward.14} parent=5 // pred_region
      %s575 = ssub.s32 %s13, 2
      // Predicated region
      $region57: #{drlstm_forward.14} parent=55 // pred_check
        %p576 = pneg %p204
      $region58: #{drlstm_forward.14} parent=55 // pred_check_branch
        %578 = sbr.rel (%p576) target = $region60
      $region59: #{drlstm_forward.14} parent=55 // pred_region
        %p579 = scmp.lt.s32.totalorder %s19, 1
        %s580 = scalar_select %p579, %s19, 1
        %s581 = smul.addr %s580, 4
        %s582 = scalar_lea.vmem %s7, %s581
      $region60: #{drlstm_forward.14} parent=55 // pred_fallthru
        _
    $region56: #{drlstm_forward.14} parent=5 // pred_fallthru
      _
  $region6: #{drlstm_forward.14} parent=0 // loop_footer
    %s17 = sadd.s32 1, %s13
  $region7: #{drlstm_forward.14} parent=0 // loop_footer_branch
    %12 = sbr.rel target = $region3
  $region8: #{drlstm_forward.14} parent=0 // loop_exit
    _

// kernel: drlstm_forward.19
$region0: #{drlstm_forward.19}
  #allocation0 [shape = 'u32[]', space=smem, size = 0x4, offset = 0x4, fixed_abs, tag = 'smem constant byte address 0x4 - core index']
  #allocation1 [shape = 'u32[144,128]{1,0:T(1,128)}', space=vmem, size = 0x12000, scoped, tag = 'internal scratch']
  %s0 = inlined_call_operand.vmem [shape: f32[2,128], index: 0, kind: input, shape index: {}]
  %s1 = inlined_call_operand.vmem [shape: f32[2,128], index: 1, kind: input, shape index: {}]
  %s2 = inlined_call_operand.vmem [shape: bf16[256,32], index: 2, kind: input, shape index: {}]
  %s3 = inlined_call_operand.vmem [shape: f32[1,32], index: 3, kind: input, shape index: {}]
  %s4 = inlined_call_operand.vmem [shape: bf16[32,3], index: 4, kind: input, shape index: {}]
  %s5 = inlined_call_operand.vmem [shape: f32[1,3], index: 5, kind: input, shape index: {}]
  %s6 = inlined_call_operand.hbm [shape: f32[2,3], index: 6, kind: output, shape index: {}]
  %s7 = sld [smem:[#allocation0]]
  $region34: #{drlstm_forward.19} parent=0
    _
  %s9 = ssub.s32 1, %s7
  %s10 = scalar_select 0, %s9, %s7
  $region1: #{drlstm_forward.19} parent=0
    #allocation2 [shape = 'u8[1024]{0}', space=vmem, size = 0x400, scoped, tag = 'output window, operand 0, single buffered']
    #allocation3 [shape = 's32[1]{0}', space=sflag, size = 0x4, scoped, tag = 'scoped memory for drlstm_forward.19']
    %11 = vsyncpa [#allocation3], 0
    // Predicated region
    $region2: #{drlstm_forward.19} parent=1 // pred_check
      _
    $region3: #{drlstm_forward.19} parent=1 // pred_check_branch
      %13 = sbr.rel (0) target = $region5
    $region4: #{drlstm_forward.19} parent=1 // pred_region
      _
    $region5: #{drlstm_forward.19} parent=1 // pred_fallthru
      _
    // Predicated region
    $region6: #{drlstm_forward.19} parent=1 // pred_check
      _
    $region7: #{drlstm_forward.19} parent=1 // pred_check_branch
      %15 = sbr.rel (0) target = $region9
    $region8: #{drlstm_forward.19} parent=1 // pred_region
      _
    $region9: #{drlstm_forward.19} parent=1 // pred_fallthru
      _
    // Predicated region
    $region10: #{drlstm_forward.19} parent=1 // pred_check
      _
    $region11: #{drlstm_forward.19} parent=1 // pred_check_branch
      %17 = sbr.rel (0) target = $region13
    $region12: #{drlstm_forward.19} parent=1 // pred_region
      _
    $region13: #{drlstm_forward.19} parent=1 // pred_fallthru
      _
    // Predicated region
    $region14: #{drlstm_forward.19} parent=1 // pred_check
      _
    $region15: #{drlstm_forward.19} parent=1 // pred_check_branch
      %19 = sbr.rel (0) target = $region17
    $region16: #{drlstm_forward.19} parent=1 // pred_region
      _
    $region17: #{drlstm_forward.19} parent=1 // pred_fallthru
      _
    // Predicated region
    $region18: #{drlstm_forward.19} parent=1 // pred_check
      _
    $region19: #{drlstm_forward.19} parent=1 // pred_check_branch
      %21 = sbr.rel (0) target = $region21
    $region20: #{drlstm_forward.19} parent=1 // pred_region
      _
    $region21: #{drlstm_forward.19} parent=1 // pred_fallthru
      _
    // Predicated region
    $region22: #{drlstm_forward.19} parent=1 // pred_check
      _
    $region23: #{drlstm_forward.19} parent=1 // pred_check_branch
      %23 = sbr.rel (0) target = $region25
    $region24: #{drlstm_forward.19} parent=1 // pred_region
      _
    $region25: #{drlstm_forward.19} parent=1 // pred_fallthru
      _
    %v25 = vld [vmem:[%s0] sm:$0x3]
    %v26 = vld [vmem:[%s1] sm:$0x3]
    %v27 = vpack.c.bf16 %v25, %v25
    %v28 = vpack.c.bf16 %v26, %v26
    %v29 = vld [vmem:[%s2] sm:$0xf]
    %v30 = vld [vmem:[%s2 + $0x4] sm:$0xf]
    %v31 = vld [vmem:[%s2 + $0x8] sm:$0xf]
    %v32 = vld [vmem:[%s2 + $0xc] sm:$0xf]
    %v33 = vld [vmem:[%s2 + $0x10] sm:$0xf]
    %v34 = vld [vmem:[%s2 + $0x14] sm:$0xf]
    %v35 = vld [vmem:[%s2 + $0x18] sm:$0xf]
    %v36 = vld [vmem:[%s2 + $0x1c] sm:$0xf]
    %v37 = vld [vmem:[%s2 + $0x20] sm:$0xf]
    %v38 = vld [vmem:[%s2 + $0x24] sm:$0xf]
    %v39 = vld [vmem:[%s2 + $0x28] sm:$0xf]
    %v40 = vld [vmem:[%s2 + $0x2c] sm:$0xf]
    %v41 = vld [vmem:[%s2 + $0x30] sm:$0xf]
    %v42 = vld [vmem:[%s2 + $0x34] sm:$0xf]
    %v43 = vld [vmem:[%s2 + $0x38] sm:$0xf]
    %v44 = vld [vmem:[%s2 + $0x3c] sm:$0xf]
    %v45 = vld [vmem:[%s2 + $0x40] sm:$0xf]
    %v46 = vld [vmem:[%s2 + $0x44] sm:$0xf]
    %v47 = vld [vmem:[%s2 + $0x48] sm:$0xf]
    %v48 = vld [vmem:[%s2 + $0x4c] sm:$0xf]
    %v49 = vld [vmem:[%s2 + $0x50] sm:$0xf]
    %v50 = vld [vmem:[%s2 + $0x54] sm:$0xf]
    %v51 = vld [vmem:[%s2 + $0x58] sm:$0xf]
    %v52 = vld [vmem:[%s2 + $0x5c] sm:$0xf]
    %v53 = vld [vmem:[%s2 + $0x60] sm:$0xf]
    %v54 = vld [vmem:[%s2 + $0x64] sm:$0xf]
    %v55 = vld [vmem:[%s2 + $0x68] sm:$0xf]
    %v56 = vld [vmem:[%s2 + $0x6c] sm:$0xf]
    %v57 = vld [vmem:[%s2 + $0x70] sm:$0xf]
    %v58 = vld [vmem:[%s2 + $0x74] sm:$0xf]
    %v59 = vld [vmem:[%s2 + $0x78] sm:$0xf]
    %v60 = vld [vmem:[%s2 + $0x7c] sm:$0xf]
    %v61 = vld [vmem:[%s3] sm:$0x1]
    %v63 = vlaneseq
    %v64 = vshrl.u32 %v63, 7
    %v65 = vsub.s32 0, %v64
    %v66 = vrot.slane %v61, %v65
    %v100 = vunpack.c.l.b16 %v29
    %v101 = vunpack.c.l.b16 %v30
    %v102 = vunpack.c.l.b16 %v31
    %v103 = vunpack.c.l.b16 %v32
    %v104 = vunpack.c.l.b16 %v33
    %v105 = vunpack.c.l.b16 %v34
    %v106 = vunpack.c.l.b16 %v35
    %v107 = vunpack.c.l.b16 %v36
    %v108 = vunpack.c.l.b16 %v37
    %v109 = vunpack.c.l.b16 %v38
    %v110 = vunpack.c.l.b16 %v39
    %v111 = vunpack.c.l.b16 %v40
    %v112 = vunpack.c.l.b16 %v41
    %v113 = vunpack.c.l.b16 %v42
    %v114 = vunpack.c.l.b16 %v43
    %v115 = vunpack.c.l.b16 %v44
    %v116 = vunpack.c.l.b16 %v45
    %v117 = vunpack.c.l.b16 %v46
    %v118 = vunpack.c.l.b16 %v47
    %v119 = vunpack.c.l.b16 %v48
    %v120 = vunpack.c.l.b16 %v49
    %v121 = vunpack.c.l.b16 %v50
    %v122 = vunpack.c.l.b16 %v51
    %v123 = vunpack.c.l.b16 %v52
    %v124 = vunpack.c.l.b16 %v53
    %v125 = vunpack.c.l.b16 %v54
    %v126 = vunpack.c.l.b16 %v55
    %v127 = vunpack.c.l.b16 %v56
    %v128 = vunpack.c.l.b16 %v57
    %v129 = vunpack.c.l.b16 %v58
    %v130 = vunpack.c.l.b16 %v59
    %v131 = vunpack.c.l.b16 %v60
    %v132 = vpack.c.b16 %v101, %v100
    %v133 = vpack.c.b16 %v103, %v102
    %v134 = vpack.c.b16 %v105, %v104
    %v135 = vpack.c.b16 %v107, %v106
    %v136 = vpack.c.b16 %v109, %v108
    %v137 = vpack.c.b16 %v111, %v110
    %v138 = vpack.c.b16 %v113, %v112
    %v139 = vpack.c.b16 %v115, %v114
    %v140 = vpack.c.b16 %v117, %v116
    %v141 = vpack.c.b16 %v119, %v118
    %v142 = vpack.c.b16 %v121, %v120
    %v143 = vpack.c.b16 %v123, %v122
    %v144 = vpack.c.b16 %v125, %v124
    %v145 = vpack.c.b16 %v127, %v126
    %v146 = vpack.c.b16 %v129, %v128
    %v147 = vpack.c.b16 %v131, %v130
    %164 = vmatprep.subr.bf16.mxu0 0
    %165 = vmatpush1.bf16.msra.mxu0 %v132
    %166 = vmatprep.subr.bf16.mxu0 0
    %167 = vmatpush1.bf16.msra.mxu0 %v133
    %168 = vmatprep.subr.bf16.mxu0 0
    %169 = vmatpush1.bf16.msra.mxu0 %v134
    %170 = vmatprep.subr.bf16.mxu0 0
    %171 = vmatpush1.bf16.msra.mxu0 %v135
    %172 = vmatprep.subr.bf16.mxu0 0
    %173 = vmatpush1.bf16.msra.mxu0 %v136
    %174 = vmatprep.subr.bf16.mxu0 0
    %175 = vmatpush1.bf16.msra.mxu0 %v137
    %176 = vmatprep.subr.bf16.mxu0 0
    %177 = vmatpush1.bf16.msra.mxu0 %v138
    %178 = vmatprep.subr.bf16.mxu0 0
    %179 = vmatpush1.bf16.msra.mxu0 %v139
    %180 = vmatprep.subr.bf16.mxu0 0
    %181 = vmatpush1.bf16.msra.mxu0 %v140
    %182 = vmatprep.subr.bf16.mxu0 0
    %183 = vmatpush1.bf16.msra.mxu0 %v141
    %184 = vmatprep.subr.bf16.mxu0 0
    %185 = vmatpush1.bf16.msra.mxu0 %v142
    %186 = vmatprep.subr.bf16.mxu0 0
    %187 = vmatpush1.bf16.msra.mxu0 %v143
    %188 = vmatprep.subr.bf16.mxu0 0
    %189 = vmatpush1.bf16.msra.mxu0 %v144
    %190 = vmatprep.subr.bf16.mxu0 0
    %191 = vmatpush1.bf16.msra.mxu0 %v145
    %192 = vmatprep.subr.bf16.mxu0 0
    %193 = vmatpush1.bf16.msra.mxu0 %v146
    %194 = vmatprep.subr.bf16.mxu0 0
    %195 = vmatpush1.bf16.msra.mxu0 %v147
    %196 = vmatprep.mubr.bf16.mxu0 %v28
    %197 = vmatmul.mubr.bf16.gmra.mrb[0].mxu0 %v27
    %v198 = vpop.f32.mrb[0].mxu0
    %v199 = vadd.f32 %v66, %v198
    %v200 = vpop.f32.mrb[0].mxu0
    %v201 = vpop.f32.mrb[0].mxu0
    %v202 = vpop.f32.mrb[0].mxu0
    %203 = vdwg.mxu0
    %v204 = vtanh.pop %v199
    %v205 = vpack.c.bf16 %v204, %v204
    %v206 = vld [vmem:[%s4] sm:$0xf]
    %v207 = vld [vmem:[%s4 + $0x4] sm:$0xf]
    %v208 = vld [vmem:[%s4 + $0x8] sm:$0xf]
    %v209 = vld [vmem:[%s4 + $0xc] sm:$0xf]
    %v210 = vld [vmem:[%s5] sm:$0x1]
    %v212 = vlaneseq
    %v213 = vshrl.u32 %v212, 7
    %v214 = vsub.s32 0, %v213
    %v215 = vrot.slane %v210, %v214
    %v221 = vunpack.c.l.b16 %v206
    %v222 = vunpack.c.l.b16 %v207
    %v223 = vunpack.c.l.b16 %v208
    %v224 = vunpack.c.l.b16 %v209
    %v225 = vpack.c.b16 %v222, %v221
    %v226 = vpack.c.b16 %v224, %v223
    %vm229 = vcmask 261120
    %v231 = vsel %vm229, %v205, 0
    %233 = vmatprep.subr.bf16.mxu0 0
    %234 = vmatpush1.bf16.msra.mxu0 %v225
    %235 = vmatprep.subr.bf16.mxu0 0
    %236 = vmatpush1.bf16.msra.mxu0 %v226
    %237 = vmatprep.subr.bf16.mxu0 0
    %238 = vmatpush1.bf16.msra.mxu0 0
    %239 = vmatprep.subr.bf16.mxu0 0
    %240 = vmatpush1.bf16.msra.mxu0 0
    %241 = vmatprep.subr.bf16.mxu0 0
    %242 = vmatpush1.bf16.msra.mxu0 0
    %243 = vmatprep.subr.bf16.mxu0 0
    %244 = vmatpush1.bf16.msra.mxu0 0
    %245 = vmatprep.subr.bf16.mxu0 0
    %246 = vmatpush1.bf16.msra.mxu0 0
    %247 = vmatprep.subr.bf16.mxu0 0
    %248 = vmatpush1.bf16.msra.mxu0 0
    %249 = vmatprep.subr.bf16.mxu0 0
    %250 = vmatpush1.bf16.msra.mxu0 0
    %251 = vmatprep.subr.bf16.mxu0 0
    %252 = vmatpush1.bf16.msra.mxu0 0
    %253 = vmatprep.subr.bf16.mxu0 0
    %254 = vmatpush1.bf16.msra.mxu0 0
    %255 = vmatprep.subr.bf16.mxu0 0
    %256 = vmatpush1.bf16.msra.mxu0 0
    %257 = vmatprep.subr.bf16.mxu0 0
    %258 = vmatpush1.bf16.msra.mxu0 0
    %259 = vmatprep.subr.bf16.mxu0 0
    %260 = vmatpush1.bf16.msra.mxu0 0
    %261 = vmatprep.subr.bf16.mxu0 0
    %262 = vmatpush1.bf16.msra.mxu0 0
    %263 = vmatprep.subr.bf16.mxu0 0
    %264 = vmatpush1.bf16.msra.mxu0 0
    %265 = vmatprep.mubr.bf16.mxu0 0
    %266 = vmatmul.mubr.bf16.gmra.mrb[0].mxu0 %v231
    %v267 = vpop.f32.mrb[0].mxu0
    %v268 = vadd.f32 %v215, %v267
    %v269 = vpop.f32.mrb[0].mxu0
    %v270 = vpop.f32.mrb[0].mxu0
    %v271 = vpop.f32.mrb[0].mxu0
    %272 = vdwg.mxu0
    %vm273 = vcmask 17408
    %274 = vst.msk [vmem:[#allocation2] sm:$0x3] %vm273, %v268
    // Predicated region
    $region26: #{drlstm_forward.19} parent=1 // pred_check
      _
    $region27: #{drlstm_forward.19} parent=1 // pred_check_branch
      %276 = sbr.rel (0) target = $region29
    $region28: #{drlstm_forward.19} parent=1 // pred_region
      %s278 = ssub.s32 32, 32
      %279 = vsyncadd [#allocation3], %s278
      %s281 = sshll.u32 [#allocation2], 4
      %s282 = int_to_ptr.vmem [resolvable:$true] %s281
      %284 = dma.vmem_to_hbm [thread:$0]  %s282, 32, %s6, [#allocation3]
    $region29: #{drlstm_forward.19} parent=1 // pred_fallthru
      _
    // Predicated region
    $region30: #{drlstm_forward.19} parent=1 // pred_check
      _
    $region31: #{drlstm_forward.19} parent=1 // pred_check_branch
      %286 = sbr.rel (0) target = $region33
    $region32: #{drlstm_forward.19} parent=1 // pred_region
      %287 = dma.done [#allocation3], 32
    $region33: #{drlstm_forward.19} parent=1 // pred_fallthru
      _
    %288 = vsyncpa [#allocation3], 1

// kernel: drlstm_forward.10
$region0: #{drlstm_forward.10}
  #allocation0 [shape = 'u32[]', space=smem, size = 0x4, offset = 0x4, fixed_abs, tag = 'smem constant byte address 0x4 - core index']
  #allocation1 [shape = 'u32[144,128]{1,0:T(1,128)}', space=vmem, size = 0x12000, scoped, tag = 'internal scratch']
  #allocation2 [shape = 'f32[1,64]{1,0:T(1,128)}', space=vmem, size = 0x200, scoped, tag = 'scratch operand']
  #allocation3 [shape = 'f32[1,64]{1,0:T(1,128)}', space=vmem, size = 0x200, scoped, tag = 'scratch operand']
  %s0 = inlined_call_operand.vmem [shape: bf16[2,8,32], index: 0, kind: input, shape index: {}, may-alias: {0,1}]
  %s1 = inlined_call_operand.vmem [shape: bf16[2,8,32], index: 1, kind: input, shape index: {}, may-alias: {0,1}]
  %s2 = inlined_call_operand.vmem [shape: f32[2,8,1], index: 2, kind: input, shape index: {}, may-alias: {2,3}]
  %s3 = inlined_call_operand.vmem [shape: f32[2,8,1], index: 3, kind: input, shape index: {}, may-alias: {2,3}]
  %s4 = inlined_call_operand.vmem [shape: bf16[128,256], index: 4, kind: input, shape index: {}]
  %s5 = inlined_call_operand.vmem [shape: f32[1,256], index: 5, kind: input, shape index: {}]
  %s6 = inlined_call_operand.vmem [shape: bf16[2,8,32], index: 6, kind: output, shape index: {0}]
  %s7 = inlined_call_operand.vmem [shape: bf16[2,8,32], index: 7, kind: output, shape index: {1}]
  %8 = xla_tuple %s6, %s7
  %s9 = sld [smem:[#allocation0]]
  $region69: #{drlstm_forward.10} parent=0
    _
  %s11 = ssub.s32 1, %s9
  %s12 = scalar_select 0, %s11, %s9
  loop: start=0, step=1, limit=4
  $region2: #{drlstm_forward.10} parent=0 // loop_pre_header
    _
  $region3: #{drlstm_forward.10} parent=0 // loop_header
    %s14 = sphi 0, %s18
    %p15 = scmp.ge.s32.totalorder %s14, 4
    %s21 = sphi 0, %s33
    %s22 = sphi 0, %s29
    %s23 = sphi 0, %s21
    %s24 = sphi 0, %s22
    %s25 = sphi 0, %s23
    %s26 = sphi 0, %s24
    %s38 = sphi 0, %s40
    %s41 = sphi 0, %s38
    %s42 = sphi 0, %s41
    %s58 = sphi 0, %s42
    %s68 = sphi 0, %s70
    %s71 = sphi 0, %s68
    %s72 = sphi 0, %s71
    %s88 = sphi 0, %s72
    %s96 = sphi 0, %s98
    %s99 = sphi 0, %s96
    %s100 = sphi 0, %s99
    %s116 = sphi 0, %s100
    %s126 = sphi 0, %s128
    %s129 = sphi 0, %s126
    %s130 = sphi 0, %s129
    %s146 = sphi 0, %s130
    %s150 = sphi 0, %s150
    %s152 = sphi 0, %s150
    %s153 = sphi 0, %s152
    %s167 = sphi 0, %s153
    %s171 = sphi 0, %s171
    %s173 = sphi 0, %s171
    %s174 = sphi 0, %s173
    %s188 = sphi 0, %s174
    %s196 = sphi 0, %s198
    %s199 = sphi 0, %s196
    %s200 = sphi 0, %s199
    %s216 = sphi 0, %s200
    %s226 = sphi 0, %s228
    %s229 = sphi 0, %s226
    %s230 = sphi 0, %s229
    %s246 = sphi 0, %s230
  $region4: #{drlstm_forward.10} parent=0 // loop_header_branch
    %17 = sbr.rel (%p15) target = $region8
  $region5: #{drlstm_forward.10} parent=0 // loop_body
    %s19 = ssub.s32 %s14, 1
    %s20 = ssub.s32 %s14, 2
    %s27 = sadd.s32 1, %s22
    %p28 = scmp.ge.s32.totalorder %s27, 1
    %s29 = scalar_select %p28, 0, %s27
    %s30 = sadd.s32 1, %s21
    %s31 = scalar_select %p28, %s30, %s21
    %p32 = scmp.ge.s32.totalorder %s31, 2
    %s33 = scalar_select %p32, 0, %s31
    %s34 = ssub.s32 %s21, %s33
    %s35 = ssub.s32 %s22, %s29
    %s36 = sor.u32 %s34, %s35
    %p37 = scmp.eq.s32.totalorder %s36, 0
    %s39 = sadd.s32 %s38, 1
    %s40 = scalar_select %p37, %s38, %s39
    %p43 = pneg %p37
    %p44 = scmp.eq.s32.totalorder %s14, 1
    %p45 = por %p43, %p44
    %p46 = scmp.ne.s32.totalorder %s38, %s41
    %p47 = scmp.eq.s32.totalorder %s14, 0
    %p48 = por %p46, %p47
    %p49 = scmp.ne.s32.totalorder %s38, %s41
    %p50 = scmp.eq.s32.totalorder %s19, 1
    %p51 = por %p49, %p50
    %p52 = scmp.ne.s32.totalorder %s41, %s42
    %p53 = scmp.eq.s32.totalorder %s19, 0
    %p54 = por %p52, %p53
    %p55 = scmp.ne.s32.totalorder %s41, %s42
    %p56 = scmp.eq.s32.totalorder %s20, 1
    %p57 = por %p55, %p56
    %p59 = scmp.ne.s32.totalorder %s42, %s58
    %p60 = scmp.eq.s32.totalorder %s20, 0
    %p61 = por %p59, %p60
    %s62 = ssub.s32 0, %s22
    %s63 = ssub.s32 0, %s29
    %s64 = ssub.s32 %s21, %s33
    %s65 = ssub.s32 %s62, %s63
    %s66 = sor.u32 %s64, %s65
    %p67 = scmp.eq.s32.totalorder %s66, 0
    %s69 = sadd.s32 %s68, 1
    %s70 = scalar_select %p67, %s68, %s69
    %p73 = pneg %p67
    %p74 = scmp.eq.s32.totalorder %s14, 1
    %p75 = por %p73, %p74
    %p76 = scmp.ne.s32.totalorder %s68, %s71
    %p77 = scmp.eq.s32.totalorder %s14, 0
    %p78 = por %p76, %p77
    %p79 = scmp.ne.s32.totalorder %s68, %s71
    %p80 = scmp.eq.s32.totalorder %s19, 1
    %p81 = por %p79, %p80
    %p82 = scmp.ne.s32.totalorder %s71, %s72
    %p83 = scmp.eq.s32.totalorder %s19, 0
    %p84 = por %p82, %p83
    %p85 = scmp.ne.s32.totalorder %s71, %s72
    %p86 = scmp.eq.s32.totalorder %s20, 1
    %p87 = por %p85, %p86
    %p89 = scmp.ne.s32.totalorder %s72, %s88
    %p90 = scmp.eq.s32.totalorder %s20, 0
    %p91 = por %p89, %p90
    %s92 = ssub.s32 %s21, %s33
    %s93 = ssub.s32 %s22, %s29
    %s94 = sor.u32 %s92, %s93
    %p95 = scmp.eq.s32.totalorder %s94, 0
    %s97 = sadd.s32 %s96, 1
    %s98 = scalar_select %p95, %s96, %s97
    %p101 = pneg %p95
    %p102 = scmp.eq.s32.totalorder %s14, 1
    %p103 = por %p101, %p102
    %p104 = scmp.ne.s32.totalorder %s96, %s99
    %p105 = scmp.eq.s32.totalorder %s14, 0
    %p106 = por %p104, %p105
    %p107 = scmp.ne.s32.totalorder %s96, %s99
    %p108 = scmp.eq.s32.totalorder %s19, 1
    %p109 = por %p107, %p108
    %p110 = scmp.ne.s32.totalorder %s99, %s100
    %p111 = scmp.eq.s32.totalorder %s19, 0
    %p112 = por %p110, %p111
    %p113 = scmp.ne.s32.totalorder %s99, %s100
    %p114 = scmp.eq.s32.totalorder %s20, 1
    %p115 = por %p113, %p114
    %p117 = scmp.ne.s32.totalorder %s100, %s116
    %p118 = scmp.eq.s32.totalorder %s20, 0
    %p119 = por %p117, %p118
    %s120 = ssub.s32 0, %s22
    %s121 = ssub.s32 0, %s29
    %s122 = ssub.s32 %s21, %s33
    %s123 = ssub.s32 %s120, %s121
    %s124 = sor.u32 %s122, %s123
    %p125 = scmp.eq.s32.totalorder %s124, 0
    %s127 = sadd.s32 %s126, 1
    %s128 = scalar_select %p125, %s126, %s127
    %p131 = pneg %p125
    %p132 = scmp.eq.s32.totalorder %s14, 1
    %p133 = por %p131, %p132
    %p134 = scmp.ne.s32.totalorder %s126, %s129
    %p135 = scmp.eq.s32.totalorder %s14, 0
    %p136 = por %p134, %p135
    %p137 = scmp.ne.s32.totalorder %s126, %s129
    %p138 = scmp.eq.s32.totalorder %s19, 1
    %p139 = por %p137, %p138
    %p140 = scmp.ne.s32.totalorder %s129, %s130
    %p141 = scmp.eq.s32.totalorder %s19, 0
    %p142 = por %p140, %p141
    %p143 = scmp.ne.s32.totalorder %s129, %s130
    %p144 = scmp.eq.s32.totalorder %s20, 1
    %p145 = por %p143, %p144
    %p147 = scmp.ne.s32.totalorder %s130, %s146
    %p148 = scmp.eq.s32.totalorder %s20, 0
    %p149 = por %p147, %p148
    %s151 = sadd.s32 %s150, 1
    %p154 = scmp.eq.s32.totalorder %s14, 1
    %p155 = scmp.ne.s32.totalorder %s150, %s152
    %p156 = scmp.eq.s32.totalorder %s14, 0
    %p157 = por %p155, %p156
    %p158 = scmp.ne.s32.totalorder %s150, %s152
    %p159 = scmp.eq.s32.totalorder %s19, 1
    %p160 = por %p158, %p159
    %p161 = scmp.ne.s32.totalorder %s152, %s153
    %p162 = scmp.eq.s32.totalorder %s19, 0
    %p163 = por %p161, %p162
    %p164 = scmp.ne.s32.totalorder %s152, %s153
    %p165 = scmp.eq.s32.totalorder %s20, 1
    %p166 = por %p164, %p165
    %p168 = scmp.ne.s32.totalorder %s153, %s167
    %p169 = scmp.eq.s32.totalorder %s20, 0
    %p170 = por %p168, %p169
    %s172 = sadd.s32 %s171, 1
    %p175 = scmp.eq.s32.totalorder %s14, 1
    %p176 = scmp.ne.s32.totalorder %s171, %s173
    %p177 = scmp.eq.s32.totalorder %s14, 0
    %p178 = por %p176, %p177
    %p179 = scmp.ne.s32.totalorder %s171, %s173
    %p180 = scmp.eq.s32.totalorder %s19, 1
    %p181 = por %p179, %p180
    %p182 = scmp.ne.s32.totalorder %s173, %s174
    %p183 = scmp.eq.s32.totalorder %s19, 0
    %p184 = por %p182, %p183
    %p185 = scmp.ne.s32.totalorder %s173, %s174
    %p186 = scmp.eq.s32.totalorder %s20, 1
    %p187 = por %p185, %p186
    %p189 = scmp.ne.s32.totalorder %s174, %s188
    %p190 = scmp.eq.s32.totalorder %s20, 0
    %p191 = por %p189, %p190
    %s192 = ssub.s32 %s21, %s33
    %s193 = ssub.s32 %s22, %s29
    %s194 = sor.u32 %s192, %s193
    %p195 = scmp.eq.s32.totalorder %s194, 0
    %s197 = sadd.s32 %s196, 1
    %s198 = scalar_select %p195, %s196, %s197
    %p201 = pneg %p195
    %p202 = scmp.eq.s32.totalorder %s14, 1
    %p203 = por %p201, %p202
    %p204 = scmp.ne.s32.totalorder %s196, %s199
    %p205 = scmp.eq.s32.totalorder %s14, 0
    %p206 = por %p204, %p205
    %p207 = scmp.ne.s32.totalorder %s196, %s199
    %p208 = scmp.eq.s32.totalorder %s19, 1
    %p209 = por %p207, %p208
    %p210 = scmp.ne.s32.totalorder %s199, %s200
    %p211 = scmp.eq.s32.totalorder %s19, 0
    %p212 = por %p210, %p211
    %p213 = scmp.ne.s32.totalorder %s199, %s200
    %p214 = scmp.eq.s32.totalorder %s20, 1
    %p215 = por %p213, %p214
    %p217 = scmp.ne.s32.totalorder %s200, %s216
    %p218 = scmp.eq.s32.totalorder %s20, 0
    %p219 = por %p217, %p218
    %s220 = ssub.s32 0, %s22
    %s221 = ssub.s32 0, %s29
    %s222 = ssub.s32 %s21, %s33
    %s223 = ssub.s32 %s220, %s221
    %s224 = sor.u32 %s222, %s223
    %p225 = scmp.eq.s32.totalorder %s224, 0
    %s227 = sadd.s32 %s226, 1
    %s228 = scalar_select %p225, %s226, %s227
    %p231 = pneg %p225
    %p232 = scmp.eq.s32.totalorder %s14, 1
    %p233 = por %p231, %p232
    %p234 = scmp.ne.s32.totalorder %s226, %s229
    %p235 = scmp.eq.s32.totalorder %s14, 0
    %p236 = por %p234, %p235
    %p237 = scmp.ne.s32.totalorder %s226, %s229
    %p238 = scmp.eq.s32.totalorder %s19, 1
    %p239 = por %p237, %p238
    %p240 = scmp.ne.s32.totalorder %s229, %s230
    %p241 = scmp.eq.s32.totalorder %s19, 0
    %p242 = por %p240, %p241
    %p243 = scmp.ne.s32.totalorder %s229, %s230
    %p244 = scmp.eq.s32.totalorder %s20, 1
    %p245 = por %p243, %p244
    %p247 = scmp.ne.s32.totalorder %s230, %s246
    %p248 = scmp.eq.s32.totalorder %s20, 0
    %p249 = por %p247, %p248
    %p250 = scmp.le.s32.totalorder 1, %s14
    %p251 = scmp.lt.s32.totalorder %s14, 3
    %p252 = pnand %p250, %p251
    %p253 = pneg %p252
    // Predicated region
    $region9: #{drlstm_forward.10} parent=5 // pred_check
      _
    $region10: #{drlstm_forward.10} parent=5 // pred_check_branch
      %255 = sbr.rel (%p252) target = $region12
    $region11: #{drlstm_forward.10} parent=5 // pred_region
      %s256 = ssub.s32 %s14, 1
      // Predicated region
      $region13: #{drlstm_forward.10} parent=11 // pred_check
        %p257 = pneg %p163
      $region14: #{drlstm_forward.10} parent=11 // pred_check_branch
        %259 = sbr.rel (%p257) target = $region16
      $region15: #{drlstm_forward.10} parent=11 // pred_region
        _
      $region16: #{drlstm_forward.10} parent=11 // pred_fallthru
        _
      // Predicated region
      $region17: #{drlstm_forward.10} parent=11 // pred_check
        %p260 = pneg %p184
      $region18: #{drlstm_forward.10} parent=11 // pred_check_branch
        %262 = sbr.rel (%p260) target = $region20
      $region19: #{drlstm_forward.10} parent=11 // pred_region
        _
      $region20: #{drlstm_forward.10} parent=11 // pred_fallthru
        _
    $region12: #{drlstm_forward.10} parent=5 // pred_fallthru
      _
    %p263 = scmp.lt.s32.totalorder %s14, 2
    // Predicated region
    $region21: #{drlstm_forward.10} parent=5 // pred_check
      %p264 = pneg %p263
    $region22: #{drlstm_forward.10} parent=5 // pred_check_branch
      %266 = sbr.rel (%p264) target = $region24
    $region23: #{drlstm_forward.10} parent=5 // pred_region
      // Predicated region
      $region25: #{drlstm_forward.10} parent=23 // pred_check
        %p267 = pneg %p48
      $region26: #{drlstm_forward.10} parent=23 // pred_check_branch
        %269 = sbr.rel (%p267) target = $region28
      $region27: #{drlstm_forward.10} parent=23 // pred_region
        %p270 = scmp.lt.s32.totalorder %s21, 1
        %s271 = scalar_select %p270, %s21, 1
        %p272 = scmp.lt.s32.totalorder %s22, 0
        %s273 = scalar_select %p272, %s22, 0
        %s274 = sadd.s32 %s273, %s271
        %s275 = smul.addr %s274, 4
        %s276 = scalar_lea.vmem %s0, %s275
      $region28: #{drlstm_forward.10} parent=23 // pred_fallthru
        _
      // Predicated region
      $region29: #{drlstm_forward.10} parent=23 // pred_check
        %p277 = pneg %p78
      $region30: #{drlstm_forward.10} parent=23 // pred_check_branch
        %279 = sbr.rel (%p277) target = $region32
      $region31: #{drlstm_forward.10} parent=23 // pred_region
        %s280 = ssub.s32 0, %s22
        %p281 = scmp.lt.s32.totalorder %s21, 1
        %s282 = scalar_select %p281, %s21, 1
        %p283 = scmp.lt.s32.totalorder %s280, 0
        %s284 = scalar_select %p283, %s280, 0
        %s285 = sadd.s32 %s284, %s282
        %s286 = smul.addr %s285, 4
        %s287 = scalar_lea.vmem %s1, %s286
        %s288 = ssub.s32 0, %s22
      $region32: #{drlstm_forward.10} parent=23 // pred_fallthru
        _
      // Predicated region
      $region33: #{drlstm_forward.10} parent=23 // pred_check
        %p289 = pneg %p106
      $region34: #{drlstm_forward.10} parent=23 // pred_check_branch
        %291 = sbr.rel (%p289) target = $region36
      $region35: #{drlstm_forward.10} parent=23 // pred_region
        %p292 = scmp.lt.s32.totalorder %s21, 1
        %s293 = scalar_select %p292, %s21, 1
        %p294 = scmp.lt.s32.totalorder %s22, 0
        %s295 = scalar_select %p294, %s22, 0
        %s296 = sadd.s32 %s295, %s293
        %s297 = smul.addr %s296, 8
        %s298 = scalar_lea.vmem %s2, %s297
      $region36: #{drlstm_forward.10} parent=23 // pred_fallthru
        _
      // Predicated region
      $region37: #{drlstm_forward.10} parent=23 // pred_check
        %p299 = pneg %p136
      $region38: #{drlstm_forward.10} parent=23 // pred_check_branch
        %301 = sbr.rel (%p299) target = $region40
      $region39: #{drlstm_forward.10} parent=23 // pred_region
        %s302 = ssub.s32 0, %s22
        %p303 = scmp.lt.s32.totalorder %s21, 1
        %s304 = scalar_select %p303, %s21, 1
        %p305 = scmp.lt.s32.totalorder %s302, 0
        %s306 = scalar_select %p305, %s302, 0
        %s307 = sadd.s32 %s306, %s304
        %s308 = smul.addr %s307, 8
        %s309 = scalar_lea.vmem %s3, %s308
        %s310 = ssub.s32 0, %s22
      $region40: #{drlstm_forward.10} parent=23 // pred_fallthru
        _
    $region24: #{drlstm_forward.10} parent=5 // pred_fallthru
      _
    %p311 = scmp.le.s32.totalorder 1, %s14
    %p312 = scmp.lt.s32.totalorder %s14, 3
    %p313 = pnand %p311, %p312
    %p314 = pneg %p313
    // Predicated region
    $region41: #{drlstm_forward.10} parent=5 // pred_check
      _
    $region42: #{drlstm_forward.10} parent=5 // pred_check_branch
      %316 = sbr.rel (%p313) target = $region44
    $region43: #{drlstm_forward.10} parent=5 // pred_region
      %s317 = ssub.s32 %s14, 1
      %p318 = scmp.lt.s32.totalorder %s23, 1
      %s319 = scalar_select %p318, %s23, 1
      %p320 = scmp.lt.s32.totalorder %s24, 0
      %s321 = scalar_select %p320, %s24, 0
      %s322 = sadd.s32 %s321, %s319
      %s323 = smul.addr %s322, 4
      %s324 = scalar_lea.vmem %s0, %s323
      %p325 = pneg %p54
      %p326 = pneg %p51
      %s327 = ssub.s32 0, %s24
      %p328 = scmp.lt.s32.totalorder %s23, 1
      %s329 = scalar_select %p328, %s23, 1
      %p330 = scmp.lt.s32.totalorder %s327, 0
      %s331 = scalar_select %p330, %s327, 0
      %s332 = sadd.s32 %s331, %s329
      %s333 = smul.addr %s332, 4
      %s334 = scalar_lea.vmem %s1, %s333
      %p335 = pneg %p84
      %p336 = pneg %p81
      %p337 = scmp.lt.s32.totalorder %s23, 1
      %s338 = scalar_select %p337, %s23, 1
      %p339 = scmp.lt.s32.totalorder %s24, 0
      %s340 = scalar_select %p339, %s24, 0
      %s341 = sadd.s32 %s340, %s338
      %s342 = smul.addr %s341, 8
      %s343 = scalar_lea.vmem %s2, %s342
      %p344 = pneg %p112
      %p345 = pneg %p109
      %s346 = ssub.s32 0, %s24
      %p347 = scmp.lt.s32.totalorder %s23, 1
      %s348 = scalar_select %p347, %s23, 1
      %p349 = scmp.lt.s32.totalorder %s346, 0
      %s350 = scalar_select %p349, %s346, 0
      %s351 = sadd.s32 %s350, %s348
      %s352 = smul.addr %s351, 8
      %s353 = scalar_lea.vmem %s3, %s352
      %p354 = pneg %p142
      %p355 = pneg %p139
      %p356 = pneg %p163
      %p357 = pneg %p160
      %p358 = pneg %p184
      %p359 = pneg %p181
      %p360 = pneg %p212
      %p361 = pneg %p209
      %p362 = scmp.lt.s32.totalorder %s23, 1
      %s363 = scalar_select %p362, %s23, 1
      %p364 = scmp.lt.s32.totalorder %s24, 0
      %s365 = scalar_select %p364, %s24, 0
      %s366 = sadd.s32 %s365, %s363
      %s367 = smul.addr %s366, 4
      %s368 = scalar_lea.vmem %s6, %s367
      %p369 = pneg %p242
      %p370 = pneg %p239
      %s371 = ssub.s32 0, %s24
      %p372 = scmp.lt.s32.totalorder %s23, 1
      %s373 = scalar_select %p372, %s23, 1
      %p374 = scmp.lt.s32.totalorder %s371, 0
      %s375 = scalar_select %p374, %s371, 0
      %s376 = sadd.s32 %s375, %s373
      %s377 = smul.addr %s376, 4
      %s378 = scalar_lea.vmem %s7, %s377
      %p379 = scmp.lt.s32.totalorder %s23, 1
      %s380 = scalar_select %p379, %s23, 1
      %p381 = scmp.lt.s32.totalorder %s24, 0
      %s382 = scalar_select %p381, %s24, 0
      %s383 = sadd.s32 %s382, %s380
      %s384 = smul.addr %s383, 4
      %s385 = scalar_lea.vmem %s0, %s384
      %s386 = ssub.s32 0, %s24
      %p387 = scmp.lt.s32.totalorder %s23, 1
      %s388 = scalar_select %p387, %s23, 1
      %p389 = scmp.lt.s32.totalorder %s386, 0
      %s390 = scalar_select %p389, %s386, 0
      %s391 = sadd.s32 %s390, %s388
      %s392 = smul.addr %s391, 4
      %s393 = scalar_lea.vmem %s1, %s392
      %s394 = ssub.s32 0, %s24
      %p395 = scmp.lt.s32.totalorder %s23, 1
      %s396 = scalar_select %p395, %s23, 1
      %p397 = scmp.lt.s32.totalorder %s24, 0
      %s398 = scalar_select %p397, %s24, 0
      %s399 = sadd.s32 %s398, %s396
      %s400 = smul.addr %s399, 8
      %s401 = scalar_lea.vmem %s2, %s400
      %s402 = ssub.s32 0, %s24
      %p403 = scmp.lt.s32.totalorder %s23, 1
      %s404 = scalar_select %p403, %s23, 1
      %p405 = scmp.lt.s32.totalorder %s402, 0
      %s406 = scalar_select %p405, %s402, 0
      %s407 = sadd.s32 %s406, %s404
      %s408 = smul.addr %s407, 8
      %s409 = scalar_lea.vmem %s3, %s408
      %s410 = ssub.s32 0, %s24
      %p411 = scmp.lt.s32.totalorder %s23, 1
      %s412 = scalar_select %p411, %s23, 1
      %p413 = scmp.lt.s32.totalorder %s24, 0
      %s414 = scalar_select %p413, %s24, 0
      %s415 = sadd.s32 %s414, %s412
      %s416 = smul.addr %s415, 4
      %s417 = scalar_lea.vmem %s6, %s416
      %s418 = ssub.s32 0, %s24
      %p419 = scmp.lt.s32.totalorder %s23, 1
      %s420 = scalar_select %p419, %s23, 1
      %p421 = scmp.lt.s32.totalorder %s418, 0
      %s422 = scalar_select %p421, %s418, 0
      %s423 = sadd.s32 %s422, %s420
      %s424 = smul.addr %s423, 4
      %s425 = scalar_lea.vmem %s7, %s424
      %s426 = ssub.s32 0, %s24
      %p428 = scmp.eq.s32.totalorder %s24, 0
      // Predicated region
      $region45: #{drlstm_forward.10} parent=43 // pred_check
        %p429 = pneg %p428
      $region46: #{drlstm_forward.10} parent=43 // pred_check_branch
        %431 = sbr.rel (%p429) target = $region48
      $region47: #{drlstm_forward.10} parent=43 // pred_region
        %vm432 = vcmask 516096
        %433 = vst.msk [vmem:[#allocation2] sm:$0x1] %vm432, 0.0
        %434 = vst.msk [vmem:[#allocation3] sm:$0x1] %vm432, 0.0
      $region48: #{drlstm_forward.10} parent=43 // pred_fallthru
        _
      %v435 = vld [vmem:[%s4] sm:$0xff]
      %v436 = vld [vmem:[%s4 + $0x8] sm:$0xff]
      %v437 = vld [vmem:[%s4 + $0x10] sm:$0xff]
      %v438 = vld [vmem:[%s4 + $0x18] sm:$0xff]
      %v439 = vld [vmem:[%s4 + $0x20] sm:$0xff]
      %v440 = vld [vmem:[%s4 + $0x28] sm:$0xff]
      %v441 = vld [vmem:[%s4 + $0x30] sm:$0xff]
      %v442 = vld [vmem:[%s4 + $0x38] sm:$0xff]
      %v443 = vld [vmem:[%s4 + $0x40] sm:$0xff]
      %v444 = vld [vmem:[%s4 + $0x48] sm:$0xff]
      %v445 = vld [vmem:[%s4 + $0x50] sm:$0xff]
      %v446 = vld [vmem:[%s4 + $0x58] sm:$0xff]
      %v447 = vld [vmem:[%s4 + $0x60] sm:$0xff]
      %v448 = vld [vmem:[%s4 + $0x68] sm:$0xff]
      %v449 = vld [vmem:[%s4 + $0x70] sm:$0xff]
      %v450 = vld [vmem:[%s4 + $0x78] sm:$0xff]
      %v451 = vld [vmem:[%s5] sm:$0x3]
      %v452 = vld [vmem:[#allocation2] sm:$0x1]
      %v453 = vld [vmem:[#allocation3] sm:$0x1]
      %v454 = vld [vmem:[%s385] sm:$0x1]
      %v455 = vld [vmem:[%s393] sm:$0x8]
      %v456 = vpack.c.bf16 %v452, %v452
      %v458 = vunpack.c.l.b16 %v455
      %v459 = vpack.c.b16 %v458, %v458
      %v461 = vshrl.u32 %v459, 16
      %v463 = vrot.slane %v461, 3
      %464 = vrot.lane.b32.xlu0 %v463, 32
      %v465 = vpop.permute.xlu0 %464
      %467 = vrot.lane.b32.xlu0 %v456, 64
      %v468 = vpop.permute.xlu0 %467
      %vm469 = vcmask 261120
      %v472 = vsel %vm469, %v454, %v465
      %vm473 = vcmask 523264
      %v475 = vsel %vm473, %v472, %v468
      %v493 = vunpack.c.l.b16 %v435
      %v494 = vunpack.c.h.b16 %v435
      %v495 = vunpack.c.l.b16 %v436
      %v496 = vunpack.c.h.b16 %v436
      %v497 = vunpack.c.l.b16 %v437
      %v498 = vunpack.c.h.b16 %v437
      %v499 = vunpack.c.l.b16 %v438
      %v500 = vunpack.c.h.b16 %v438
      %v501 = vunpack.c.l.b16 %v439
      %v502 = vunpack.c.h.b16 %v439
      %v503 = vunpack.c.l.b16 %v440
      %v504 = vunpack.c.h.b16 %v440
      %v505 = vunpack.c.l.b16 %v441
      %v506 = vunpack.c.h.b16 %v441
      %v507 = vunpack.c.l.b16 %v442
      %v508 = vunpack.c.h.b16 %v442
      %v509 = vunpack.c.l.b16 %v443
      %v510 = vunpack.c.h.b16 %v443
      %v511 = vunpack.c.l.b16 %v444
      %v512 = vunpack.c.h.b16 %v444
      %v513 = vunpack.c.l.b16 %v445
      %v514 = vunpack.c.h.b16 %v445
      %v515 = vunpack.c.l.b16 %v446
      %v516 = vunpack.c.h.b16 %v446
      %v517 = vunpack.c.l.b16 %v447
      %v518 = vunpack.c.h.b16 %v447
      %v519 = vunpack.c.l.b16 %v448
      %v520 = vunpack.c.h.b16 %v448
      %v521 = vunpack.c.l.b16 %v449
      %v522 = vunpack.c.h.b16 %v449
      %v523 = vunpack.c.l.b16 %v450
      %v524 = vunpack.c.h.b16 %v450
      %v525 = vpack.c.b16 %v495, %v493
      %v526 = vpack.c.b16 %v496, %v494
      %v527 = vpack.c.b16 %v499, %v497
      %v528 = vpack.c.b16 %v500, %v498
      %v529 = vpack.c.b16 %v503, %v501
      %v530 = vpack.c.b16 %v504, %v502
      %v531 = vpack.c.b16 %v507, %v505
      %v532 = vpack.c.b16 %v508, %v506
      %v533 = vpack.c.b16 %v511, %v509
      %v534 = vpack.c.b16 %v512, %v510
      %v535 = vpack.c.b16 %v515, %v513
      %v536 = vpack.c.b16 %v516, %v514
      %v537 = vpack.c.b16 %v519, %v517
      %v538 = vpack.c.b16 %v520, %v518
      %v539 = vpack.c.b16 %v523, %v521
      %v540 = vpack.c.b16 %v524, %v522
      %v558 = vlaneseq
      %v559 = vshrl.u32 %v558, 7
      %v560 = vsub.s32 0, %v559
      %v561 = vrot.slane %v451, %v560
      %v562 = vlaneseq
      %v563 = vshrl.u32 %v562, 7
      %v564 = vsub.s32 1, %v563
      %v565 = vrot.slane %v451, %v564
      %568 = vmatprep.subr.bf16.mxu0 %v526
      %569 = vmatpush1.bf16.msra.mxu0 %v525
      %570 = vmatprep.subr.bf16.mxu0 %v528
      %571 = vmatpush1.bf16.msra.mxu0 %v527
      %572 = vmatprep.subr.bf16.mxu0 %v530
      %573 = vmatpush1.bf16.msra.mxu0 %v529
      %574 = vmatprep.subr.bf16.mxu0 %v532
      %575 = vmatpush1.bf16.msra.mxu0 %v531
      %576 = vmatprep.subr.bf16.mxu0 %v534
      %577 = vmatpush1.bf16.msra.mxu0 %v533
      %578 = vmatprep.subr.bf16.mxu0 %v536
      %579 = vmatpush1.bf16.msra.mxu0 %v535
      %580 = vmatprep.subr.bf16.mxu0 %v538
      %581 = vmatpush1.bf16.msra.mxu0 %v537
      %582 = vmatprep.subr.bf16.mxu0 %v540
      %583 = vmatpush1.bf16.msra.mxu0 %v539
      %584 = vmatprep.subr.bf16.mxu0 0
      %585 = vmatpush1.bf16.msra.mxu0 0
      %586 = vmatprep.subr.bf16.mxu0 0
      %587 = vmatpush1.bf16.msra.mxu0 0
      %588 = vmatprep.subr.bf16.mxu0 0
      %589 = vmatpush1.bf16.msra.mxu0 0
      %590 = vmatprep.subr.bf16.mxu0 0
      %591 = vmatpush1.bf16.msra.mxu0 0
      %592 = vmatprep.subr.bf16.mxu0 0
      %593 = vmatpush1.bf16.msra.mxu0 0
      %594 = vmatprep.subr.bf16.mxu0 0
      %595 = vmatpush1.bf16.msra.mxu0 0
      %596 = vmatprep.subr.bf16.mxu0 0
      %597 = vmatpush1.bf16.msra.mxu0 0
      %598 = vmatprep.subr.bf16.mxu0 0
      %599 = vmatpush1.bf16.msra.mxu0 0
      %600 = vmatprep.mubr.bf16.mxu0 0
      %601 = vmatmul.mubr.bf16.gmra.mrb[0].mxu0 %v475
      %v602 = vpop.f32.mrb[0].mxu0
      %v603 = vadd.f32 %v561, %v602
      %v604 = vpop.f32.mrb[0].mxu0
      %v605 = vadd.f32 %v565, %v604
      %v606 = vpop.f32.mrb[0].mxu0
      %v607 = vpop.f32.mrb[0].mxu0
      %608 = vdwg.mxu0
      %v609 = vmul.f32 %v603, 0.5
      %v610 = vtanh.pop %v609
      %v611 = vadd.f32 %v610, 1.0
      %v612 = vmul.f32 %v611, 0.5
      %v613 = vtanh.pop %v603
      %v615 = vlaneseq
      %v616 = vshrl.u32 %v615, 7
      %v617 = vsub.s32 0, %v616
      %v618 = vrot.slane %v453, %v617
      %619 = vrot.lane.b32.xlu0 %v618, 32
      %v620 = vpop.permute.xlu0 %619
      %v622 = vmul.f32 %v612, %v620
      %624 = vrot.lane.b32.xlu0 %v613, 64
      %v625 = vpop.permute.xlu0 %624
      %v627 = vmul.f32 %v612, %v625
      %629 = vrot.lane.b32.xlu0 %v627, 32
      %v630 = vpop.permute.xlu0 %629
      %v632 = vadd.f32 %v622, %v630
      %v633 = vtanh.pop %v632
      %635 = vrot.lane.b32.xlu0 %v633, 64
      %v636 = vpop.permute.xlu0 %635
      %v638 = vmul.f32 %v612, %v636
      %v639 = vmul.f32 %v605, 0.5
      %v640 = vtanh.pop %v639
      %v641 = vadd.f32 %v640, 1.0
      %v642 = vmul.f32 %v641, 0.5
      %v643 = vtanh.pop %v605
      %v644 = vmul.f32 %v642, %v453
      %646 = vrot.lane.b32.xlu0 %v643, 64
      %v647 = vpop.permute.xlu0 %646
      %v649 = vmul.f32 %v642, %v647
      %651 = vrot.lane.b32.xlu0 %v649, 32
      %v652 = vpop.permute.xlu0 %651
      %v654 = vadd.f32 %v644, %v652
      %v655 = vtanh.pop %v654
      %657 = vrot.lane.b32.xlu0 %v655, 64
      %v658 = vpop.permute.xlu0 %657
      %v660 = vmul.f32 %v642, %v658
      %v661 = vld [vmem:[%s401] sm:$0x1]
      %vm662 = vcmp.gt.f32.partialorder %v661, 0.0
      %v663 = vld [vmem:[%s409 + $0x7] sm:$0x1]
      %vm664 = vcmp.gt.f32.partialorder %v663, 0.0
      %v665 = vsel %vm662, 1, 0
      %666 = vset.pattern.permute.xlu0 0
      %667 = vperm.xlu0 %666, %v665
      %v668 = vpop.permute.xlu0 %667
      %vm669 = vcmp.eq.s32.totalorder %v668, 1
      %v670 = vsel %vm669, %v638, 0.0
      %v671 = vpack.c.bf16 %v670, %v670
      %v673 = vunpack.c.l.b16 %v671
      %v674 = vpack.c.b16 %v673, %v673
      %675 = vrot.lane.b32.xlu0 %v674, 32
      %v676 = vpop.permute.xlu0 %675
      %vm678 = vcmask 253952
      %vm679 = vsmask.f32 256
      %vm680 = vmand %vm678, %vm679
      %v681 = vld [vmem:[%s417] sm:$0x1]
      %v682 = vsel %vm680, %v676, %v681
      %683 = vst [vmem:[%s417] sm:$0x1] %v682
      %v684 = vsel %vm664, 1, 0
      %685 = vset.pattern.permute.xlu0 0
      %686 = vperm.xlu0 %685, %v684
      %v687 = vpop.permute.xlu0 %686
      %vm688 = vcmp.eq.s32.totalorder %v687, 1
      %v689 = vsel %vm688, %v660, 0.0
      %v690 = vpack.c.bf16 %v689, %v689
      %v692 = vunpack.c.l.b16 %v690
      %v693 = vpack.c.b16 %v692, %v692
      %v695 = vshll.u32 %v693, 16
      %v697 = vrot.slane %v695, 5
      %698 = vrot.lane.b32.xlu0 %v697, 32
      %v699 = vpop.permute.xlu0 %698
      %vm701 = vcmask 257027
      %vm702 = vsmask.f32 7950
      %vm703 = vmand %vm701, %vm702
      %v704 = vld [vmem:[%s425] sm:$0x8]
      %v705 = vsel %vm703, %v699, %v704
      %706 = vst [vmem:[%s425] sm:$0x8] %v705
      %v708 = vlaneseq
      %v709 = vshrl.u32 %v708, 7
      %v710 = vsub.s32 0, %v709
      %v711 = vrot.slane %v452, %v710
      %712 = vrot.lane.b32.xlu0 %v711, 96
      %v713 = vpop.permute.xlu0 %712
      %v715 = vsel %vm669, %v638, %v713
      %717 = vrot.lane.b32.xlu0 %v715, 32
      %v718 = vpop.permute.xlu0 %717
      %vm720 = vcmask 253952
      %721 = vst.msk [vmem:[#allocation2] sm:$0x1] %vm720, %v718
      %722 = vrot.lane.b32.xlu0 %v711, 64
      %v723 = vpop.permute.xlu0 %722
      %v725 = vsel %vm688, %v660, %v723
      %727 = vrot.lane.b32.xlu0 %v725, 64
      %v728 = vpop.permute.xlu0 %727
      %vm730 = vcmask 516352
      %731 = vst.msk [vmem:[#allocation2] sm:$0x1] %vm730, %v728
      %v732 = vsel %vm669, %v632, %v620
      %734 = vrot.lane.b32.xlu0 %v732, 96
      %v735 = vpop.permute.xlu0 %734
      %737 = vst.msk [vmem:[#allocation3] sm:$0x1] %vm720, %v735
      %v738 = vsel %vm688, %v654, %v453
      %739 = vst.msk [vmem:[#allocation3] sm:$0x1] %vm730, %v738
      %v740 = vld [vmem:[#allocation2] sm:$0x1]
      %v741 = vld [vmem:[#allocation3] sm:$0x1]
      %v742 = vld [vmem:[%s385] sm:$0x1]
      %v743 = vld [vmem:[%s393] sm:$0x8]
      %v744 = vpack.c.bf16 %v740, %v740
      %v746 = vunpack.c.l.b16 %v743
      %v747 = vpack.c.b16 %v746, %v746
      %v749 = vshll.u32 %v747, 16
      %v751 = vrot.slane %v749, 3
      %752 = vrot.lane.b32.xlu0 %v751, 32
      %v753 = vpop.permute.xlu0 %752
      %v755 = vshll.u32 %v744, 16
      %757 = vrot.lane.b32.xlu0 %v755, 64
      %v758 = vpop.permute.xlu0 %757
      %v761 = vsel %vm469, %v742, %v753
      %v763 = vsel %vm473, %v761, %v758
      %v764 = vshrl.u32 %v763, 16
      %767 = vmatprep.subr.bf16.mxu0 %v526
      %768 = vmatpush1.bf16.msra.mxu0 %v525
      %769 = vmatprep.subr.bf16.mxu0 %v528
      %770 = vmatpush1.bf16.msra.mxu0 %v527
      %771 = vmatprep.subr.bf16.mxu0 %v530
      %772 = vmatpush1.bf16.msra.mxu0 %v529
      %773 = vmatprep.subr.bf16.mxu0 %v532
      %774 = vmatpush1.bf16.msra.mxu0 %v531
      %775 = vmatprep.subr.bf16.mxu0 %v534
      %776 = vmatpush1.bf16.msra.mxu0 %v533
      %777 = vmatprep.subr.bf16.mxu0 %v536
      %778 = vmatpush1.bf16.msra.mxu0 %v535
      %779 = vmatprep.subr.bf16.mxu0 %v538
      %780 = vmatpush1.bf16.msra.mxu0 %v537
      %781 = vmatprep.subr.bf16.mxu0 %v540
      %782 = vmatpush1.bf16.msra.mxu0 %v539
      %783 = vmatprep.subr.bf16.mxu0 0
      %784 = vmatpush1.bf16.msra.mxu0 0
      %785 = vmatprep.subr.bf16.mxu0 0
      %786 = vmatpush1.bf16.msra.mxu0 0
      %787 = vmatprep.subr.bf16.mxu0 0
      %788 = vmatpush1.bf16.msra.mxu0 0
      %789 = vmatprep.subr.bf16.mxu0 0
      %790 = vmatpush1.bf16.msra.mxu0 0
      %791 = vmatprep.subr.bf16.mxu0 0
      %792 = vmatpush1.bf16.msra.mxu0 0
      %793 = vmatprep.subr.bf16.mxu0 0
      %794 = vmatpush1.bf16.msra.mxu0 0
      %795 = vmatprep.subr.bf16.mxu0 0
      %796 = vmatpush1.bf16.msra.mxu0 0
      %797 = vmatprep.subr.bf16.mxu0 0
      %798 = vmatpush1.bf16.msra.mxu0 0
      %799 = vmatprep.mubr.bf16.mxu0 0
      %800 = vmatmul.mubr.bf16.gmra.mrb[0].mxu0 %v764
      %v801 = vpop.f32.mrb[0].mxu0
      %v802 = vadd.f32 %v561, %v801
      %v803 = vpop.f32.mrb[0].mxu0
      %v804 = vadd.f32 %v565, %v803
      %v805 = vpop.f32.mrb[0].mxu0
      %v806 = vpop.f32.mrb[0].mxu0
      %807 = vdwg.mxu0
      %v808 = vmul.f32 %v802, 0.5
      %v809 = vtanh.pop %v808
      %v810 = vadd.f32 %v809, 1.0
      %v811 = vmul.f32 %v810, 0.5
      %v812 = vtanh.pop %v802
      %v814 = vlaneseq
      %v815 = vshrl.u32 %v814, 7
      %v816 = vsub.s32 0, %v815
      %v817 = vrot.slane %v741, %v816
      %818 = vrot.lane.b32.xlu0 %v817, 32
      %v819 = vpop.permute.xlu0 %818
      %v821 = vmul.f32 %v811, %v819
      %823 = vrot.lane.b32.xlu0 %v812, 64
      %v824 = vpop.permute.xlu0 %823
      %v826 = vmul.f32 %v811, %v824
      %828 = vrot.lane.b32.xlu0 %v826, 32
      %v829 = vpop.permute.xlu0 %828
      %v831 = vadd.f32 %v821, %v829
      %v832 = vtanh.pop %v831
      %834 = vrot.lane.b32.xlu0 %v832, 64
      %v835 = vpop.permute.xlu0 %834
      %v837 = vmul.f32 %v811, %v835
      %v838 = vmul.f32 %v804, 0.5
      %v839 = vtanh.pop %v838
      %v840 = vadd.f32 %v839, 1.0
      %v841 = vmul.f32 %v840, 0.5
      %v842 = vtanh.pop %v804
      %v843 = vmul.f32 %v841, %v741
      %845 = vrot.lane.b32.xlu0 %v842, 64
      %v846 = vpop.permute.xlu0 %845
      %v848 = vmul.f32 %v841, %v846
      %850 = vrot.lane.b32.xlu0 %v848, 32
      %v851 = vpop.permute.xlu0 %850
      %v853 = vadd.f32 %v843, %v851
      %v854 = vtanh.pop %v853
      %856 = vrot.lane.b32.xlu0 %v854, 64
      %v857 = vpop.permute.xlu0 %856
      %v859 = vmul.f32 %v841, %v857
      %v860 = vld [vmem:[%s401 + $0x1] sm:$0x1]
      %vm861 = vcmp.gt.f32.partialorder %v860, 0.0
      %v862 = vld [vmem:[%s409 + $0x6] sm:$0x1]
      %vm863 = vcmp.gt.f32.partialorder %v862, 0.0
      %v864 = vsel %vm861, 1, 0
      %865 = vset.pattern.permute.xlu0 0
      %866 = vperm.xlu0 %865, %v864
      %v867 = vpop.permute.xlu0 %866
      %vm868 = vcmp.eq.s32.totalorder %v867, 1
      %v869 = vsel %vm868, %v837, 0.0
      %v870 = vpack.c.bf16 %v869, %v869
      %v872 = vunpack.c.l.b16 %v870
      %v873 = vpack.c.b16 %v872, %v872
      %v875 = vshll.u32 %v873, 16
      %877 = vrot.lane.b32.xlu0 %v875, 32
      %v878 = vpop.permute.xlu0 %877
      %vm880 = vsmask.f32 7938
      %vm881 = vmand %vm678, %vm880
      %v882 = vld [vmem:[%s417] sm:$0x1]
      %v883 = vsel %vm881, %v878, %v882
      %884 = vst [vmem:[%s417] sm:$0x1] %v883
      %v885 = vsel %vm863, 1, 0
      %886 = vset.pattern.permute.xlu0 0
      %887 = vperm.xlu0 %886, %v885
      %v888 = vpop.permute.xlu0 %887
      %vm889 = vcmp.eq.s32.totalorder %v888, 1
      %v890 = vsel %vm889, %v859, 0.0
      %v891 = vpack.c.bf16 %v890, %v890
      %v893 = vunpack.c.l.b16 %v891
      %v894 = vpack.c.b16 %v893, %v893
      %v895 = vrot.slane %v894, 5
      %896 = vrot.lane.b32.xlu0 %v895, 32
      %v897 = vpop.permute.xlu0 %896
      %vm899 = vsmask.f32 3328
      %vm900 = vmand %vm701, %vm899
      %v901 = vld [vmem:[%s425] sm:$0x8]
      %v902 = vsel %vm900, %v897, %v901
      %903 = vst [vmem:[%s425] sm:$0x8] %v902
      %v905 = vlaneseq
      %v906 = vshrl.u32 %v905, 7
      %v907 = vsub.s32 0, %v906
      %v908 = vrot.slane %v740, %v907
      %909 = vrot.lane.b32.xlu0 %v908, 96
      %v910 = vpop.permute.xlu0 %909
      %v912 = vsel %vm868, %v837, %v910
      %914 = vrot.lane.b32.xlu0 %v912, 32
      %v915 = vpop.permute.xlu0 %914
      %917 = vst.msk [vmem:[#allocation2] sm:$0x1] %vm720, %v915
      %918 = vrot.lane.b32.xlu0 %v908, 64
      %v919 = vpop.permute.xlu0 %918
      %v921 = vsel %vm889, %v859, %v919
      %923 = vrot.lane.b32.xlu0 %v921, 64
      %v924 = vpop.permute.xlu0 %923
      %926 = vst.msk [vmem:[#allocation2] sm:$0x1] %vm730, %v924
      %v927 = vsel %vm868, %v831, %v819
      %929 = vrot.lane.b32.xlu0 %v927, 96
      %v930 = vpop.permute.xlu0 %929
      %932 = vst.msk [vmem:[#allocation3] sm:$0x1] %vm720, %v930
      %v933 = vsel %vm889, %v853, %v741
      %934 = vst.msk [vmem:[#allocation3] sm:$0x1] %vm730, %v933
      %v935 = vld [vmem:[#allocation2] sm:$0x1]
      %v936 = vld [vmem:[#allocation3] sm:$0x1]
      %v937 = vld [vmem:[%s385] sm:$0x2]
      %v938 = vld [vmem:[%s393] sm:$0x4]
      %v939 = vpack.c.bf16 %v935, %v935
      %v941 = vunpack.c.l.b16 %v938
      %v942 = vpack.c.b16 %v941, %v941
      %v944 = vshrl.u32 %v942, 16
      %v946 = vrot.slane %v944, 1
      %947 = vrot.lane.b32.xlu0 %v946, 32
      %v948 = vpop.permute.xlu0 %947
      %v950 = vrot.slane %v939, 7
      %951 = vrot.lane.b32.xlu0 %v950, 64
      %v952 = vpop.permute.xlu0 %951
      %v955 = vsel %vm469, %v937, %v948
      %v957 = vsel %vm473, %v955, %v952
      %v959 = vrot.slane %v957, 1
      %961 = vmatprep.subr.bf16.mxu0 %v526
      %962 = vmatpush1.bf16.msra.mxu0 %v525
      %963 = vmatprep.subr.bf16.mxu0 %v528
      %964 = vmatpush1.bf16.msra.mxu0 %v527
      %965 = vmatprep.subr.bf16.mxu0 %v530
      %966 = vmatpush1.bf16.msra.mxu0 %v529
      %967 = vmatprep.subr.bf16.mxu0 %v532
      %968 = vmatpush1.bf16.msra.mxu0 %v531
      %969 = vmatprep.subr.bf16.mxu0 %v534
      %970 = vmatpush1.bf16.msra.mxu0 %v533
      %971 = vmatprep.subr.bf16.mxu0 %v536
      %972 = vmatpush1.bf16.msra.mxu0 %v535
      %973 = vmatprep.subr.bf16.mxu0 %v538
      %974 = vmatpush1.bf16.msra.mxu0 %v537
      %975 = vmatprep.subr.bf16.mxu0 %v540
      %976 = vmatpush1.bf16.msra.mxu0 %v539
      %977 = vmatprep.subr.bf16.mxu0 0
      %978 = vmatpush1.bf16.msra.mxu0 0
      %979 = vmatprep.subr.bf16.mxu0 0
      %980 = vmatpush1.bf16.msra.mxu0 0
      %981 = vmatprep.subr.bf16.mxu0 0
      %982 = vmatpush1.bf16.msra.mxu0 0
      %983 = vmatprep.subr.bf16.mxu0 0
      %984 = vmatpush1.bf16.msra.mxu0 0
      %985 = vmatprep.subr.bf16.mxu0 0
      %986 = vmatpush1.bf16.msra.mxu0 0
      %987 = vmatprep.subr.bf16.mxu0 0
      %988 = vmatpush1.bf16.msra.mxu0 0
      %989 = vmatprep.subr.bf16.mxu0 0
      %990 = vmatpush1.bf16.msra.mxu0 0
      %991 = vmatprep.subr.bf16.mxu0 0
      %992 = vmatpush1.bf16.msra.mxu0 0
      %993 = vmatprep.mubr.bf16.mxu0 0
      %994 = vmatmul.mubr.bf16.gmra.mrb[0].mxu0 %v959
      %v995 = vpop.f32.mrb[0].mxu0
      %v996 = vadd.f32 %v561, %v995
      %v997 = vpop.f32.mrb[0].mxu0
      %v998 = vadd.f32 %v565, %v997
      %v999 = vpop.f32.mrb[0].mxu0
      %v1000 = vpop.f32.mrb[0].mxu0
      %1001 = vdwg.mxu0
      %v1002 = vmul.f32 %v996, 0.5
      %v1003 = vtanh.pop %v1002
      %v1004 = vadd.f32 %v1003, 1.0
      %v1005 = vmul.f32 %v1004, 0.5
      %v1006 = vtanh.pop %v996
      %v1008 = vlaneseq
      %v1009 = vshrl.u32 %v1008, 7
      %v1010 = vsub.s32 0, %v1009
      %v1011 = vrot.slane %v936, %v1010
      %1012 = vrot.lane.b32.xlu0 %v1011, 32
      %v1013 = vpop.permute.xlu0 %1012
      %v1015 = vmul.f32 %v1005, %v1013
      %1017 = vrot.lane.b32.xlu0 %v1006, 64
      %v1018 = vpop.permute.xlu0 %1017
      %v1020 = vmul.f32 %v1005, %v1018
      %1022 = vrot.lane.b32.xlu0 %v1020, 32
      %v1023 = vpop.permute.xlu0 %1022
      %v1025 = vadd.f32 %v1015, %v1023
      %v1026 = vtanh.pop %v1025
      %1028 = vrot.lane.b32.xlu0 %v1026, 64
      %v1029 = vpop.permute.xlu0 %1028
      %v1031 = vmul.f32 %v1005, %v1029
      %v1032 = vmul.f32 %v998, 0.5
      %v1033 = vtanh.pop %v1032
      %v1034 = vadd.f32 %v1033, 1.0
      %v1035 = vmul.f32 %v1034, 0.5
      %v1036 = vtanh.pop %v998
      %v1037 = vmul.f32 %v1035, %v936
      %1039 = vrot.lane.b32.xlu0 %v1036, 64
      %v1040 = vpop.permute.xlu0 %1039
      %v1042 = vmul.f32 %v1035, %v1040
      %1044 = vrot.lane.b32.xlu0 %v1042, 32
      %v1045 = vpop.permute.xlu0 %1044
      %v1047 = vadd.f32 %v1037, %v1045
      %v1048 = vtanh.pop %v1047
      %1050 = vrot.lane.b32.xlu0 %v1048, 64
      %v1051 = vpop.permute.xlu0 %1050
      %v1053 = vmul.f32 %v1035, %v1051
      %v1054 = vld [vmem:[%s401 + $0x2] sm:$0x1]
      %vm1055 = vcmp.gt.f32.partialorder %v1054, 0.0
      %v1056 = vld [vmem:[%s409 + $0x5] sm:$0x1]
      %vm1057 = vcmp.gt.f32.partialorder %v1056, 0.0
      %v1058 = vsel %vm1055, 1, 0
      %1059 = vset.pattern.permute.xlu0 0
      %1060 = vperm.xlu0 %1059, %v1058
      %v1061 = vpop.permute.xlu0 %1060
      %vm1062 = vcmp.eq.s32.totalorder %v1061, 1
      %v1063 = vsel %vm1062, %v1031, 0.0
      %v1064 = vpack.c.bf16 %v1063, %v1063
      %v1066 = vunpack.c.l.b16 %v1064
      %v1067 = vpack.c.b16 %v1066, %v1066
      %v1068 = vrot.slane %v1067, 7
      %1069 = vrot.lane.b32.xlu0 %v1068, 32
      %v1070 = vpop.permute.xlu0 %1069
      %vm1072 = vcmask 254977
      %vm1073 = vsmask.f32 1280
      %vm1074 = vmand %vm1072, %vm1073
      %v1075 = vld [vmem:[%s417] sm:$0x2]
      %v1076 = vsel %vm1074, %v1070, %v1075
      %1077 = vst [vmem:[%s417] sm:$0x2] %v1076
      %v1078 = vsel %vm1057, 1, 0
      %1079 = vset.pattern.permute.xlu0 0
      %1080 = vperm.xlu0 %1079, %v1078
      %v1081 = vpop.permute.xlu0 %1080
      %vm1082 = vcmp.eq.s32.totalorder %v1081, 1
      %v1083 = vsel %vm1082, %v1053, 0.0
      %v1084 = vpack.c.bf16 %v1083, %v1083
      %v1086 = vunpack.c.l.b16 %v1084
      %v1087 = vpack.c.b16 %v1086, %v1086
      %v1089 = vshll.u32 %v1087, 16
      %v1091 = vrot.slane %v1089, 6
      %1092 = vrot.lane.b32.xlu0 %v1091, 32
      %v1093 = vpop.permute.xlu0 %1092
      %vm1095 = vcmask 256002
      %vm1096 = vsmask.f32 7946
      %vm1097 = vmand %vm1095, %vm1096
      %v1098 = vld [vmem:[%s425] sm:$0x4]
      %v1099 = vsel %vm1097, %v1093, %v1098
      %1100 = vst [vmem:[%s425] sm:$0x4] %v1099
      %v1102 = vlaneseq
      %v1103 = vshrl.u32 %v1102, 7
      %v1104 = vsub.s32 0, %v1103
      %v1105 = vrot.slane %v935, %v1104
      %1106 = vrot.lane.b32.xlu0 %v1105, 96
      %v1107 = vpop.permute.xlu0 %1106
      %v1109 = vsel %vm1062, %v1031, %v1107
      %1111 = vrot.lane.b32.xlu0 %v1109, 32
      %v1112 = vpop.permute.xlu0 %1111
      %1114 = vst.msk [vmem:[#allocation2] sm:$0x1] %vm720, %v1112
      %1115 = vrot.lane.b32.xlu0 %v1105, 64
      %v1116 = vpop.permute.xlu0 %1115
      %v1118 = vsel %vm1082, %v1053, %v1116
      %1120 = vrot.lane.b32.xlu0 %v1118, 64
      %v1121 = vpop.permute.xlu0 %1120
      %1123 = vst.msk [vmem:[#allocation2] sm:$0x1] %vm730, %v1121
      %v1124 = vsel %vm1062, %v1025, %v1013
      %1126 = vrot.lane.b32.xlu0 %v1124, 96
      %v1127 = vpop.permute.xlu0 %1126
      %1129 = vst.msk [vmem:[#allocation3] sm:$0x1] %vm720, %v1127
      %v1130 = vsel %vm1082, %v1047, %v936
      %1131 = vst.msk [vmem:[#allocation3] sm:$0x1] %vm730, %v1130
      %v1132 = vld [vmem:[#allocation2] sm:$0x1]
      %v1133 = vld [vmem:[#allocation3] sm:$0x1]
      %v1134 = vld [vmem:[%s385] sm:$0x2]
      %v1135 = vld [vmem:[%s393] sm:$0x4]
      %v1136 = vpack.c.bf16 %v1132, %v1132
      %v1138 = vunpack.c.l.b16 %v1135
      %v1139 = vpack.c.b16 %v1138, %v1138
      %v1141 = vshll.u32 %v1139, 16
      %v1143 = vrot.slane %v1141, 1
      %1144 = vrot.lane.b32.xlu0 %v1143, 32
      %v1145 = vpop.permute.xlu0 %1144
      %v1147 = vshll.u32 %v1136, 16
      %v1149 = vrot.slane %v1147, 7
      %1150 = vrot.lane.b32.xlu0 %v1149, 64
      %v1151 = vpop.permute.xlu0 %1150
      %v1154 = vsel %vm469, %v1134, %v1145
      %v1156 = vsel %vm473, %v1154, %v1151
      %v1157 = vshrl.u32 %v1156, 16
      %v1159 = vrot.slane %v1157, 1
      %1161 = vmatprep.subr.bf16.mxu0 %v526
      %1162 = vmatpush1.bf16.msra.mxu0 %v525
      %1163 = vmatprep.subr.bf16.mxu0 %v528
      %1164 = vmatpush1.bf16.msra.mxu0 %v527
      %1165 = vmatprep.subr.bf16.mxu0 %v530
      %1166 = vmatpush1.bf16.msra.mxu0 %v529
      %1167 = vmatprep.subr.bf16.mxu0 %v532
      %1168 = vmatpush1.bf16.msra.mxu0 %v531
      %1169 = vmatprep.subr.bf16.mxu0 %v534
      %1170 = vmatpush1.bf16.msra.mxu0 %v533
      %1171 = vmatprep.subr.bf16.mxu0 %v536
      %1172 = vmatpush1.bf16.msra.mxu0 %v535
      %1173 = vmatprep.subr.bf16.mxu0 %v538
      %1174 = vmatpush1.bf16.msra.mxu0 %v537
      %1175 = vmatprep.subr.bf16.mxu0 %v540
      %1176 = vmatpush1.bf16.msra.mxu0 %v539
      %1177 = vmatprep.subr.bf16.mxu0 0
      %1178 = vmatpush1.bf16.msra.mxu0 0
      %1179 = vmatprep.subr.bf16.mxu0 0
      %1180 = vmatpush1.bf16.msra.mxu0 0
      %1181 = vmatprep.subr.bf16.mxu0 0
      %1182 = vmatpush1.bf16.msra.mxu0 0
      %1183 = vmatprep.subr.bf16.mxu0 0
      %1184 = vmatpush1.bf16.msra.mxu0 0
      %1185 = vmatprep.subr.bf16.mxu0 0
      %1186 = vmatpush1.bf16.msra.mxu0 0
      %1187 = vmatprep.subr.bf16.mxu0 0
      %1188 = vmatpush1.bf16.msra.mxu0 0
      %1189 = vmatprep.subr.bf16.mxu0 0
      %1190 = vmatpush1.bf16.msra.mxu0 0
      %1191 = vmatprep.subr.bf16.mxu0 0
      %1192 = vmatpush1.bf16.msra.mxu0 0
      %1193 = vmatprep.mubr.bf16.mxu0 0
      %1194 = vmatmul.mubr.bf16.gmra.mrb[0].mxu0 %v1159
      %v1195 = vpop.f32.mrb[0].mxu0
      %v1196 = vadd.f32 %v561, %v1195
      %v1197 = vpop.f32.mrb[0].mxu0
      %v1198 = vadd.f32 %v565, %v1197
      %v1199 = vpop.f32.mrb[0].mxu0
      %v1200 = vpop.f32.mrb[0].mxu0
      %1201 = vdwg.mxu0
      %v1202 = vmul.f32 %v1196, 0.5
      %v1203 = vtanh.pop %v1202
      %v1204 = vadd.f32 %v1203, 1.0
      %v1205 = vmul.f32 %v1204, 0.5
      %v1206 = vtanh.pop %v1196
      %v1208 = vlaneseq
      %v1209 = vshrl.u32 %v1208, 7
      %v1210 = vsub.s32 0, %v1209
      %v1211 = vrot.slane %v1133, %v1210
      %1212 = vrot.lane.b32.xlu0 %v1211, 32
      %v1213 = vpop.permute.xlu0 %1212
      %v1215 = vmul.f32 %v1205, %v1213
      %1217 = vrot.lane.b32.xlu0 %v1206, 64
      %v1218 = vpop.permute.xlu0 %1217
      %v1220 = vmul.f32 %v1205, %v1218
      %1222 = vrot.lane.b32.xlu0 %v1220, 32
      %v1223 = vpop.permute.xlu0 %1222
      %v1225 = vadd.f32 %v1215, %v1223
      %v1226 = vtanh.pop %v1225
      %1228 = vrot.lane.b32.xlu0 %v1226, 64
      %v1229 = vpop.permute.xlu0 %1228
      %v1231 = vmul.f32 %v1205, %v1229
      %v1232 = vmul.f32 %v1198, 0.5
      %v1233 = vtanh.pop %v1232
      %v1234 = vadd.f32 %v1233, 1.0
      %v1235 = vmul.f32 %v1234, 0.5
      %v1236 = vtanh.pop %v1198
      %v1237 = vmul.f32 %v1235, %v1133
      %1239 = vrot.lane.b32.xlu0 %v1236, 64
      %v1240 = vpop.permute.xlu0 %1239
      %v1242 = vmul.f32 %v1235, %v1240
      %1244 = vrot.lane.b32.xlu0 %v1242, 32
      %v1245 = vpop.permute.xlu0 %1244
      %v1247 = vadd.f32 %v1237, %v1245
      %v1248 = vtanh.pop %v1247
      %1250 = vrot.lane.b32.xlu0 %v1248, 64
      %v1251 = vpop.permute.xlu0 %1250
      %v1253 = vmul.f32 %v1235, %v1251
      %v1254 = vld [vmem:[%s401 + $0x3] sm:$0x1]
      %vm1255 = vcmp.gt.f32.partialorder %v1254, 0.0
      %v1256 = vld [vmem:[%s409 + $0x4] sm:$0x1]
      %vm1257 = vcmp.gt.f32.partialorder %v1256, 0.0
      %v1258 = vsel %vm1255, 1, 0
      %1259 = vset.pattern.permute.xlu0 0
      %1260 = vperm.xlu0 %1259, %v1258
      %v1261 = vpop.permute.xlu0 %1260
      %vm1262 = vcmp.eq.s32.totalorder %v1261, 1
      %v1263 = vsel %vm1262, %v1231, 0.0
      %v1264 = vpack.c.bf16 %v1263, %v1263
      %v1266 = vunpack.c.l.b16 %v1264
      %v1267 = vpack.c.b16 %v1266, %v1266
      %v1269 = vshll.u32 %v1267, 16
      %v1271 = vrot.slane %v1269, 7
      %1272 = vrot.lane.b32.xlu0 %v1271, 32
      %v1273 = vpop.permute.xlu0 %1272
      %vm1275 = vsmask.f32 7942
      %vm1276 = vmand %vm1072, %vm1275
      %v1277 = vld [vmem:[%s417] sm:$0x2]
      %v1278 = vsel %vm1276, %v1273, %v1277
      %1279 = vst [vmem:[%s417] sm:$0x2] %v1278
      %v1280 = vsel %vm1257, 1, 0
      %1281 = vset.pattern.permute.xlu0 0
      %1282 = vperm.xlu0 %1281, %v1280
      %v1283 = vpop.permute.xlu0 %1282
      %vm1284 = vcmp.eq.s32.totalorder %v1283, 1
      %v1285 = vsel %vm1284, %v1253, 0.0
      %v1286 = vpack.c.bf16 %v1285, %v1285
      %v1288 = vunpack.c.l.b16 %v1286
      %v1289 = vpack.c.b16 %v1288, %v1288
      %v1290 = vrot.slane %v1289, 6
      %1291 = vrot.lane.b32.xlu0 %v1290, 32
      %v1292 = vpop.permute.xlu0 %1291
      %vm1294 = vsmask.f32 2304
      %vm1295 = vmand %vm1095, %vm1294
      %v1296 = vld [vmem:[%s425] sm:$0x4]
      %v1297 = vsel %vm1295, %v1292, %v1296
      %1298 = vst [vmem:[%s425] sm:$0x4] %v1297
      %v1300 = vlaneseq
      %v1301 = vshrl.u32 %v1300, 7
      %v1302 = vsub.s32 0, %v1301
      %v1303 = vrot.slane %v1132, %v1302
      %1304 = vrot.lane.b32.xlu0 %v1303, 96
      %v1305 = vpop.permute.xlu0 %1304
      %v1307 = vsel %vm1262, %v1231, %v1305
      %1309 = vrot.lane.b32.xlu0 %v1307, 32
      %v1310 = vpop.permute.xlu0 %1309
      %1312 = vst.msk [vmem:[#allocation2] sm:$0x1] %vm720, %v1310
      %1313 = vrot.lane.b32.xlu0 %v1303, 64
      %v1314 = vpop.permute.xlu0 %1313
      %v1316 = vsel %vm1284, %v1253, %v1314
      %1318 = vrot.lane.b32.xlu0 %v1316, 64
      %v1319 = vpop.permute.xlu0 %1318
      %1321 = vst.msk [vmem:[#allocation2] sm:$0x1] %vm730, %v1319
      %v1322 = vsel %vm1262, %v1225, %v1213
      %1324 = vrot.lane.b32.xlu0 %v1322, 96
      %v1325 = vpop.permute.xlu0 %1324
      %1327 = vst.msk [vmem:[#allocation3] sm:$0x1] %vm720, %v1325
      %v1328 = vsel %vm1284, %v1247, %v1133
      %1329 = vst.msk [vmem:[#allocation3] sm:$0x1] %vm730, %v1328
      %v1330 = vld [vmem:[#allocation2] sm:$0x1]
      %v1331 = vld [vmem:[#allocation3] sm:$0x1]
      %v1332 = vld [vmem:[%s385] sm:$0x4]
      %v1333 = vld [vmem:[%s393] sm:$0x2]
      %v1334 = vpack.c.bf16 %v1330, %v1330
      %v1336 = vunpack.c.l.b16 %v1333
      %v1337 = vpack.c.b16 %v1336, %v1336
      %v1339 = vshrl.u32 %v1337, 16
      %v1341 = vrot.slane %v1339, 7
      %1342 = vrot.lane.b32.xlu0 %v1341, 32
      %v1343 = vpop.permute.xlu0 %1342
      %v1345 = vrot.slane %v1334, 6
      %1346 = vrot.lane.b32.xlu0 %v1345, 64
      %v1347 = vpop.permute.xlu0 %1346
      %v1350 = vsel %vm469, %v1332, %v1343
      %v1352 = vsel %vm473, %v1350, %v1347
      %v1354 = vrot.slane %v1352, 2
      %1356 = vmatprep.subr.bf16.mxu0 %v526
      %1357 = vmatpush1.bf16.msra.mxu0 %v525
      %1358 = vmatprep.subr.bf16.mxu0 %v528
      %1359 = vmatpush1.bf16.msra.mxu0 %v527
      %1360 = vmatprep.subr.bf16.mxu0 %v530
      %1361 = vmatpush1.bf16.msra.mxu0 %v529
      %1362 = vmatprep.subr.bf16.mxu0 %v532
      %1363 = vmatpush1.bf16.msra.mxu0 %v531
      %1364 = vmatprep.subr.bf16.mxu0 %v534
      %1365 = vmatpush1.bf16.msra.mxu0 %v533
      %1366 = vmatprep.subr.bf16.mxu0 %v536
      %1367 = vmatpush1.bf16.msra.mxu0 %v535
      %1368 = vmatprep.subr.bf16.mxu0 %v538
      %1369 = vmatpush1.bf16.msra.mxu0 %v537
      %1370 = vmatprep.subr.bf16.mxu0 %v540
      %1371 = vmatpush1.bf16.msra.mxu0 %v539
      %1372 = vmatprep.subr.bf16.mxu0 0
      %1373 = vmatpush1.bf16.msra.mxu0 0
      %1374 = vmatprep.subr.bf16.mxu0 0
      %1375 = vmatpush1.bf16.msra.mxu0 0
      %1376 = vmatprep.subr.bf16.mxu0 0
      %1377 = vmatpush1.bf16.msra.mxu0 0
      %1378 = vmatprep.subr.bf16.mxu0 0
      %1379 = vmatpush1.bf16.msra.mxu0 0
      %1380 = vmatprep.subr.bf16.mxu0 0
      %1381 = vmatpush1.bf16.msra.mxu0 0
      %1382 = vmatprep.subr.bf16.mxu0 0
      %1383 = vmatpush1.bf16.msra.mxu0 0
      %1384 = vmatprep.subr.bf16.mxu0 0
      %1385 = vmatpush1.bf16.msra.mxu0 0
      %1386 = vmatprep.subr.bf16.mxu0 0
      %1387 = vmatpush1.bf16.msra.mxu0 0
      %1388 = vmatprep.mubr.bf16.mxu0 0
      %1389 = vmatmul.mubr.bf16.gmra.mrb[0].mxu0 %v1354
      %v1390 = vpop.f32.mrb[0].mxu0
      %v1391 = vadd.f32 %v561, %v1390
      %v1392 = vpop.f32.mrb[0].mxu0
      %v1393 = vadd.f32 %v565, %v1392
      %v1394 = vpop.f32.mrb[0].mxu0
      %v1395 = vpop.f32.mrb[0].mxu0
      %1396 = vdwg.mxu0
      %v1397 = vmul.f32 %v1391, 0.5
      %v1398 = vtanh.pop %v1397
      %v1399 = vadd.f32 %v1398, 1.0
      %v1400 = vmul.f32 %v1399, 0.5
      %v1401 = vtanh.pop %v1391
      %v1403 = vlaneseq
      %v1404 = vshrl.u32 %v1403, 7
      %v1405 = vsub.s32 0, %v1404
      %v1406 = vrot.slane %v1331, %v1405
      %1407 = vrot.lane.b32.xlu0 %v1406, 32
      %v1408 = vpop.permute.xlu0 %1407
      %v1410 = vmul.f32 %v1400, %v1408
      %1412 = vrot.lane.b32.xlu0 %v1401, 64
      %v1413 = vpop.permute.xlu0 %1412
      %v1415 = vmul.f32 %v1400, %v1413
      %1417 = vrot.lane.b32.xlu0 %v1415, 32
      %v1418 = vpop.permute.xlu0 %1417
      %v1420 = vadd.f32 %v1410, %v1418
      %v1421 = vtanh.pop %v1420
      %1423 = vrot.lane.b32.xlu0 %v1421, 64
      %v1424 = vpop.permute.xlu0 %1423
      %v1426 = vmul.f32 %v1400, %v1424
      %v1427 = vmul.f32 %v1393, 0.5
      %v1428 = vtanh.pop %v1427
      %v1429 = vadd.f32 %v1428, 1.0
      %v1430 = vmul.f32 %v1429, 0.5
      %v1431 = vtanh.pop %v1393
      %v1432 = vmul.f32 %v1430, %v1331
      %1434 = vrot.lane.b32.xlu0 %v1431, 64
      %v1435 = vpop.permute.xlu0 %1434
      %v1437 = vmul.f32 %v1430, %v1435
      %1439 = vrot.lane.b32.xlu0 %v1437, 32
      %v1440 = vpop.permute.xlu0 %1439
      %v1442 = vadd.f32 %v1432, %v1440
      %v1443 = vtanh.pop %v1442
      %1445 = vrot.lane.b32.xlu0 %v1443, 64
      %v1446 = vpop.permute.xlu0 %1445
      %v1448 = vmul.f32 %v1430, %v1446
      %v1449 = vld [vmem:[%s401 + $0x4] sm:$0x1]
      %vm1450 = vcmp.gt.f32.partialorder %v1449, 0.0
      %v1451 = vld [vmem:[%s409 + $0x3] sm:$0x1]
      %vm1452 = vcmp.gt.f32.partialorder %v1451, 0.0
      %v1453 = vsel %vm1450, 1, 0
      %1454 = vset.pattern.permute.xlu0 0
      %1455 = vperm.xlu0 %1454, %v1453
      %v1456 = vpop.permute.xlu0 %1455
      %vm1457 = vcmp.eq.s32.totalorder %v1456, 1
      %v1458 = vsel %vm1457, %v1426, 0.0
      %v1459 = vpack.c.bf16 %v1458, %v1458
      %v1461 = vunpack.c.l.b16 %v1459
      %v1462 = vpack.c.b16 %v1461, %v1461
      %v1463 = vrot.slane %v1462, 6
      %1464 = vrot.lane.b32.xlu0 %v1463, 32
      %v1465 = vpop.permute.xlu0 %1464
      %v1467 = vld [vmem:[%s417] sm:$0x4]
      %v1468 = vsel %vm1295, %v1465, %v1467
      %1469 = vst [vmem:[%s417] sm:$0x4] %v1468
      %v1470 = vsel %vm1452, 1, 0
      %1471 = vset.pattern.permute.xlu0 0
      %1472 = vperm.xlu0 %1471, %v1470
      %v1473 = vpop.permute.xlu0 %1472
      %vm1474 = vcmp.eq.s32.totalorder %v1473, 1
      %v1475 = vsel %vm1474, %v1448, 0.0
      %v1476 = vpack.c.bf16 %v1475, %v1475
      %v1478 = vunpack.c.l.b16 %v1476
      %v1479 = vpack.c.b16 %v1478, %v1478
      %v1481 = vshll.u32 %v1479, 16
      %v1483 = vrot.slane %v1481, 7
      %1484 = vrot.lane.b32.xlu0 %v1483, 32
      %v1485 = vpop.permute.xlu0 %1484
      %v1487 = vld [vmem:[%s425] sm:$0x2]
      %v1488 = vsel %vm1276, %v1485, %v1487
      %1489 = vst [vmem:[%s425] sm:$0x2] %v1488
      %v1491 = vlaneseq
      %v1492 = vshrl.u32 %v1491, 7
      %v1493 = vsub.s32 0, %v1492
      %v1494 = vrot.slane %v1330, %v1493
      %1495 = vrot.lane.b32.xlu0 %v1494, 96
      %v1496 = vpop.permute.xlu0 %1495
      %v1498 = vsel %vm1457, %v1426, %v1496
      %1500 = vrot.lane.b32.xlu0 %v1498, 32
      %v1501 = vpop.permute.xlu0 %1500
      %1503 = vst.msk [vmem:[#allocation2] sm:$0x1] %vm720, %v1501
      %1504 = vrot.lane.b32.xlu0 %v1494, 64
      %v1505 = vpop.permute.xlu0 %1504
      %v1507 = vsel %vm1474, %v1448, %v1505
      %1509 = vrot.lane.b32.xlu0 %v1507, 64
      %v1510 = vpop.permute.xlu0 %1509
      %1512 = vst.msk [vmem:[#allocation2] sm:$0x1] %vm730, %v1510
      %v1513 = vsel %vm1457, %v1420, %v1408
      %1515 = vrot.lane.b32.xlu0 %v1513, 96
      %v1516 = vpop.permute.xlu0 %1515
      %1518 = vst.msk [vmem:[#allocation3] sm:$0x1] %vm720, %v1516
      %v1519 = vsel %vm1474, %v1442, %v1331
      %1520 = vst.msk [vmem:[#allocation3] sm:$0x1] %vm730, %v1519
      %v1521 = vld [vmem:[#allocation2] sm:$0x1]
      %v1522 = vld [vmem:[#allocation3] sm:$0x1]
      %v1523 = vld [vmem:[%s385] sm:$0x4]
      %v1524 = vld [vmem:[%s393] sm:$0x2]
      %v1525 = vpack.c.bf16 %v1521, %v1521
      %v1527 = vunpack.c.l.b16 %v1524
      %v1528 = vpack.c.b16 %v1527, %v1527
      %v1530 = vshll.u32 %v1528, 16
      %v1532 = vrot.slane %v1530, 7
      %1533 = vrot.lane.b32.xlu0 %v1532, 32
      %v1534 = vpop.permute.xlu0 %1533
      %v1536 = vshll.u32 %v1525, 16
      %v1538 = vrot.slane %v1536, 6
      %1539 = vrot.lane.b32.xlu0 %v1538, 64
      %v1540 = vpop.permute.xlu0 %1539
      %v1543 = vsel %vm469, %v1523, %v1534
      %v1545 = vsel %vm473, %v1543, %v1540
      %v1546 = vshrl.u32 %v1545, 16
      %v1548 = vrot.slane %v1546, 2
      %1550 = vmatprep.subr.bf16.mxu0 %v526
      %1551 = vmatpush1.bf16.msra.mxu0 %v525
      %1552 = vmatprep.subr.bf16.mxu0 %v528
      %1553 = vmatpush1.bf16.msra.mxu0 %v527
      %1554 = vmatprep.subr.bf16.mxu0 %v530
      %1555 = vmatpush1.bf16.msra.mxu0 %v529
      %1556 = vmatprep.subr.bf16.mxu0 %v532
      %1557 = vmatpush1.bf16.msra.mxu0 %v531
      %1558 = vmatprep.subr.bf16.mxu0 %v534
      %1559 = vmatpush1.bf16.msra.mxu0 %v533
      %1560 = vmatprep.subr.bf16.mxu0 %v536
      %1561 = vmatpush1.bf16.msra.mxu0 %v535
      %1562 = vmatprep.subr.bf16.mxu0 %v538
      %1563 = vmatpush1.bf16.msra.mxu0 %v537
      %1564 = vmatprep.subr.bf16.mxu0 %v540
      %1565 = vmatpush1.bf16.msra.mxu0 %v539
      %1566 = vmatprep.subr.bf16.mxu0 0
      %1567 = vmatpush1.bf16.msra.mxu0 0
      %1568 = vmatprep.subr.bf16.mxu0 0
      %1569 = vmatpush1.bf16.msra.mxu0 0
      %1570 = vmatprep.subr.bf16.mxu0 0
      %1571 = vmatpush1.bf16.msra.mxu0 0
      %1572 = vmatprep.subr.bf16.mxu0 0
      %1573 = vmatpush1.bf16.msra.mxu0 0
      %1574 = vmatprep.subr.bf16.mxu0 0
      %1575 = vmatpush1.bf16.msra.mxu0 0
      %1576 = vmatprep.subr.bf16.mxu0 0
      %1577 = vmatpush1.bf16.msra.mxu0 0
      %1578 = vmatprep.subr.bf16.mxu0 0
      %1579 = vmatpush1.bf16.msra.mxu0 0
      %1580 = vmatprep.subr.bf16.mxu0 0
      %1581 = vmatpush1.bf16.msra.mxu0 0
      %1582 = vmatprep.mubr.bf16.mxu0 0
      %1583 = vmatmul.mubr.bf16.gmra.mrb[0].mxu0 %v1548
      %v1584 = vpop.f32.mrb[0].mxu0
      %v1585 = vadd.f32 %v561, %v1584
      %v1586 = vpop.f32.mrb[0].mxu0
      %v1587 = vadd.f32 %v565, %v1586
      %v1588 = vpop.f32.mrb[0].mxu0
      %v1589 = vpop.f32.mrb[0].mxu0
      %1590 = vdwg.mxu0
      %v1591 = vmul.f32 %v1585, 0.5
      %v1592 = vtanh.pop %v1591
      %v1593 = vadd.f32 %v1592, 1.0
      %v1594 = vmul.f32 %v1593, 0.5
      %v1595 = vtanh.pop %v1585
      %v1597 = vlaneseq
      %v1598 = vshrl.u32 %v1597, 7
      %v1599 = vsub.s32 0, %v1598
      %v1600 = vrot.slane %v1522, %v1599
      %1601 = vrot.lane.b32.xlu0 %v1600, 32
      %v1602 = vpop.permute.xlu0 %1601
      %v1604 = vmul.f32 %v1594, %v1602
      %1606 = vrot.lane.b32.xlu0 %v1595, 64
      %v1607 = vpop.permute.xlu0 %1606
      %v1609 = vmul.f32 %v1594, %v1607
      %1611 = vrot.lane.b32.xlu0 %v1609, 32
      %v1612 = vpop.permute.xlu0 %1611
      %v1614 = vadd.f32 %v1604, %v1612
      %v1615 = vtanh.pop %v1614
      %1617 = vrot.lane.b32.xlu0 %v1615, 64
      %v1618 = vpop.permute.xlu0 %1617
      %v1620 = vmul.f32 %v1594, %v1618
      %v1621 = vmul.f32 %v1587, 0.5
      %v1622 = vtanh.pop %v1621
      %v1623 = vadd.f32 %v1622, 1.0
      %v1624 = vmul.f32 %v1623, 0.5
      %v1625 = vtanh.pop %v1587
      %v1626 = vmul.f32 %v1624, %v1522
      %1628 = vrot.lane.b32.xlu0 %v1625, 64
      %v1629 = vpop.permute.xlu0 %1628
      %v1631 = vmul.f32 %v1624, %v1629
      %1633 = vrot.lane.b32.xlu0 %v1631, 32
      %v1634 = vpop.permute.xlu0 %1633
      %v1636 = vadd.f32 %v1626, %v1634
      %v1637 = vtanh.pop %v1636
      %1639 = vrot.lane.b32.xlu0 %v1637, 64
      %v1640 = vpop.permute.xlu0 %1639
      %v1642 = vmul.f32 %v1624, %v1640
      %v1643 = vld [vmem:[%s401 + $0x5] sm:$0x1]
      %vm1644 = vcmp.gt.f32.partialorder %v1643, 0.0
      %v1645 = vld [vmem:[%s409 + $0x2] sm:$0x1]
      %vm1646 = vcmp.gt.f32.partialorder %v1645, 0.0
      %v1647 = vsel %vm1644, 1, 0
      %1648 = vset.pattern.permute.xlu0 0
      %1649 = vperm.xlu0 %1648, %v1647
      %v1650 = vpop.permute.xlu0 %1649
      %vm1651 = vcmp.eq.s32.totalorder %v1650, 1
      %v1652 = vsel %vm1651, %v1620, 0.0
      %v1653 = vpack.c.bf16 %v1652, %v1652
      %v1655 = vunpack.c.l.b16 %v1653
      %v1656 = vpack.c.b16 %v1655, %v1655
      %v1658 = vshll.u32 %v1656, 16
      %v1660 = vrot.slane %v1658, 6
      %1661 = vrot.lane.b32.xlu0 %v1660, 32
      %v1662 = vpop.permute.xlu0 %1661
      %v1664 = vld [vmem:[%s417] sm:$0x4]
      %v1665 = vsel %vm1097, %v1662, %v1664
      %1666 = vst [vmem:[%s417] sm:$0x4] %v1665
      %v1667 = vsel %vm1646, 1, 0
      %1668 = vset.pattern.permute.xlu0 0
      %1669 = vperm.xlu0 %1668, %v1667
      %v1670 = vpop.permute.xlu0 %1669
      %vm1671 = vcmp.eq.s32.totalorder %v1670, 1
      %v1672 = vsel %vm1671, %v1642, 0.0
      %v1673 = vpack.c.bf16 %v1672, %v1672
      %v1675 = vunpack.c.l.b16 %v1673
      %v1676 = vpack.c.b16 %v1675, %v1675
      %v1677 = vrot.slane %v1676, 7
      %1678 = vrot.lane.b32.xlu0 %v1677, 32
      %v1679 = vpop.permute.xlu0 %1678
      %v1681 = vld [vmem:[%s425] sm:$0x2]
      %v1682 = vsel %vm1074, %v1679, %v1681
      %1683 = vst [vmem:[%s425] sm:$0x2] %v1682
      %v1685 = vlaneseq
      %v1686 = vshrl.u32 %v1685, 7
      %v1687 = vsub.s32 0, %v1686
      %v1688 = vrot.slane %v1521, %v1687
      %1689 = vrot.lane.b32.xlu0 %v1688, 96
      %v1690 = vpop.permute.xlu0 %1689
      %v1692 = vsel %vm1651, %v1620, %v1690
      %1694 = vrot.lane.b32.xlu0 %v1692, 32
      %v1695 = vpop.permute.xlu0 %1694
      %1697 = vst.msk [vmem:[#allocation2] sm:$0x1] %vm720, %v1695
      %1698 = vrot.lane.b32.xlu0 %v1688, 64
      %v1699 = vpop.permute.xlu0 %1698
      %v1701 = vsel %vm1671, %v1642, %v1699
      %1703 = vrot.lane.b32.xlu0 %v1701, 64
      %v1704 = vpop.permute.xlu0 %1703
      %1706 = vst.msk [vmem:[#allocation2] sm:$0x1] %vm730, %v1704
      %v1707 = vsel %vm1651, %v1614, %v1602
      %1709 = vrot.lane.b32.xlu0 %v1707, 96
      %v1710 = vpop.permute.xlu0 %1709
      %1712 = vst.msk [vmem:[#allocation3] sm:$0x1] %vm720, %v1710
      %v1713 = vsel %vm1671, %v1636, %v1522
      %1714 = vst.msk [vmem:[#allocation3] sm:$0x1] %vm730, %v1713
      %v1715 = vld [vmem:[#allocation2] sm:$0x1]
      %v1716 = vld [vmem:[#allocation3] sm:$0x1]
      %v1717 = vld [vmem:[%s385] sm:$0x8]
      %v1718 = vld [vmem:[%s393] sm:$0x1]
      %v1719 = vpack.c.bf16 %v1715, %v1715
      %v1721 = vunpack.c.l.b16 %v1718
      %v1722 = vpack.c.b16 %v1721, %v1721
      %v1724 = vshrl.u32 %v1722, 16
      %v1726 = vrot.slane %v1724, 5
      %1727 = vrot.lane.b32.xlu0 %v1726, 32
      %v1728 = vpop.permute.xlu0 %1727
      %v1730 = vrot.slane %v1719, 5
      %1731 = vrot.lane.b32.xlu0 %v1730, 64
      %v1732 = vpop.permute.xlu0 %1731
      %v1735 = vsel %vm469, %v1717, %v1728
      %v1737 = vsel %vm473, %v1735, %v1732
      %v1739 = vrot.slane %v1737, 3
      %1741 = vmatprep.subr.bf16.mxu0 %v526
      %1742 = vmatpush1.bf16.msra.mxu0 %v525
      %1743 = vmatprep.subr.bf16.mxu0 %v528
      %1744 = vmatpush1.bf16.msra.mxu0 %v527
      %1745 = vmatprep.subr.bf16.mxu0 %v530
      %1746 = vmatpush1.bf16.msra.mxu0 %v529
      %1747 = vmatprep.subr.bf16.mxu0 %v532
      %1748 = vmatpush1.bf16.msra.mxu0 %v531
      %1749 = vmatprep.subr.bf16.mxu0 %v534
      %1750 = vmatpush1.bf16.msra.mxu0 %v533
      %1751 = vmatprep.subr.bf16.mxu0 %v536
      %1752 = vmatpush1.bf16.msra.mxu0 %v535
      %1753 = vmatprep.subr.bf16.mxu0 %v538
      %1754 = vmatpush1.bf16.msra.mxu0 %v537
      %1755 = vmatprep.subr.bf16.mxu0 %v540
      %1756 = vmatpush1.bf16.msra.mxu0 %v539
      %1757 = vmatprep.subr.bf16.mxu0 0
      %1758 = vmatpush1.bf16.msra.mxu0 0
      %1759 = vmatprep.subr.bf16.mxu0 0
      %1760 = vmatpush1.bf16.msra.mxu0 0
      %1761 = vmatprep.subr.bf16.mxu0 0
      %1762 = vmatpush1.bf16.msra.mxu0 0
      %1763 = vmatprep.subr.bf16.mxu0 0
      %1764 = vmatpush1.bf16.msra.mxu0 0
      %1765 = vmatprep.subr.bf16.mxu0 0
      %1766 = vmatpush1.bf16.msra.mxu0 0
      %1767 = vmatprep.subr.bf16.mxu0 0
      %1768 = vmatpush1.bf16.msra.mxu0 0
      %1769 = vmatprep.subr.bf16.mxu0 0
      %1770 = vmatpush1.bf16.msra.mxu0 0
      %1771 = vmatprep.subr.bf16.mxu0 0
      %1772 = vmatpush1.bf16.msra.mxu0 0
      %1773 = vmatprep.mubr.bf16.mxu0 0
      %1774 = vmatmul.mubr.bf16.gmra.mrb[0].mxu0 %v1739
      %v1775 = vpop.f32.mrb[0].mxu0
      %v1776 = vadd.f32 %v561, %v1775
      %v1777 = vpop.f32.mrb[0].mxu0
      %v1778 = vadd.f32 %v565, %v1777
      %v1779 = vpop.f32.mrb[0].mxu0
      %v1780 = vpop.f32.mrb[0].mxu0
      %1781 = vdwg.mxu0
      %v1782 = vmul.f32 %v1776, 0.5
      %v1783 = vtanh.pop %v1782
      %v1784 = vadd.f32 %v1783, 1.0
      %v1785 = vmul.f32 %v1784, 0.5
      %v1786 = vtanh.pop %v1776
      %v1788 = vlaneseq
      %v1789 = vshrl.u32 %v1788, 7
      %v1790 = vsub.s32 0, %v1789
      %v1791 = vrot.slane %v1716, %v1790
      %1792 = vrot.lane.b32.xlu0 %v1791, 32
      %v1793 = vpop.permute.xlu0 %1792
      %v1795 = vmul.f32 %v1785, %v1793
      %1797 = vrot.lane.b32.xlu0 %v1786, 64
      %v1798 = vpop.permute.xlu0 %1797
      %v1800 = vmul.f32 %v1785, %v1798
      %1802 = vrot.lane.b32.xlu0 %v1800, 32
      %v1803 = vpop.permute.xlu0 %1802
      %v1805 = vadd.f32 %v1795, %v1803
      %v1806 = vtanh.pop %v1805
      %1808 = vrot.lane.b32.xlu0 %v1806, 64
      %v1809 = vpop.permute.xlu0 %1808
      %v1811 = vmul.f32 %v1785, %v1809
      %v1812 = vmul.f32 %v1778, 0.5
      %v1813 = vtanh.pop %v1812
      %v1814 = vadd.f32 %v1813, 1.0
      %v1815 = vmul.f32 %v1814, 0.5
      %v1816 = vtanh.pop %v1778
      %v1817 = vmul.f32 %v1815, %v1716
      %1819 = vrot.lane.b32.xlu0 %v1816, 64
      %v1820 = vpop.permute.xlu0 %1819
      %v1822 = vmul.f32 %v1815, %v1820
      %1824 = vrot.lane.b32.xlu0 %v1822, 32
      %v1825 = vpop.permute.xlu0 %1824
      %v1827 = vadd.f32 %v1817, %v1825
      %v1828 = vtanh.pop %v1827
      %1830 = vrot.lane.b32.xlu0 %v1828, 64
      %v1831 = vpop.permute.xlu0 %1830
      %v1833 = vmul.f32 %v1815, %v1831
      %v1834 = vld [vmem:[%s401 + $0x6] sm:$0x1]
      %vm1835 = vcmp.gt.f32.partialorder %v1834, 0.0
      %v1836 = vld [vmem:[%s409 + $0x1] sm:$0x1]
      %vm1837 = vcmp.gt.f32.partialorder %v1836, 0.0
      %v1838 = vsel %vm1835, 1, 0
      %1839 = vset.pattern.permute.xlu0 0
      %1840 = vperm.xlu0 %1839, %v1838
      %v1841 = vpop.permute.xlu0 %1840
      %vm1842 = vcmp.eq.s32.totalorder %v1841, 1
      %v1843 = vsel %vm1842, %v1811, 0.0
      %v1844 = vpack.c.bf16 %v1843, %v1843
      %v1846 = vunpack.c.l.b16 %v1844
      %v1847 = vpack.c.b16 %v1846, %v1846
      %v1848 = vrot.slane %v1847, 5
      %1849 = vrot.lane.b32.xlu0 %v1848, 32
      %v1850 = vpop.permute.xlu0 %1849
      %v1852 = vld [vmem:[%s417] sm:$0x8]
      %v1853 = vsel %vm900, %v1850, %v1852
      %1854 = vst [vmem:[%s417] sm:$0x8] %v1853
      %v1855 = vsel %vm1837, 1, 0
      %1856 = vset.pattern.permute.xlu0 0
      %1857 = vperm.xlu0 %1856, %v1855
      %v1858 = vpop.permute.xlu0 %1857
      %vm1859 = vcmp.eq.s32.totalorder %v1858, 1
      %v1860 = vsel %vm1859, %v1833, 0.0
      %v1861 = vpack.c.bf16 %v1860, %v1860
      %v1863 = vunpack.c.l.b16 %v1861
      %v1864 = vpack.c.b16 %v1863, %v1863
      %v1866 = vshll.u32 %v1864, 16
      %1868 = vrot.lane.b32.xlu0 %v1866, 32
      %v1869 = vpop.permute.xlu0 %1868
      %v1871 = vld [vmem:[%s425] sm:$0x1]
      %v1872 = vsel %vm881, %v1869, %v1871
      %1873 = vst [vmem:[%s425] sm:$0x1] %v1872
      %v1875 = vlaneseq
      %v1876 = vshrl.u32 %v1875, 7
      %v1877 = vsub.s32 0, %v1876
      %v1878 = vrot.slane %v1715, %v1877
      %1879 = vrot.lane.b32.xlu0 %v1878, 96
      %v1880 = vpop.permute.xlu0 %1879
      %v1882 = vsel %vm1842, %v1811, %v1880
      %1884 = vrot.lane.b32.xlu0 %v1882, 32
      %v1885 = vpop.permute.xlu0 %1884
      %1887 = vst.msk [vmem:[#allocation2] sm:$0x1] %vm720, %v1885
      %1888 = vrot.lane.b32.xlu0 %v1878, 64
      %v1889 = vpop.permute.xlu0 %1888
      %v1891 = vsel %vm1859, %v1833, %v1889
      %1893 = vrot.lane.b32.xlu0 %v1891, 64
      %v1894 = vpop.permute.xlu0 %1893
      %1896 = vst.msk [vmem:[#allocation2] sm:$0x1] %vm730, %v1894
      %v1897 = vsel %vm1842, %v1805, %v1793
      %1899 = vrot.lane.b32.xlu0 %v1897, 96
      %v1900 = vpop.permute.xlu0 %1899
      %1902 = vst.msk [vmem:[#allocation3] sm:$0x1] %vm720, %v1900
      %v1903 = vsel %vm1859, %v1827, %v1716
      %1904 = vst.msk [vmem:[#allocation3] sm:$0x1] %vm730, %v1903
      %v1905 = vld [vmem:[#allocation2] sm:$0x1]
      %v1906 = vld [vmem:[#allocation3] sm:$0x1]
      %v1907 = vld [vmem:[%s385] sm:$0x8]
      %v1908 = vld [vmem:[%s393] sm:$0x1]
      %v1909 = vpack.c.bf16 %v1905, %v1905
      %v1911 = vunpack.c.l.b16 %v1908
      %v1912 = vpack.c.b16 %v1911, %v1911
      %v1914 = vshll.u32 %v1912, 16
      %v1916 = vrot.slane %v1914, 5
      %1917 = vrot.lane.b32.xlu0 %v1916, 32
      %v1918 = vpop.permute.xlu0 %1917
      %v1920 = vshll.u32 %v1909, 16
      %v1922 = vrot.slane %v1920, 5
      %1923 = vrot.lane.b32.xlu0 %v1922, 64
      %v1924 = vpop.permute.xlu0 %1923
      %v1927 = vsel %vm469, %v1907, %v1918
      %v1929 = vsel %vm473, %v1927, %v1924
      %v1930 = vshrl.u32 %v1929, 16
      %v1932 = vrot.slane %v1930, 3
      %1934 = vmatprep.subr.bf16.mxu0 %v526
      %1935 = vmatpush1.bf16.msra.mxu0 %v525
      %1936 = vmatprep.subr.bf16.mxu0 %v528
      %1937 = vmatpush1.bf16.msra.mxu0 %v527
      %1938 = vmatprep.subr.bf16.mxu0 %v530
      %1939 = vmatpush1.bf16.msra.mxu0 %v529
      %1940 = vmatprep.subr.bf16.mxu0 %v532
      %1941 = vmatpush1.bf16.msra.mxu0 %v531
      %1942 = vmatprep.subr.bf16.mxu0 %v534
      %1943 = vmatpush1.bf16.msra.mxu0 %v533
      %1944 = vmatprep.subr.bf16.mxu0 %v536
      %1945 = vmatpush1.bf16.msra.mxu0 %v535
      %1946 = vmatprep.subr.bf16.mxu0 %v538
      %1947 = vmatpush1.bf16.msra.mxu0 %v537
      %1948 = vmatprep.subr.bf16.mxu0 %v540
      %1949 = vmatpush1.bf16.msra.mxu0 %v539
      %1950 = vmatprep.subr.bf16.mxu0 0
      %1951 = vmatpush1.bf16.msra.mxu0 0
      %1952 = vmatprep.subr.bf16.mxu0 0
      %1953 = vmatpush1.bf16.msra.mxu0 0
      %1954 = vmatprep.subr.bf16.mxu0 0
      %1955 = vmatpush1.bf16.msra.mxu0 0
      %1956 = vmatprep.subr.bf16.mxu0 0
      %1957 = vmatpush1.bf16.msra.mxu0 0
      %1958 = vmatprep.subr.bf16.mxu0 0
      %1959 = vmatpush1.bf16.msra.mxu0 0
      %1960 = vmatprep.subr.bf16.mxu0 0
      %1961 = vmatpush1.bf16.msra.mxu0 0
      %1962 = vmatprep.subr.bf16.mxu0 0
      %1963 = vmatpush1.bf16.msra.mxu0 0
      %1964 = vmatprep.subr.bf16.mxu0 0
      %1965 = vmatpush1.bf16.msra.mxu0 0
      %1966 = vmatprep.mubr.bf16.mxu0 0
      %1967 = vmatmul.mubr.bf16.gmra.mrb[0].mxu0 %v1932
      %v1968 = vpop.f32.mrb[0].mxu0
      %v1969 = vadd.f32 %v561, %v1968
      %v1970 = vpop.f32.mrb[0].mxu0
      %v1971 = vadd.f32 %v565, %v1970
      %v1972 = vpop.f32.mrb[0].mxu0
      %v1973 = vpop.f32.mrb[0].mxu0
      %1974 = vdwg.mxu0
      %v1975 = vmul.f32 %v1969, 0.5
      %v1976 = vtanh.pop %v1975
      %v1977 = vadd.f32 %v1976, 1.0
      %v1978 = vmul.f32 %v1977, 0.5
      %v1979 = vtanh.pop %v1969
      %v1981 = vlaneseq
      %v1982 = vshrl.u32 %v1981, 7
      %v1983 = vsub.s32 0, %v1982
      %v1984 = vrot.slane %v1906, %v1983
      %1985 = vrot.lane.b32.xlu0 %v1984, 32
      %v1986 = vpop.permute.xlu0 %1985
      %v1988 = vmul.f32 %v1978, %v1986
      %1990 = vrot.lane.b32.xlu0 %v1979, 64
      %v1991 = vpop.permute.xlu0 %1990
      %v1993 = vmul.f32 %v1978, %v1991
      %1995 = vrot.lane.b32.xlu0 %v1993, 32
      %v1996 = vpop.permute.xlu0 %1995
      %v1998 = vadd.f32 %v1988, %v1996
      %v1999 = vtanh.pop %v1998
      %2001 = vrot.lane.b32.xlu0 %v1999, 64
      %v2002 = vpop.permute.xlu0 %2001
      %v2004 = vmul.f32 %v1978, %v2002
      %v2005 = vmul.f32 %v1971, 0.5
      %v2006 = vtanh.pop %v2005
      %v2007 = vadd.f32 %v2006, 1.0
      %v2008 = vmul.f32 %v2007, 0.5
      %v2009 = vtanh.pop %v1971
      %v2010 = vmul.f32 %v2008, %v1906
      %2012 = vrot.lane.b32.xlu0 %v2009, 64
      %v2013 = vpop.permute.xlu0 %2012
      %v2015 = vmul.f32 %v2008, %v2013
      %2017 = vrot.lane.b32.xlu0 %v2015, 32
      %v2018 = vpop.permute.xlu0 %2017
      %v2020 = vadd.f32 %v2010, %v2018
      %v2021 = vtanh.pop %v2020
      %2023 = vrot.lane.b32.xlu0 %v2021, 64
      %v2024 = vpop.permute.xlu0 %2023
      %v2026 = vmul.f32 %v2008, %v2024
      %v2027 = vld [vmem:[%s401 + $0x7] sm:$0x1]
      %vm2028 = vcmp.gt.f32.partialorder %v2027, 0.0
      %v2029 = vld [vmem:[%s409] sm:$0x1]
      %vm2030 = vcmp.gt.f32.partialorder %v2029, 0.0
      %v2031 = vsel %vm2028, 1, 0
      %2032 = vset.pattern.permute.xlu0 0
      %2033 = vperm.xlu0 %2032, %v2031
      %v2034 = vpop.permute.xlu0 %2033
      %vm2035 = vcmp.eq.s32.totalorder %v2034, 1
      %v2036 = vsel %vm2035, %v2004, 0.0
      %v2037 = vpack.c.bf16 %v2036, %v2036
      %v2039 = vunpack.c.l.b16 %v2037
      %v2040 = vpack.c.b16 %v2039, %v2039
      %v2042 = vshll.u32 %v2040, 16
      %v2044 = vrot.slane %v2042, 5
      %2045 = vrot.lane.b32.xlu0 %v2044, 32
      %v2046 = vpop.permute.xlu0 %2045
      %v2048 = vld [vmem:[%s417] sm:$0x8]
      %v2049 = vsel %vm703, %v2046, %v2048
      %2050 = vst [vmem:[%s417] sm:$0x8] %v2049
      %v2051 = vsel %vm2030, 1, 0
      %2052 = vset.pattern.permute.xlu0 0
      %2053 = vperm.xlu0 %2052, %v2051
      %v2054 = vpop.permute.xlu0 %2053
      %vm2055 = vcmp.eq.s32.totalorder %v2054, 1
      %v2056 = vsel %vm2055, %v2026, 0.0
      %v2057 = vpack.c.bf16 %v2056, %v2056
      %v2059 = vunpack.c.l.b16 %v2057
      %v2060 = vpack.c.b16 %v2059, %v2059
      %2061 = vrot.lane.b32.xlu0 %v2060, 32
      %v2062 = vpop.permute.xlu0 %2061
      %v2064 = vld [vmem:[%s425] sm:$0x1]
      %v2065 = vsel %vm680, %v2062, %v2064
      %2066 = vst [vmem:[%s425] sm:$0x1] %v2065
      %v2068 = vlaneseq
      %v2069 = vshrl.u32 %v2068, 7
      %v2070 = vsub.s32 0, %v2069
      %v2071 = vrot.slane %v1905, %v2070
      %2072 = vrot.lane.b32.xlu0 %v2071, 96
      %v2073 = vpop.permute.xlu0 %2072
      %v2075 = vsel %vm2035, %v2004, %v2073
      %2077 = vrot.lane.b32.xlu0 %v2075, 32
      %v2078 = vpop.permute.xlu0 %2077
      %2080 = vst.msk [vmem:[#allocation2] sm:$0x1] %vm720, %v2078
      %2081 = vrot.lane.b32.xlu0 %v2071, 64
      %v2082 = vpop.permute.xlu0 %2081
      %v2084 = vsel %vm2055, %v2026, %v2082
      %2086 = vrot.lane.b32.xlu0 %v2084, 64
      %v2087 = vpop.permute.xlu0 %2086
      %2089 = vst.msk [vmem:[#allocation2] sm:$0x1] %vm730, %v2087
      %v2090 = vsel %vm2035, %v1998, %v1986
      %2092 = vrot.lane.b32.xlu0 %v2090, 96
      %v2093 = vpop.permute.xlu0 %2092
      %2095 = vst.msk [vmem:[#allocation3] sm:$0x1] %vm720, %v2093
      %v2096 = vsel %vm2055, %v2020, %v1906
      %2097 = vst.msk [vmem:[#allocation3] sm:$0x1] %vm730, %v2096
      %p2098 = scmp.lt.s32.totalorder %s23, 1
      %s2099 = scalar_select %p2098, %s23, 1
      %p2100 = scmp.lt.s32.totalorder %s24, 0
      %s2101 = scalar_select %p2100, %s24, 0
      %s2102 = sadd.s32 %s2101, %s2099
      %s2103 = smul.addr %s2102, 4
      %s2104 = scalar_lea.vmem %s6, %s2103
      %s2105 = ssub.s32 0, %s24
      %p2106 = scmp.lt.s32.totalorder %s23, 1
      %s2107 = scalar_select %p2106, %s23, 1
      %p2108 = scmp.lt.s32.totalorder %s2105, 0
      %s2109 = scalar_select %p2108, %s2105, 0
      %s2110 = sadd.s32 %s2109, %s2107
      %s2111 = smul.addr %s2110, 4
      %s2112 = scalar_lea.vmem %s7, %s2111
      // Predicated region
      $region49: #{drlstm_forward.10} parent=43 // pred_check
        %p2113 = pneg %p209
      $region50: #{drlstm_forward.10} parent=43 // pred_check_branch
        %2115 = sbr.rel (%p2113) target = $region52
      $region51: #{drlstm_forward.10} parent=43 // pred_region
        _
      $region52: #{drlstm_forward.10} parent=43 // pred_fallthru
        _
      // Predicated region
      $region53: #{drlstm_forward.10} parent=43 // pred_check
        %p2116 = pneg %p239
      $region54: #{drlstm_forward.10} parent=43 // pred_check_branch
        %2118 = sbr.rel (%p2116) target = $region56
      $region55: #{drlstm_forward.10} parent=43 // pred_region
        %s2119 = ssub.s32 0, %s24
      $region56: #{drlstm_forward.10} parent=43 // pred_fallthru
        _
    $region44: #{drlstm_forward.10} parent=5 // pred_fallthru
      _
    %p2120 = scmp.le.s32.totalorder 2, %s14
    // Predicated region
    $region57: #{drlstm_forward.10} parent=5 // pred_check
      %p2121 = pneg %p2120
    $region58: #{drlstm_forward.10} parent=5 // pred_check_branch
      %2123 = sbr.rel (%p2121) target = $region60
    $region59: #{drlstm_forward.10} parent=5 // pred_region
      %s2124 = ssub.s32 %s14, 2
      // Predicated region
      $region61: #{drlstm_forward.10} parent=59 // pred_check
        %p2125 = pneg %p215
      $region62: #{drlstm_forward.10} parent=59 // pred_check_branch
        %2127 = sbr.rel (%p2125) target = $region64
      $region63: #{drlstm_forward.10} parent=59 // pred_region
        %p2128 = scmp.lt.s32.totalorder %s25, 1
        %s2129 = scalar_select %p2128, %s25, 1
        %p2130 = scmp.lt.s32.totalorder %s26, 0
        %s2131 = scalar_select %p2130, %s26, 0
        %s2132 = sadd.s32 %s2131, %s2129
        %s2133 = smul.addr %s2132, 4
        %s2134 = scalar_lea.vmem %s6, %s2133
      $region64: #{drlstm_forward.10} parent=59 // pred_fallthru
        _
      // Predicated region
      $region65: #{drlstm_forward.10} parent=59 // pred_check
        %p2135 = pneg %p245
      $region66: #{drlstm_forward.10} parent=59 // pred_check_branch
        %2137 = sbr.rel (%p2135) target = $region68
      $region67: #{drlstm_forward.10} parent=59 // pred_region
        %s2138 = ssub.s32 0, %s26
        %p2139 = scmp.lt.s32.totalorder %s25, 1
        %s2140 = scalar_select %p2139, %s25, 1
        %p2141 = scmp.lt.s32.totalorder %s2138, 0
        %s2142 = scalar_select %p2141, %s2138, 0
        %s2143 = sadd.s32 %s2142, %s2140
        %s2144 = smul.addr %s2143, 4
        %s2145 = scalar_lea.vmem %s7, %s2144
      $region68: #{drlstm_forward.10} parent=59 // pred_fallthru
        _
    $region60: #{drlstm_forward.10} parent=5 // pred_fallthru
      _
  $region6: #{drlstm_forward.10} parent=0 // loop_footer
    %s18 = sadd.s32 1, %s14
  $region7: #{drlstm_forward.10} parent=0 // loop_footer_branch
    %13 = sbr.rel target = $region3
  $region8: #{drlstm_forward.10} parent=0 // loop_exit
    _

</llo_original>
